<compile_context>
chip_gen: v5e
topology: v5e:2x2
jax: 0.10.0
libtpu: 0.0.40
codegen_flags: <defaults>
</compile_context>

<pallas_src>
import functools

import jax
import jax.numpy as jnp
from jax.experimental import pallas as pl
from jax.experimental.pallas import tpu as pltpu


_BN_EPS = 1e-5
_C = 128                                     # lane-dense channel padding
_CONV_CH = [(22, 32), (32, 64), (64, 11),    # self.layer1
            (22, 32), (32, 64), (64, 128)]   # self.layer
_N_CONV = len(_CONV_CH)
_ROW_GAMMA = 0             # table rows 0..5   : BN gamma (zero-padded to 128)
_ROW_BETA = _N_CONV        # table rows 6..11  : BN beta
_ROW_FCW = 2 * _N_CONV     # table row 12      : Linear(128, 1) weight
_ROW_FCB = _ROW_FCW + 1    # table row 13, col0: Linear bias
_TBL_ROWS = 16             # padded to a sublane multiple


# ---------------------------------------------------------------------------
# Fused whole-network kernel
# ---------------------------------------------------------------------------
def _net_kernel(x_ref, wts_ref, tbl_ref, rep_ref,
                out_ref, out1_ref, out2_ref, pad_ref, *, N, H, W):
    f32 = jnp.float32
    M = N * H * W

    # Zero the padded-activation scratch once.  Each conv rewrites only the
    # spatial interior (all 128 lanes), so the 1-pixel zero border persists for
    # all six convs.  NOTE: this full zeroing must stay -- stale VMEM NaN/Inf
    # in the border would otherwise propagate (0 * NaN = NaN).
    pad_ref[...] = jnp.zeros(pad_ref.shape, pad_ref.dtype)

    def conv3x3_bn(h_flat, conv_idx):
        # Full-lane (unmasked) interior store of the current activation.
        pad_ref[:, 1:H + 1, 1:W + 1, :] = h_flat.reshape(N, H, W, _C)
        # 3x3 "same" conv (bias=False) as 9 accumulated K=128 tap matmuls.
        # No im2col patch / concatenate is ever materialized.
        acc = None
        t = 0
        for dh in range(3):
            for dw in range(3):
                tap = pad_ref[:, dh:dh + H, dw:dw + W, :].reshape(M, _C)
                part = jnp.dot(tap, wts_ref[conv_idx * 9 + t],
                               preferred_element_type=f32)
                acc = part if acc is None else acc + part
                t += 1
        # BatchNorm2d, train-mode batch statistics over (N, H, W); centered
        # variance avoids E[x^2]-E[x]^2 cancellation.
        mean = jnp.mean(acc, axis=0, keepdims=True)
        xc = acc - mean
        var = jnp.mean(xc * xc, axis=0, keepdims=True)
        gamma = tbl_ref[pl.ds(_ROW_GAMMA + conv_idx, 1), :]    # (1, 128)
        beta = tbl_ref[pl.ds(_ROW_BETA + conv_idx, 1), :]      # (1, 128)
        return xc * jax.lax.rsqrt(var + _BN_EPS) * gamma + beta

    x_flat = x_ref[...].reshape(M, _C)             # f32; lanes >= 22 are zero

    # ---- self.layer1: (conv/BN/ReLU) x2, conv/BN, Softmax(dim=2 == H) -------
    h = jnp.maximum(conv3x3_bn(x_flat, 0), 0.0)
    h = jnp.maximum(conv3x3_bn(h, 1), 0.0)
    h = conv3x3_bn(h, 2)                           # (M, 128); real channels :11
    y3 = h.reshape(N, H, W, _C)
    mx = jnp.max(y3, axis=1, keepdims=True)
    e = jnp.exp(y3 - mx)
    y3 = e / jnp.sum(e, axis=1, keepdims=True)     # softmax over H
    out1_ref[...] = y3[..., :11]
    out1_flat = y3.reshape(M, _C)

    # ---- out2 = repeat_interleave(out1, 2, channel) * x ----------------------
    # Exact f32 selection matmul; rep rows >= 11 and cols >= 22 are zero, so
    # the uniform-softmax values in padded out1 lanes never contribute.
    out1_rpt = jnp.dot(out1_flat, rep_ref[...], preferred_element_type=f32)
    out2_flat = out1_rpt * x_flat                  # padded lanes stay exactly 0
    out2_ref[...] = out2_flat.reshape(N, H, W, _C)[..., :22]

    # ---- self.layer: 3x (conv/BN/ReLU) + AdaptiveAvgPool2d((1,1)) ------------
    h = jnp.maximum(conv3x3_bn(out2_flat, 3), 0.0)
    h = jnp.maximum(conv3x3_bn(h, 4), 0.0)
    h = jnp.maximum(conv3x3_bn(h, 5), 0.0)         # (M, 128)
    pooled = jnp.mean(h.reshape(N, H * W, _C), axis=1)         # (N, 128)

    # ---- self.out_layer: Linear(128, 1) + Sigmoid ----------------------------
    fcw = tbl_ref[pl.ds(_ROW_FCW, 1), :]                       # (1, 128)
    fcb = tbl_ref[pl.ds(_ROW_FCB, 1), :][:, :1]                # (1, 1)
    logit = jnp.sum(pooled * fcw, axis=1, keepdims=True) + fcb
    out_ref[...] = 1.0 / (1.0 + jnp.exp(-logit))               # Sigmoid


def _net_pallas(x_pad, wts, tbl, rep):
    N, H, W, _ = x_pad.shape
    kernel = functools.partial(_net_kernel, N=N, H=H, W=W)
    # TODO(synk): if batch N grows, add a batch grid axis with
    # dimension_semantics=("parallel",) to engage v7x's second TensorCore --
    # needs a cross-core reduction of the BN batch statistics to stay exact.
    return pl.pallas_call(
        kernel,
        out_shape=(
            jax.ShapeDtypeStruct((N, 1), jnp.float32),          # out
            jax.ShapeDtypeStruct((N, H, W, 11), jnp.float32),   # out1 (NHWC)
            jax.ShapeDtypeStruct((N, H, W, 22), jnp.float32),   # out2 (NHWC)
        ),
        scratch_shapes=[
            pltpu.VMEM((N, H + 2, W + 2, _C), jnp.float32),     # zero-bordered acts
        ],
    )(x_pad, wts, tbl, rep)


def net_forward(x_nchw, params):
    N, C, H, W = x_nchw.shape
    x_nhwc = jnp.transpose(x_nchw, (0, 2, 3, 1)).astype(jnp.float32)  # NCHW->NHWC
    x_pad = jnp.pad(x_nhwc, ((0, 0), (0, 0), (0, 0), (0, _C - C)))    # lanes -> 128
    out, out1, out2 = _net_pallas(x_pad, params["wts"], params["tbl"], params["rep"])
    return out, jnp.transpose(out1, (0, 3, 1, 2)), jnp.transpose(out2, (0, 3, 1, 2))


# ---------------------------------------------------------------------------
# Parameters (deterministic, synthetic), packed for few/lane-dense DMAs
# ---------------------------------------------------------------------------
def init_params(key):
    keys = jax.random.split(key, 2 * _N_CONV + 2)
    wts = jnp.zeros((_N_CONV * 9, _C, _C), jnp.float32)   # 54 taps, Cin/Cout padded
    tbl = jnp.zeros((_TBL_ROWS, _C), jnp.float32)         # packed gamma/beta/fc
    ki = 0
    for c, (cin, cout) in enumerate(_CONV_CH):
        fan_in = 9 * cin
        w = (2.0 / fan_in) ** 0.5 * jax.random.normal(
            keys[ki], (3, 3, cin, cout), jnp.float32)
        ki += 1
        wts = wts.at[c * 9:(c + 1) * 9, :cin, :cout].set(w.reshape(9, cin, cout))
        kg, kb = jax.random.split(keys[ki])
        ki += 1
        tbl = tbl.at[_ROW_GAMMA + c, :cout].set(
            1.0 + 0.1 * jax.random.normal(kg, (cout,), jnp.float32))
        tbl = tbl.at[_ROW_BETA + c, :cout].set(
            0.1 * jax.random.normal(kb, (cout,), jnp.float32))
    bound = 1.0 / (128.0 ** 0.5)                          # nn.Linear(128, 1) init
    tbl = tbl.at[_ROW_FCW, :].set(
        jax.random.uniform(keys[ki], (_C,), jnp.float32, -bound, bound))
    ki += 1
    tbl = tbl.at[_ROW_FCB, 0].set(
        jax.random.uniform(keys[ki], (), jnp.float32, -bound, bound))
    # Exact 0/1 selection matrix implementing repeat_interleave(., 2, channel),
    # padded to (128, 128) so the matmul output is lane-dense.
    rep = jnp.zeros((_C, _C), jnp.float32)
    rep = rep.at[jnp.arange(22) // 2, jnp.arange(22)].set(1.0)
    return {"wts": wts, "tbl": tbl, "rep": rep}


if __name__ == "__main__":
    key = jax.random.PRNGKey(0)
    kx, kp = jax.random.split(key)
    N, C, H, W = 2, 22, 8, 8
    x = jax.random.normal(kx, (N, C, H, W), jnp.float32)
    params = init_params(kp)

    fwd = jax.jit(net_forward)
    out, out1, out2 = fwd(x, params)
    jax.block_until_ready((out, out1, out2))

    assert out.shape == (N, 1)
    assert out1.shape == (N, 11, H, W)
    assert out2.shape == (N, 22, H, W)
    assert bool(jnp.all(jnp.isfinite(out)))
    assert bool(jnp.all(jnp.isfinite(out1)))
    assert bool(jnp.all(jnp.isfinite(out2)))
    # Softmax(dim=2) sanity: sums over H must be 1
    assert bool(jnp.allclose(jnp.sum(out1, axis=2), 1.0, atol=1e-4))
    print("KERNEL_OK")
</pallas_src>

<mosaic_0001>
module attributes {stable_mosaic.version = 11 : i64} {
  func.func @_net_kernel(%arg0: memref<2x8x8x128xf32, #tpu.memory_space<vmem>>, %arg1: memref<54x128x128xf32, #tpu.memory_space<vmem>>, %arg2: memref<16x128xf32, #tpu.memory_space<vmem>>, %arg3: memref<128x128xf32, #tpu.memory_space<vmem>>, %arg4: memref<2x1xf32, #tpu.memory_space<vmem>>, %arg5: memref<2x8x8x11xf32, #tpu.memory_space<vmem>>, %arg6: memref<2x8x8x22xf32, #tpu.memory_space<vmem>>, %arg7: memref<2x10x10x128xf32, #tpu.memory_space<vmem>>) attributes {dimension_semantics = [], scalar_prefetch = 0 : i64, scratch_operands = 1 : i64, tpu.core_type = #tpu.core_type<tc>} {
    %cst = arith.constant 0.000000e+00 : f32
    %0 = vector.broadcast %cst : f32 to vector<2x10x10x128xf32>
    %c0 = arith.constant 0 : index
    %c0_0 = arith.constant 0 : index
    %c0_1 = arith.constant 0 : index
    %c0_2 = arith.constant 0 : index
    %1 = vector.load %arg7[%c0, %c0_0, %c0_1, %c0_2] : memref<2x10x10x128xf32, #tpu.memory_space<vmem>>, vector<2x10x10x128xf32>
    tpu.vector_store %arg7[%c0, %c0_0, %c0_1, %c0_2], %0 {strides = array<i32>} : memref<2x10x10x128xf32, #tpu.memory_space<vmem>>, vector<2x10x10x128xf32>,
    %c0_3 = arith.constant 0 : index
    %c0_4 = arith.constant 0 : index
    %c0_5 = arith.constant 0 : index
    %c0_6 = arith.constant 0 : index
    %2 = vector.load %arg0[%c0_3, %c0_4, %c0_5, %c0_6] : memref<2x8x8x128xf32, #tpu.memory_space<vmem>>, vector<2x8x8x128xf32>
    %3 = vector.shape_cast %2 : vector<2x8x8x128xf32> to vector<128x128xf32>
    %4 = vector.shape_cast %3 : vector<128x128xf32> to vector<2x8x8x128xf32>
    %c0_7 = arith.constant 0 : index
    %c1 = arith.constant 1 : index
    %c1_8 = arith.constant 1 : index
    %c0_9 = arith.constant 0 : index
    %5 = vector.load %arg7[%c0_7, %c1, %c1_8, %c0_9] : memref<2x10x10x128xf32, #tpu.memory_space<vmem>>, vector<2x8x8x128xf32>
    tpu.vector_store %arg7[%c0_7, %c1, %c1_8, %c0_9], %4 {strides = array<i32>} : memref<2x10x10x128xf32, #tpu.memory_space<vmem>>, vector<2x8x8x128xf32>,
    %c0_10 = arith.constant 0 : index
    %c0_11 = arith.constant 0 : index
    %c0_12 = arith.constant 0 : index
    %c0_13 = arith.constant 0 : index
    %6 = vector.load %arg7[%c0_10, %c0_11, %c0_12, %c0_13] : memref<2x10x10x128xf32, #tpu.memory_space<vmem>>, vector<2x8x8x128xf32>
    %7 = vector.shape_cast %6 : vector<2x8x8x128xf32> to vector<128x128xf32>
    %c0_14 = arith.constant 0 : index
    %c0_15 = arith.constant 0 : index
    %c0_16 = arith.constant 0 : index
    %8 = vector.load %arg1[%c0_14, %c0_15, %c0_16] : memref<54x128x128xf32, #tpu.memory_space<vmem>>, vector<1x128x128xf32>
    %9 = vector.shape_cast %8 : vector<1x128x128xf32> to vector<128x128xf32>
    %cst_17 = arith.constant dense<0.000000e+00> : vector<128x128xf32>
    %10 = tpu.matmul %7, %9, %cst_17 {dimension_numbers = #tpu.dot_dimension_numbers<[1], [0], [0], [1], [0, 0, 1, 1], [], []>} : vector<128x128xf32>, vector<128x128xf32>, vector<128x128xf32> -> vector<128x128xf32>
    %c0_18 = arith.constant 0 : index
    %c0_19 = arith.constant 0 : index
    %c1_20 = arith.constant 1 : index
    %c0_21 = arith.constant 0 : index
    %11 = vector.load %arg7[%c0_18, %c0_19, %c1_20, %c0_21] : memref<2x10x10x128xf32, #tpu.memory_space<vmem>>, vector<2x8x8x128xf32>
    %12 = vector.shape_cast %11 : vector<2x8x8x128xf32> to vector<128x128xf32>
    %c1_22 = arith.constant 1 : index
    %c0_23 = arith.constant 0 : index
    %c0_24 = arith.constant 0 : index
    %13 = vector.load %arg1[%c1_22, %c0_23, %c0_24] : memref<54x128x128xf32, #tpu.memory_space<vmem>>, vector<1x128x128xf32>
    %14 = vector.shape_cast %13 : vector<1x128x128xf32> to vector<128x128xf32>
    %cst_25 = arith.constant dense<0.000000e+00> : vector<128x128xf32>
    %15 = tpu.matmul %12, %14, %cst_25 {dimension_numbers = #tpu.dot_dimension_numbers<[1], [0], [0], [1], [0, 0, 1, 1], [], []>} : vector<128x128xf32>, vector<128x128xf32>, vector<128x128xf32> -> vector<128x128xf32>
    %16 = arith.addf %10, %15 : vector<128x128xf32>
    %c0_26 = arith.constant 0 : index
    %c0_27 = arith.constant 0 : index
    %c2 = arith.constant 2 : index
    %c0_28 = arith.constant 0 : index
    %17 = vector.load %arg7[%c0_26, %c0_27, %c2, %c0_28] : memref<2x10x10x128xf32, #tpu.memory_space<vmem>>, vector<2x8x8x128xf32>
    %18 = vector.shape_cast %17 : vector<2x8x8x128xf32> to vector<128x128xf32>
    %c2_29 = arith.constant 2 : index
    %c0_30 = arith.constant 0 : index
    %c0_31 = arith.constant 0 : index
    %19 = vector.load %arg1[%c2_29, %c0_30, %c0_31] : memref<54x128x128xf32, #tpu.memory_space<vmem>>, vector<1x128x128xf32>
    %20 = vector.shape_cast %19 : vector<1x128x128xf32> to vector<128x128xf32>
    %cst_32 = arith.constant dense<0.000000e+00> : vector<128x128xf32>
    %21 = tpu.matmul %18, %20, %cst_32 {dimension_numbers = #tpu.dot_dimension_numbers<[1], [0], [0], [1], [0, 0, 1, 1], [], []>} : vector<128x128xf32>, vector<128x128xf32>, vector<128x128xf32> -> vector<128x128xf32>
    %22 = arith.addf %16, %21 : vector<128x128xf32>
    %c0_33 = arith.constant 0 : index
    %c1_34 = arith.constant 1 : index
    %c0_35 = arith.constant 0 : index
    %c0_36 = arith.constant 0 : index
    %23 = vector.load %arg7[%c0_33, %c1_34, %c0_35, %c0_36] : memref<2x10x10x128xf32, #tpu.memory_space<vmem>>, vector<2x8x8x128xf32>
    %24 = vector.shape_cast %23 : vector<2x8x8x128xf32> to vector<128x128xf32>
    %c3 = arith.constant 3 : index
    %c0_37 = arith.constant 0 : index
    %c0_38 = arith.constant 0 : index
    %25 = vector.load %arg1[%c3, %c0_37, %c0_38] : memref<54x128x128xf32, #tpu.memory_space<vmem>>, vector<1x128x128xf32>
    %26 = vector.shape_cast %25 : vector<1x128x128xf32> to vector<128x128xf32>
    %cst_39 = arith.constant dense<0.000000e+00> : vector<128x128xf32>
    %27 = tpu.matmul %24, %26, %cst_39 {dimension_numbers = #tpu.dot_dimension_numbers<[1], [0], [0], [1], [0, 0, 1, 1], [], []>} : vector<128x128xf32>, vector<128x128xf32>, vector<128x128xf32> -> vector<128x128xf32>
    %28 = arith.addf %22, %27 : vector<128x128xf32>
    %c0_40 = arith.constant 0 : index
    %c1_41 = arith.constant 1 : index
    %c1_42 = arith.constant 1 : index
    %c0_43 = arith.constant 0 : index
    %29 = vector.load %arg7[%c0_40, %c1_41, %c1_42, %c0_43] : memref<2x10x10x128xf32, #tpu.memory_space<vmem>>, vector<2x8x8x128xf32>
    %30 = vector.shape_cast %29 : vector<2x8x8x128xf32> to vector<128x128xf32>
    %c4 = arith.constant 4 : index
    %c0_44 = arith.constant 0 : index
    %c0_45 = arith.constant 0 : index
    %31 = vector.load %arg1[%c4, %c0_44, %c0_45] : memref<54x128x128xf32, #tpu.memory_space<vmem>>, vector<1x128x128xf32>
    %32 = vector.shape_cast %31 : vector<1x128x128xf32> to vector<128x128xf32>
    %cst_46 = arith.constant dense<0.000000e+00> : vector<128x128xf32>
    %33 = tpu.matmul %30, %32, %cst_46 {dimension_numbers = #tpu.dot_dimension_numbers<[1], [0], [0], [1], [0, 0, 1, 1], [], []>} : vector<128x128xf32>, vector<128x128xf32>, vector<128x128xf32> -> vector<128x128xf32>
    %34 = arith.addf %28, %33 : vector<128x128xf32>
    %c0_47 = arith.constant 0 : index
    %c1_48 = arith.constant 1 : index
    %c2_49 = arith.constant 2 : index
    %c0_50 = arith.constant 0 : index
    %35 = vector.load %arg7[%c0_47, %c1_48, %c2_49, %c0_50] : memref<2x10x10x128xf32, #tpu.memory_space<vmem>>, vector<2x8x8x128xf32>
    %36 = vector.shape_cast %35 : vector<2x8x8x128xf32> to vector<128x128xf32>
    %c5 = arith.constant 5 : index
    %c0_51 = arith.constant 0 : index
    %c0_52 = arith.constant 0 : index
    %37 = vector.load %arg1[%c5, %c0_51, %c0_52] : memref<54x128x128xf32, #tpu.memory_space<vmem>>, vector<1x128x128xf32>
    %38 = vector.shape_cast %37 : vector<1x128x128xf32> to vector<128x128xf32>
    %cst_53 = arith.constant dense<0.000000e+00> : vector<128x128xf32>
    %39 = tpu.matmul %36, %38, %cst_53 {dimension_numbers = #tpu.dot_dimension_numbers<[1], [0], [0], [1], [0, 0, 1, 1], [], []>} : vector<128x128xf32>, vector<128x128xf32>, vector<128x128xf32> -> vector<128x128xf32>
    %40 = arith.addf %34, %39 : vector<128x128xf32>
    %c0_54 = arith.constant 0 : index
    %c2_55 = arith.constant 2 : index
    %c0_56 = arith.constant 0 : index
    %c0_57 = arith.constant 0 : index
    %41 = vector.load %arg7[%c0_54, %c2_55, %c0_56, %c0_57] : memref<2x10x10x128xf32, #tpu.memory_space<vmem>>, vector<2x8x8x128xf32>
    %42 = vector.shape_cast %41 : vector<2x8x8x128xf32> to vector<128x128xf32>
    %c6 = arith.constant 6 : index
    %c0_58 = arith.constant 0 : index
    %c0_59 = arith.constant 0 : index
    %43 = vector.load %arg1[%c6, %c0_58, %c0_59] : memref<54x128x128xf32, #tpu.memory_space<vmem>>, vector<1x128x128xf32>
    %44 = vector.shape_cast %43 : vector<1x128x128xf32> to vector<128x128xf32>
    %cst_60 = arith.constant dense<0.000000e+00> : vector<128x128xf32>
    %45 = tpu.matmul %42, %44, %cst_60 {dimension_numbers = #tpu.dot_dimension_numbers<[1], [0], [0], [1], [0, 0, 1, 1], [], []>} : vector<128x128xf32>, vector<128x128xf32>, vector<128x128xf32> -> vector<128x128xf32>
    %46 = arith.addf %40, %45 : vector<128x128xf32>
    %c0_61 = arith.constant 0 : index
    %c2_62 = arith.constant 2 : index
    %c1_63 = arith.constant 1 : index
    %c0_64 = arith.constant 0 : index
    %47 = vector.load %arg7[%c0_61, %c2_62, %c1_63, %c0_64] : memref<2x10x10x128xf32, #tpu.memory_space<vmem>>, vector<2x8x8x128xf32>
    %48 = vector.shape_cast %47 : vector<2x8x8x128xf32> to vector<128x128xf32>
    %c7 = arith.constant 7 : index
    %c0_65 = arith.constant 0 : index
    %c0_66 = arith.constant 0 : index
    %49 = vector.load %arg1[%c7, %c0_65, %c0_66] : memref<54x128x128xf32, #tpu.memory_space<vmem>>, vector<1x128x128xf32>
    %50 = vector.shape_cast %49 : vector<1x128x128xf32> to vector<128x128xf32>
    %cst_67 = arith.constant dense<0.000000e+00> : vector<128x128xf32>
    %51 = tpu.matmul %48, %50, %cst_67 {dimension_numbers = #tpu.dot_dimension_numbers<[1], [0], [0], [1], [0, 0, 1, 1], [], []>} : vector<128x128xf32>, vector<128x128xf32>, vector<128x128xf32> -> vector<128x128xf32>
    %52 = arith.addf %46, %51 : vector<128x128xf32>
    %c0_68 = arith.constant 0 : index
    %c2_69 = arith.constant 2 : index
    %c2_70 = arith.constant 2 : index
    %c0_71 = arith.constant 0 : index
    %53 = vector.load %arg7[%c0_68, %c2_69, %c2_70, %c0_71] : memref<2x10x10x128xf32, #tpu.memory_space<vmem>>, vector<2x8x8x128xf32>
    %54 = vector.shape_cast %53 : vector<2x8x8x128xf32> to vector<128x128xf32>
    %c8 = arith.constant 8 : index
    %c0_72 = arith.constant 0 : index
    %c0_73 = arith.constant 0 : index
    %55 = vector.load %arg1[%c8, %c0_72, %c0_73] : memref<54x128x128xf32, #tpu.memory_space<vmem>>, vector<1x128x128xf32>
    %56 = vector.shape_cast %55 : vector<1x128x128xf32> to vector<128x128xf32>
    %cst_74 = arith.constant dense<0.000000e+00> : vector<128x128xf32>
    %57 = tpu.matmul %54, %56, %cst_74 {dimension_numbers = #tpu.dot_dimension_numbers<[1], [0], [0], [1], [0, 0, 1, 1], [], []>} : vector<128x128xf32>, vector<128x128xf32>, vector<128x128xf32> -> vector<128x128xf32>
    %58 = arith.addf %52, %57 : vector<128x128xf32>
    %cst_75 = arith.constant dense<0.000000e+00> : vector<128xf32>
    %59 = vector.multi_reduction <add>, %58, %cst_75 [0] : vector<128x128xf32> to vector<128xf32>
    %60 = vector.shape_cast %59 : vector<128xf32> to vector<1x128xf32>
    %cst_76 = arith.constant 1.280000e+02 : f32
    %61 = vector.broadcast %cst_76 : f32 to vector<1x128xf32>
    %62 = arith.divf %60, %61 : vector<1x128xf32>
    %63 = vector.broadcast %62 : vector<1x128xf32> to vector<128x128xf32>
    %64 = arith.subf %58, %63 : vector<128x128xf32>
    %65 = arith.mulf %64, %64 : vector<128x128xf32>
    %cst_77 = arith.constant dense<0.000000e+00> : vector<128xf32>
    %66 = vector.multi_reduction <add>, %65, %cst_77 [0] : vector<128x128xf32> to vector<128xf32>
    %67 = vector.shape_cast %66 : vector<128xf32> to vector<1x128xf32>
    %cst_78 = arith.constant 1.280000e+02 : f32
    %68 = vector.broadcast %cst_78 : f32 to vector<1x128xf32>
    %69 = arith.divf %67, %68 : vector<1x128xf32>
    %c0_79 = arith.constant 0 : index
    %c0_80 = arith.constant 0 : index
    %70 = vector.load %arg2[%c0_79, %c0_80] : memref<16x128xf32, #tpu.memory_space<vmem>>, vector<1x128xf32>
    %c6_81 = arith.constant 6 : index
    %c0_82 = arith.constant 0 : index
    %71 = vector.load %arg2[%c6_81, %c0_82] : memref<16x128xf32, #tpu.memory_space<vmem>>, vector<1x128xf32>
    %cst_83 = arith.constant 9.99999974E-6 : f32
    %72 = vector.broadcast %cst_83 : f32 to vector<1x128xf32>
    %73 = arith.addf %69, %72 : vector<1x128xf32>
    %74 = math.rsqrt %73 : vector<1x128xf32>
    %75 = vector.broadcast %74 : vector<1x128xf32> to vector<128x128xf32>
    %76 = arith.mulf %64, %75 : vector<128x128xf32>
    %77 = vector.broadcast %70 : vector<1x128xf32> to vector<128x128xf32>
    %78 = arith.mulf %76, %77 : vector<128x128xf32>
    %79 = vector.broadcast %71 : vector<1x128xf32> to vector<128x128xf32>
    %80 = arith.addf %78, %79 : vector<128x128xf32>
    %cst_84 = arith.constant 0.000000e+00 : f32
    %81 = vector.broadcast %cst_84 : f32 to vector<128x128xf32>
    %82 = arith.maximumf %80, %81 : vector<128x128xf32>
    %83 = vector.shape_cast %82 : vector<128x128xf32> to vector<2x8x8x128xf32>
    %c0_85 = arith.constant 0 : index
    %c1_86 = arith.constant 1 : index
    %c1_87 = arith.constant 1 : index
    %c0_88 = arith.constant 0 : index
    %84 = vector.load %arg7[%c0_85, %c1_86, %c1_87, %c0_88] : memref<2x10x10x128xf32, #tpu.memory_space<vmem>>, vector<2x8x8x128xf32>
    tpu.vector_store %arg7[%c0_85, %c1_86, %c1_87, %c0_88], %83 {strides = array<i32>} : memref<2x10x10x128xf32, #tpu.memory_space<vmem>>, vector<2x8x8x128xf32>,
    %c0_89 = arith.constant 0 : index
    %c0_90 = arith.constant 0 : index
    %c0_91 = arith.constant 0 : index
    %c0_92 = arith.constant 0 : index
    %85 = vector.load %arg7[%c0_89, %c0_90, %c0_91, %c0_92] : memref<2x10x10x128xf32, #tpu.memory_space<vmem>>, vector<2x8x8x128xf32>
    %86 = vector.shape_cast %85 : vector<2x8x8x128xf32> to vector<128x128xf32>
    %c9 = arith.constant 9 : index
    %c0_93 = arith.constant 0 : index
    %c0_94 = arith.constant 0 : index
    %87 = vector.load %arg1[%c9, %c0_93, %c0_94] : memref<54x128x128xf32, #tpu.memory_space<vmem>>, vector<1x128x128xf32>
    %88 = vector.shape_cast %87 : vector<1x128x128xf32> to vector<128x128xf32>
    %cst_95 = arith.constant dense<0.000000e+00> : vector<128x128xf32>
    %89 = tpu.matmul %86, %88, %cst_95 {dimension_numbers = #tpu.dot_dimension_numbers<[1], [0], [0], [1], [0, 0, 1, 1], [], []>} : vector<128x128xf32>, vector<128x128xf32>, vector<128x128xf32> -> vector<128x128xf32>
    %c0_96 = arith.constant 0 : index
    %c0_97 = arith.constant 0 : index
    %c1_98 = arith.constant 1 : index
    %c0_99 = arith.constant 0 : index
    %90 = vector.load %arg7[%c0_96, %c0_97, %c1_98, %c0_99] : memref<2x10x10x128xf32, #tpu.memory_space<vmem>>, vector<2x8x8x128xf32>
    %91 = vector.shape_cast %90 : vector<2x8x8x128xf32> to vector<128x128xf32>
    %c10 = arith.constant 10 : index
    %c0_100 = arith.constant 0 : index
    %c0_101 = arith.constant 0 : index
    %92 = vector.load %arg1[%c10, %c0_100, %c0_101] : memref<54x128x128xf32, #tpu.memory_space<vmem>>, vector<1x128x128xf32>
    %93 = vector.shape_cast %92 : vector<1x128x128xf32> to vector<128x128xf32>
    %cst_102 = arith.constant dense<0.000000e+00> : vector<128x128xf32>
    %94 = tpu.matmul %91, %93, %cst_102 {dimension_numbers = #tpu.dot_dimension_numbers<[1], [0], [0], [1], [0, 0, 1, 1], [], []>} : vector<128x128xf32>, vector<128x128xf32>, vector<128x128xf32> -> vector<128x128xf32>
    %95 = arith.addf %89, %94 : vector<128x128xf32>
    %c0_103 = arith.constant 0 : index
    %c0_104 = arith.constant 0 : index
    %c2_105 = arith.constant 2 : index
    %c0_106 = arith.constant 0 : index
    %96 = vector.load %arg7[%c0_103, %c0_104, %c2_105, %c0_106] : memref<2x10x10x128xf32, #tpu.memory_space<vmem>>, vector<2x8x8x128xf32>
    %97 = vector.shape_cast %96 : vector<2x8x8x128xf32> to vector<128x128xf32>
    %c11 = arith.constant 11 : index
    %c0_107 = arith.constant 0 : index
    %c0_108 = arith.constant 0 : index
    %98 = vector.load %arg1[%c11, %c0_107, %c0_108] : memref<54x128x128xf32, #tpu.memory_space<vmem>>, vector<1x128x128xf32>
    %99 = vector.shape_cast %98 : vector<1x128x128xf32> to vector<128x128xf32>
    %cst_109 = arith.constant dense<0.000000e+00> : vector<128x128xf32>
    %100 = tpu.matmul %97, %99, %cst_109 {dimension_numbers = #tpu.dot_dimension_numbers<[1], [0], [0], [1], [0, 0, 1, 1], [], []>} : vector<128x128xf32>, vector<128x128xf32>, vector<128x128xf32> -> vector<128x128xf32>
    %101 = arith.addf %95, %100 : vector<128x128xf32>
    %c0_110 = arith.constant 0 : index
    %c1_111 = arith.constant 1 : index
    %c0_112 = arith.constant 0 : index
    %c0_113 = arith.constant 0 : index
    %102 = vector.load %arg7[%c0_110, %c1_111, %c0_112, %c0_113] : memref<2x10x10x128xf32, #tpu.memory_space<vmem>>, vector<2x8x8x128xf32>
    %103 = vector.shape_cast %102 : vector<2x8x8x128xf32> to vector<128x128xf32>
    %c12 = arith.constant 12 : index
    %c0_114 = arith.constant 0 : index
    %c0_115 = arith.constant 0 : index
    %104 = vector.load %arg1[%c12, %c0_114, %c0_115] : memref<54x128x128xf32, #tpu.memory_space<vmem>>, vector<1x128x128xf32>
    %105 = vector.shape_cast %104 : vector<1x128x128xf32> to vector<128x128xf32>
    %cst_116 = arith.constant dense<0.000000e+00> : vector<128x128xf32>
    %106 = tpu.matmul %103, %105, %cst_116 {dimension_numbers = #tpu.dot_dimension_numbers<[1], [0], [0], [1], [0, 0, 1, 1], [], []>} : vector<128x128xf32>, vector<128x128xf32>, vector<128x128xf32> -> vector<128x128xf32>
    %107 = arith.addf %101, %106 : vector<128x128xf32>
    %c0_117 = arith.constant 0 : index
    %c1_118 = arith.constant 1 : index
    %c1_119 = arith.constant 1 : index
    %c0_120 = arith.constant 0 : index
    %108 = vector.load %arg7[%c0_117, %c1_118, %c1_119, %c0_120] : memref<2x10x10x128xf32, #tpu.memory_space<vmem>>, vector<2x8x8x128xf32>
    %109 = vector.shape_cast %108 : vector<2x8x8x128xf32> to vector<128x128xf32>
    %c13 = arith.constant 13 : index
    %c0_121 = arith.constant 0 : index
    %c0_122 = arith.constant 0 : index
    %110 = vector.load %arg1[%c13, %c0_121, %c0_122] : memref<54x128x128xf32, #tpu.memory_space<vmem>>, vector<1x128x128xf32>
    %111 = vector.shape_cast %110 : vector<1x128x128xf32> to vector<128x128xf32>
    %cst_123 = arith.constant dense<0.000000e+00> : vector<128x128xf32>
    %112 = tpu.matmul %109, %111, %cst_123 {dimension_numbers = #tpu.dot_dimension_numbers<[1], [0], [0], [1], [0, 0, 1, 1], [], []>} : vector<128x128xf32>, vector<128x128xf32>, vector<128x128xf32> -> vector<128x128xf32>
    %113 = arith.addf %107, %112 : vector<128x128xf32>
    %c0_124 = arith.constant 0 : index
    %c1_125 = arith.constant 1 : index
    %c2_126 = arith.constant 2 : index
    %c0_127 = arith.constant 0 : index
    %114 = vector.load %arg7[%c0_124, %c1_125, %c2_126, %c0_127] : memref<2x10x10x128xf32, #tpu.memory_space<vmem>>, vector<2x8x8x128xf32>
    %115 = vector.shape_cast %114 : vector<2x8x8x128xf32> to vector<128x128xf32>
    %c14 = arith.constant 14 : index
    %c0_128 = arith.constant 0 : index
    %c0_129 = arith.constant 0 : index
    %116 = vector.load %arg1[%c14, %c0_128, %c0_129] : memref<54x128x128xf32, #tpu.memory_space<vmem>>, vector<1x128x128xf32>
    %117 = vector.shape_cast %116 : vector<1x128x128xf32> to vector<128x128xf32>
    %cst_130 = arith.constant dense<0.000000e+00> : vector<128x128xf32>
    %118 = tpu.matmul %115, %117, %cst_130 {dimension_numbers = #tpu.dot_dimension_numbers<[1], [0], [0], [1], [0, 0, 1, 1], [], []>} : vector<128x128xf32>, vector<128x128xf32>, vector<128x128xf32> -> vector<128x128xf32>
    %119 = arith.addf %113, %118 : vector<128x128xf32>
    %c0_131 = arith.constant 0 : index
    %c2_132 = arith.constant 2 : index
    %c0_133 = arith.constant 0 : index
    %c0_134 = arith.constant 0 : index
    %120 = vector.load %arg7[%c0_131, %c2_132, %c0_133, %c0_134] : memref<2x10x10x128xf32, #tpu.memory_space<vmem>>, vector<2x8x8x128xf32>
    %121 = vector.shape_cast %120 : vector<2x8x8x128xf32> to vector<128x128xf32>
    %c15 = arith.constant 15 : index
    %c0_135 = arith.constant 0 : index
    %c0_136 = arith.constant 0 : index
    %122 = vector.load %arg1[%c15, %c0_135, %c0_136] : memref<54x128x128xf32, #tpu.memory_space<vmem>>, vector<1x128x128xf32>
    %123 = vector.shape_cast %122 : vector<1x128x128xf32> to vector<128x128xf32>
    %cst_137 = arith.constant dense<0.000000e+00> : vector<128x128xf32>
    %124 = tpu.matmul %121, %123, %cst_137 {dimension_numbers = #tpu.dot_dimension_numbers<[1], [0], [0], [1], [0, 0, 1, 1], [], []>} : vector<128x128xf32>, vector<128x128xf32>, vector<128x128xf32> -> vector<128x128xf32>
    %125 = arith.addf %119, %124 : vector<128x128xf32>
    %c0_138 = arith.constant 0 : index
    %c2_139 = arith.constant 2 : index
    %c1_140 = arith.constant 1 : index
    %c0_141 = arith.constant 0 : index
    %126 = vector.load %arg7[%c0_138, %c2_139, %c1_140, %c0_141] : memref<2x10x10x128xf32, #tpu.memory_space<vmem>>, vector<2x8x8x128xf32>
    %127 = vector.shape_cast %126 : vector<2x8x8x128xf32> to vector<128x128xf32>
    %c16 = arith.constant 16 : index
    %c0_142 = arith.constant 0 : index
    %c0_143 = arith.constant 0 : index
    %128 = vector.load %arg1[%c16, %c0_142, %c0_143] : memref<54x128x128xf32, #tpu.memory_space<vmem>>, vector<1x128x128xf32>
    %129 = vector.shape_cast %128 : vector<1x128x128xf32> to vector<128x128xf32>
    %cst_144 = arith.constant dense<0.000000e+00> : vector<128x128xf32>
    %130 = tpu.matmul %127, %129, %cst_144 {dimension_numbers = #tpu.dot_dimension_numbers<[1], [0], [0], [1], [0, 0, 1, 1], [], []>} : vector<128x128xf32>, vector<128x128xf32>, vector<128x128xf32> -> vector<128x128xf32>
    %131 = arith.addf %125, %130 : vector<128x128xf32>
    %c0_145 = arith.constant 0 : index
    %c2_146 = arith.constant 2 : index
    %c2_147 = arith.constant 2 : index
    %c0_148 = arith.constant 0 : index
    %132 = vector.load %arg7[%c0_145, %c2_146, %c2_147, %c0_148] : memref<2x10x10x128xf32, #tpu.memory_space<vmem>>, vector<2x8x8x128xf32>
    %133 = vector.shape_cast %132 : vector<2x8x8x128xf32> to vector<128x128xf32>
    %c17 = arith.constant 17 : index
    %c0_149 = arith.constant 0 : index
    %c0_150 = arith.constant 0 : index
    %134 = vector.load %arg1[%c17, %c0_149, %c0_150] : memref<54x128x128xf32, #tpu.memory_space<vmem>>, vector<1x128x128xf32>
    %135 = vector.shape_cast %134 : vector<1x128x128xf32> to vector<128x128xf32>
    %cst_151 = arith.constant dense<0.000000e+00> : vector<128x128xf32>
    %136 = tpu.matmul %133, %135, %cst_151 {dimension_numbers = #tpu.dot_dimension_numbers<[1], [0], [0], [1], [0, 0, 1, 1], [], []>} : vector<128x128xf32>, vector<128x128xf32>, vector<128x128xf32> -> vector<128x128xf32>
    %137 = arith.addf %131, %136 : vector<128x128xf32>
    %cst_152 = arith.constant dense<0.000000e+00> : vector<128xf32>
    %138 = vector.multi_reduction <add>, %137, %cst_152 [0] : vector<128x128xf32> to vector<128xf32>
    %139 = vector.shape_cast %138 : vector<128xf32> to vector<1x128xf32>
    %cst_153 = arith.constant 1.280000e+02 : f32
    %140 = vector.broadcast %cst_153 : f32 to vector<1x128xf32>
    %141 = arith.divf %139, %140 : vector<1x128xf32>
    %142 = vector.broadcast %141 : vector<1x128xf32> to vector<128x128xf32>
    %143 = arith.subf %137, %142 : vector<128x128xf32>
    %144 = arith.mulf %143, %143 : vector<128x128xf32>
    %cst_154 = arith.constant dense<0.000000e+00> : vector<128xf32>
    %145 = vector.multi_reduction <add>, %144, %cst_154 [0] : vector<128x128xf32> to vector<128xf32>
    %146 = vector.shape_cast %145 : vector<128xf32> to vector<1x128xf32>
    %cst_155 = arith.constant 1.280000e+02 : f32
    %147 = vector.broadcast %cst_155 : f32 to vector<1x128xf32>
    %148 = arith.divf %146, %147 : vector<1x128xf32>
    %c1_156 = arith.constant 1 : index
    %c0_157 = arith.constant 0 : index
    %149 = vector.load %arg2[%c1_156, %c0_157] : memref<16x128xf32, #tpu.memory_space<vmem>>, vector<1x128xf32>
    %c7_158 = arith.constant 7 : index
    %c0_159 = arith.constant 0 : index
    %150 = vector.load %arg2[%c7_158, %c0_159] : memref<16x128xf32, #tpu.memory_space<vmem>>, vector<1x128xf32>
    %cst_160 = arith.constant 9.99999974E-6 : f32
    %151 = vector.broadcast %cst_160 : f32 to vector<1x128xf32>
    %152 = arith.addf %148, %151 : vector<1x128xf32>
    %153 = math.rsqrt %152 : vector<1x128xf32>
    %154 = vector.broadcast %153 : vector<1x128xf32> to vector<128x128xf32>
    %155 = arith.mulf %143, %154 : vector<128x128xf32>
    %156 = vector.broadcast %149 : vector<1x128xf32> to vector<128x128xf32>
    %157 = arith.mulf %155, %156 : vector<128x128xf32>
    %158 = vector.broadcast %150 : vector<1x128xf32> to vector<128x128xf32>
    %159 = arith.addf %157, %158 : vector<128x128xf32>
    %cst_161 = arith.constant 0.000000e+00 : f32
    %160 = vector.broadcast %cst_161 : f32 to vector<128x128xf32>
    %161 = arith.maximumf %159, %160 : vector<128x128xf32>
    %162 = vector.shape_cast %161 : vector<128x128xf32> to vector<2x8x8x128xf32>
    %c0_162 = arith.constant 0 : index
    %c1_163 = arith.constant 1 : index
    %c1_164 = arith.constant 1 : index
    %c0_165 = arith.constant 0 : index
    %163 = vector.load %arg7[%c0_162, %c1_163, %c1_164, %c0_165] : memref<2x10x10x128xf32, #tpu.memory_space<vmem>>, vector<2x8x8x128xf32>
    tpu.vector_store %arg7[%c0_162, %c1_163, %c1_164, %c0_165], %162 {strides = array<i32>} : memref<2x10x10x128xf32, #tpu.memory_space<vmem>>, vector<2x8x8x128xf32>,
    %c0_166 = arith.constant 0 : index
    %c0_167 = arith.constant 0 : index
    %c0_168 = arith.constant 0 : index
    %c0_169 = arith.constant 0 : index
    %164 = vector.load %arg7[%c0_166, %c0_167, %c0_168, %c0_169] : memref<2x10x10x128xf32, #tpu.memory_space<vmem>>, vector<2x8x8x128xf32>
    %165 = vector.shape_cast %164 : vector<2x8x8x128xf32> to vector<128x128xf32>
    %c18 = arith.constant 18 : index
    %c0_170 = arith.constant 0 : index
    %c0_171 = arith.constant 0 : index
    %166 = vector.load %arg1[%c18, %c0_170, %c0_171] : memref<54x128x128xf32, #tpu.memory_space<vmem>>, vector<1x128x128xf32>
    %167 = vector.shape_cast %166 : vector<1x128x128xf32> to vector<128x128xf32>
    %cst_172 = arith.constant dense<0.000000e+00> : vector<128x128xf32>
    %168 = tpu.matmul %165, %167, %cst_172 {dimension_numbers = #tpu.dot_dimension_numbers<[1], [0], [0], [1], [0, 0, 1, 1], [], []>} : vector<128x128xf32>, vector<128x128xf32>, vector<128x128xf32> -> vector<128x128xf32>
    %c0_173 = arith.constant 0 : index
    %c0_174 = arith.constant 0 : index
    %c1_175 = arith.constant 1 : index
    %c0_176 = arith.constant 0 : index
    %169 = vector.load %arg7[%c0_173, %c0_174, %c1_175, %c0_176] : memref<2x10x10x128xf32, #tpu.memory_space<vmem>>, vector<2x8x8x128xf32>
    %170 = vector.shape_cast %169 : vector<2x8x8x128xf32> to vector<128x128xf32>
    %c19 = arith.constant 19 : index
    %c0_177 = arith.constant 0 : index
    %c0_178 = arith.constant 0 : index
    %171 = vector.load %arg1[%c19, %c0_177, %c0_178] : memref<54x128x128xf32, #tpu.memory_space<vmem>>, vector<1x128x128xf32>
    %172 = vector.shape_cast %171 : vector<1x128x128xf32> to vector<128x128xf32>
    %cst_179 = arith.constant dense<0.000000e+00> : vector<128x128xf32>
    %173 = tpu.matmul %170, %172, %cst_179 {dimension_numbers = #tpu.dot_dimension_numbers<[1], [0], [0], [1], [0, 0, 1, 1], [], []>} : vector<128x128xf32>, vector<128x128xf32>, vector<128x128xf32> -> vector<128x128xf32>
    %174 = arith.addf %168, %173 : vector<128x128xf32>
    %c0_180 = arith.constant 0 : index
    %c0_181 = arith.constant 0 : index
    %c2_182 = arith.constant 2 : index
    %c0_183 = arith.constant 0 : index
    %175 = vector.load %arg7[%c0_180, %c0_181, %c2_182, %c0_183] : memref<2x10x10x128xf32, #tpu.memory_space<vmem>>, vector<2x8x8x128xf32>
    %176 = vector.shape_cast %175 : vector<2x8x8x128xf32> to vector<128x128xf32>
    %c20 = arith.constant 20 : index
    %c0_184 = arith.constant 0 : index
    %c0_185 = arith.constant 0 : index
    %177 = vector.load %arg1[%c20, %c0_184, %c0_185] : memref<54x128x128xf32, #tpu.memory_space<vmem>>, vector<1x128x128xf32>
    %178 = vector.shape_cast %177 : vector<1x128x128xf32> to vector<128x128xf32>
    %cst_186 = arith.constant dense<0.000000e+00> : vector<128x128xf32>
    %179 = tpu.matmul %176, %178, %cst_186 {dimension_numbers = #tpu.dot_dimension_numbers<[1], [0], [0], [1], [0, 0, 1, 1], [], []>} : vector<128x128xf32>, vector<128x128xf32>, vector<128x128xf32> -> vector<128x128xf32>
    %180 = arith.addf %174, %179 : vector<128x128xf32>
    %c0_187 = arith.constant 0 : index
    %c1_188 = arith.constant 1 : index
    %c0_189 = arith.constant 0 : index
    %c0_190 = arith.constant 0 : index
    %181 = vector.load %arg7[%c0_187, %c1_188, %c0_189, %c0_190] : memref<2x10x10x128xf32, #tpu.memory_space<vmem>>, vector<2x8x8x128xf32>
    %182 = vector.shape_cast %181 : vector<2x8x8x128xf32> to vector<128x128xf32>
    %c21 = arith.constant 21 : index
    %c0_191 = arith.constant 0 : index
    %c0_192 = arith.constant 0 : index
    %183 = vector.load %arg1[%c21, %c0_191, %c0_192] : memref<54x128x128xf32, #tpu.memory_space<vmem>>, vector<1x128x128xf32>
    %184 = vector.shape_cast %183 : vector<1x128x128xf32> to vector<128x128xf32>
    %cst_193 = arith.constant dense<0.000000e+00> : vector<128x128xf32>
    %185 = tpu.matmul %182, %184, %cst_193 {dimension_numbers = #tpu.dot_dimension_numbers<[1], [0], [0], [1], [0, 0, 1, 1], [], []>} : vector<128x128xf32>, vector<128x128xf32>, vector<128x128xf32> -> vector<128x128xf32>
    %186 = arith.addf %180, %185 : vector<128x128xf32>
    %c0_194 = arith.constant 0 : index
    %c1_195 = arith.constant 1 : index
    %c1_196 = arith.constant 1 : index
    %c0_197 = arith.constant 0 : index
    %187 = vector.load %arg7[%c0_194, %c1_195, %c1_196, %c0_197] : memref<2x10x10x128xf32, #tpu.memory_space<vmem>>, vector<2x8x8x128xf32>
    %188 = vector.shape_cast %187 : vector<2x8x8x128xf32> to vector<128x128xf32>
    %c22 = arith.constant 22 : index
    %c0_198 = arith.constant 0 : index
    %c0_199 = arith.constant 0 : index
    %189 = vector.load %arg1[%c22, %c0_198, %c0_199] : memref<54x128x128xf32, #tpu.memory_space<vmem>>, vector<1x128x128xf32>
    %190 = vector.shape_cast %189 : vector<1x128x128xf32> to vector<128x128xf32>
    %cst_200 = arith.constant dense<0.000000e+00> : vector<128x128xf32>
    %191 = tpu.matmul %188, %190, %cst_200 {dimension_numbers = #tpu.dot_dimension_numbers<[1], [0], [0], [1], [0, 0, 1, 1], [], []>} : vector<128x128xf32>, vector<128x128xf32>, vector<128x128xf32> -> vector<128x128xf32>
    %192 = arith.addf %186, %191 : vector<128x128xf32>
    %c0_201 = arith.constant 0 : index
    %c1_202 = arith.constant 1 : index
    %c2_203 = arith.constant 2 : index
    %c0_204 = arith.constant 0 : index
    %193 = vector.load %arg7[%c0_201, %c1_202, %c2_203, %c0_204] : memref<2x10x10x128xf32, #tpu.memory_space<vmem>>, vector<2x8x8x128xf32>
    %194 = vector.shape_cast %193 : vector<2x8x8x128xf32> to vector<128x128xf32>
    %c23 = arith.constant 23 : index
    %c0_205 = arith.constant 0 : index
    %c0_206 = arith.constant 0 : index
    %195 = vector.load %arg1[%c23, %c0_205, %c0_206] : memref<54x128x128xf32, #tpu.memory_space<vmem>>, vector<1x128x128xf32>
    %196 = vector.shape_cast %195 : vector<1x128x128xf32> to vector<128x128xf32>
    %cst_207 = arith.constant dense<0.000000e+00> : vector<128x128xf32>
    %197 = tpu.matmul %194, %196, %cst_207 {dimension_numbers = #tpu.dot_dimension_numbers<[1], [0], [0], [1], [0, 0, 1, 1], [], []>} : vector<128x128xf32>, vector<128x128xf32>, vector<128x128xf32> -> vector<128x128xf32>
    %198 = arith.addf %192, %197 : vector<128x128xf32>
    %c0_208 = arith.constant 0 : index
    %c2_209 = arith.constant 2 : index
    %c0_210 = arith.constant 0 : index
    %c0_211 = arith.constant 0 : index
    %199 = vector.load %arg7[%c0_208, %c2_209, %c0_210, %c0_211] : memref<2x10x10x128xf32, #tpu.memory_space<vmem>>, vector<2x8x8x128xf32>
    %200 = vector.shape_cast %199 : vector<2x8x8x128xf32> to vector<128x128xf32>
    %c24 = arith.constant 24 : index
    %c0_212 = arith.constant 0 : index
    %c0_213 = arith.constant 0 : index
    %201 = vector.load %arg1[%c24, %c0_212, %c0_213] : memref<54x128x128xf32, #tpu.memory_space<vmem>>, vector<1x128x128xf32>
    %202 = vector.shape_cast %201 : vector<1x128x128xf32> to vector<128x128xf32>
    %cst_214 = arith.constant dense<0.000000e+00> : vector<128x128xf32>
    %203 = tpu.matmul %200, %202, %cst_214 {dimension_numbers = #tpu.dot_dimension_numbers<[1], [0], [0], [1], [0, 0, 1, 1], [], []>} : vector<128x128xf32>, vector<128x128xf32>, vector<128x128xf32> -> vector<128x128xf32>
    %204 = arith.addf %198, %203 : vector<128x128xf32>
    %c0_215 = arith.constant 0 : index
    %c2_216 = arith.constant 2 : index
    %c1_217 = arith.constant 1 : index
    %c0_218 = arith.constant 0 : index
    %205 = vector.load %arg7[%c0_215, %c2_216, %c1_217, %c0_218] : memref<2x10x10x128xf32, #tpu.memory_space<vmem>>, vector<2x8x8x128xf32>
    %206 = vector.shape_cast %205 : vector<2x8x8x128xf32> to vector<128x128xf32>
    %c25 = arith.constant 25 : index
    %c0_219 = arith.constant 0 : index
    %c0_220 = arith.constant 0 : index
    %207 = vector.load %arg1[%c25, %c0_219, %c0_220] : memref<54x128x128xf32, #tpu.memory_space<vmem>>, vector<1x128x128xf32>
    %208 = vector.shape_cast %207 : vector<1x128x128xf32> to vector<128x128xf32>
    %cst_221 = arith.constant dense<0.000000e+00> : vector<128x128xf32>
    %209 = tpu.matmul %206, %208, %cst_221 {dimension_numbers = #tpu.dot_dimension_numbers<[1], [0], [0], [1], [0, 0, 1, 1], [], []>} : vector<128x128xf32>, vector<128x128xf32>, vector<128x128xf32> -> vector<128x128xf32>
    %210 = arith.addf %204, %209 : vector<128x128xf32>
    %c0_222 = arith.constant 0 : index
    %c2_223 = arith.constant 2 : index
    %c2_224 = arith.constant 2 : index
    %c0_225 = arith.constant 0 : index
    %211 = vector.load %arg7[%c0_222, %c2_223, %c2_224, %c0_225] : memref<2x10x10x128xf32, #tpu.memory_space<vmem>>, vector<2x8x8x128xf32>
    %212 = vector.shape_cast %211 : vector<2x8x8x128xf32> to vector<128x128xf32>
    %c26 = arith.constant 26 : index
    %c0_226 = arith.constant 0 : index
    %c0_227 = arith.constant 0 : index
    %213 = vector.load %arg1[%c26, %c0_226, %c0_227] : memref<54x128x128xf32, #tpu.memory_space<vmem>>, vector<1x128x128xf32>
    %214 = vector.shape_cast %213 : vector<1x128x128xf32> to vector<128x128xf32>
    %cst_228 = arith.constant dense<0.000000e+00> : vector<128x128xf32>
    %215 = tpu.matmul %212, %214, %cst_228 {dimension_numbers = #tpu.dot_dimension_numbers<[1], [0], [0], [1], [0, 0, 1, 1], [], []>} : vector<128x128xf32>, vector<128x128xf32>, vector<128x128xf32> -> vector<128x128xf32>
    %216 = arith.addf %210, %215 : vector<128x128xf32>
    %cst_229 = arith.constant dense<0.000000e+00> : vector<128xf32>
    %217 = vector.multi_reduction <add>, %216, %cst_229 [0] : vector<128x128xf32> to vector<128xf32>
    %218 = vector.shape_cast %217 : vector<128xf32> to vector<1x128xf32>
    %cst_230 = arith.constant 1.280000e+02 : f32
    %219 = vector.broadcast %cst_230 : f32 to vector<1x128xf32>
    %220 = arith.divf %218, %219 : vector<1x128xf32>
    %221 = vector.broadcast %220 : vector<1x128xf32> to vector<128x128xf32>
    %222 = arith.subf %216, %221 : vector<128x128xf32>
    %223 = arith.mulf %222, %222 : vector<128x128xf32>
    %cst_231 = arith.constant dense<0.000000e+00> : vector<128xf32>
    %224 = vector.multi_reduction <add>, %223, %cst_231 [0] : vector<128x128xf32> to vector<128xf32>
    %225 = vector.shape_cast %224 : vector<128xf32> to vector<1x128xf32>
    %cst_232 = arith.constant 1.280000e+02 : f32
    %226 = vector.broadcast %cst_232 : f32 to vector<1x128xf32>
    %227 = arith.divf %225, %226 : vector<1x128xf32>
    %c2_233 = arith.constant 2 : index
    %c0_234 = arith.constant 0 : index
    %228 = vector.load %arg2[%c2_233, %c0_234] : memref<16x128xf32, #tpu.memory_space<vmem>>, vector<1x128xf32>
    %c8_235 = arith.constant 8 : index
    %c0_236 = arith.constant 0 : index
    %229 = vector.load %arg2[%c8_235, %c0_236] : memref<16x128xf32, #tpu.memory_space<vmem>>, vector<1x128xf32>
    %cst_237 = arith.constant 9.99999974E-6 : f32
    %230 = vector.broadcast %cst_237 : f32 to vector<1x128xf32>
    %231 = arith.addf %227, %230 : vector<1x128xf32>
    %232 = math.rsqrt %231 : vector<1x128xf32>
    %233 = vector.broadcast %232 : vector<1x128xf32> to vector<128x128xf32>
    %234 = arith.mulf %222, %233 : vector<128x128xf32>
    %235 = vector.broadcast %228 : vector<1x128xf32> to vector<128x128xf32>
    %236 = arith.mulf %234, %235 : vector<128x128xf32>
    %237 = vector.broadcast %229 : vector<1x128xf32> to vector<128x128xf32>
    %238 = arith.addf %236, %237 : vector<128x128xf32>
    %239 = vector.shape_cast %238 : vector<128x128xf32> to vector<2x8x8x128xf32>
    %cst_238 = arith.constant dense<0xFF800000> : vector<2x8x128xf32>
    %240 = vector.multi_reduction <maximumf>, %239, %cst_238 [1] : vector<2x8x8x128xf32> to vector<2x8x128xf32>
    %241 = vector.shape_cast %240 : vector<2x8x128xf32> to vector<2x1x8x128xf32>
    %242 = vector.broadcast %241 : vector<2x1x8x128xf32> to vector<2x8x8x128xf32>
    %243 = arith.subf %239, %242 : vector<2x8x8x128xf32>
    %244 = math.exp %243 : vector<2x8x8x128xf32>
    %cst_239 = arith.constant dense<0.000000e+00> : vector<2x8x128xf32>
    %245 = vector.multi_reduction <add>, %244, %cst_239 [1] : vector<2x8x8x128xf32> to vector<2x8x128xf32>
    %246 = vector.shape_cast %245 : vector<2x8x128xf32> to vector<2x1x8x128xf32>
    %247 = vector.broadcast %246 : vector<2x1x8x128xf32> to vector<2x8x8x128xf32>
    %248 = arith.divf %244, %247 : vector<2x8x8x128xf32>
    %249 = vector.extract_strided_slice %248 {offsets = [0, 0, 0, 0], sizes = [2, 8, 8, 11], strides = [1, 1, 1, 1]} : vector<2x8x8x128xf32> to vector<2x8x8x11xf32>
    %c0_240 = arith.constant 0 : index
    %c0_241 = arith.constant 0 : index
    %c0_242 = arith.constant 0 : index
    %c0_243 = arith.constant 0 : index
    %250 = vector.load %arg5[%c0_240, %c0_241, %c0_242, %c0_243] : memref<2x8x8x11xf32, #tpu.memory_space<vmem>>, vector<2x8x8x11xf32>
    tpu.vector_store %arg5[%c0_240, %c0_241, %c0_242, %c0_243], %249 {strides = array<i32>} : memref<2x8x8x11xf32, #tpu.memory_space<vmem>>, vector<2x8x8x11xf32>,
    %251 = vector.shape_cast %248 : vector<2x8x8x128xf32> to vector<128x128xf32>
    %c0_244 = arith.constant 0 : index
    %c0_245 = arith.constant 0 : index
    %252 = vector.load %arg3[%c0_244, %c0_245] : memref<128x128xf32, #tpu.memory_space<vmem>>, vector<128x128xf32>
    %cst_246 = arith.constant dense<0.000000e+00> : vector<128x128xf32>
    %253 = tpu.matmul %251, %252, %cst_246 {dimension_numbers = #tpu.dot_dimension_numbers<[1], [0], [0], [1], [0, 0, 1, 1], [], []>} : vector<128x128xf32>, vector<128x128xf32>, vector<128x128xf32> -> vector<128x128xf32>
    %254 = arith.mulf %253, %3 : vector<128x128xf32>
    %255 = vector.shape_cast %254 : vector<128x128xf32> to vector<2x8x8x128xf32>
    %256 = vector.extract_strided_slice %255 {offsets = [0, 0, 0, 0], sizes = [2, 8, 8, 22], strides = [1, 1, 1, 1]} : vector<2x8x8x128xf32> to vector<2x8x8x22xf32>
    %c0_247 = arith.constant 0 : index
    %c0_248 = arith.constant 0 : index
    %c0_249 = arith.constant 0 : index
    %c0_250 = arith.constant 0 : index
    %257 = vector.load %arg6[%c0_247, %c0_248, %c0_249, %c0_250] : memref<2x8x8x22xf32, #tpu.memory_space<vmem>>, vector<2x8x8x22xf32>
    tpu.vector_store %arg6[%c0_247, %c0_248, %c0_249, %c0_250], %256 {strides = array<i32>} : memref<2x8x8x22xf32, #tpu.memory_space<vmem>>, vector<2x8x8x22xf32>,
    %258 = vector.shape_cast %254 : vector<128x128xf32> to vector<2x8x8x128xf32>
    %c0_251 = arith.constant 0 : index
    %c1_252 = arith.constant 1 : index
    %c1_253 = arith.constant 1 : index
    %c0_254 = arith.constant 0 : index
    %259 = vector.load %arg7[%c0_251, %c1_252, %c1_253, %c0_254] : memref<2x10x10x128xf32, #tpu.memory_space<vmem>>, vector<2x8x8x128xf32>
    tpu.vector_store %arg7[%c0_251, %c1_252, %c1_253, %c0_254], %258 {strides = array<i32>} : memref<2x10x10x128xf32, #tpu.memory_space<vmem>>, vector<2x8x8x128xf32>,
    %c0_255 = arith.constant 0 : index
    %c0_256 = arith.constant 0 : index
    %c0_257 = arith.constant 0 : index
    %c0_258 = arith.constant 0 : index
    %260 = vector.load %arg7[%c0_255, %c0_256, %c0_257, %c0_258] : memref<2x10x10x128xf32, #tpu.memory_space<vmem>>, vector<2x8x8x128xf32>
    %261 = vector.shape_cast %260 : vector<2x8x8x128xf32> to vector<128x128xf32>
    %c27 = arith.constant 27 : index
    %c0_259 = arith.constant 0 : index
    %c0_260 = arith.constant 0 : index
    %262 = vector.load %arg1[%c27, %c0_259, %c0_260] : memref<54x128x128xf32, #tpu.memory_space<vmem>>, vector<1x128x128xf32>
    %263 = vector.shape_cast %262 : vector<1x128x128xf32> to vector<128x128xf32>
    %cst_261 = arith.constant dense<0.000000e+00> : vector<128x128xf32>
    %264 = tpu.matmul %261, %263, %cst_261 {dimension_numbers = #tpu.dot_dimension_numbers<[1], [0], [0], [1], [0, 0, 1, 1], [], []>} : vector<128x128xf32>, vector<128x128xf32>, vector<128x128xf32> -> vector<128x128xf32>
    %c0_262 = arith.constant 0 : index
    %c0_263 = arith.constant 0 : index
    %c1_264 = arith.constant 1 : index
    %c0_265 = arith.constant 0 : index
    %265 = vector.load %arg7[%c0_262, %c0_263, %c1_264, %c0_265] : memref<2x10x10x128xf32, #tpu.memory_space<vmem>>, vector<2x8x8x128xf32>
    %266 = vector.shape_cast %265 : vector<2x8x8x128xf32> to vector<128x128xf32>
    %c28 = arith.constant 28 : index
    %c0_266 = arith.constant 0 : index
    %c0_267 = arith.constant 0 : index
    %267 = vector.load %arg1[%c28, %c0_266, %c0_267] : memref<54x128x128xf32, #tpu.memory_space<vmem>>, vector<1x128x128xf32>
    %268 = vector.shape_cast %267 : vector<1x128x128xf32> to vector<128x128xf32>
    %cst_268 = arith.constant dense<0.000000e+00> : vector<128x128xf32>
    %269 = tpu.matmul %266, %268, %cst_268 {dimension_numbers = #tpu.dot_dimension_numbers<[1], [0], [0], [1], [0, 0, 1, 1], [], []>} : vector<128x128xf32>, vector<128x128xf32>, vector<128x128xf32> -> vector<128x128xf32>
    %270 = arith.addf %264, %269 : vector<128x128xf32>
    %c0_269 = arith.constant 0 : index
    %c0_270 = arith.constant 0 : index
    %c2_271 = arith.constant 2 : index
    %c0_272 = arith.constant 0 : index
    %271 = vector.load %arg7[%c0_269, %c0_270, %c2_271, %c0_272] : memref<2x10x10x128xf32, #tpu.memory_space<vmem>>, vector<2x8x8x128xf32>
    %272 = vector.shape_cast %271 : vector<2x8x8x128xf32> to vector<128x128xf32>
    %c29 = arith.constant 29 : index
    %c0_273 = arith.constant 0 : index
    %c0_274 = arith.constant 0 : index
    %273 = vector.load %arg1[%c29, %c0_273, %c0_274] : memref<54x128x128xf32, #tpu.memory_space<vmem>>, vector<1x128x128xf32>
    %274 = vector.shape_cast %273 : vector<1x128x128xf32> to vector<128x128xf32>
    %cst_275 = arith.constant dense<0.000000e+00> : vector<128x128xf32>
    %275 = tpu.matmul %272, %274, %cst_275 {dimension_numbers = #tpu.dot_dimension_numbers<[1], [0], [0], [1], [0, 0, 1, 1], [], []>} : vector<128x128xf32>, vector<128x128xf32>, vector<128x128xf32> -> vector<128x128xf32>
    %276 = arith.addf %270, %275 : vector<128x128xf32>
    %c0_276 = arith.constant 0 : index
    %c1_277 = arith.constant 1 : index
    %c0_278 = arith.constant 0 : index
    %c0_279 = arith.constant 0 : index
    %277 = vector.load %arg7[%c0_276, %c1_277, %c0_278, %c0_279] : memref<2x10x10x128xf32, #tpu.memory_space<vmem>>, vector<2x8x8x128xf32>
    %278 = vector.shape_cast %277 : vector<2x8x8x128xf32> to vector<128x128xf32>
    %c30 = arith.constant 30 : index
    %c0_280 = arith.constant 0 : index
    %c0_281 = arith.constant 0 : index
    %279 = vector.load %arg1[%c30, %c0_280, %c0_281] : memref<54x128x128xf32, #tpu.memory_space<vmem>>, vector<1x128x128xf32>
    %280 = vector.shape_cast %279 : vector<1x128x128xf32> to vector<128x128xf32>
    %cst_282 = arith.constant dense<0.000000e+00> : vector<128x128xf32>
    %281 = tpu.matmul %278, %280, %cst_282 {dimension_numbers = #tpu.dot_dimension_numbers<[1], [0], [0], [1], [0, 0, 1, 1], [], []>} : vector<128x128xf32>, vector<128x128xf32>, vector<128x128xf32> -> vector<128x128xf32>
    %282 = arith.addf %276, %281 : vector<128x128xf32>
    %c0_283 = arith.constant 0 : index
    %c1_284 = arith.constant 1 : index
    %c1_285 = arith.constant 1 : index
    %c0_286 = arith.constant 0 : index
    %283 = vector.load %arg7[%c0_283, %c1_284, %c1_285, %c0_286] : memref<2x10x10x128xf32, #tpu.memory_space<vmem>>, vector<2x8x8x128xf32>
    %284 = vector.shape_cast %283 : vector<2x8x8x128xf32> to vector<128x128xf32>
    %c31 = arith.constant 31 : index
    %c0_287 = arith.constant 0 : index
    %c0_288 = arith.constant 0 : index
    %285 = vector.load %arg1[%c31, %c0_287, %c0_288] : memref<54x128x128xf32, #tpu.memory_space<vmem>>, vector<1x128x128xf32>
    %286 = vector.shape_cast %285 : vector<1x128x128xf32> to vector<128x128xf32>
    %cst_289 = arith.constant dense<0.000000e+00> : vector<128x128xf32>
    %287 = tpu.matmul %284, %286, %cst_289 {dimension_numbers = #tpu.dot_dimension_numbers<[1], [0], [0], [1], [0, 0, 1, 1], [], []>} : vector<128x128xf32>, vector<128x128xf32>, vector<128x128xf32> -> vector<128x128xf32>
    %288 = arith.addf %282, %287 : vector<128x128xf32>
    %c0_290 = arith.constant 0 : index
    %c1_291 = arith.constant 1 : index
    %c2_292 = arith.constant 2 : index
    %c0_293 = arith.constant 0 : index
    %289 = vector.load %arg7[%c0_290, %c1_291, %c2_292, %c0_293] : memref<2x10x10x128xf32, #tpu.memory_space<vmem>>, vector<2x8x8x128xf32>
    %290 = vector.shape_cast %289 : vector<2x8x8x128xf32> to vector<128x128xf32>
    %c32 = arith.constant 32 : index
    %c0_294 = arith.constant 0 : index
    %c0_295 = arith.constant 0 : index
    %291 = vector.load %arg1[%c32, %c0_294, %c0_295] : memref<54x128x128xf32, #tpu.memory_space<vmem>>, vector<1x128x128xf32>
    %292 = vector.shape_cast %291 : vector<1x128x128xf32> to vector<128x128xf32>
    %cst_296 = arith.constant dense<0.000000e+00> : vector<128x128xf32>
    %293 = tpu.matmul %290, %292, %cst_296 {dimension_numbers = #tpu.dot_dimension_numbers<[1], [0], [0], [1], [0, 0, 1, 1], [], []>} : vector<128x128xf32>, vector<128x128xf32>, vector<128x128xf32> -> vector<128x128xf32>
    %294 = arith.addf %288, %293 : vector<128x128xf32>
    %c0_297 = arith.constant 0 : index
    %c2_298 = arith.constant 2 : index
    %c0_299 = arith.constant 0 : index
    %c0_300 = arith.constant 0 : index
    %295 = vector.load %arg7[%c0_297, %c2_298, %c0_299, %c0_300] : memref<2x10x10x128xf32, #tpu.memory_space<vmem>>, vector<2x8x8x128xf32>
    %296 = vector.shape_cast %295 : vector<2x8x8x128xf32> to vector<128x128xf32>
    %c33 = arith.constant 33 : index
    %c0_301 = arith.constant 0 : index
    %c0_302 = arith.constant 0 : index
    %297 = vector.load %arg1[%c33, %c0_301, %c0_302] : memref<54x128x128xf32, #tpu.memory_space<vmem>>, vector<1x128x128xf32>
    %298 = vector.shape_cast %297 : vector<1x128x128xf32> to vector<128x128xf32>
    %cst_303 = arith.constant dense<0.000000e+00> : vector<128x128xf32>
    %299 = tpu.matmul %296, %298, %cst_303 {dimension_numbers = #tpu.dot_dimension_numbers<[1], [0], [0], [1], [0, 0, 1, 1], [], []>} : vector<128x128xf32>, vector<128x128xf32>, vector<128x128xf32> -> vector<128x128xf32>
    %300 = arith.addf %294, %299 : vector<128x128xf32>
    %c0_304 = arith.constant 0 : index
    %c2_305 = arith.constant 2 : index
    %c1_306 = arith.constant 1 : index
    %c0_307 = arith.constant 0 : index
    %301 = vector.load %arg7[%c0_304, %c2_305, %c1_306, %c0_307] : memref<2x10x10x128xf32, #tpu.memory_space<vmem>>, vector<2x8x8x128xf32>
    %302 = vector.shape_cast %301 : vector<2x8x8x128xf32> to vector<128x128xf32>
    %c34 = arith.constant 34 : index
    %c0_308 = arith.constant 0 : index
    %c0_309 = arith.constant 0 : index
    %303 = vector.load %arg1[%c34, %c0_308, %c0_309] : memref<54x128x128xf32, #tpu.memory_space<vmem>>, vector<1x128x128xf32>
    %304 = vector.shape_cast %303 : vector<1x128x128xf32> to vector<128x128xf32>
    %cst_310 = arith.constant dense<0.000000e+00> : vector<128x128xf32>
    %305 = tpu.matmul %302, %304, %cst_310 {dimension_numbers = #tpu.dot_dimension_numbers<[1], [0], [0], [1], [0, 0, 1, 1], [], []>} : vector<128x128xf32>, vector<128x128xf32>, vector<128x128xf32> -> vector<128x128xf32>
    %306 = arith.addf %300, %305 : vector<128x128xf32>
    %c0_311 = arith.constant 0 : index
    %c2_312 = arith.constant 2 : index
    %c2_313 = arith.constant 2 : index
    %c0_314 = arith.constant 0 : index
    %307 = vector.load %arg7[%c0_311, %c2_312, %c2_313, %c0_314] : memref<2x10x10x128xf32, #tpu.memory_space<vmem>>, vector<2x8x8x128xf32>
    %308 = vector.shape_cast %307 : vector<2x8x8x128xf32> to vector<128x128xf32>
    %c35 = arith.constant 35 : index
    %c0_315 = arith.constant 0 : index
    %c0_316 = arith.constant 0 : index
    %309 = vector.load %arg1[%c35, %c0_315, %c0_316] : memref<54x128x128xf32, #tpu.memory_space<vmem>>, vector<1x128x128xf32>
    %310 = vector.shape_cast %309 : vector<1x128x128xf32> to vector<128x128xf32>
    %cst_317 = arith.constant dense<0.000000e+00> : vector<128x128xf32>
    %311 = tpu.matmul %308, %310, %cst_317 {dimension_numbers = #tpu.dot_dimension_numbers<[1], [0], [0], [1], [0, 0, 1, 1], [], []>} : vector<128x128xf32>, vector<128x128xf32>, vector<128x128xf32> -> vector<128x128xf32>
    %312 = arith.addf %306, %311 : vector<128x128xf32>
    %cst_318 = arith.constant dense<0.000000e+00> : vector<128xf32>
    %313 = vector.multi_reduction <add>, %312, %cst_318 [0] : vector<128x128xf32> to vector<128xf32>
    %314 = vector.shape_cast %313 : vector<128xf32> to vector<1x128xf32>
    %cst_319 = arith.constant 1.280000e+02 : f32
    %315 = vector.broadcast %cst_319 : f32 to vector<1x128xf32>
    %316 = arith.divf %314, %315 : vector<1x128xf32>
    %317 = vector.broadcast %316 : vector<1x128xf32> to vector<128x128xf32>
    %318 = arith.subf %312, %317 : vector<128x128xf32>
    %319 = arith.mulf %318, %318 : vector<128x128xf32>
    %cst_320 = arith.constant dense<0.000000e+00> : vector<128xf32>
    %320 = vector.multi_reduction <add>, %319, %cst_320 [0] : vector<128x128xf32> to vector<128xf32>
    %321 = vector.shape_cast %320 : vector<128xf32> to vector<1x128xf32>
    %cst_321 = arith.constant 1.280000e+02 : f32
    %322 = vector.broadcast %cst_321 : f32 to vector<1x128xf32>
    %323 = arith.divf %321, %322 : vector<1x128xf32>
    %c3_322 = arith.constant 3 : index
    %c0_323 = arith.constant 0 : index
    %324 = vector.load %arg2[%c3_322, %c0_323] : memref<16x128xf32, #tpu.memory_space<vmem>>, vector<1x128xf32>
    %c9_324 = arith.constant 9 : index
    %c0_325 = arith.constant 0 : index
    %325 = vector.load %arg2[%c9_324, %c0_325] : memref<16x128xf32, #tpu.memory_space<vmem>>, vector<1x128xf32>
    %cst_326 = arith.constant 9.99999974E-6 : f32
    %326 = vector.broadcast %cst_326 : f32 to vector<1x128xf32>
    %327 = arith.addf %323, %326 : vector<1x128xf32>
    %328 = math.rsqrt %327 : vector<1x128xf32>
    %329 = vector.broadcast %328 : vector<1x128xf32> to vector<128x128xf32>
    %330 = arith.mulf %318, %329 : vector<128x128xf32>
    %331 = vector.broadcast %324 : vector<1x128xf32> to vector<128x128xf32>
    %332 = arith.mulf %330, %331 : vector<128x128xf32>
    %333 = vector.broadcast %325 : vector<1x128xf32> to vector<128x128xf32>
    %334 = arith.addf %332, %333 : vector<128x128xf32>
    %cst_327 = arith.constant 0.000000e+00 : f32
    %335 = vector.broadcast %cst_327 : f32 to vector<128x128xf32>
    %336 = arith.maximumf %334, %335 : vector<128x128xf32>
    %337 = vector.shape_cast %336 : vector<128x128xf32> to vector<2x8x8x128xf32>
    %c0_328 = arith.constant 0 : index
    %c1_329 = arith.constant 1 : index
    %c1_330 = arith.constant 1 : index
    %c0_331 = arith.constant 0 : index
    %338 = vector.load %arg7[%c0_328, %c1_329, %c1_330, %c0_331] : memref<2x10x10x128xf32, #tpu.memory_space<vmem>>, vector<2x8x8x128xf32>
    tpu.vector_store %arg7[%c0_328, %c1_329, %c1_330, %c0_331], %337 {strides = array<i32>} : memref<2x10x10x128xf32, #tpu.memory_space<vmem>>, vector<2x8x8x128xf32>,
    %c0_332 = arith.constant 0 : index
    %c0_333 = arith.constant 0 : index
    %c0_334 = arith.constant 0 : index
    %c0_335 = arith.constant 0 : index
    %339 = vector.load %arg7[%c0_332, %c0_333, %c0_334, %c0_335] : memref<2x10x10x128xf32, #tpu.memory_space<vmem>>, vector<2x8x8x128xf32>
    %340 = vector.shape_cast %339 : vector<2x8x8x128xf32> to vector<128x128xf32>
    %c36 = arith.constant 36 : index
    %c0_336 = arith.constant 0 : index
    %c0_337 = arith.constant 0 : index
    %341 = vector.load %arg1[%c36, %c0_336, %c0_337] : memref<54x128x128xf32, #tpu.memory_space<vmem>>, vector<1x128x128xf32>
    %342 = vector.shape_cast %341 : vector<1x128x128xf32> to vector<128x128xf32>
    %cst_338 = arith.constant dense<0.000000e+00> : vector<128x128xf32>
    %343 = tpu.matmul %340, %342, %cst_338 {dimension_numbers = #tpu.dot_dimension_numbers<[1], [0], [0], [1], [0, 0, 1, 1], [], []>} : vector<128x128xf32>, vector<128x128xf32>, vector<128x128xf32> -> vector<128x128xf32>
    %c0_339 = arith.constant 0 : index
    %c0_340 = arith.constant 0 : index
    %c1_341 = arith.constant 1 : index
    %c0_342 = arith.constant 0 : index
    %344 = vector.load %arg7[%c0_339, %c0_340, %c1_341, %c0_342] : memref<2x10x10x128xf32, #tpu.memory_space<vmem>>, vector<2x8x8x128xf32>
    %345 = vector.shape_cast %344 : vector<2x8x8x128xf32> to vector<128x128xf32>
    %c37 = arith.constant 37 : index
    %c0_343 = arith.constant 0 : index
    %c0_344 = arith.constant 0 : index
    %346 = vector.load %arg1[%c37, %c0_343, %c0_344] : memref<54x128x128xf32, #tpu.memory_space<vmem>>, vector<1x128x128xf32>
    %347 = vector.shape_cast %346 : vector<1x128x128xf32> to vector<128x128xf32>
    %cst_345 = arith.constant dense<0.000000e+00> : vector<128x128xf32>
    %348 = tpu.matmul %345, %347, %cst_345 {dimension_numbers = #tpu.dot_dimension_numbers<[1], [0], [0], [1], [0, 0, 1, 1], [], []>} : vector<128x128xf32>, vector<128x128xf32>, vector<128x128xf32> -> vector<128x128xf32>
    %349 = arith.addf %343, %348 : vector<128x128xf32>
    %c0_346 = arith.constant 0 : index
    %c0_347 = arith.constant 0 : index
    %c2_348 = arith.constant 2 : index
    %c0_349 = arith.constant 0 : index
    %350 = vector.load %arg7[%c0_346, %c0_347, %c2_348, %c0_349] : memref<2x10x10x128xf32, #tpu.memory_space<vmem>>, vector<2x8x8x128xf32>
    %351 = vector.shape_cast %350 : vector<2x8x8x128xf32> to vector<128x128xf32>
    %c38 = arith.constant 38 : index
    %c0_350 = arith.constant 0 : index
    %c0_351 = arith.constant 0 : index
    %352 = vector.load %arg1[%c38, %c0_350, %c0_351] : memref<54x128x128xf32, #tpu.memory_space<vmem>>, vector<1x128x128xf32>
    %353 = vector.shape_cast %352 : vector<1x128x128xf32> to vector<128x128xf32>
    %cst_352 = arith.constant dense<0.000000e+00> : vector<128x128xf32>
    %354 = tpu.matmul %351, %353, %cst_352 {dimension_numbers = #tpu.dot_dimension_numbers<[1], [0], [0], [1], [0, 0, 1, 1], [], []>} : vector<128x128xf32>, vector<128x128xf32>, vector<128x128xf32> -> vector<128x128xf32>
    %355 = arith.addf %349, %354 : vector<128x128xf32>
    %c0_353 = arith.constant 0 : index
    %c1_354 = arith.constant 1 : index
    %c0_355 = arith.constant 0 : index
    %c0_356 = arith.constant 0 : index
    %356 = vector.load %arg7[%c0_353, %c1_354, %c0_355, %c0_356] : memref<2x10x10x128xf32, #tpu.memory_space<vmem>>, vector<2x8x8x128xf32>
    %357 = vector.shape_cast %356 : vector<2x8x8x128xf32> to vector<128x128xf32>
    %c39 = arith.constant 39 : index
    %c0_357 = arith.constant 0 : index
    %c0_358 = arith.constant 0 : index
    %358 = vector.load %arg1[%c39, %c0_357, %c0_358] : memref<54x128x128xf32, #tpu.memory_space<vmem>>, vector<1x128x128xf32>
    %359 = vector.shape_cast %358 : vector<1x128x128xf32> to vector<128x128xf32>
    %cst_359 = arith.constant dense<0.000000e+00> : vector<128x128xf32>
    %360 = tpu.matmul %357, %359, %cst_359 {dimension_numbers = #tpu.dot_dimension_numbers<[1], [0], [0], [1], [0, 0, 1, 1], [], []>} : vector<128x128xf32>, vector<128x128xf32>, vector<128x128xf32> -> vector<128x128xf32>
    %361 = arith.addf %355, %360 : vector<128x128xf32>
    %c0_360 = arith.constant 0 : index
    %c1_361 = arith.constant 1 : index
    %c1_362 = arith.constant 1 : index
    %c0_363 = arith.constant 0 : index
    %362 = vector.load %arg7[%c0_360, %c1_361, %c1_362, %c0_363] : memref<2x10x10x128xf32, #tpu.memory_space<vmem>>, vector<2x8x8x128xf32>
    %363 = vector.shape_cast %362 : vector<2x8x8x128xf32> to vector<128x128xf32>
    %c40 = arith.constant 40 : index
    %c0_364 = arith.constant 0 : index
    %c0_365 = arith.constant 0 : index
    %364 = vector.load %arg1[%c40, %c0_364, %c0_365] : memref<54x128x128xf32, #tpu.memory_space<vmem>>, vector<1x128x128xf32>
    %365 = vector.shape_cast %364 : vector<1x128x128xf32> to vector<128x128xf32>
    %cst_366 = arith.constant dense<0.000000e+00> : vector<128x128xf32>
    %366 = tpu.matmul %363, %365, %cst_366 {dimension_numbers = #tpu.dot_dimension_numbers<[1], [0], [0], [1], [0, 0, 1, 1], [], []>} : vector<128x128xf32>, vector<128x128xf32>, vector<128x128xf32> -> vector<128x128xf32>
    %367 = arith.addf %361, %366 : vector<128x128xf32>
    %c0_367 = arith.constant 0 : index
    %c1_368 = arith.constant 1 : index
    %c2_369 = arith.constant 2 : index
    %c0_370 = arith.constant 0 : index
    %368 = vector.load %arg7[%c0_367, %c1_368, %c2_369, %c0_370] : memref<2x10x10x128xf32, #tpu.memory_space<vmem>>, vector<2x8x8x128xf32>
    %369 = vector.shape_cast %368 : vector<2x8x8x128xf32> to vector<128x128xf32>
    %c41 = arith.constant 41 : index
    %c0_371 = arith.constant 0 : index
    %c0_372 = arith.constant 0 : index
    %370 = vector.load %arg1[%c41, %c0_371, %c0_372] : memref<54x128x128xf32, #tpu.memory_space<vmem>>, vector<1x128x128xf32>
    %371 = vector.shape_cast %370 : vector<1x128x128xf32> to vector<128x128xf32>
    %cst_373 = arith.constant dense<0.000000e+00> : vector<128x128xf32>
    %372 = tpu.matmul %369, %371, %cst_373 {dimension_numbers = #tpu.dot_dimension_numbers<[1], [0], [0], [1], [0, 0, 1, 1], [], []>} : vector<128x128xf32>, vector<128x128xf32>, vector<128x128xf32> -> vector<128x128xf32>
    %373 = arith.addf %367, %372 : vector<128x128xf32>
    %c0_374 = arith.constant 0 : index
    %c2_375 = arith.constant 2 : index
    %c0_376 = arith.constant 0 : index
    %c0_377 = arith.constant 0 : index
    %374 = vector.load %arg7[%c0_374, %c2_375, %c0_376, %c0_377] : memref<2x10x10x128xf32, #tpu.memory_space<vmem>>, vector<2x8x8x128xf32>
    %375 = vector.shape_cast %374 : vector<2x8x8x128xf32> to vector<128x128xf32>
    %c42 = arith.constant 42 : index
    %c0_378 = arith.constant 0 : index
    %c0_379 = arith.constant 0 : index
    %376 = vector.load %arg1[%c42, %c0_378, %c0_379] : memref<54x128x128xf32, #tpu.memory_space<vmem>>, vector<1x128x128xf32>
    %377 = vector.shape_cast %376 : vector<1x128x128xf32> to vector<128x128xf32>
    %cst_380 = arith.constant dense<0.000000e+00> : vector<128x128xf32>
    %378 = tpu.matmul %375, %377, %cst_380 {dimension_numbers = #tpu.dot_dimension_numbers<[1], [0], [0], [1], [0, 0, 1, 1], [], []>} : vector<128x128xf32>, vector<128x128xf32>, vector<128x128xf32> -> vector<128x128xf32>
    %379 = arith.addf %373, %378 : vector<128x128xf32>
    %c0_381 = arith.constant 0 : index
    %c2_382 = arith.constant 2 : index
    %c1_383 = arith.constant 1 : index
    %c0_384 = arith.constant 0 : index
    %380 = vector.load %arg7[%c0_381, %c2_382, %c1_383, %c0_384] : memref<2x10x10x128xf32, #tpu.memory_space<vmem>>, vector<2x8x8x128xf32>
    %381 = vector.shape_cast %380 : vector<2x8x8x128xf32> to vector<128x128xf32>
    %c43 = arith.constant 43 : index
    %c0_385 = arith.constant 0 : index
    %c0_386 = arith.constant 0 : index
    %382 = vector.load %arg1[%c43, %c0_385, %c0_386] : memref<54x128x128xf32, #tpu.memory_space<vmem>>, vector<1x128x128xf32>
    %383 = vector.shape_cast %382 : vector<1x128x128xf32> to vector<128x128xf32>
    %cst_387 = arith.constant dense<0.000000e+00> : vector<128x128xf32>
    %384 = tpu.matmul %381, %383, %cst_387 {dimension_numbers = #tpu.dot_dimension_numbers<[1], [0], [0], [1], [0, 0, 1, 1], [], []>} : vector<128x128xf32>, vector<128x128xf32>, vector<128x128xf32> -> vector<128x128xf32>
    %385 = arith.addf %379, %384 : vector<128x128xf32>
    %c0_388 = arith.constant 0 : index
    %c2_389 = arith.constant 2 : index
    %c2_390 = arith.constant 2 : index
    %c0_391 = arith.constant 0 : index
    %386 = vector.load %arg7[%c0_388, %c2_389, %c2_390, %c0_391] : memref<2x10x10x128xf32, #tpu.memory_space<vmem>>, vector<2x8x8x128xf32>
    %387 = vector.shape_cast %386 : vector<2x8x8x128xf32> to vector<128x128xf32>
    %c44 = arith.constant 44 : index
    %c0_392 = arith.constant 0 : index
    %c0_393 = arith.constant 0 : index
    %388 = vector.load %arg1[%c44, %c0_392, %c0_393] : memref<54x128x128xf32, #tpu.memory_space<vmem>>, vector<1x128x128xf32>
    %389 = vector.shape_cast %388 : vector<1x128x128xf32> to vector<128x128xf32>
    %cst_394 = arith.constant dense<0.000000e+00> : vector<128x128xf32>
    %390 = tpu.matmul %387, %389, %cst_394 {dimension_numbers = #tpu.dot_dimension_numbers<[1], [0], [0], [1], [0, 0, 1, 1], [], []>} : vector<128x128xf32>, vector<128x128xf32>, vector<128x128xf32> -> vector<128x128xf32>
    %391 = arith.addf %385, %390 : vector<128x128xf32>
    %cst_395 = arith.constant dense<0.000000e+00> : vector<128xf32>
    %392 = vector.multi_reduction <add>, %391, %cst_395 [0] : vector<128x128xf32> to vector<128xf32>
    %393 = vector.shape_cast %392 : vector<128xf32> to vector<1x128xf32>
    %cst_396 = arith.constant 1.280000e+02 : f32
    %394 = vector.broadcast %cst_396 : f32 to vector<1x128xf32>
    %395 = arith.divf %393, %394 : vector<1x128xf32>
    %396 = vector.broadcast %395 : vector<1x128xf32> to vector<128x128xf32>
    %397 = arith.subf %391, %396 : vector<128x128xf32>
    %398 = arith.mulf %397, %397 : vector<128x128xf32>
    %cst_397 = arith.constant dense<0.000000e+00> : vector<128xf32>
    %399 = vector.multi_reduction <add>, %398, %cst_397 [0] : vector<128x128xf32> to vector<128xf32>
    %400 = vector.shape_cast %399 : vector<128xf32> to vector<1x128xf32>
    %cst_398 = arith.constant 1.280000e+02 : f32
    %401 = vector.broadcast %cst_398 : f32 to vector<1x128xf32>
    %402 = arith.divf %400, %401 : vector<1x128xf32>
    %c4_399 = arith.constant 4 : index
    %c0_400 = arith.constant 0 : index
    %403 = vector.load %arg2[%c4_399, %c0_400] : memref<16x128xf32, #tpu.memory_space<vmem>>, vector<1x128xf32>
    %c10_401 = arith.constant 10 : index
    %c0_402 = arith.constant 0 : index
    %404 = vector.load %arg2[%c10_401, %c0_402] : memref<16x128xf32, #tpu.memory_space<vmem>>, vector<1x128xf32>
    %cst_403 = arith.constant 9.99999974E-6 : f32
    %405 = vector.broadcast %cst_403 : f32 to vector<1x128xf32>
    %406 = arith.addf %402, %405 : vector<1x128xf32>
    %407 = math.rsqrt %406 : vector<1x128xf32>
    %408 = vector.broadcast %407 : vector<1x128xf32> to vector<128x128xf32>
    %409 = arith.mulf %397, %408 : vector<128x128xf32>
    %410 = vector.broadcast %403 : vector<1x128xf32> to vector<128x128xf32>
    %411 = arith.mulf %409, %410 : vector<128x128xf32>
    %412 = vector.broadcast %404 : vector<1x128xf32> to vector<128x128xf32>
    %413 = arith.addf %411, %412 : vector<128x128xf32>
    %cst_404 = arith.constant 0.000000e+00 : f32
    %414 = vector.broadcast %cst_404 : f32 to vector<128x128xf32>
    %415 = arith.maximumf %413, %414 : vector<128x128xf32>
    %416 = vector.shape_cast %415 : vector<128x128xf32> to vector<2x8x8x128xf32>
    %c0_405 = arith.constant 0 : index
    %c1_406 = arith.constant 1 : index
    %c1_407 = arith.constant 1 : index
    %c0_408 = arith.constant 0 : index
    %417 = vector.load %arg7[%c0_405, %c1_406, %c1_407, %c0_408] : memref<2x10x10x128xf32, #tpu.memory_space<vmem>>, vector<2x8x8x128xf32>
    tpu.vector_store %arg7[%c0_405, %c1_406, %c1_407, %c0_408], %416 {strides = array<i32>} : memref<2x10x10x128xf32, #tpu.memory_space<vmem>>, vector<2x8x8x128xf32>,
    %c0_409 = arith.constant 0 : index
    %c0_410 = arith.constant 0 : index
    %c0_411 = arith.constant 0 : index
    %c0_412 = arith.constant 0 : index
    %418 = vector.load %arg7[%c0_409, %c0_410, %c0_411, %c0_412] : memref<2x10x10x128xf32, #tpu.memory_space<vmem>>, vector<2x8x8x128xf32>
    %419 = vector.shape_cast %418 : vector<2x8x8x128xf32> to vector<128x128xf32>
    %c45 = arith.constant 45 : index
    %c0_413 = arith.constant 0 : index
    %c0_414 = arith.constant 0 : index
    %420 = vector.load %arg1[%c45, %c0_413, %c0_414] : memref<54x128x128xf32, #tpu.memory_space<vmem>>, vector<1x128x128xf32>
    %421 = vector.shape_cast %420 : vector<1x128x128xf32> to vector<128x128xf32>
    %cst_415 = arith.constant dense<0.000000e+00> : vector<128x128xf32>
    %422 = tpu.matmul %419, %421, %cst_415 {dimension_numbers = #tpu.dot_dimension_numbers<[1], [0], [0], [1], [0, 0, 1, 1], [], []>} : vector<128x128xf32>, vector<128x128xf32>, vector<128x128xf32> -> vector<128x128xf32>
    %c0_416 = arith.constant 0 : index
    %c0_417 = arith.constant 0 : index
    %c1_418 = arith.constant 1 : index
    %c0_419 = arith.constant 0 : index
    %423 = vector.load %arg7[%c0_416, %c0_417, %c1_418, %c0_419] : memref<2x10x10x128xf32, #tpu.memory_space<vmem>>, vector<2x8x8x128xf32>
    %424 = vector.shape_cast %423 : vector<2x8x8x128xf32> to vector<128x128xf32>
    %c46 = arith.constant 46 : index
    %c0_420 = arith.constant 0 : index
    %c0_421 = arith.constant 0 : index
    %425 = vector.load %arg1[%c46, %c0_420, %c0_421] : memref<54x128x128xf32, #tpu.memory_space<vmem>>, vector<1x128x128xf32>
    %426 = vector.shape_cast %425 : vector<1x128x128xf32> to vector<128x128xf32>
    %cst_422 = arith.constant dense<0.000000e+00> : vector<128x128xf32>
    %427 = tpu.matmul %424, %426, %cst_422 {dimension_numbers = #tpu.dot_dimension_numbers<[1], [0], [0], [1], [0, 0, 1, 1], [], []>} : vector<128x128xf32>, vector<128x128xf32>, vector<128x128xf32> -> vector<128x128xf32>
    %428 = arith.addf %422, %427 : vector<128x128xf32>
    %c0_423 = arith.constant 0 : index
    %c0_424 = arith.constant 0 : index
    %c2_425 = arith.constant 2 : index
    %c0_426 = arith.constant 0 : index
    %429 = vector.load %arg7[%c0_423, %c0_424, %c2_425, %c0_426] : memref<2x10x10x128xf32, #tpu.memory_space<vmem>>, vector<2x8x8x128xf32>
    %430 = vector.shape_cast %429 : vector<2x8x8x128xf32> to vector<128x128xf32>
    %c47 = arith.constant 47 : index
    %c0_427 = arith.constant 0 : index
    %c0_428 = arith.constant 0 : index
    %431 = vector.load %arg1[%c47, %c0_427, %c0_428] : memref<54x128x128xf32, #tpu.memory_space<vmem>>, vector<1x128x128xf32>
    %432 = vector.shape_cast %431 : vector<1x128x128xf32> to vector<128x128xf32>
    %cst_429 = arith.constant dense<0.000000e+00> : vector<128x128xf32>
    %433 = tpu.matmul %430, %432, %cst_429 {dimension_numbers = #tpu.dot_dimension_numbers<[1], [0], [0], [1], [0, 0, 1, 1], [], []>} : vector<128x128xf32>, vector<128x128xf32>, vector<128x128xf32> -> vector<128x128xf32>
    %434 = arith.addf %428, %433 : vector<128x128xf32>
    %c0_430 = arith.constant 0 : index
    %c1_431 = arith.constant 1 : index
    %c0_432 = arith.constant 0 : index
    %c0_433 = arith.constant 0 : index
    %435 = vector.load %arg7[%c0_430, %c1_431, %c0_432, %c0_433] : memref<2x10x10x128xf32, #tpu.memory_space<vmem>>, vector<2x8x8x128xf32>
    %436 = vector.shape_cast %435 : vector<2x8x8x128xf32> to vector<128x128xf32>
    %c48 = arith.constant 48 : index
    %c0_434 = arith.constant 0 : index
    %c0_435 = arith.constant 0 : index
    %437 = vector.load %arg1[%c48, %c0_434, %c0_435] : memref<54x128x128xf32, #tpu.memory_space<vmem>>, vector<1x128x128xf32>
    %438 = vector.shape_cast %437 : vector<1x128x128xf32> to vector<128x128xf32>
    %cst_436 = arith.constant dense<0.000000e+00> : vector<128x128xf32>
    %439 = tpu.matmul %436, %438, %cst_436 {dimension_numbers = #tpu.dot_dimension_numbers<[1], [0], [0], [1], [0, 0, 1, 1], [], []>} : vector<128x128xf32>, vector<128x128xf32>, vector<128x128xf32> -> vector<128x128xf32>
    %440 = arith.addf %434, %439 : vector<128x128xf32>
    %c0_437 = arith.constant 0 : index
    %c1_438 = arith.constant 1 : index
    %c1_439 = arith.constant 1 : index
    %c0_440 = arith.constant 0 : index
    %441 = vector.load %arg7[%c0_437, %c1_438, %c1_439, %c0_440] : memref<2x10x10x128xf32, #tpu.memory_space<vmem>>, vector<2x8x8x128xf32>
    %442 = vector.shape_cast %441 : vector<2x8x8x128xf32> to vector<128x128xf32>
    %c49 = arith.constant 49 : index
    %c0_441 = arith.constant 0 : index
    %c0_442 = arith.constant 0 : index
    %443 = vector.load %arg1[%c49, %c0_441, %c0_442] : memref<54x128x128xf32, #tpu.memory_space<vmem>>, vector<1x128x128xf32>
    %444 = vector.shape_cast %443 : vector<1x128x128xf32> to vector<128x128xf32>
    %cst_443 = arith.constant dense<0.000000e+00> : vector<128x128xf32>
    %445 = tpu.matmul %442, %444, %cst_443 {dimension_numbers = #tpu.dot_dimension_numbers<[1], [0], [0], [1], [0, 0, 1, 1], [], []>} : vector<128x128xf32>, vector<128x128xf32>, vector<128x128xf32> -> vector<128x128xf32>
    %446 = arith.addf %440, %445 : vector<128x128xf32>
    %c0_444 = arith.constant 0 : index
    %c1_445 = arith.constant 1 : index
    %c2_446 = arith.constant 2 : index
    %c0_447 = arith.constant 0 : index
    %447 = vector.load %arg7[%c0_444, %c1_445, %c2_446, %c0_447] : memref<2x10x10x128xf32, #tpu.memory_space<vmem>>, vector<2x8x8x128xf32>
    %448 = vector.shape_cast %447 : vector<2x8x8x128xf32> to vector<128x128xf32>
    %c50 = arith.constant 50 : index
    %c0_448 = arith.constant 0 : index
    %c0_449 = arith.constant 0 : index
    %449 = vector.load %arg1[%c50, %c0_448, %c0_449] : memref<54x128x128xf32, #tpu.memory_space<vmem>>, vector<1x128x128xf32>
    %450 = vector.shape_cast %449 : vector<1x128x128xf32> to vector<128x128xf32>
    %cst_450 = arith.constant dense<0.000000e+00> : vector<128x128xf32>
    %451 = tpu.matmul %448, %450, %cst_450 {dimension_numbers = #tpu.dot_dimension_numbers<[1], [0], [0], [1], [0, 0, 1, 1], [], []>} : vector<128x128xf32>, vector<128x128xf32>, vector<128x128xf32> -> vector<128x128xf32>
    %452 = arith.addf %446, %451 : vector<128x128xf32>
    %c0_451 = arith.constant 0 : index
    %c2_452 = arith.constant 2 : index
    %c0_453 = arith.constant 0 : index
    %c0_454 = arith.constant 0 : index
    %453 = vector.load %arg7[%c0_451, %c2_452, %c0_453, %c0_454] : memref<2x10x10x128xf32, #tpu.memory_space<vmem>>, vector<2x8x8x128xf32>
    %454 = vector.shape_cast %453 : vector<2x8x8x128xf32> to vector<128x128xf32>
    %c51 = arith.constant 51 : index
    %c0_455 = arith.constant 0 : index
    %c0_456 = arith.constant 0 : index
    %455 = vector.load %arg1[%c51, %c0_455, %c0_456] : memref<54x128x128xf32, #tpu.memory_space<vmem>>, vector<1x128x128xf32>
    %456 = vector.shape_cast %455 : vector<1x128x128xf32> to vector<128x128xf32>
    %cst_457 = arith.constant dense<0.000000e+00> : vector<128x128xf32>
    %457 = tpu.matmul %454, %456, %cst_457 {dimension_numbers = #tpu.dot_dimension_numbers<[1], [0], [0], [1], [0, 0, 1, 1], [], []>} : vector<128x128xf32>, vector<128x128xf32>, vector<128x128xf32> -> vector<128x128xf32>
    %458 = arith.addf %452, %457 : vector<128x128xf32>
    %c0_458 = arith.constant 0 : index
    %c2_459 = arith.constant 2 : index
    %c1_460 = arith.constant 1 : index
    %c0_461 = arith.constant 0 : index
    %459 = vector.load %arg7[%c0_458, %c2_459, %c1_460, %c0_461] : memref<2x10x10x128xf32, #tpu.memory_space<vmem>>, vector<2x8x8x128xf32>
    %460 = vector.shape_cast %459 : vector<2x8x8x128xf32> to vector<128x128xf32>
    %c52 = arith.constant 52 : index
    %c0_462 = arith.constant 0 : index
    %c0_463 = arith.constant 0 : index
    %461 = vector.load %arg1[%c52, %c0_462, %c0_463] : memref<54x128x128xf32, #tpu.memory_space<vmem>>, vector<1x128x128xf32>
    %462 = vector.shape_cast %461 : vector<1x128x128xf32> to vector<128x128xf32>
    %cst_464 = arith.constant dense<0.000000e+00> : vector<128x128xf32>
    %463 = tpu.matmul %460, %462, %cst_464 {dimension_numbers = #tpu.dot_dimension_numbers<[1], [0], [0], [1], [0, 0, 1, 1], [], []>} : vector<128x128xf32>, vector<128x128xf32>, vector<128x128xf32> -> vector<128x128xf32>
    %464 = arith.addf %458, %463 : vector<128x128xf32>
    %c0_465 = arith.constant 0 : index
    %c2_466 = arith.constant 2 : index
    %c2_467 = arith.constant 2 : index
    %c0_468 = arith.constant 0 : index
    %465 = vector.load %arg7[%c0_465, %c2_466, %c2_467, %c0_468] : memref<2x10x10x128xf32, #tpu.memory_space<vmem>>, vector<2x8x8x128xf32>
    %466 = vector.shape_cast %465 : vector<2x8x8x128xf32> to vector<128x128xf32>
    %c53 = arith.constant 53 : index
    %c0_469 = arith.constant 0 : index
    %c0_470 = arith.constant 0 : index
    %467 = vector.load %arg1[%c53, %c0_469, %c0_470] : memref<54x128x128xf32, #tpu.memory_space<vmem>>, vector<1x128x128xf32>
    %468 = vector.shape_cast %467 : vector<1x128x128xf32> to vector<128x128xf32>
    %cst_471 = arith.constant dense<0.000000e+00> : vector<128x128xf32>
    %469 = tpu.matmul %466, %468, %cst_471 {dimension_numbers = #tpu.dot_dimension_numbers<[1], [0], [0], [1], [0, 0, 1, 1], [], []>} : vector<128x128xf32>, vector<128x128xf32>, vector<128x128xf32> -> vector<128x128xf32>
    %470 = arith.addf %464, %469 : vector<128x128xf32>
    %cst_472 = arith.constant dense<0.000000e+00> : vector<128xf32>
    %471 = vector.multi_reduction <add>, %470, %cst_472 [0] : vector<128x128xf32> to vector<128xf32>
    %472 = vector.shape_cast %471 : vector<128xf32> to vector<1x128xf32>
    %cst_473 = arith.constant 1.280000e+02 : f32
    %473 = vector.broadcast %cst_473 : f32 to vector<1x128xf32>
    %474 = arith.divf %472, %473 : vector<1x128xf32>
    %475 = vector.broadcast %474 : vector<1x128xf32> to vector<128x128xf32>
    %476 = arith.subf %470, %475 : vector<128x128xf32>
    %477 = arith.mulf %476, %476 : vector<128x128xf32>
    %cst_474 = arith.constant dense<0.000000e+00> : vector<128xf32>
    %478 = vector.multi_reduction <add>, %477, %cst_474 [0] : vector<128x128xf32> to vector<128xf32>
    %479 = vector.shape_cast %478 : vector<128xf32> to vector<1x128xf32>
    %cst_475 = arith.constant 1.280000e+02 : f32
    %480 = vector.broadcast %cst_475 : f32 to vector<1x128xf32>
    %481 = arith.divf %479, %480 : vector<1x128xf32>
    %c5_476 = arith.constant 5 : index
    %c0_477 = arith.constant 0 : index
    %482 = vector.load %arg2[%c5_476, %c0_477] : memref<16x128xf32, #tpu.memory_space<vmem>>, vector<1x128xf32>
    %c11_478 = arith.constant 11 : index
    %c0_479 = arith.constant 0 : index
    %483 = vector.load %arg2[%c11_478, %c0_479] : memref<16x128xf32, #tpu.memory_space<vmem>>, vector<1x128xf32>
    %cst_480 = arith.constant 9.99999974E-6 : f32
    %484 = vector.broadcast %cst_480 : f32 to vector<1x128xf32>
    %485 = arith.addf %481, %484 : vector<1x128xf32>
    %486 = math.rsqrt %485 : vector<1x128xf32>
    %487 = vector.broadcast %486 : vector<1x128xf32> to vector<128x128xf32>
    %488 = arith.mulf %476, %487 : vector<128x128xf32>
    %489 = vector.broadcast %482 : vector<1x128xf32> to vector<128x128xf32>
    %490 = arith.mulf %488, %489 : vector<128x128xf32>
    %491 = vector.broadcast %483 : vector<1x128xf32> to vector<128x128xf32>
    %492 = arith.addf %490, %491 : vector<128x128xf32>
    %cst_481 = arith.constant 0.000000e+00 : f32
    %493 = vector.broadcast %cst_481 : f32 to vector<128x128xf32>
    %494 = arith.maximumf %492, %493 : vector<128x128xf32>
    %495 = vector.shape_cast %494 : vector<128x128xf32> to vector<2x64x128xf32>
    %cst_482 = arith.constant dense<0.000000e+00> : vector<2x128xf32>
    %496 = vector.multi_reduction <add>, %495, %cst_482 [1] : vector<2x64x128xf32> to vector<2x128xf32>
    %cst_483 = arith.constant 6.400000e+01 : f32
    %497 = vector.broadcast %cst_483 : f32 to vector<2x128xf32>
    %498 = arith.divf %496, %497 : vector<2x128xf32>
    %c12_484 = arith.constant 12 : index
    %c0_485 = arith.constant 0 : index
    %499 = vector.load %arg2[%c12_484, %c0_485] : memref<16x128xf32, #tpu.memory_space<vmem>>, vector<1x128xf32>
    %c13_486 = arith.constant 13 : index
    %c0_487 = arith.constant 0 : index
    %500 = vector.load %arg2[%c13_486, %c0_487] : memref<16x128xf32, #tpu.memory_space<vmem>>, vector<1x128xf32>
    %501 = vector.extract_strided_slice %500 {offsets = [0, 0], sizes = [1, 1], strides = [1, 1]} : vector<1x128xf32> to vector<1x1xf32>
    %502 = vector.broadcast %499 : vector<1x128xf32> to vector<2x128xf32>
    %503 = arith.mulf %498, %502 : vector<2x128xf32>
    %cst_488 = arith.constant dense<0.000000e+00> : vector<2xf32>
    %504 = vector.multi_reduction <add>, %503, %cst_488 [1] : vector<2x128xf32> to vector<2xf32>
    %505 = vector.shape_cast %504 : vector<2xf32> to vector<2x1xf32>
    %506 = vector.broadcast %501 : vector<1x1xf32> to vector<2x1xf32>
    %507 = arith.addf %505, %506 : vector<2x1xf32>
    %cst_489 = arith.constant 0.000000e+00 : f32
    %508 = vector.broadcast %cst_489 : f32 to vector<2x1xf32>
    %509 = arith.subf %508, %507 : vector<2x1xf32>
    %510 = math.exp %509 : vector<2x1xf32>
    %cst_490 = arith.constant 1.000000e+00 : f32
    %511 = vector.broadcast %cst_490 : f32 to vector<2x1xf32>
    %512 = arith.addf %511, %510 : vector<2x1xf32>
    %cst_491 = arith.constant 1.000000e+00 : f32
    %513 = vector.broadcast %cst_491 : f32 to vector<2x1xf32>
    %514 = arith.divf %513, %512 : vector<2x1xf32>
    %c0_492 = arith.constant 0 : index
    %c0_493 = arith.constant 0 : index
    %515 = vector.load %arg4[%c0_492, %c0_493] : memref<2x1xf32, #tpu.memory_space<vmem>>, vector<2x1xf32>
    tpu.vector_store %arg4[%c0_492, %c0_493], %514 {strides = array<i32>} : memref<2x1xf32, #tpu.memory_space<vmem>>, vector<2x1xf32>,
    return
  }
}

</mosaic_0001>

<llo_original>
// kernel: net_forward.1
$region0: #{net_forward.1}
  #allocation0 [shape = 'u32[]', space=smem, size = 0x4, offset = 0x4, fixed_abs, tag = 'smem constant byte address 0x4 - core index']
  #allocation1 [shape = 'u32[72,128]{1,0:T(1,128)}', space=vmem, size = 0x9000, scoped, tag = 'internal scratch']
  #allocation2 [shape = 'f32[2,10,10,128]{3,2,1,0:T(8,128)}', space=vmem, size = 0x28000, scoped, tag = 'scratch operand']
  %s0 = inlined_call_operand.vmem [shape: f32[2,8,8,128], index: 0, kind: input, shape index: {}]
  %s1 = inlined_call_operand.hbm [shape: f32[54,128,128], index: 1, kind: input, shape index: {}]
  %s2 = inlined_call_operand.hbm [shape: f32[16,128], index: 2, kind: input, shape index: {}]
  %s3 = inlined_call_operand.hbm [shape: f32[128,128], index: 3, kind: input, shape index: {}]
  %s4 = inlined_call_operand.vmem [shape: f32[2,1], index: 4, kind: output, shape index: {0}]
  %s5 = inlined_call_operand.hbm [shape: f32[2,8,8,11], index: 5, kind: output, shape index: {1}]
  %s6 = inlined_call_operand.hbm [shape: f32[2,8,8,22], index: 6, kind: output, shape index: {2}]
  %7 = xla_tuple %s4, %s5, %s6
  %s8 = sld [smem:[#allocation0]]
  $region54: #{net_forward.1} parent=0
    _
  %s10 = ssub.s32 1, %s8
  %s11 = scalar_select 0, %s10, %s8
  $region1: #{net_forward.1} parent=0
    #allocation3 [shape = 'u8[3538944]{0}', space=vmem, size = 0x360000, scoped, tag = 'input window, operand 1, single buffered']
    #allocation4 [shape = 's32[1]{0}', space=sflag, size = 0x4, scoped, tag = 'scoped memory for net_forward.1']
    #allocation5 [shape = 's32[1]{0}', space=sflag, size = 0x4, scoped, tag = 'scoped memory for net_forward.1']
    #allocation6 [shape = 'u8[8192]{0}', space=vmem, size = 0x2000, scoped, tag = 'input window, operand 2, single buffered']
    #allocation7 [shape = 's32[1]{0}', space=sflag, size = 0x4, scoped, tag = 'scoped memory for net_forward.1']
    #allocation8 [shape = 'u8[65536]{0}', space=vmem, size = 0x10000, scoped, tag = 'input window, operand 3, single buffered']
    #allocation9 [shape = 'u8[65536]{0}', space=vmem, size = 0x10000, scoped, tag = 'output window, operand 1, single buffered']
    #allocation10 [shape = 'u8[65536]{0}', space=vmem, size = 0x10000, scoped, tag = 'output window, operand 2, single buffered']
    #allocation11 [shape = 's32[1]{0}', space=sflag, size = 0x4, scoped, tag = 'scoped memory for net_forward.1']
    %12 = vsyncpa [#allocation4], 0
    %13 = vsyncpa [#allocation7], 0
    %14 = vsyncpa [#allocation5], 0
    %15 = vsyncpa [#allocation11], 0
    // Predicated region
    $region2: #{net_forward.1} parent=1 // pred_check
      _
    $region3: #{net_forward.1} parent=1 // pred_check_branch
      %17 = sbr.rel (0) target = $region5
    $region4: #{net_forward.1} parent=1 // pred_region
      _
    $region5: #{net_forward.1} parent=1 // pred_fallthru
      _
    // Predicated region
    $region6: #{net_forward.1} parent=1 // pred_check
      _
    $region7: #{net_forward.1} parent=1 // pred_check_branch
      %19 = sbr.rel (0) target = $region9
    $region8: #{net_forward.1} parent=1 // pred_region
      %21 = vsyncadd [#allocation4], 0
      %s22 = sshll.u32 %s1, 4
      %s23 = int_to_ptr.hbm [resolvable:$true] %s22
      %s24 = sshll.u32 [#allocation3], 4
      %s25 = int_to_ptr.vmem [resolvable:$true] %s24
      %30 = dma.hbm_to_vmem [thread:$0]  %s23, 110592, %s25, [#allocation4], 128, 128, 8
    $region9: #{net_forward.1} parent=1 // pred_fallthru
      _
    // Predicated region
    $region10: #{net_forward.1} parent=1 // pred_check
      _
    $region11: #{net_forward.1} parent=1 // pred_check_branch
      %32 = sbr.rel (0) target = $region13
    $region12: #{net_forward.1} parent=1 // pred_region
      %34 = vsyncadd [#allocation7], 0
      %s35 = sshll.u32 %s2, 4
      %s36 = int_to_ptr.hbm [resolvable:$true] %s35
      %s37 = sshll.u32 [#allocation6], 4
      %s38 = int_to_ptr.vmem [resolvable:$true] %s37
      %43 = dma.hbm_to_vmem [thread:$0]  %s36, 256, %s38, [#allocation7], 128, 128, 8
    $region13: #{net_forward.1} parent=1 // pred_fallthru
      _
    // Predicated region
    $region14: #{net_forward.1} parent=1 // pred_check
      _
    $region15: #{net_forward.1} parent=1 // pred_check_branch
      %45 = sbr.rel (0) target = $region17
    $region16: #{net_forward.1} parent=1 // pred_region
      %47 = vsyncadd [#allocation7], 0
      %s48 = sshll.u32 %s3, 4
      %s49 = int_to_ptr.hbm [resolvable:$true] %s48
      %s50 = sshll.u32 [#allocation8], 4
      %s51 = int_to_ptr.vmem [resolvable:$true] %s50
      %56 = dma.hbm_to_vmem [thread:$0]  %s49, 2048, %s51, [#allocation7], 128, 128, 8
    $region17: #{net_forward.1} parent=1 // pred_fallthru
      _
    // Predicated region
    $region18: #{net_forward.1} parent=1 // pred_check
      _
    $region19: #{net_forward.1} parent=1 // pred_check_branch
      %58 = sbr.rel (0) target = $region21
    $region20: #{net_forward.1} parent=1 // pred_region
      %60 = dma.done [#allocation4], 110592
    $region21: #{net_forward.1} parent=1 // pred_fallthru
      _
    // Predicated region
    $region22: #{net_forward.1} parent=1 // pred_check
      _
    $region23: #{net_forward.1} parent=1 // pred_check_branch
      %62 = sbr.rel (0) target = $region25
    $region24: #{net_forward.1} parent=1 // pred_region
      %64 = dma.done [#allocation7], 256
    $region25: #{net_forward.1} parent=1 // pred_fallthru
      _
    // Predicated region
    $region26: #{net_forward.1} parent=1 // pred_check
      _
    $region27: #{net_forward.1} parent=1 // pred_check_branch
      %66 = sbr.rel (0) target = $region29
    $region28: #{net_forward.1} parent=1 // pred_region
      %68 = dma.done [#allocation7], 2048
    $region29: #{net_forward.1} parent=1 // pred_fallthru
      _
    %69 = vst [vmem:[#allocation2] sm:$0xff] 0.0
    %70 = vst [vmem:[#allocation2 + $0x8] sm:$0x3] 0.0
    %71 = vst [vmem:[#allocation2 + $0x10] sm:$0xff] 0.0
    %72 = vst [vmem:[#allocation2 + $0x18] sm:$0x3] 0.0
    %73 = vst [vmem:[#allocation2 + $0x20] sm:$0xff] 0.0
    %74 = vst [vmem:[#allocation2 + $0x28] sm:$0x3] 0.0
    %75 = vst [vmem:[#allocation2 + $0x30] sm:$0xff] 0.0
    %76 = vst [vmem:[#allocation2 + $0x38] sm:$0x3] 0.0
    %77 = vst [vmem:[#allocation2 + $0x40] sm:$0xff] 0.0
    %78 = vst [vmem:[#allocation2 + $0x48] sm:$0x3] 0.0
    %79 = vst [vmem:[#allocation2 + $0x50] sm:$0xff] 0.0
    %80 = vst [vmem:[#allocation2 + $0x58] sm:$0x3] 0.0
    %81 = vst [vmem:[#allocation2 + $0x60] sm:$0xff] 0.0
    %82 = vst [vmem:[#allocation2 + $0x68] sm:$0x3] 0.0
    %83 = vst [vmem:[#allocation2 + $0x70] sm:$0xff] 0.0
    %84 = vst [vmem:[#allocation2 + $0x78] sm:$0x3] 0.0
    %85 = vst [vmem:[#allocation2 + $0x80] sm:$0xff] 0.0
    %86 = vst [vmem:[#allocation2 + $0x88] sm:$0x3] 0.0
    %87 = vst [vmem:[#allocation2 + $0x90] sm:$0xff] 0.0
    %88 = vst [vmem:[#allocation2 + $0x98] sm:$0x3] 0.0
    %89 = vst [vmem:[#allocation2 + $0xa0] sm:$0xff] 0.0
    %90 = vst [vmem:[#allocation2 + $0xa8] sm:$0x3] 0.0
    %91 = vst [vmem:[#allocation2 + $0xb0] sm:$0xff] 0.0
    %92 = vst [vmem:[#allocation2 + $0xb8] sm:$0x3] 0.0
    %93 = vst [vmem:[#allocation2 + $0xc0] sm:$0xff] 0.0
    %94 = vst [vmem:[#allocation2 + $0xc8] sm:$0x3] 0.0
    %95 = vst [vmem:[#allocation2 + $0xd0] sm:$0xff] 0.0
    %96 = vst [vmem:[#allocation2 + $0xd8] sm:$0x3] 0.0
    %97 = vst [vmem:[#allocation2 + $0xe0] sm:$0xff] 0.0
    %98 = vst [vmem:[#allocation2 + $0xe8] sm:$0x3] 0.0
    %99 = vst [vmem:[#allocation2 + $0xf0] sm:$0xff] 0.0
    %100 = vst [vmem:[#allocation2 + $0xf8] sm:$0x3] 0.0
    %101 = vst [vmem:[#allocation2 + $0x100] sm:$0xff] 0.0
    %102 = vst [vmem:[#allocation2 + $0x108] sm:$0x3] 0.0
    %103 = vst [vmem:[#allocation2 + $0x110] sm:$0xff] 0.0
    %104 = vst [vmem:[#allocation2 + $0x118] sm:$0x3] 0.0
    %105 = vst [vmem:[#allocation2 + $0x120] sm:$0xff] 0.0
    %106 = vst [vmem:[#allocation2 + $0x128] sm:$0x3] 0.0
    %107 = vst [vmem:[#allocation2 + $0x130] sm:$0xff] 0.0
    %108 = vst [vmem:[#allocation2 + $0x138] sm:$0x3] 0.0
    %v109 = vld [vmem:[%s0] sm:$0xff]
    %v110 = vld [vmem:[%s0 + $0x8] sm:$0xff]
    %v111 = vld [vmem:[%s0 + $0x10] sm:$0xff]
    %v112 = vld [vmem:[%s0 + $0x18] sm:$0xff]
    %v113 = vld [vmem:[%s0 + $0x20] sm:$0xff]
    %v114 = vld [vmem:[%s0 + $0x28] sm:$0xff]
    %v115 = vld [vmem:[%s0 + $0x30] sm:$0xff]
    %v116 = vld [vmem:[%s0 + $0x38] sm:$0xff]
    %v117 = vld [vmem:[%s0 + $0x40] sm:$0xff]
    %v118 = vld [vmem:[%s0 + $0x48] sm:$0xff]
    %v119 = vld [vmem:[%s0 + $0x50] sm:$0xff]
    %v120 = vld [vmem:[%s0 + $0x58] sm:$0xff]
    %v121 = vld [vmem:[%s0 + $0x60] sm:$0xff]
    %v122 = vld [vmem:[%s0 + $0x68] sm:$0xff]
    %v123 = vld [vmem:[%s0 + $0x70] sm:$0xff]
    %v124 = vld [vmem:[%s0 + $0x78] sm:$0xff]
    %s125 = scalar_lea.vmem [#allocation2], 16
    %126 = vst [vmem:[%s125 + $0x1] sm:$0xff] %v109
    %127 = vst [vmem:[%s125 + $0x11] sm:$0xff] %v110
    %128 = vst [vmem:[%s125 + $0x21] sm:$0xff] %v111
    %129 = vst [vmem:[%s125 + $0x31] sm:$0xff] %v112
    %130 = vst [vmem:[%s125 + $0x41] sm:$0xff] %v113
    %131 = vst [vmem:[%s125 + $0x51] sm:$0xff] %v114
    %132 = vst [vmem:[%s125 + $0x61] sm:$0xff] %v115
    %133 = vst [vmem:[%s125 + $0x71] sm:$0xff] %v116
    %134 = vst [vmem:[%s125 + $0xa1] sm:$0xff] %v117
    %135 = vst [vmem:[%s125 + $0xb1] sm:$0xff] %v118
    %136 = vst [vmem:[%s125 + $0xc1] sm:$0xff] %v119
    %137 = vst [vmem:[%s125 + $0xd1] sm:$0xff] %v120
    %138 = vst [vmem:[%s125 + $0xe1] sm:$0xff] %v121
    %139 = vst [vmem:[%s125 + $0xf1] sm:$0xff] %v122
    %140 = vst [vmem:[%s125 + $0x101] sm:$0xff] %v123
    %141 = vst [vmem:[%s125 + $0x111] sm:$0xff] %v124
    %v142 = vld [vmem:[#allocation2] sm:$0xff]
    %v143 = vld [vmem:[#allocation2 + $0x10] sm:$0xff]
    %v144 = vld [vmem:[#allocation2 + $0x20] sm:$0xff]
    %v145 = vld [vmem:[#allocation2 + $0x30] sm:$0xff]
    %v146 = vld [vmem:[#allocation2 + $0x40] sm:$0xff]
    %v147 = vld [vmem:[#allocation2 + $0x50] sm:$0xff]
    %v148 = vld [vmem:[#allocation2 + $0x60] sm:$0xff]
    %v149 = vld [vmem:[#allocation2 + $0x70] sm:$0xff]
    %v150 = vld [vmem:[#allocation2 + $0xa0] sm:$0xff]
    %v151 = vld [vmem:[#allocation2 + $0xb0] sm:$0xff]
    %v152 = vld [vmem:[#allocation2 + $0xc0] sm:$0xff]
    %v153 = vld [vmem:[#allocation2 + $0xd0] sm:$0xff]
    %v154 = vld [vmem:[#allocation2 + $0xe0] sm:$0xff]
    %v155 = vld [vmem:[#allocation2 + $0xf0] sm:$0xff]
    %v156 = vld [vmem:[#allocation2 + $0x100] sm:$0xff]
    %v157 = vld [vmem:[#allocation2 + $0x110] sm:$0xff]
    %v158 = vld [vmem:[#allocation3] sm:$0xff]
    %v159 = vld [vmem:[#allocation3 + $0x8] sm:$0xff]
    %v160 = vld [vmem:[#allocation3 + $0x10] sm:$0xff]
    %v161 = vld [vmem:[#allocation3 + $0x18] sm:$0xff]
    %v162 = vld [vmem:[#allocation3 + $0x20] sm:$0xff]
    %v163 = vld [vmem:[#allocation3 + $0x28] sm:$0xff]
    %v164 = vld [vmem:[#allocation3 + $0x30] sm:$0xff]
    %v165 = vld [vmem:[#allocation3 + $0x38] sm:$0xff]
    %v166 = vld [vmem:[#allocation3 + $0x40] sm:$0xff]
    %v167 = vld [vmem:[#allocation3 + $0x48] sm:$0xff]
    %v168 = vld [vmem:[#allocation3 + $0x50] sm:$0xff]
    %v169 = vld [vmem:[#allocation3 + $0x58] sm:$0xff]
    %v170 = vld [vmem:[#allocation3 + $0x60] sm:$0xff]
    %v171 = vld [vmem:[#allocation3 + $0x68] sm:$0xff]
    %v172 = vld [vmem:[#allocation3 + $0x70] sm:$0xff]
    %v173 = vld [vmem:[#allocation3 + $0x78] sm:$0xff]
    %v174 = vld [vmem:[#allocation2 + $0x1] sm:$0xff]
    %v175 = vld [vmem:[#allocation2 + $0x11] sm:$0xff]
    %v176 = vld [vmem:[#allocation2 + $0x21] sm:$0xff]
    %v177 = vld [vmem:[#allocation2 + $0x31] sm:$0xff]
    %v178 = vld [vmem:[#allocation2 + $0x41] sm:$0xff]
    %v179 = vld [vmem:[#allocation2 + $0x51] sm:$0xff]
    %v180 = vld [vmem:[#allocation2 + $0x61] sm:$0xff]
    %v181 = vld [vmem:[#allocation2 + $0x71] sm:$0xff]
    %v182 = vld [vmem:[#allocation2 + $0xa1] sm:$0xff]
    %v183 = vld [vmem:[#allocation2 + $0xb1] sm:$0xff]
    %v184 = vld [vmem:[#allocation2 + $0xc1] sm:$0xff]
    %v185 = vld [vmem:[#allocation2 + $0xd1] sm:$0xff]
    %v186 = vld [vmem:[#allocation2 + $0xe1] sm:$0xff]
    %v187 = vld [vmem:[#allocation2 + $0xf1] sm:$0xff]
    %v188 = vld [vmem:[#allocation2 + $0x101] sm:$0xff]
    %v189 = vld [vmem:[#allocation2 + $0x111] sm:$0xff]
    %s190 = scalar_lea.vmem [#allocation3], 128
    %v191 = vld [vmem:[%s190] sm:$0xff]
    %v192 = vld [vmem:[%s190 + $0x8] sm:$0xff]
    %v193 = vld [vmem:[%s190 + $0x10] sm:$0xff]
    %v194 = vld [vmem:[%s190 + $0x18] sm:$0xff]
    %v195 = vld [vmem:[%s190 + $0x20] sm:$0xff]
    %v196 = vld [vmem:[%s190 + $0x28] sm:$0xff]
    %v197 = vld [vmem:[%s190 + $0x30] sm:$0xff]
    %v198 = vld [vmem:[%s190 + $0x38] sm:$0xff]
    %v199 = vld [vmem:[%s190 + $0x40] sm:$0xff]
    %v200 = vld [vmem:[%s190 + $0x48] sm:$0xff]
    %v201 = vld [vmem:[%s190 + $0x50] sm:$0xff]
    %v202 = vld [vmem:[%s190 + $0x58] sm:$0xff]
    %v203 = vld [vmem:[%s190 + $0x60] sm:$0xff]
    %v204 = vld [vmem:[%s190 + $0x68] sm:$0xff]
    %v205 = vld [vmem:[%s190 + $0x70] sm:$0xff]
    %v206 = vld [vmem:[%s190 + $0x78] sm:$0xff]
    %207 = vmatpush.msra.mxu0 %v206
    %208 = vmatpush.msra.mxu0 %v205
    %209 = vmatpush.msra.mxu0 %v204
    %210 = vmatpush.msra.mxu0 %v203
    %211 = vmatpush.msra.mxu0 %v202
    %212 = vmatpush.msra.mxu0 %v201
    %213 = vmatpush.msra.mxu0 %v200
    %214 = vmatpush.msra.mxu0 %v199
    %215 = vmatpush.msra.mxu0 %v198
    %216 = vmatpush.msra.mxu0 %v197
    %217 = vmatpush.msra.mxu0 %v196
    %218 = vmatpush.msra.mxu0 %v195
    %219 = vmatpush.msra.mxu0 %v194
    %220 = vmatpush.msra.mxu0 %v193
    %221 = vmatpush.msra.mxu0 %v192
    %222 = vmatpush.msra.mxu0 %v191
    %223 = vmatmul.f32.gmra.mxu0 %v174
    %v224 = vpop.f32.mrf.mxu0
    %v225 = vadd.f32 0.0, %v224
    %226 = vmatmul.f32.gmra.mxu0 %v175
    %v227 = vpop.f32.mrf.mxu0
    %v228 = vadd.f32 0.0, %v227
    %229 = vmatmul.f32.gmra.mxu0 %v176
    %v230 = vpop.f32.mrf.mxu0
    %v231 = vadd.f32 0.0, %v230
    %232 = vmatmul.f32.gmra.mxu0 %v177
    %v233 = vpop.f32.mrf.mxu0
    %v234 = vadd.f32 0.0, %v233
    %235 = vmatmul.f32.gmra.mxu0 %v178
    %v236 = vpop.f32.mrf.mxu0
    %v237 = vadd.f32 0.0, %v236
    %238 = vmatmul.f32.gmra.mxu0 %v179
    %v239 = vpop.f32.mrf.mxu0
    %v240 = vadd.f32 0.0, %v239
    %241 = vmatmul.f32.gmra.mxu0 %v180
    %v242 = vpop.f32.mrf.mxu0
    %v243 = vadd.f32 0.0, %v242
    %244 = vmatmul.f32.gmra.mxu0 %v181
    %v245 = vpop.f32.mrf.mxu0
    %v246 = vadd.f32 0.0, %v245
    %247 = vmatmul.f32.gmra.mxu0 %v182
    %v248 = vpop.f32.mrf.mxu0
    %v249 = vadd.f32 0.0, %v248
    %250 = vmatmul.f32.gmra.mxu0 %v183
    %v251 = vpop.f32.mrf.mxu0
    %v252 = vadd.f32 0.0, %v251
    %253 = vmatmul.f32.gmra.mxu0 %v184
    %v254 = vpop.f32.mrf.mxu0
    %v255 = vadd.f32 0.0, %v254
    %256 = vmatmul.f32.gmra.mxu0 %v185
    %v257 = vpop.f32.mrf.mxu0
    %v258 = vadd.f32 0.0, %v257
    %259 = vmatmul.f32.gmra.mxu0 %v186
    %v260 = vpop.f32.mrf.mxu0
    %v261 = vadd.f32 0.0, %v260
    %262 = vmatmul.f32.gmra.mxu0 %v187
    %v263 = vpop.f32.mrf.mxu0
    %v264 = vadd.f32 0.0, %v263
    %265 = vmatmul.f32.gmra.mxu0 %v188
    %v266 = vpop.f32.mrf.mxu0
    %v267 = vadd.f32 0.0, %v266
    %268 = vmatmul.f32.gmra.mxu0 %v189
    %v269 = vpop.f32.mrf.mxu0
    %v270 = vadd.f32 0.0, %v269
    %271 = vdwg.mxu0
    %272 = vmatpush.msra.mxu0 %v173
    %273 = vmatpush.msra.mxu0 %v172
    %274 = vmatpush.msra.mxu0 %v171
    %275 = vmatpush.msra.mxu0 %v170
    %276 = vmatpush.msra.mxu0 %v169
    %277 = vmatpush.msra.mxu0 %v168
    %278 = vmatpush.msra.mxu0 %v167
    %279 = vmatpush.msra.mxu0 %v166
    %280 = vmatpush.msra.mxu0 %v165
    %281 = vmatpush.msra.mxu0 %v164
    %282 = vmatpush.msra.mxu0 %v163
    %283 = vmatpush.msra.mxu0 %v162
    %284 = vmatpush.msra.mxu0 %v161
    %285 = vmatpush.msra.mxu0 %v160
    %286 = vmatpush.msra.mxu0 %v159
    %287 = vmatpush.msra.mxu0 %v158
    %288 = vmatmul.f32.gmra.mxu0 %v142
    %v289 = vpop.f32.mrf.mxu0
    %v290 = vadd.f32 %v225, %v289
    %291 = vmatmul.f32.gmra.mxu0 %v143
    %v292 = vpop.f32.mrf.mxu0
    %v293 = vadd.f32 %v228, %v292
    %294 = vmatmul.f32.gmra.mxu0 %v144
    %v295 = vpop.f32.mrf.mxu0
    %v296 = vadd.f32 %v231, %v295
    %297 = vmatmul.f32.gmra.mxu0 %v145
    %v298 = vpop.f32.mrf.mxu0
    %v299 = vadd.f32 %v234, %v298
    %300 = vmatmul.f32.gmra.mxu0 %v146
    %v301 = vpop.f32.mrf.mxu0
    %v302 = vadd.f32 %v237, %v301
    %303 = vmatmul.f32.gmra.mxu0 %v147
    %v304 = vpop.f32.mrf.mxu0
    %v305 = vadd.f32 %v240, %v304
    %306 = vmatmul.f32.gmra.mxu0 %v148
    %v307 = vpop.f32.mrf.mxu0
    %v308 = vadd.f32 %v243, %v307
    %309 = vmatmul.f32.gmra.mxu0 %v149
    %v310 = vpop.f32.mrf.mxu0
    %v311 = vadd.f32 %v246, %v310
    %312 = vmatmul.f32.gmra.mxu0 %v150
    %v313 = vpop.f32.mrf.mxu0
    %v314 = vadd.f32 %v249, %v313
    %315 = vmatmul.f32.gmra.mxu0 %v151
    %v316 = vpop.f32.mrf.mxu0
    %v317 = vadd.f32 %v252, %v316
    %318 = vmatmul.f32.gmra.mxu0 %v152
    %v319 = vpop.f32.mrf.mxu0
    %v320 = vadd.f32 %v255, %v319
    %321 = vmatmul.f32.gmra.mxu0 %v153
    %v322 = vpop.f32.mrf.mxu0
    %v323 = vadd.f32 %v258, %v322
    %324 = vmatmul.f32.gmra.mxu0 %v154
    %v325 = vpop.f32.mrf.mxu0
    %v326 = vadd.f32 %v261, %v325
    %327 = vmatmul.f32.gmra.mxu0 %v155
    %v328 = vpop.f32.mrf.mxu0
    %v329 = vadd.f32 %v264, %v328
    %330 = vmatmul.f32.gmra.mxu0 %v156
    %v331 = vpop.f32.mrf.mxu0
    %v332 = vadd.f32 %v267, %v331
    %333 = vmatmul.f32.gmra.mxu0 %v157
    %v334 = vpop.f32.mrf.mxu0
    %v335 = vadd.f32 %v270, %v334
    %336 = vdwg.mxu0
    %v337 = vld [vmem:[#allocation2 + $0x2] sm:$0xff]
    %v338 = vld [vmem:[#allocation2 + $0x12] sm:$0xff]
    %v339 = vld [vmem:[#allocation2 + $0x22] sm:$0xff]
    %v340 = vld [vmem:[#allocation2 + $0x32] sm:$0xff]
    %v341 = vld [vmem:[#allocation2 + $0x42] sm:$0xff]
    %v342 = vld [vmem:[#allocation2 + $0x52] sm:$0xff]
    %v343 = vld [vmem:[#allocation2 + $0x62] sm:$0xff]
    %v344 = vld [vmem:[#allocation2 + $0x72] sm:$0xff]
    %v345 = vld [vmem:[#allocation2 + $0xa2] sm:$0xff]
    %v346 = vld [vmem:[#allocation2 + $0xb2] sm:$0xff]
    %v347 = vld [vmem:[#allocation2 + $0xc2] sm:$0xff]
    %v348 = vld [vmem:[#allocation2 + $0xd2] sm:$0xff]
    %v349 = vld [vmem:[#allocation2 + $0xe2] sm:$0xff]
    %v350 = vld [vmem:[#allocation2 + $0xf2] sm:$0xff]
    %v351 = vld [vmem:[#allocation2 + $0x102] sm:$0xff]
    %v352 = vld [vmem:[#allocation2 + $0x112] sm:$0xff]
    %s353 = scalar_lea.vmem [#allocation3], 256
    %v354 = vld [vmem:[%s353] sm:$0xff]
    %v355 = vld [vmem:[%s353 + $0x8] sm:$0xff]
    %v356 = vld [vmem:[%s353 + $0x10] sm:$0xff]
    %v357 = vld [vmem:[%s353 + $0x18] sm:$0xff]
    %v358 = vld [vmem:[%s353 + $0x20] sm:$0xff]
    %v359 = vld [vmem:[%s353 + $0x28] sm:$0xff]
    %v360 = vld [vmem:[%s353 + $0x30] sm:$0xff]
    %v361 = vld [vmem:[%s353 + $0x38] sm:$0xff]
    %v362 = vld [vmem:[%s353 + $0x40] sm:$0xff]
    %v363 = vld [vmem:[%s353 + $0x48] sm:$0xff]
    %v364 = vld [vmem:[%s353 + $0x50] sm:$0xff]
    %v365 = vld [vmem:[%s353 + $0x58] sm:$0xff]
    %v366 = vld [vmem:[%s353 + $0x60] sm:$0xff]
    %v367 = vld [vmem:[%s353 + $0x68] sm:$0xff]
    %v368 = vld [vmem:[%s353 + $0x70] sm:$0xff]
    %v369 = vld [vmem:[%s353 + $0x78] sm:$0xff]
    %370 = vmatpush.msra.mxu0 %v369
    %371 = vmatpush.msra.mxu0 %v368
    %372 = vmatpush.msra.mxu0 %v367
    %373 = vmatpush.msra.mxu0 %v366
    %374 = vmatpush.msra.mxu0 %v365
    %375 = vmatpush.msra.mxu0 %v364
    %376 = vmatpush.msra.mxu0 %v363
    %377 = vmatpush.msra.mxu0 %v362
    %378 = vmatpush.msra.mxu0 %v361
    %379 = vmatpush.msra.mxu0 %v360
    %380 = vmatpush.msra.mxu0 %v359
    %381 = vmatpush.msra.mxu0 %v358
    %382 = vmatpush.msra.mxu0 %v357
    %383 = vmatpush.msra.mxu0 %v356
    %384 = vmatpush.msra.mxu0 %v355
    %385 = vmatpush.msra.mxu0 %v354
    %386 = vmatmul.f32.gmra.mxu0 %v337
    %v387 = vpop.f32.mrf.mxu0
    %v388 = vadd.f32 0.0, %v387
    %389 = vmatmul.f32.gmra.mxu0 %v338
    %v390 = vpop.f32.mrf.mxu0
    %v391 = vadd.f32 0.0, %v390
    %392 = vmatmul.f32.gmra.mxu0 %v339
    %v393 = vpop.f32.mrf.mxu0
    %v394 = vadd.f32 0.0, %v393
    %395 = vmatmul.f32.gmra.mxu0 %v340
    %v396 = vpop.f32.mrf.mxu0
    %v397 = vadd.f32 0.0, %v396
    %398 = vmatmul.f32.gmra.mxu0 %v341
    %v399 = vpop.f32.mrf.mxu0
    %v400 = vadd.f32 0.0, %v399
    %401 = vmatmul.f32.gmra.mxu0 %v342
    %v402 = vpop.f32.mrf.mxu0
    %v403 = vadd.f32 0.0, %v402
    %404 = vmatmul.f32.gmra.mxu0 %v343
    %v405 = vpop.f32.mrf.mxu0
    %v406 = vadd.f32 0.0, %v405
    %407 = vmatmul.f32.gmra.mxu0 %v344
    %v408 = vpop.f32.mrf.mxu0
    %v409 = vadd.f32 0.0, %v408
    %410 = vmatmul.f32.gmra.mxu0 %v345
    %v411 = vpop.f32.mrf.mxu0
    %v412 = vadd.f32 0.0, %v411
    %413 = vmatmul.f32.gmra.mxu0 %v346
    %v414 = vpop.f32.mrf.mxu0
    %v415 = vadd.f32 0.0, %v414
    %416 = vmatmul.f32.gmra.mxu0 %v347
    %v417 = vpop.f32.mrf.mxu0
    %v418 = vadd.f32 0.0, %v417
    %419 = vmatmul.f32.gmra.mxu0 %v348
    %v420 = vpop.f32.mrf.mxu0
    %v421 = vadd.f32 0.0, %v420
    %422 = vmatmul.f32.gmra.mxu0 %v349
    %v423 = vpop.f32.mrf.mxu0
    %v424 = vadd.f32 0.0, %v423
    %425 = vmatmul.f32.gmra.mxu0 %v350
    %v426 = vpop.f32.mrf.mxu0
    %v427 = vadd.f32 0.0, %v426
    %428 = vmatmul.f32.gmra.mxu0 %v351
    %v429 = vpop.f32.mrf.mxu0
    %v430 = vadd.f32 0.0, %v429
    %431 = vmatmul.f32.gmra.mxu0 %v352
    %v432 = vpop.f32.mrf.mxu0
    %v433 = vadd.f32 0.0, %v432
    %434 = vdwg.mxu0
    %v435 = vadd.f32 %v290, %v388
    %v436 = vadd.f32 %v293, %v391
    %v437 = vadd.f32 %v296, %v394
    %v438 = vadd.f32 %v299, %v397
    %v439 = vadd.f32 %v302, %v400
    %v440 = vadd.f32 %v305, %v403
    %v441 = vadd.f32 %v308, %v406
    %v442 = vadd.f32 %v311, %v409
    %v443 = vadd.f32 %v314, %v412
    %v444 = vadd.f32 %v317, %v415
    %v445 = vadd.f32 %v320, %v418
    %v446 = vadd.f32 %v323, %v421
    %v447 = vadd.f32 %v326, %v424
    %v448 = vadd.f32 %v329, %v427
    %v449 = vadd.f32 %v332, %v430
    %v450 = vadd.f32 %v335, %v433
    %v451 = vld [vmem:[%s125] sm:$0xff]
    %v452 = vld [vmem:[%s125 + $0x10] sm:$0xff]
    %v453 = vld [vmem:[%s125 + $0x20] sm:$0xff]
    %v454 = vld [vmem:[%s125 + $0x30] sm:$0xff]
    %v455 = vld [vmem:[%s125 + $0x40] sm:$0xff]
    %v456 = vld [vmem:[%s125 + $0x50] sm:$0xff]
    %v457 = vld [vmem:[%s125 + $0x60] sm:$0xff]
    %v458 = vld [vmem:[%s125 + $0x70] sm:$0xff]
    %v459 = vld [vmem:[%s125 + $0xa0] sm:$0xff]
    %v460 = vld [vmem:[%s125 + $0xb0] sm:$0xff]
    %v461 = vld [vmem:[%s125 + $0xc0] sm:$0xff]
    %v462 = vld [vmem:[%s125 + $0xd0] sm:$0xff]
    %v463 = vld [vmem:[%s125 + $0xe0] sm:$0xff]
    %v464 = vld [vmem:[%s125 + $0xf0] sm:$0xff]
    %v465 = vld [vmem:[%s125 + $0x100] sm:$0xff]
    %v466 = vld [vmem:[%s125 + $0x110] sm:$0xff]
    %s467 = scalar_lea.vmem [#allocation3], 384
    %v468 = vld [vmem:[%s467] sm:$0xff]
    %v469 = vld [vmem:[%s467 + $0x8] sm:$0xff]
    %v470 = vld [vmem:[%s467 + $0x10] sm:$0xff]
    %v471 = vld [vmem:[%s467 + $0x18] sm:$0xff]
    %v472 = vld [vmem:[%s467 + $0x20] sm:$0xff]
    %v473 = vld [vmem:[%s467 + $0x28] sm:$0xff]
    %v474 = vld [vmem:[%s467 + $0x30] sm:$0xff]
    %v475 = vld [vmem:[%s467 + $0x38] sm:$0xff]
    %v476 = vld [vmem:[%s467 + $0x40] sm:$0xff]
    %v477 = vld [vmem:[%s467 + $0x48] sm:$0xff]
    %v478 = vld [vmem:[%s467 + $0x50] sm:$0xff]
    %v479 = vld [vmem:[%s467 + $0x58] sm:$0xff]
    %v480 = vld [vmem:[%s467 + $0x60] sm:$0xff]
    %v481 = vld [vmem:[%s467 + $0x68] sm:$0xff]
    %v482 = vld [vmem:[%s467 + $0x70] sm:$0xff]
    %v483 = vld [vmem:[%s467 + $0x78] sm:$0xff]
    %484 = vmatpush.msra.mxu0 %v483
    %485 = vmatpush.msra.mxu0 %v482
    %486 = vmatpush.msra.mxu0 %v481
    %487 = vmatpush.msra.mxu0 %v480
    %488 = vmatpush.msra.mxu0 %v479
    %489 = vmatpush.msra.mxu0 %v478
    %490 = vmatpush.msra.mxu0 %v477
    %491 = vmatpush.msra.mxu0 %v476
    %492 = vmatpush.msra.mxu0 %v475
    %493 = vmatpush.msra.mxu0 %v474
    %494 = vmatpush.msra.mxu0 %v473
    %495 = vmatpush.msra.mxu0 %v472
    %496 = vmatpush.msra.mxu0 %v471
    %497 = vmatpush.msra.mxu0 %v470
    %498 = vmatpush.msra.mxu0 %v469
    %499 = vmatpush.msra.mxu0 %v468
    %500 = vmatmul.f32.gmra.mxu0 %v451
    %v501 = vpop.f32.mrf.mxu0
    %v502 = vadd.f32 0.0, %v501
    %503 = vmatmul.f32.gmra.mxu0 %v452
    %v504 = vpop.f32.mrf.mxu0
    %v505 = vadd.f32 0.0, %v504
    %506 = vmatmul.f32.gmra.mxu0 %v453
    %v507 = vpop.f32.mrf.mxu0
    %v508 = vadd.f32 0.0, %v507
    %509 = vmatmul.f32.gmra.mxu0 %v454
    %v510 = vpop.f32.mrf.mxu0
    %v511 = vadd.f32 0.0, %v510
    %512 = vmatmul.f32.gmra.mxu0 %v455
    %v513 = vpop.f32.mrf.mxu0
    %v514 = vadd.f32 0.0, %v513
    %515 = vmatmul.f32.gmra.mxu0 %v456
    %v516 = vpop.f32.mrf.mxu0
    %v517 = vadd.f32 0.0, %v516
    %518 = vmatmul.f32.gmra.mxu0 %v457
    %v519 = vpop.f32.mrf.mxu0
    %v520 = vadd.f32 0.0, %v519
    %521 = vmatmul.f32.gmra.mxu0 %v458
    %v522 = vpop.f32.mrf.mxu0
    %v523 = vadd.f32 0.0, %v522
    %524 = vmatmul.f32.gmra.mxu0 %v459
    %v525 = vpop.f32.mrf.mxu0
    %v526 = vadd.f32 0.0, %v525
    %527 = vmatmul.f32.gmra.mxu0 %v460
    %v528 = vpop.f32.mrf.mxu0
    %v529 = vadd.f32 0.0, %v528
    %530 = vmatmul.f32.gmra.mxu0 %v461
    %v531 = vpop.f32.mrf.mxu0
    %v532 = vadd.f32 0.0, %v531
    %533 = vmatmul.f32.gmra.mxu0 %v462
    %v534 = vpop.f32.mrf.mxu0
    %v535 = vadd.f32 0.0, %v534
    %536 = vmatmul.f32.gmra.mxu0 %v463
    %v537 = vpop.f32.mrf.mxu0
    %v538 = vadd.f32 0.0, %v537
    %539 = vmatmul.f32.gmra.mxu0 %v464
    %v540 = vpop.f32.mrf.mxu0
    %v541 = vadd.f32 0.0, %v540
    %542 = vmatmul.f32.gmra.mxu0 %v465
    %v543 = vpop.f32.mrf.mxu0
    %v544 = vadd.f32 0.0, %v543
    %545 = vmatmul.f32.gmra.mxu0 %v466
    %v546 = vpop.f32.mrf.mxu0
    %v547 = vadd.f32 0.0, %v546
    %548 = vdwg.mxu0
    %v549 = vadd.f32 %v435, %v502
    %v550 = vadd.f32 %v436, %v505
    %v551 = vadd.f32 %v437, %v508
    %v552 = vadd.f32 %v438, %v511
    %v553 = vadd.f32 %v439, %v514
    %v554 = vadd.f32 %v440, %v517
    %v555 = vadd.f32 %v441, %v520
    %v556 = vadd.f32 %v442, %v523
    %v557 = vadd.f32 %v443, %v526
    %v558 = vadd.f32 %v444, %v529
    %v559 = vadd.f32 %v445, %v532
    %v560 = vadd.f32 %v446, %v535
    %v561 = vadd.f32 %v447, %v538
    %v562 = vadd.f32 %v448, %v541
    %v563 = vadd.f32 %v449, %v544
    %v564 = vadd.f32 %v450, %v547
    %v565 = vld [vmem:[%s125 + $0x1] sm:$0xff]
    %v566 = vld [vmem:[%s125 + $0x11] sm:$0xff]
    %v567 = vld [vmem:[%s125 + $0x21] sm:$0xff]
    %v568 = vld [vmem:[%s125 + $0x31] sm:$0xff]
    %v569 = vld [vmem:[%s125 + $0x41] sm:$0xff]
    %v570 = vld [vmem:[%s125 + $0x51] sm:$0xff]
    %v571 = vld [vmem:[%s125 + $0x61] sm:$0xff]
    %v572 = vld [vmem:[%s125 + $0x71] sm:$0xff]
    %v573 = vld [vmem:[%s125 + $0xa1] sm:$0xff]
    %v574 = vld [vmem:[%s125 + $0xb1] sm:$0xff]
    %v575 = vld [vmem:[%s125 + $0xc1] sm:$0xff]
    %v576 = vld [vmem:[%s125 + $0xd1] sm:$0xff]
    %v577 = vld [vmem:[%s125 + $0xe1] sm:$0xff]
    %v578 = vld [vmem:[%s125 + $0xf1] sm:$0xff]
    %v579 = vld [vmem:[%s125 + $0x101] sm:$0xff]
    %v580 = vld [vmem:[%s125 + $0x111] sm:$0xff]
    %s581 = scalar_lea.vmem [#allocation3], 512
    %v582 = vld [vmem:[%s581] sm:$0xff]
    %v583 = vld [vmem:[%s581 + $0x8] sm:$0xff]
    %v584 = vld [vmem:[%s581 + $0x10] sm:$0xff]
    %v585 = vld [vmem:[%s581 + $0x18] sm:$0xff]
    %v586 = vld [vmem:[%s581 + $0x20] sm:$0xff]
    %v587 = vld [vmem:[%s581 + $0x28] sm:$0xff]
    %v588 = vld [vmem:[%s581 + $0x30] sm:$0xff]
    %v589 = vld [vmem:[%s581 + $0x38] sm:$0xff]
    %v590 = vld [vmem:[%s581 + $0x40] sm:$0xff]
    %v591 = vld [vmem:[%s581 + $0x48] sm:$0xff]
    %v592 = vld [vmem:[%s581 + $0x50] sm:$0xff]
    %v593 = vld [vmem:[%s581 + $0x58] sm:$0xff]
    %v594 = vld [vmem:[%s581 + $0x60] sm:$0xff]
    %v595 = vld [vmem:[%s581 + $0x68] sm:$0xff]
    %v596 = vld [vmem:[%s581 + $0x70] sm:$0xff]
    %v597 = vld [vmem:[%s581 + $0x78] sm:$0xff]
    %598 = vmatpush.msra.mxu0 %v597
    %599 = vmatpush.msra.mxu0 %v596
    %600 = vmatpush.msra.mxu0 %v595
    %601 = vmatpush.msra.mxu0 %v594
    %602 = vmatpush.msra.mxu0 %v593
    %603 = vmatpush.msra.mxu0 %v592
    %604 = vmatpush.msra.mxu0 %v591
    %605 = vmatpush.msra.mxu0 %v590
    %606 = vmatpush.msra.mxu0 %v589
    %607 = vmatpush.msra.mxu0 %v588
    %608 = vmatpush.msra.mxu0 %v587
    %609 = vmatpush.msra.mxu0 %v586
    %610 = vmatpush.msra.mxu0 %v585
    %611 = vmatpush.msra.mxu0 %v584
    %612 = vmatpush.msra.mxu0 %v583
    %613 = vmatpush.msra.mxu0 %v582
    %614 = vmatmul.f32.gmra.mxu0 %v565
    %v615 = vpop.f32.mrf.mxu0
    %v616 = vadd.f32 0.0, %v615
    %617 = vmatmul.f32.gmra.mxu0 %v566
    %v618 = vpop.f32.mrf.mxu0
    %v619 = vadd.f32 0.0, %v618
    %620 = vmatmul.f32.gmra.mxu0 %v567
    %v621 = vpop.f32.mrf.mxu0
    %v622 = vadd.f32 0.0, %v621
    %623 = vmatmul.f32.gmra.mxu0 %v568
    %v624 = vpop.f32.mrf.mxu0
    %v625 = vadd.f32 0.0, %v624
    %626 = vmatmul.f32.gmra.mxu0 %v569
    %v627 = vpop.f32.mrf.mxu0
    %v628 = vadd.f32 0.0, %v627
    %629 = vmatmul.f32.gmra.mxu0 %v570
    %v630 = vpop.f32.mrf.mxu0
    %v631 = vadd.f32 0.0, %v630
    %632 = vmatmul.f32.gmra.mxu0 %v571
    %v633 = vpop.f32.mrf.mxu0
    %v634 = vadd.f32 0.0, %v633
    %635 = vmatmul.f32.gmra.mxu0 %v572
    %v636 = vpop.f32.mrf.mxu0
    %v637 = vadd.f32 0.0, %v636
    %638 = vmatmul.f32.gmra.mxu0 %v573
    %v639 = vpop.f32.mrf.mxu0
    %v640 = vadd.f32 0.0, %v639
    %641 = vmatmul.f32.gmra.mxu0 %v574
    %v642 = vpop.f32.mrf.mxu0
    %v643 = vadd.f32 0.0, %v642
    %644 = vmatmul.f32.gmra.mxu0 %v575
    %v645 = vpop.f32.mrf.mxu0
    %v646 = vadd.f32 0.0, %v645
    %647 = vmatmul.f32.gmra.mxu0 %v576
    %v648 = vpop.f32.mrf.mxu0
    %v649 = vadd.f32 0.0, %v648
    %650 = vmatmul.f32.gmra.mxu0 %v577
    %v651 = vpop.f32.mrf.mxu0
    %v652 = vadd.f32 0.0, %v651
    %653 = vmatmul.f32.gmra.mxu0 %v578
    %v654 = vpop.f32.mrf.mxu0
    %v655 = vadd.f32 0.0, %v654
    %656 = vmatmul.f32.gmra.mxu0 %v579
    %v657 = vpop.f32.mrf.mxu0
    %v658 = vadd.f32 0.0, %v657
    %659 = vmatmul.f32.gmra.mxu0 %v580
    %v660 = vpop.f32.mrf.mxu0
    %v661 = vadd.f32 0.0, %v660
    %662 = vdwg.mxu0
    %v663 = vadd.f32 %v549, %v616
    %v664 = vadd.f32 %v550, %v619
    %v665 = vadd.f32 %v551, %v622
    %v666 = vadd.f32 %v552, %v625
    %v667 = vadd.f32 %v553, %v628
    %v668 = vadd.f32 %v554, %v631
    %v669 = vadd.f32 %v555, %v634
    %v670 = vadd.f32 %v556, %v637
    %v671 = vadd.f32 %v557, %v640
    %v672 = vadd.f32 %v558, %v643
    %v673 = vadd.f32 %v559, %v646
    %v674 = vadd.f32 %v560, %v649
    %v675 = vadd.f32 %v561, %v652
    %v676 = vadd.f32 %v562, %v655
    %v677 = vadd.f32 %v563, %v658
    %v678 = vadd.f32 %v564, %v661
    %v679 = vld [vmem:[%s125 + $0x2] sm:$0xff]
    %v680 = vld [vmem:[%s125 + $0x12] sm:$0xff]
    %v681 = vld [vmem:[%s125 + $0x22] sm:$0xff]
    %v682 = vld [vmem:[%s125 + $0x32] sm:$0xff]
    %v683 = vld [vmem:[%s125 + $0x42] sm:$0xff]
    %v684 = vld [vmem:[%s125 + $0x52] sm:$0xff]
    %v685 = vld [vmem:[%s125 + $0x62] sm:$0xff]
    %v686 = vld [vmem:[%s125 + $0x72] sm:$0xff]
    %v687 = vld [vmem:[%s125 + $0xa2] sm:$0xff]
    %v688 = vld [vmem:[%s125 + $0xb2] sm:$0xff]
    %v689 = vld [vmem:[%s125 + $0xc2] sm:$0xff]
    %v690 = vld [vmem:[%s125 + $0xd2] sm:$0xff]
    %v691 = vld [vmem:[%s125 + $0xe2] sm:$0xff]
    %v692 = vld [vmem:[%s125 + $0xf2] sm:$0xff]
    %v693 = vld [vmem:[%s125 + $0x102] sm:$0xff]
    %v694 = vld [vmem:[%s125 + $0x112] sm:$0xff]
    %s695 = scalar_lea.vmem [#allocation3], 640
    %v696 = vld [vmem:[%s695] sm:$0xff]
    %v697 = vld [vmem:[%s695 + $0x8] sm:$0xff]
    %v698 = vld [vmem:[%s695 + $0x10] sm:$0xff]
    %v699 = vld [vmem:[%s695 + $0x18] sm:$0xff]
    %v700 = vld [vmem:[%s695 + $0x20] sm:$0xff]
    %v701 = vld [vmem:[%s695 + $0x28] sm:$0xff]
    %v702 = vld [vmem:[%s695 + $0x30] sm:$0xff]
    %v703 = vld [vmem:[%s695 + $0x38] sm:$0xff]
    %v704 = vld [vmem:[%s695 + $0x40] sm:$0xff]
    %v705 = vld [vmem:[%s695 + $0x48] sm:$0xff]
    %v706 = vld [vmem:[%s695 + $0x50] sm:$0xff]
    %v707 = vld [vmem:[%s695 + $0x58] sm:$0xff]
    %v708 = vld [vmem:[%s695 + $0x60] sm:$0xff]
    %v709 = vld [vmem:[%s695 + $0x68] sm:$0xff]
    %v710 = vld [vmem:[%s695 + $0x70] sm:$0xff]
    %v711 = vld [vmem:[%s695 + $0x78] sm:$0xff]
    %712 = vmatpush.msra.mxu0 %v711
    %713 = vmatpush.msra.mxu0 %v710
    %714 = vmatpush.msra.mxu0 %v709
    %715 = vmatpush.msra.mxu0 %v708
    %716 = vmatpush.msra.mxu0 %v707
    %717 = vmatpush.msra.mxu0 %v706
    %718 = vmatpush.msra.mxu0 %v705
    %719 = vmatpush.msra.mxu0 %v704
    %720 = vmatpush.msra.mxu0 %v703
    %721 = vmatpush.msra.mxu0 %v702
    %722 = vmatpush.msra.mxu0 %v701
    %723 = vmatpush.msra.mxu0 %v700
    %724 = vmatpush.msra.mxu0 %v699
    %725 = vmatpush.msra.mxu0 %v698
    %726 = vmatpush.msra.mxu0 %v697
    %727 = vmatpush.msra.mxu0 %v696
    %728 = vmatmul.f32.gmra.mxu0 %v679
    %v729 = vpop.f32.mrf.mxu0
    %v730 = vadd.f32 0.0, %v729
    %731 = vmatmul.f32.gmra.mxu0 %v680
    %v732 = vpop.f32.mrf.mxu0
    %v733 = vadd.f32 0.0, %v732
    %734 = vmatmul.f32.gmra.mxu0 %v681
    %v735 = vpop.f32.mrf.mxu0
    %v736 = vadd.f32 0.0, %v735
    %737 = vmatmul.f32.gmra.mxu0 %v682
    %v738 = vpop.f32.mrf.mxu0
    %v739 = vadd.f32 0.0, %v738
    %740 = vmatmul.f32.gmra.mxu0 %v683
    %v741 = vpop.f32.mrf.mxu0
    %v742 = vadd.f32 0.0, %v741
    %743 = vmatmul.f32.gmra.mxu0 %v684
    %v744 = vpop.f32.mrf.mxu0
    %v745 = vadd.f32 0.0, %v744
    %746 = vmatmul.f32.gmra.mxu0 %v685
    %v747 = vpop.f32.mrf.mxu0
    %v748 = vadd.f32 0.0, %v747
    %749 = vmatmul.f32.gmra.mxu0 %v686
    %v750 = vpop.f32.mrf.mxu0
    %v751 = vadd.f32 0.0, %v750
    %752 = vmatmul.f32.gmra.mxu0 %v687
    %v753 = vpop.f32.mrf.mxu0
    %v754 = vadd.f32 0.0, %v753
    %755 = vmatmul.f32.gmra.mxu0 %v688
    %v756 = vpop.f32.mrf.mxu0
    %v757 = vadd.f32 0.0, %v756
    %758 = vmatmul.f32.gmra.mxu0 %v689
    %v759 = vpop.f32.mrf.mxu0
    %v760 = vadd.f32 0.0, %v759
    %761 = vmatmul.f32.gmra.mxu0 %v690
    %v762 = vpop.f32.mrf.mxu0
    %v763 = vadd.f32 0.0, %v762
    %764 = vmatmul.f32.gmra.mxu0 %v691
    %v765 = vpop.f32.mrf.mxu0
    %v766 = vadd.f32 0.0, %v765
    %767 = vmatmul.f32.gmra.mxu0 %v692
    %v768 = vpop.f32.mrf.mxu0
    %v769 = vadd.f32 0.0, %v768
    %770 = vmatmul.f32.gmra.mxu0 %v693
    %v771 = vpop.f32.mrf.mxu0
    %v772 = vadd.f32 0.0, %v771
    %773 = vmatmul.f32.gmra.mxu0 %v694
    %v774 = vpop.f32.mrf.mxu0
    %v775 = vadd.f32 0.0, %v774
    %776 = vdwg.mxu0
    %v777 = vadd.f32 %v663, %v730
    %v778 = vadd.f32 %v664, %v733
    %v779 = vadd.f32 %v665, %v736
    %v780 = vadd.f32 %v666, %v739
    %v781 = vadd.f32 %v667, %v742
    %v782 = vadd.f32 %v668, %v745
    %v783 = vadd.f32 %v669, %v748
    %v784 = vadd.f32 %v670, %v751
    %v785 = vadd.f32 %v671, %v754
    %v786 = vadd.f32 %v672, %v757
    %v787 = vadd.f32 %v673, %v760
    %v788 = vadd.f32 %v674, %v763
    %v789 = vadd.f32 %v675, %v766
    %v790 = vadd.f32 %v676, %v769
    %v791 = vadd.f32 %v677, %v772
    %v792 = vadd.f32 %v678, %v775
    %s793 = scalar_lea.vmem [#allocation2], 32
    %v794 = vld [vmem:[%s793] sm:$0xff]
    %v795 = vld [vmem:[%s793 + $0x10] sm:$0xff]
    %v796 = vld [vmem:[%s793 + $0x20] sm:$0xff]
    %v797 = vld [vmem:[%s793 + $0x30] sm:$0xff]
    %v798 = vld [vmem:[%s793 + $0x40] sm:$0xff]
    %v799 = vld [vmem:[%s793 + $0x50] sm:$0xff]
    %v800 = vld [vmem:[%s793 + $0x60] sm:$0xff]
    %v801 = vld [vmem:[%s793 + $0x70] sm:$0xff]
    %v802 = vld [vmem:[%s793 + $0xa0] sm:$0xff]
    %v803 = vld [vmem:[%s793 + $0xb0] sm:$0xff]
    %v804 = vld [vmem:[%s793 + $0xc0] sm:$0xff]
    %v805 = vld [vmem:[%s793 + $0xd0] sm:$0xff]
    %v806 = vld [vmem:[%s793 + $0xe0] sm:$0xff]
    %v807 = vld [vmem:[%s793 + $0xf0] sm:$0xff]
    %v808 = vld [vmem:[%s793 + $0x100] sm:$0xff]
    %v809 = vld [vmem:[%s793 + $0x110] sm:$0xff]
    %s810 = scalar_lea.vmem [#allocation3], 768
    %v811 = vld [vmem:[%s810] sm:$0xff]
    %v812 = vld [vmem:[%s810 + $0x8] sm:$0xff]
    %v813 = vld [vmem:[%s810 + $0x10] sm:$0xff]
    %v814 = vld [vmem:[%s810 + $0x18] sm:$0xff]
    %v815 = vld [vmem:[%s810 + $0x20] sm:$0xff]
    %v816 = vld [vmem:[%s810 + $0x28] sm:$0xff]
    %v817 = vld [vmem:[%s810 + $0x30] sm:$0xff]
    %v818 = vld [vmem:[%s810 + $0x38] sm:$0xff]
    %v819 = vld [vmem:[%s810 + $0x40] sm:$0xff]
    %v820 = vld [vmem:[%s810 + $0x48] sm:$0xff]
    %v821 = vld [vmem:[%s810 + $0x50] sm:$0xff]
    %v822 = vld [vmem:[%s810 + $0x58] sm:$0xff]
    %v823 = vld [vmem:[%s810 + $0x60] sm:$0xff]
    %v824 = vld [vmem:[%s810 + $0x68] sm:$0xff]
    %v825 = vld [vmem:[%s810 + $0x70] sm:$0xff]
    %v826 = vld [vmem:[%s810 + $0x78] sm:$0xff]
    %827 = vmatpush.msra.mxu0 %v826
    %828 = vmatpush.msra.mxu0 %v825
    %829 = vmatpush.msra.mxu0 %v824
    %830 = vmatpush.msra.mxu0 %v823
    %831 = vmatpush.msra.mxu0 %v822
    %832 = vmatpush.msra.mxu0 %v821
    %833 = vmatpush.msra.mxu0 %v820
    %834 = vmatpush.msra.mxu0 %v819
    %835 = vmatpush.msra.mxu0 %v818
    %836 = vmatpush.msra.mxu0 %v817
    %837 = vmatpush.msra.mxu0 %v816
    %838 = vmatpush.msra.mxu0 %v815
    %839 = vmatpush.msra.mxu0 %v814
    %840 = vmatpush.msra.mxu0 %v813
    %841 = vmatpush.msra.mxu0 %v812
    %842 = vmatpush.msra.mxu0 %v811
    %843 = vmatmul.f32.gmra.mxu0 %v794
    %v844 = vpop.f32.mrf.mxu0
    %v845 = vadd.f32 0.0, %v844
    %846 = vmatmul.f32.gmra.mxu0 %v795
    %v847 = vpop.f32.mrf.mxu0
    %v848 = vadd.f32 0.0, %v847
    %849 = vmatmul.f32.gmra.mxu0 %v796
    %v850 = vpop.f32.mrf.mxu0
    %v851 = vadd.f32 0.0, %v850
    %852 = vmatmul.f32.gmra.mxu0 %v797
    %v853 = vpop.f32.mrf.mxu0
    %v854 = vadd.f32 0.0, %v853
    %855 = vmatmul.f32.gmra.mxu0 %v798
    %v856 = vpop.f32.mrf.mxu0
    %v857 = vadd.f32 0.0, %v856
    %858 = vmatmul.f32.gmra.mxu0 %v799
    %v859 = vpop.f32.mrf.mxu0
    %v860 = vadd.f32 0.0, %v859
    %861 = vmatmul.f32.gmra.mxu0 %v800
    %v862 = vpop.f32.mrf.mxu0
    %v863 = vadd.f32 0.0, %v862
    %864 = vmatmul.f32.gmra.mxu0 %v801
    %v865 = vpop.f32.mrf.mxu0
    %v866 = vadd.f32 0.0, %v865
    %867 = vmatmul.f32.gmra.mxu0 %v802
    %v868 = vpop.f32.mrf.mxu0
    %v869 = vadd.f32 0.0, %v868
    %870 = vmatmul.f32.gmra.mxu0 %v803
    %v871 = vpop.f32.mrf.mxu0
    %v872 = vadd.f32 0.0, %v871
    %873 = vmatmul.f32.gmra.mxu0 %v804
    %v874 = vpop.f32.mrf.mxu0
    %v875 = vadd.f32 0.0, %v874
    %876 = vmatmul.f32.gmra.mxu0 %v805
    %v877 = vpop.f32.mrf.mxu0
    %v878 = vadd.f32 0.0, %v877
    %879 = vmatmul.f32.gmra.mxu0 %v806
    %v880 = vpop.f32.mrf.mxu0
    %v881 = vadd.f32 0.0, %v880
    %882 = vmatmul.f32.gmra.mxu0 %v807
    %v883 = vpop.f32.mrf.mxu0
    %v884 = vadd.f32 0.0, %v883
    %885 = vmatmul.f32.gmra.mxu0 %v808
    %v886 = vpop.f32.mrf.mxu0
    %v887 = vadd.f32 0.0, %v886
    %888 = vmatmul.f32.gmra.mxu0 %v809
    %v889 = vpop.f32.mrf.mxu0
    %v890 = vadd.f32 0.0, %v889
    %891 = vdwg.mxu0
    %v892 = vadd.f32 %v777, %v845
    %v893 = vadd.f32 %v778, %v848
    %v894 = vadd.f32 %v779, %v851
    %v895 = vadd.f32 %v780, %v854
    %v896 = vadd.f32 %v781, %v857
    %v897 = vadd.f32 %v782, %v860
    %v898 = vadd.f32 %v783, %v863
    %v899 = vadd.f32 %v784, %v866
    %v900 = vadd.f32 %v785, %v869
    %v901 = vadd.f32 %v786, %v872
    %v902 = vadd.f32 %v787, %v875
    %v903 = vadd.f32 %v788, %v878
    %v904 = vadd.f32 %v789, %v881
    %v905 = vadd.f32 %v790, %v884
    %v906 = vadd.f32 %v791, %v887
    %v907 = vadd.f32 %v792, %v890
    %v908 = vld [vmem:[%s793 + $0x1] sm:$0xff]
    %v909 = vld [vmem:[%s793 + $0x11] sm:$0xff]
    %v910 = vld [vmem:[%s793 + $0x21] sm:$0xff]
    %v911 = vld [vmem:[%s793 + $0x31] sm:$0xff]
    %v912 = vld [vmem:[%s793 + $0x41] sm:$0xff]
    %v913 = vld [vmem:[%s793 + $0x51] sm:$0xff]
    %v914 = vld [vmem:[%s793 + $0x61] sm:$0xff]
    %v915 = vld [vmem:[%s793 + $0x71] sm:$0xff]
    %v916 = vld [vmem:[%s793 + $0xa1] sm:$0xff]
    %v917 = vld [vmem:[%s793 + $0xb1] sm:$0xff]
    %v918 = vld [vmem:[%s793 + $0xc1] sm:$0xff]
    %v919 = vld [vmem:[%s793 + $0xd1] sm:$0xff]
    %v920 = vld [vmem:[%s793 + $0xe1] sm:$0xff]
    %v921 = vld [vmem:[%s793 + $0xf1] sm:$0xff]
    %v922 = vld [vmem:[%s793 + $0x101] sm:$0xff]
    %v923 = vld [vmem:[%s793 + $0x111] sm:$0xff]
    %s924 = scalar_lea.vmem [#allocation3], 896
    %v925 = vld [vmem:[%s924] sm:$0xff]
    %v926 = vld [vmem:[%s924 + $0x8] sm:$0xff]
    %v927 = vld [vmem:[%s924 + $0x10] sm:$0xff]
    %v928 = vld [vmem:[%s924 + $0x18] sm:$0xff]
    %v929 = vld [vmem:[%s924 + $0x20] sm:$0xff]
    %v930 = vld [vmem:[%s924 + $0x28] sm:$0xff]
    %v931 = vld [vmem:[%s924 + $0x30] sm:$0xff]
    %v932 = vld [vmem:[%s924 + $0x38] sm:$0xff]
    %v933 = vld [vmem:[%s924 + $0x40] sm:$0xff]
    %v934 = vld [vmem:[%s924 + $0x48] sm:$0xff]
    %v935 = vld [vmem:[%s924 + $0x50] sm:$0xff]
    %v936 = vld [vmem:[%s924 + $0x58] sm:$0xff]
    %v937 = vld [vmem:[%s924 + $0x60] sm:$0xff]
    %v938 = vld [vmem:[%s924 + $0x68] sm:$0xff]
    %v939 = vld [vmem:[%s924 + $0x70] sm:$0xff]
    %v940 = vld [vmem:[%s924 + $0x78] sm:$0xff]
    %941 = vmatpush.msra.mxu0 %v940
    %942 = vmatpush.msra.mxu0 %v939
    %943 = vmatpush.msra.mxu0 %v938
    %944 = vmatpush.msra.mxu0 %v937
    %945 = vmatpush.msra.mxu0 %v936
    %946 = vmatpush.msra.mxu0 %v935
    %947 = vmatpush.msra.mxu0 %v934
    %948 = vmatpush.msra.mxu0 %v933
    %949 = vmatpush.msra.mxu0 %v932
    %950 = vmatpush.msra.mxu0 %v931
    %951 = vmatpush.msra.mxu0 %v930
    %952 = vmatpush.msra.mxu0 %v929
    %953 = vmatpush.msra.mxu0 %v928
    %954 = vmatpush.msra.mxu0 %v927
    %955 = vmatpush.msra.mxu0 %v926
    %956 = vmatpush.msra.mxu0 %v925
    %957 = vmatmul.f32.gmra.mxu0 %v908
    %v958 = vpop.f32.mrf.mxu0
    %v959 = vadd.f32 0.0, %v958
    %960 = vmatmul.f32.gmra.mxu0 %v909
    %v961 = vpop.f32.mrf.mxu0
    %v962 = vadd.f32 0.0, %v961
    %963 = vmatmul.f32.gmra.mxu0 %v910
    %v964 = vpop.f32.mrf.mxu0
    %v965 = vadd.f32 0.0, %v964
    %966 = vmatmul.f32.gmra.mxu0 %v911
    %v967 = vpop.f32.mrf.mxu0
    %v968 = vadd.f32 0.0, %v967
    %969 = vmatmul.f32.gmra.mxu0 %v912
    %v970 = vpop.f32.mrf.mxu0
    %v971 = vadd.f32 0.0, %v970
    %972 = vmatmul.f32.gmra.mxu0 %v913
    %v973 = vpop.f32.mrf.mxu0
    %v974 = vadd.f32 0.0, %v973
    %975 = vmatmul.f32.gmra.mxu0 %v914
    %v976 = vpop.f32.mrf.mxu0
    %v977 = vadd.f32 0.0, %v976
    %978 = vmatmul.f32.gmra.mxu0 %v915
    %v979 = vpop.f32.mrf.mxu0
    %v980 = vadd.f32 0.0, %v979
    %981 = vmatmul.f32.gmra.mxu0 %v916
    %v982 = vpop.f32.mrf.mxu0
    %v983 = vadd.f32 0.0, %v982
    %984 = vmatmul.f32.gmra.mxu0 %v917
    %v985 = vpop.f32.mrf.mxu0
    %v986 = vadd.f32 0.0, %v985
    %987 = vmatmul.f32.gmra.mxu0 %v918
    %v988 = vpop.f32.mrf.mxu0
    %v989 = vadd.f32 0.0, %v988
    %990 = vmatmul.f32.gmra.mxu0 %v919
    %v991 = vpop.f32.mrf.mxu0
    %v992 = vadd.f32 0.0, %v991
    %993 = vmatmul.f32.gmra.mxu0 %v920
    %v994 = vpop.f32.mrf.mxu0
    %v995 = vadd.f32 0.0, %v994
    %996 = vmatmul.f32.gmra.mxu0 %v921
    %v997 = vpop.f32.mrf.mxu0
    %v998 = vadd.f32 0.0, %v997
    %999 = vmatmul.f32.gmra.mxu0 %v922
    %v1000 = vpop.f32.mrf.mxu0
    %v1001 = vadd.f32 0.0, %v1000
    %1002 = vmatmul.f32.gmra.mxu0 %v923
    %v1003 = vpop.f32.mrf.mxu0
    %v1004 = vadd.f32 0.0, %v1003
    %1005 = vdwg.mxu0
    %v1006 = vadd.f32 %v892, %v959
    %v1007 = vadd.f32 %v893, %v962
    %v1008 = vadd.f32 %v894, %v965
    %v1009 = vadd.f32 %v895, %v968
    %v1010 = vadd.f32 %v896, %v971
    %v1011 = vadd.f32 %v897, %v974
    %v1012 = vadd.f32 %v898, %v977
    %v1013 = vadd.f32 %v899, %v980
    %v1014 = vadd.f32 %v900, %v983
    %v1015 = vadd.f32 %v901, %v986
    %v1016 = vadd.f32 %v902, %v989
    %v1017 = vadd.f32 %v903, %v992
    %v1018 = vadd.f32 %v904, %v995
    %v1019 = vadd.f32 %v905, %v998
    %v1020 = vadd.f32 %v906, %v1001
    %v1021 = vadd.f32 %v907, %v1004
    %v1022 = vld [vmem:[%s793 + $0x2] sm:$0xff]
    %v1023 = vld [vmem:[%s793 + $0x12] sm:$0xff]
    %v1024 = vld [vmem:[%s793 + $0x22] sm:$0xff]
    %v1025 = vld [vmem:[%s793 + $0x32] sm:$0xff]
    %v1026 = vld [vmem:[%s793 + $0x42] sm:$0xff]
    %v1027 = vld [vmem:[%s793 + $0x52] sm:$0xff]
    %v1028 = vld [vmem:[%s793 + $0x62] sm:$0xff]
    %v1029 = vld [vmem:[%s793 + $0x72] sm:$0xff]
    %v1030 = vld [vmem:[%s793 + $0xa2] sm:$0xff]
    %v1031 = vld [vmem:[%s793 + $0xb2] sm:$0xff]
    %v1032 = vld [vmem:[%s793 + $0xc2] sm:$0xff]
    %v1033 = vld [vmem:[%s793 + $0xd2] sm:$0xff]
    %v1034 = vld [vmem:[%s793 + $0xe2] sm:$0xff]
    %v1035 = vld [vmem:[%s793 + $0xf2] sm:$0xff]
    %v1036 = vld [vmem:[%s793 + $0x102] sm:$0xff]
    %v1037 = vld [vmem:[%s793 + $0x112] sm:$0xff]
    %s1038 = scalar_lea.vmem [#allocation3], 1024
    %v1039 = vld [vmem:[%s1038] sm:$0xff]
    %v1040 = vld [vmem:[%s1038 + $0x8] sm:$0xff]
    %v1041 = vld [vmem:[%s1038 + $0x10] sm:$0xff]
    %v1042 = vld [vmem:[%s1038 + $0x18] sm:$0xff]
    %v1043 = vld [vmem:[%s1038 + $0x20] sm:$0xff]
    %v1044 = vld [vmem:[%s1038 + $0x28] sm:$0xff]
    %v1045 = vld [vmem:[%s1038 + $0x30] sm:$0xff]
    %v1046 = vld [vmem:[%s1038 + $0x38] sm:$0xff]
    %v1047 = vld [vmem:[%s1038 + $0x40] sm:$0xff]
    %v1048 = vld [vmem:[%s1038 + $0x48] sm:$0xff]
    %v1049 = vld [vmem:[%s1038 + $0x50] sm:$0xff]
    %v1050 = vld [vmem:[%s1038 + $0x58] sm:$0xff]
    %v1051 = vld [vmem:[%s1038 + $0x60] sm:$0xff]
    %v1052 = vld [vmem:[%s1038 + $0x68] sm:$0xff]
    %v1053 = vld [vmem:[%s1038 + $0x70] sm:$0xff]
    %v1054 = vld [vmem:[%s1038 + $0x78] sm:$0xff]
    %1055 = vmatpush.msra.mxu0 %v1054
    %1056 = vmatpush.msra.mxu0 %v1053
    %1057 = vmatpush.msra.mxu0 %v1052
    %1058 = vmatpush.msra.mxu0 %v1051
    %1059 = vmatpush.msra.mxu0 %v1050
    %1060 = vmatpush.msra.mxu0 %v1049
    %1061 = vmatpush.msra.mxu0 %v1048
    %1062 = vmatpush.msra.mxu0 %v1047
    %1063 = vmatpush.msra.mxu0 %v1046
    %1064 = vmatpush.msra.mxu0 %v1045
    %1065 = vmatpush.msra.mxu0 %v1044
    %1066 = vmatpush.msra.mxu0 %v1043
    %1067 = vmatpush.msra.mxu0 %v1042
    %1068 = vmatpush.msra.mxu0 %v1041
    %1069 = vmatpush.msra.mxu0 %v1040
    %1070 = vmatpush.msra.mxu0 %v1039
    %1071 = vmatmul.f32.gmra.mxu0 %v1022
    %v1072 = vpop.f32.mrf.mxu0
    %v1073 = vadd.f32 0.0, %v1072
    %1074 = vmatmul.f32.gmra.mxu0 %v1023
    %v1075 = vpop.f32.mrf.mxu0
    %v1076 = vadd.f32 0.0, %v1075
    %1077 = vmatmul.f32.gmra.mxu0 %v1024
    %v1078 = vpop.f32.mrf.mxu0
    %v1079 = vadd.f32 0.0, %v1078
    %1080 = vmatmul.f32.gmra.mxu0 %v1025
    %v1081 = vpop.f32.mrf.mxu0
    %v1082 = vadd.f32 0.0, %v1081
    %1083 = vmatmul.f32.gmra.mxu0 %v1026
    %v1084 = vpop.f32.mrf.mxu0
    %v1085 = vadd.f32 0.0, %v1084
    %1086 = vmatmul.f32.gmra.mxu0 %v1027
    %v1087 = vpop.f32.mrf.mxu0
    %v1088 = vadd.f32 0.0, %v1087
    %1089 = vmatmul.f32.gmra.mxu0 %v1028
    %v1090 = vpop.f32.mrf.mxu0
    %v1091 = vadd.f32 0.0, %v1090
    %1092 = vmatmul.f32.gmra.mxu0 %v1029
    %v1093 = vpop.f32.mrf.mxu0
    %v1094 = vadd.f32 0.0, %v1093
    %1095 = vmatmul.f32.gmra.mxu0 %v1030
    %v1096 = vpop.f32.mrf.mxu0
    %v1097 = vadd.f32 0.0, %v1096
    %1098 = vmatmul.f32.gmra.mxu0 %v1031
    %v1099 = vpop.f32.mrf.mxu0
    %v1100 = vadd.f32 0.0, %v1099
    %1101 = vmatmul.f32.gmra.mxu0 %v1032
    %v1102 = vpop.f32.mrf.mxu0
    %v1103 = vadd.f32 0.0, %v1102
    %1104 = vmatmul.f32.gmra.mxu0 %v1033
    %v1105 = vpop.f32.mrf.mxu0
    %v1106 = vadd.f32 0.0, %v1105
    %1107 = vmatmul.f32.gmra.mxu0 %v1034
    %v1108 = vpop.f32.mrf.mxu0
    %v1109 = vadd.f32 0.0, %v1108
    %1110 = vmatmul.f32.gmra.mxu0 %v1035
    %v1111 = vpop.f32.mrf.mxu0
    %v1112 = vadd.f32 0.0, %v1111
    %1113 = vmatmul.f32.gmra.mxu0 %v1036
    %v1114 = vpop.f32.mrf.mxu0
    %v1115 = vadd.f32 0.0, %v1114
    %1116 = vmatmul.f32.gmra.mxu0 %v1037
    %v1117 = vpop.f32.mrf.mxu0
    %v1118 = vadd.f32 0.0, %v1117
    %1119 = vdwg.mxu0
    %v1120 = vadd.f32 %v1006, %v1073
    %v1121 = vadd.f32 %v1007, %v1076
    %v1122 = vadd.f32 %v1008, %v1079
    %v1123 = vadd.f32 %v1009, %v1082
    %v1124 = vadd.f32 %v1010, %v1085
    %v1125 = vadd.f32 %v1011, %v1088
    %v1126 = vadd.f32 %v1012, %v1091
    %v1127 = vadd.f32 %v1013, %v1094
    %v1128 = vadd.f32 %v1014, %v1097
    %v1129 = vadd.f32 %v1015, %v1100
    %v1130 = vadd.f32 %v1016, %v1103
    %v1131 = vadd.f32 %v1017, %v1106
    %v1132 = vadd.f32 %v1018, %v1109
    %v1133 = vadd.f32 %v1019, %v1112
    %v1134 = vadd.f32 %v1020, %v1115
    %v1135 = vadd.f32 %v1021, %v1118
    %v1136 = vadd.f32 %v1120, %v1121
    %v1137 = vadd.f32 %v1136, %v1122
    %v1138 = vadd.f32 %v1137, %v1123
    %v1139 = vadd.f32 %v1138, %v1124
    %v1140 = vadd.f32 %v1139, %v1125
    %v1141 = vadd.f32 %v1140, %v1126
    %v1142 = vadd.f32 %v1141, %v1127
    %v1143 = vadd.f32 %v1142, %v1128
    %v1144 = vadd.f32 %v1143, %v1129
    %v1145 = vadd.f32 %v1144, %v1130
    %v1146 = vadd.f32 %v1145, %v1131
    %v1147 = vadd.f32 %v1146, %v1132
    %v1148 = vadd.f32 %v1147, %v1133
    %v1149 = vadd.f32 %v1148, %v1134
    %v1150 = vadd.f32 %v1149, %v1135
    %v1151 = vrot.slane %v1150, 4
    %v1152 = vadd.f32 %v1150, %v1151
    %v1153 = vrot.slane %v1152, 2
    %v1154 = vadd.f32 %v1152, %v1153
    %v1155 = vrot.slane %v1154, 1
    %v1156 = vadd.f32 %v1154, %v1155
    %v1157 = vrcp.pop 128.0
    %v1158 = vmul.f32 128.0, %v1157
    %v1159 = vsub.f32 1.0, %v1158
    %v1160 = vmul.f32 %v1157, %v1159
    %v1161 = vadd.f32 %v1157, %v1160
    %vm1162 = vweird.f32 %v1157
    %v1163 = vsel %vm1162, %v1157, %v1161
    %v1164 = vmul.f32 %v1156, %v1163
    %v1165 = vsub.f32 %v1120, %v1164
    %v1166 = vsub.f32 %v1121, %v1164
    %v1167 = vsub.f32 %v1122, %v1164
    %v1168 = vsub.f32 %v1123, %v1164
    %v1169 = vsub.f32 %v1124, %v1164
    %v1170 = vsub.f32 %v1125, %v1164
    %v1171 = vsub.f32 %v1126, %v1164
    %v1172 = vsub.f32 %v1127, %v1164
    %v1173 = vsub.f32 %v1128, %v1164
    %v1174 = vsub.f32 %v1129, %v1164
    %v1175 = vsub.f32 %v1130, %v1164
    %v1176 = vsub.f32 %v1131, %v1164
    %v1177 = vsub.f32 %v1132, %v1164
    %v1178 = vsub.f32 %v1133, %v1164
    %v1179 = vsub.f32 %v1134, %v1164
    %v1180 = vsub.f32 %v1135, %v1164
    %v1181 = vmul.f32 %v1165, %v1165
    %v1182 = vmul.f32 %v1166, %v1166
    %v1183 = vmul.f32 %v1167, %v1167
    %v1184 = vmul.f32 %v1168, %v1168
    %v1185 = vmul.f32 %v1169, %v1169
    %v1186 = vmul.f32 %v1170, %v1170
    %v1187 = vmul.f32 %v1171, %v1171
    %v1188 = vmul.f32 %v1172, %v1172
    %v1189 = vmul.f32 %v1173, %v1173
    %v1190 = vmul.f32 %v1174, %v1174
    %v1191 = vmul.f32 %v1175, %v1175
    %v1192 = vmul.f32 %v1176, %v1176
    %v1193 = vmul.f32 %v1177, %v1177
    %v1194 = vmul.f32 %v1178, %v1178
    %v1195 = vmul.f32 %v1179, %v1179
    %v1196 = vmul.f32 %v1180, %v1180
    %v1197 = vadd.f32 %v1181, %v1182
    %v1198 = vadd.f32 %v1197, %v1183
    %v1199 = vadd.f32 %v1198, %v1184
    %v1200 = vadd.f32 %v1199, %v1185
    %v1201 = vadd.f32 %v1200, %v1186
    %v1202 = vadd.f32 %v1201, %v1187
    %v1203 = vadd.f32 %v1202, %v1188
    %v1204 = vadd.f32 %v1203, %v1189
    %v1205 = vadd.f32 %v1204, %v1190
    %v1206 = vadd.f32 %v1205, %v1191
    %v1207 = vadd.f32 %v1206, %v1192
    %v1208 = vadd.f32 %v1207, %v1193
    %v1209 = vadd.f32 %v1208, %v1194
    %v1210 = vadd.f32 %v1209, %v1195
    %v1211 = vadd.f32 %v1210, %v1196
    %v1212 = vrot.slane %v1211, 4
    %v1213 = vadd.f32 %v1211, %v1212
    %v1214 = vrot.slane %v1213, 2
    %v1215 = vadd.f32 %v1213, %v1214
    %v1216 = vrot.slane %v1215, 1
    %v1217 = vadd.f32 %v1215, %v1216
    %v1218 = vmul.f32 %v1217, %v1163
    %v1219 = vld [vmem:[#allocation6] sm:$0x1]
    %v1220 = vld [vmem:[#allocation6 + $0x6] sm:$0x1]
    %v1221 = vadd.f32 %v1218, 1e-05
    %v1222 = vrsqrt.pop %v1221
    %v1223 = vmul.f32 %v1222, %v1221
    %v1224 = vmul.f32 %v1223, %v1222
    %v1225 = vmul.f32 0.5, %v1224
    %v1226 = vsub.f32 1.5, %v1225
    %v1227 = vmul.f32 %v1222, %v1226
    %vm1228 = vweird.f32 %v1221
    %vm1229 = vweird.f32 %v1222
    %vm1230 = vmor %vm1228, %vm1229
    %v1231 = vsel %vm1230, %v1222, %v1227
    %v1232 = vmul.f32 %v1165, %v1231
    %v1233 = vmul.f32 %v1166, %v1231
    %v1234 = vmul.f32 %v1167, %v1231
    %v1235 = vmul.f32 %v1168, %v1231
    %v1236 = vmul.f32 %v1169, %v1231
    %v1237 = vmul.f32 %v1170, %v1231
    %v1238 = vmul.f32 %v1171, %v1231
    %v1239 = vmul.f32 %v1172, %v1231
    %v1240 = vmul.f32 %v1173, %v1231
    %v1241 = vmul.f32 %v1174, %v1231
    %v1242 = vmul.f32 %v1175, %v1231
    %v1243 = vmul.f32 %v1176, %v1231
    %v1244 = vmul.f32 %v1177, %v1231
    %v1245 = vmul.f32 %v1178, %v1231
    %v1246 = vmul.f32 %v1179, %v1231
    %v1247 = vmul.f32 %v1180, %v1231
    %v1248 = vperm.slane %v1219, 0
    %v1249 = vmul.f32 %v1232, %v1248
    %v1250 = vmul.f32 %v1233, %v1248
    %v1251 = vmul.f32 %v1234, %v1248
    %v1252 = vmul.f32 %v1235, %v1248
    %v1253 = vmul.f32 %v1236, %v1248
    %v1254 = vmul.f32 %v1237, %v1248
    %v1255 = vmul.f32 %v1238, %v1248
    %v1256 = vmul.f32 %v1239, %v1248
    %v1257 = vmul.f32 %v1240, %v1248
    %v1258 = vmul.f32 %v1241, %v1248
    %v1259 = vmul.f32 %v1242, %v1248
    %v1260 = vmul.f32 %v1243, %v1248
    %v1261 = vmul.f32 %v1244, %v1248
    %v1262 = vmul.f32 %v1245, %v1248
    %v1263 = vmul.f32 %v1246, %v1248
    %v1264 = vmul.f32 %v1247, %v1248
    %v1265 = vperm.slane %v1220, 0
    %v1266 = vadd.f32 %v1249, %v1265
    %v1267 = vadd.f32 %v1250, %v1265
    %v1268 = vadd.f32 %v1251, %v1265
    %v1269 = vadd.f32 %v1252, %v1265
    %v1270 = vadd.f32 %v1253, %v1265
    %v1271 = vadd.f32 %v1254, %v1265
    %v1272 = vadd.f32 %v1255, %v1265
    %v1273 = vadd.f32 %v1256, %v1265
    %v1274 = vadd.f32 %v1257, %v1265
    %v1275 = vadd.f32 %v1258, %v1265
    %v1276 = vadd.f32 %v1259, %v1265
    %v1277 = vadd.f32 %v1260, %v1265
    %v1278 = vadd.f32 %v1261, %v1265
    %v1279 = vadd.f32 %v1262, %v1265
    %v1280 = vadd.f32 %v1263, %v1265
    %v1281 = vadd.f32 %v1264, %v1265
    %v1282 = vmax.f32 %v1266, 0.0
    %v1283 = vmax.f32 %v1267, 0.0
    %v1284 = vmax.f32 %v1268, 0.0
    %v1285 = vmax.f32 %v1269, 0.0
    %v1286 = vmax.f32 %v1270, 0.0
    %v1287 = vmax.f32 %v1271, 0.0
    %v1288 = vmax.f32 %v1272, 0.0
    %v1289 = vmax.f32 %v1273, 0.0
    %v1290 = vmax.f32 %v1274, 0.0
    %v1291 = vmax.f32 %v1275, 0.0
    %v1292 = vmax.f32 %v1276, 0.0
    %v1293 = vmax.f32 %v1277, 0.0
    %v1294 = vmax.f32 %v1278, 0.0
    %v1295 = vmax.f32 %v1279, 0.0
    %v1296 = vmax.f32 %v1280, 0.0
    %v1297 = vmax.f32 %v1281, 0.0
    %1298 = vst [vmem:[%s125 + $0x1] sm:$0xff] %v1282
    %1299 = vst [vmem:[%s125 + $0x11] sm:$0xff] %v1283
    %1300 = vst [vmem:[%s125 + $0x21] sm:$0xff] %v1284
    %1301 = vst [vmem:[%s125 + $0x31] sm:$0xff] %v1285
    %1302 = vst [vmem:[%s125 + $0x41] sm:$0xff] %v1286
    %1303 = vst [vmem:[%s125 + $0x51] sm:$0xff] %v1287
    %1304 = vst [vmem:[%s125 + $0x61] sm:$0xff] %v1288
    %1305 = vst [vmem:[%s125 + $0x71] sm:$0xff] %v1289
    %1306 = vst [vmem:[%s125 + $0xa1] sm:$0xff] %v1290
    %1307 = vst [vmem:[%s125 + $0xb1] sm:$0xff] %v1291
    %1308 = vst [vmem:[%s125 + $0xc1] sm:$0xff] %v1292
    %1309 = vst [vmem:[%s125 + $0xd1] sm:$0xff] %v1293
    %1310 = vst [vmem:[%s125 + $0xe1] sm:$0xff] %v1294
    %1311 = vst [vmem:[%s125 + $0xf1] sm:$0xff] %v1295
    %1312 = vst [vmem:[%s125 + $0x101] sm:$0xff] %v1296
    %1313 = vst [vmem:[%s125 + $0x111] sm:$0xff] %v1297
    %v1314 = vld [vmem:[#allocation2] sm:$0xff]
    %v1315 = vld [vmem:[#allocation2 + $0x10] sm:$0xff]
    %v1316 = vld [vmem:[#allocation2 + $0x20] sm:$0xff]
    %v1317 = vld [vmem:[#allocation2 + $0x30] sm:$0xff]
    %v1318 = vld [vmem:[#allocation2 + $0x40] sm:$0xff]
    %v1319 = vld [vmem:[#allocation2 + $0x50] sm:$0xff]
    %v1320 = vld [vmem:[#allocation2 + $0x60] sm:$0xff]
    %v1321 = vld [vmem:[#allocation2 + $0x70] sm:$0xff]
    %v1322 = vld [vmem:[#allocation2 + $0xa0] sm:$0xff]
    %v1323 = vld [vmem:[#allocation2 + $0xb0] sm:$0xff]
    %v1324 = vld [vmem:[#allocation2 + $0xc0] sm:$0xff]
    %v1325 = vld [vmem:[#allocation2 + $0xd0] sm:$0xff]
    %v1326 = vld [vmem:[#allocation2 + $0xe0] sm:$0xff]
    %v1327 = vld [vmem:[#allocation2 + $0xf0] sm:$0xff]
    %v1328 = vld [vmem:[#allocation2 + $0x100] sm:$0xff]
    %v1329 = vld [vmem:[#allocation2 + $0x110] sm:$0xff]
    %s1330 = scalar_lea.vmem [#allocation3], 1152
    %v1331 = vld [vmem:[%s1330] sm:$0xff]
    %v1332 = vld [vmem:[%s1330 + $0x8] sm:$0xff]
    %v1333 = vld [vmem:[%s1330 + $0x10] sm:$0xff]
    %v1334 = vld [vmem:[%s1330 + $0x18] sm:$0xff]
    %v1335 = vld [vmem:[%s1330 + $0x20] sm:$0xff]
    %v1336 = vld [vmem:[%s1330 + $0x28] sm:$0xff]
    %v1337 = vld [vmem:[%s1330 + $0x30] sm:$0xff]
    %v1338 = vld [vmem:[%s1330 + $0x38] sm:$0xff]
    %v1339 = vld [vmem:[%s1330 + $0x40] sm:$0xff]
    %v1340 = vld [vmem:[%s1330 + $0x48] sm:$0xff]
    %v1341 = vld [vmem:[%s1330 + $0x50] sm:$0xff]
    %v1342 = vld [vmem:[%s1330 + $0x58] sm:$0xff]
    %v1343 = vld [vmem:[%s1330 + $0x60] sm:$0xff]
    %v1344 = vld [vmem:[%s1330 + $0x68] sm:$0xff]
    %v1345 = vld [vmem:[%s1330 + $0x70] sm:$0xff]
    %v1346 = vld [vmem:[%s1330 + $0x78] sm:$0xff]
    %v1347 = vld [vmem:[#allocation2 + $0x1] sm:$0xff]
    %v1348 = vld [vmem:[#allocation2 + $0x11] sm:$0xff]
    %v1349 = vld [vmem:[#allocation2 + $0x21] sm:$0xff]
    %v1350 = vld [vmem:[#allocation2 + $0x31] sm:$0xff]
    %v1351 = vld [vmem:[#allocation2 + $0x41] sm:$0xff]
    %v1352 = vld [vmem:[#allocation2 + $0x51] sm:$0xff]
    %v1353 = vld [vmem:[#allocation2 + $0x61] sm:$0xff]
    %v1354 = vld [vmem:[#allocation2 + $0x71] sm:$0xff]
    %v1355 = vld [vmem:[#allocation2 + $0xa1] sm:$0xff]
    %v1356 = vld [vmem:[#allocation2 + $0xb1] sm:$0xff]
    %v1357 = vld [vmem:[#allocation2 + $0xc1] sm:$0xff]
    %v1358 = vld [vmem:[#allocation2 + $0xd1] sm:$0xff]
    %v1359 = vld [vmem:[#allocation2 + $0xe1] sm:$0xff]
    %v1360 = vld [vmem:[#allocation2 + $0xf1] sm:$0xff]
    %v1361 = vld [vmem:[#allocation2 + $0x101] sm:$0xff]
    %v1362 = vld [vmem:[#allocation2 + $0x111] sm:$0xff]
    %s1363 = scalar_lea.vmem [#allocation3], 1280
    %v1364 = vld [vmem:[%s1363] sm:$0xff]
    %v1365 = vld [vmem:[%s1363 + $0x8] sm:$0xff]
    %v1366 = vld [vmem:[%s1363 + $0x10] sm:$0xff]
    %v1367 = vld [vmem:[%s1363 + $0x18] sm:$0xff]
    %v1368 = vld [vmem:[%s1363 + $0x20] sm:$0xff]
    %v1369 = vld [vmem:[%s1363 + $0x28] sm:$0xff]
    %v1370 = vld [vmem:[%s1363 + $0x30] sm:$0xff]
    %v1371 = vld [vmem:[%s1363 + $0x38] sm:$0xff]
    %v1372 = vld [vmem:[%s1363 + $0x40] sm:$0xff]
    %v1373 = vld [vmem:[%s1363 + $0x48] sm:$0xff]
    %v1374 = vld [vmem:[%s1363 + $0x50] sm:$0xff]
    %v1375 = vld [vmem:[%s1363 + $0x58] sm:$0xff]
    %v1376 = vld [vmem:[%s1363 + $0x60] sm:$0xff]
    %v1377 = vld [vmem:[%s1363 + $0x68] sm:$0xff]
    %v1378 = vld [vmem:[%s1363 + $0x70] sm:$0xff]
    %v1379 = vld [vmem:[%s1363 + $0x78] sm:$0xff]
    %1380 = vmatpush.msra.mxu0 %v1379
    %1381 = vmatpush.msra.mxu0 %v1378
    %1382 = vmatpush.msra.mxu0 %v1377
    %1383 = vmatpush.msra.mxu0 %v1376
    %1384 = vmatpush.msra.mxu0 %v1375
    %1385 = vmatpush.msra.mxu0 %v1374
    %1386 = vmatpush.msra.mxu0 %v1373
    %1387 = vmatpush.msra.mxu0 %v1372
    %1388 = vmatpush.msra.mxu0 %v1371
    %1389 = vmatpush.msra.mxu0 %v1370
    %1390 = vmatpush.msra.mxu0 %v1369
    %1391 = vmatpush.msra.mxu0 %v1368
    %1392 = vmatpush.msra.mxu0 %v1367
    %1393 = vmatpush.msra.mxu0 %v1366
    %1394 = vmatpush.msra.mxu0 %v1365
    %1395 = vmatpush.msra.mxu0 %v1364
    %1396 = vmatmul.f32.gmra.mxu0 %v1347
    %v1397 = vpop.f32.mrf.mxu0
    %v1398 = vadd.f32 0.0, %v1397
    %1399 = vmatmul.f32.gmra.mxu0 %v1348
    %v1400 = vpop.f32.mrf.mxu0
    %v1401 = vadd.f32 0.0, %v1400
    %1402 = vmatmul.f32.gmra.mxu0 %v1349
    %v1403 = vpop.f32.mrf.mxu0
    %v1404 = vadd.f32 0.0, %v1403
    %1405 = vmatmul.f32.gmra.mxu0 %v1350
    %v1406 = vpop.f32.mrf.mxu0
    %v1407 = vadd.f32 0.0, %v1406
    %1408 = vmatmul.f32.gmra.mxu0 %v1351
    %v1409 = vpop.f32.mrf.mxu0
    %v1410 = vadd.f32 0.0, %v1409
    %1411 = vmatmul.f32.gmra.mxu0 %v1352
    %v1412 = vpop.f32.mrf.mxu0
    %v1413 = vadd.f32 0.0, %v1412
    %1414 = vmatmul.f32.gmra.mxu0 %v1353
    %v1415 = vpop.f32.mrf.mxu0
    %v1416 = vadd.f32 0.0, %v1415
    %1417 = vmatmul.f32.gmra.mxu0 %v1354
    %v1418 = vpop.f32.mrf.mxu0
    %v1419 = vadd.f32 0.0, %v1418
    %1420 = vmatmul.f32.gmra.mxu0 %v1355
    %v1421 = vpop.f32.mrf.mxu0
    %v1422 = vadd.f32 0.0, %v1421
    %1423 = vmatmul.f32.gmra.mxu0 %v1356
    %v1424 = vpop.f32.mrf.mxu0
    %v1425 = vadd.f32 0.0, %v1424
    %1426 = vmatmul.f32.gmra.mxu0 %v1357
    %v1427 = vpop.f32.mrf.mxu0
    %v1428 = vadd.f32 0.0, %v1427
    %1429 = vmatmul.f32.gmra.mxu0 %v1358
    %v1430 = vpop.f32.mrf.mxu0
    %v1431 = vadd.f32 0.0, %v1430
    %1432 = vmatmul.f32.gmra.mxu0 %v1359
    %v1433 = vpop.f32.mrf.mxu0
    %v1434 = vadd.f32 0.0, %v1433
    %1435 = vmatmul.f32.gmra.mxu0 %v1360
    %v1436 = vpop.f32.mrf.mxu0
    %v1437 = vadd.f32 0.0, %v1436
    %1438 = vmatmul.f32.gmra.mxu0 %v1361
    %v1439 = vpop.f32.mrf.mxu0
    %v1440 = vadd.f32 0.0, %v1439
    %1441 = vmatmul.f32.gmra.mxu0 %v1362
    %v1442 = vpop.f32.mrf.mxu0
    %v1443 = vadd.f32 0.0, %v1442
    %1444 = vdwg.mxu0
    %1445 = vmatpush.msra.mxu0 %v1346
    %1446 = vmatpush.msra.mxu0 %v1345
    %1447 = vmatpush.msra.mxu0 %v1344
    %1448 = vmatpush.msra.mxu0 %v1343
    %1449 = vmatpush.msra.mxu0 %v1342
    %1450 = vmatpush.msra.mxu0 %v1341
    %1451 = vmatpush.msra.mxu0 %v1340
    %1452 = vmatpush.msra.mxu0 %v1339
    %1453 = vmatpush.msra.mxu0 %v1338
    %1454 = vmatpush.msra.mxu0 %v1337
    %1455 = vmatpush.msra.mxu0 %v1336
    %1456 = vmatpush.msra.mxu0 %v1335
    %1457 = vmatpush.msra.mxu0 %v1334
    %1458 = vmatpush.msra.mxu0 %v1333
    %1459 = vmatpush.msra.mxu0 %v1332
    %1460 = vmatpush.msra.mxu0 %v1331
    %1461 = vmatmul.f32.gmra.mxu0 %v1314
    %v1462 = vpop.f32.mrf.mxu0
    %v1463 = vadd.f32 %v1398, %v1462
    %1464 = vmatmul.f32.gmra.mxu0 %v1315
    %v1465 = vpop.f32.mrf.mxu0
    %v1466 = vadd.f32 %v1401, %v1465
    %1467 = vmatmul.f32.gmra.mxu0 %v1316
    %v1468 = vpop.f32.mrf.mxu0
    %v1469 = vadd.f32 %v1404, %v1468
    %1470 = vmatmul.f32.gmra.mxu0 %v1317
    %v1471 = vpop.f32.mrf.mxu0
    %v1472 = vadd.f32 %v1407, %v1471
    %1473 = vmatmul.f32.gmra.mxu0 %v1318
    %v1474 = vpop.f32.mrf.mxu0
    %v1475 = vadd.f32 %v1410, %v1474
    %1476 = vmatmul.f32.gmra.mxu0 %v1319
    %v1477 = vpop.f32.mrf.mxu0
    %v1478 = vadd.f32 %v1413, %v1477
    %1479 = vmatmul.f32.gmra.mxu0 %v1320
    %v1480 = vpop.f32.mrf.mxu0
    %v1481 = vadd.f32 %v1416, %v1480
    %1482 = vmatmul.f32.gmra.mxu0 %v1321
    %v1483 = vpop.f32.mrf.mxu0
    %v1484 = vadd.f32 %v1419, %v1483
    %1485 = vmatmul.f32.gmra.mxu0 %v1322
    %v1486 = vpop.f32.mrf.mxu0
    %v1487 = vadd.f32 %v1422, %v1486
    %1488 = vmatmul.f32.gmra.mxu0 %v1323
    %v1489 = vpop.f32.mrf.mxu0
    %v1490 = vadd.f32 %v1425, %v1489
    %1491 = vmatmul.f32.gmra.mxu0 %v1324
    %v1492 = vpop.f32.mrf.mxu0
    %v1493 = vadd.f32 %v1428, %v1492
    %1494 = vmatmul.f32.gmra.mxu0 %v1325
    %v1495 = vpop.f32.mrf.mxu0
    %v1496 = vadd.f32 %v1431, %v1495
    %1497 = vmatmul.f32.gmra.mxu0 %v1326
    %v1498 = vpop.f32.mrf.mxu0
    %v1499 = vadd.f32 %v1434, %v1498
    %1500 = vmatmul.f32.gmra.mxu0 %v1327
    %v1501 = vpop.f32.mrf.mxu0
    %v1502 = vadd.f32 %v1437, %v1501
    %1503 = vmatmul.f32.gmra.mxu0 %v1328
    %v1504 = vpop.f32.mrf.mxu0
    %v1505 = vadd.f32 %v1440, %v1504
    %1506 = vmatmul.f32.gmra.mxu0 %v1329
    %v1507 = vpop.f32.mrf.mxu0
    %v1508 = vadd.f32 %v1443, %v1507
    %1509 = vdwg.mxu0
    %v1510 = vld [vmem:[#allocation2 + $0x2] sm:$0xff]
    %v1511 = vld [vmem:[#allocation2 + $0x12] sm:$0xff]
    %v1512 = vld [vmem:[#allocation2 + $0x22] sm:$0xff]
    %v1513 = vld [vmem:[#allocation2 + $0x32] sm:$0xff]
    %v1514 = vld [vmem:[#allocation2 + $0x42] sm:$0xff]
    %v1515 = vld [vmem:[#allocation2 + $0x52] sm:$0xff]
    %v1516 = vld [vmem:[#allocation2 + $0x62] sm:$0xff]
    %v1517 = vld [vmem:[#allocation2 + $0x72] sm:$0xff]
    %v1518 = vld [vmem:[#allocation2 + $0xa2] sm:$0xff]
    %v1519 = vld [vmem:[#allocation2 + $0xb2] sm:$0xff]
    %v1520 = vld [vmem:[#allocation2 + $0xc2] sm:$0xff]
    %v1521 = vld [vmem:[#allocation2 + $0xd2] sm:$0xff]
    %v1522 = vld [vmem:[#allocation2 + $0xe2] sm:$0xff]
    %v1523 = vld [vmem:[#allocation2 + $0xf2] sm:$0xff]
    %v1524 = vld [vmem:[#allocation2 + $0x102] sm:$0xff]
    %v1525 = vld [vmem:[#allocation2 + $0x112] sm:$0xff]
    %s1526 = scalar_lea.vmem [#allocation3], 1408
    %v1527 = vld [vmem:[%s1526] sm:$0xff]
    %v1528 = vld [vmem:[%s1526 + $0x8] sm:$0xff]
    %v1529 = vld [vmem:[%s1526 + $0x10] sm:$0xff]
    %v1530 = vld [vmem:[%s1526 + $0x18] sm:$0xff]
    %v1531 = vld [vmem:[%s1526 + $0x20] sm:$0xff]
    %v1532 = vld [vmem:[%s1526 + $0x28] sm:$0xff]
    %v1533 = vld [vmem:[%s1526 + $0x30] sm:$0xff]
    %v1534 = vld [vmem:[%s1526 + $0x38] sm:$0xff]
    %v1535 = vld [vmem:[%s1526 + $0x40] sm:$0xff]
    %v1536 = vld [vmem:[%s1526 + $0x48] sm:$0xff]
    %v1537 = vld [vmem:[%s1526 + $0x50] sm:$0xff]
    %v1538 = vld [vmem:[%s1526 + $0x58] sm:$0xff]
    %v1539 = vld [vmem:[%s1526 + $0x60] sm:$0xff]
    %v1540 = vld [vmem:[%s1526 + $0x68] sm:$0xff]
    %v1541 = vld [vmem:[%s1526 + $0x70] sm:$0xff]
    %v1542 = vld [vmem:[%s1526 + $0x78] sm:$0xff]
    %1543 = vmatpush.msra.mxu0 %v1542
    %1544 = vmatpush.msra.mxu0 %v1541
    %1545 = vmatpush.msra.mxu0 %v1540
    %1546 = vmatpush.msra.mxu0 %v1539
    %1547 = vmatpush.msra.mxu0 %v1538
    %1548 = vmatpush.msra.mxu0 %v1537
    %1549 = vmatpush.msra.mxu0 %v1536
    %1550 = vmatpush.msra.mxu0 %v1535
    %1551 = vmatpush.msra.mxu0 %v1534
    %1552 = vmatpush.msra.mxu0 %v1533
    %1553 = vmatpush.msra.mxu0 %v1532
    %1554 = vmatpush.msra.mxu0 %v1531
    %1555 = vmatpush.msra.mxu0 %v1530
    %1556 = vmatpush.msra.mxu0 %v1529
    %1557 = vmatpush.msra.mxu0 %v1528
    %1558 = vmatpush.msra.mxu0 %v1527
    %1559 = vmatmul.f32.gmra.mxu0 %v1510
    %v1560 = vpop.f32.mrf.mxu0
    %v1561 = vadd.f32 0.0, %v1560
    %1562 = vmatmul.f32.gmra.mxu0 %v1511
    %v1563 = vpop.f32.mrf.mxu0
    %v1564 = vadd.f32 0.0, %v1563
    %1565 = vmatmul.f32.gmra.mxu0 %v1512
    %v1566 = vpop.f32.mrf.mxu0
    %v1567 = vadd.f32 0.0, %v1566
    %1568 = vmatmul.f32.gmra.mxu0 %v1513
    %v1569 = vpop.f32.mrf.mxu0
    %v1570 = vadd.f32 0.0, %v1569
    %1571 = vmatmul.f32.gmra.mxu0 %v1514
    %v1572 = vpop.f32.mrf.mxu0
    %v1573 = vadd.f32 0.0, %v1572
    %1574 = vmatmul.f32.gmra.mxu0 %v1515
    %v1575 = vpop.f32.mrf.mxu0
    %v1576 = vadd.f32 0.0, %v1575
    %1577 = vmatmul.f32.gmra.mxu0 %v1516
    %v1578 = vpop.f32.mrf.mxu0
    %v1579 = vadd.f32 0.0, %v1578
    %1580 = vmatmul.f32.gmra.mxu0 %v1517
    %v1581 = vpop.f32.mrf.mxu0
    %v1582 = vadd.f32 0.0, %v1581
    %1583 = vmatmul.f32.gmra.mxu0 %v1518
    %v1584 = vpop.f32.mrf.mxu0
    %v1585 = vadd.f32 0.0, %v1584
    %1586 = vmatmul.f32.gmra.mxu0 %v1519
    %v1587 = vpop.f32.mrf.mxu0
    %v1588 = vadd.f32 0.0, %v1587
    %1589 = vmatmul.f32.gmra.mxu0 %v1520
    %v1590 = vpop.f32.mrf.mxu0
    %v1591 = vadd.f32 0.0, %v1590
    %1592 = vmatmul.f32.gmra.mxu0 %v1521
    %v1593 = vpop.f32.mrf.mxu0
    %v1594 = vadd.f32 0.0, %v1593
    %1595 = vmatmul.f32.gmra.mxu0 %v1522
    %v1596 = vpop.f32.mrf.mxu0
    %v1597 = vadd.f32 0.0, %v1596
    %1598 = vmatmul.f32.gmra.mxu0 %v1523
    %v1599 = vpop.f32.mrf.mxu0
    %v1600 = vadd.f32 0.0, %v1599
    %1601 = vmatmul.f32.gmra.mxu0 %v1524
    %v1602 = vpop.f32.mrf.mxu0
    %v1603 = vadd.f32 0.0, %v1602
    %1604 = vmatmul.f32.gmra.mxu0 %v1525
    %v1605 = vpop.f32.mrf.mxu0
    %v1606 = vadd.f32 0.0, %v1605
    %1607 = vdwg.mxu0
    %v1608 = vadd.f32 %v1463, %v1561
    %v1609 = vadd.f32 %v1466, %v1564
    %v1610 = vadd.f32 %v1469, %v1567
    %v1611 = vadd.f32 %v1472, %v1570
    %v1612 = vadd.f32 %v1475, %v1573
    %v1613 = vadd.f32 %v1478, %v1576
    %v1614 = vadd.f32 %v1481, %v1579
    %v1615 = vadd.f32 %v1484, %v1582
    %v1616 = vadd.f32 %v1487, %v1585
    %v1617 = vadd.f32 %v1490, %v1588
    %v1618 = vadd.f32 %v1493, %v1591
    %v1619 = vadd.f32 %v1496, %v1594
    %v1620 = vadd.f32 %v1499, %v1597
    %v1621 = vadd.f32 %v1502, %v1600
    %v1622 = vadd.f32 %v1505, %v1603
    %v1623 = vadd.f32 %v1508, %v1606
    %v1624 = vld [vmem:[%s125] sm:$0xff]
    %v1625 = vld [vmem:[%s125 + $0x10] sm:$0xff]
    %v1626 = vld [vmem:[%s125 + $0x20] sm:$0xff]
    %v1627 = vld [vmem:[%s125 + $0x30] sm:$0xff]
    %v1628 = vld [vmem:[%s125 + $0x40] sm:$0xff]
    %v1629 = vld [vmem:[%s125 + $0x50] sm:$0xff]
    %v1630 = vld [vmem:[%s125 + $0x60] sm:$0xff]
    %v1631 = vld [vmem:[%s125 + $0x70] sm:$0xff]
    %v1632 = vld [vmem:[%s125 + $0xa0] sm:$0xff]
    %v1633 = vld [vmem:[%s125 + $0xb0] sm:$0xff]
    %v1634 = vld [vmem:[%s125 + $0xc0] sm:$0xff]
    %v1635 = vld [vmem:[%s125 + $0xd0] sm:$0xff]
    %v1636 = vld [vmem:[%s125 + $0xe0] sm:$0xff]
    %v1637 = vld [vmem:[%s125 + $0xf0] sm:$0xff]
    %v1638 = vld [vmem:[%s125 + $0x100] sm:$0xff]
    %v1639 = vld [vmem:[%s125 + $0x110] sm:$0xff]
    %s1640 = scalar_lea.vmem [#allocation3], 1536
    %v1641 = vld [vmem:[%s1640] sm:$0xff]
    %v1642 = vld [vmem:[%s1640 + $0x8] sm:$0xff]
    %v1643 = vld [vmem:[%s1640 + $0x10] sm:$0xff]
    %v1644 = vld [vmem:[%s1640 + $0x18] sm:$0xff]
    %v1645 = vld [vmem:[%s1640 + $0x20] sm:$0xff]
    %v1646 = vld [vmem:[%s1640 + $0x28] sm:$0xff]
    %v1647 = vld [vmem:[%s1640 + $0x30] sm:$0xff]
    %v1648 = vld [vmem:[%s1640 + $0x38] sm:$0xff]
    %v1649 = vld [vmem:[%s1640 + $0x40] sm:$0xff]
    %v1650 = vld [vmem:[%s1640 + $0x48] sm:$0xff]
    %v1651 = vld [vmem:[%s1640 + $0x50] sm:$0xff]
    %v1652 = vld [vmem:[%s1640 + $0x58] sm:$0xff]
    %v1653 = vld [vmem:[%s1640 + $0x60] sm:$0xff]
    %v1654 = vld [vmem:[%s1640 + $0x68] sm:$0xff]
    %v1655 = vld [vmem:[%s1640 + $0x70] sm:$0xff]
    %v1656 = vld [vmem:[%s1640 + $0x78] sm:$0xff]
    %1657 = vmatpush.msra.mxu0 %v1656
    %1658 = vmatpush.msra.mxu0 %v1655
    %1659 = vmatpush.msra.mxu0 %v1654
    %1660 = vmatpush.msra.mxu0 %v1653
    %1661 = vmatpush.msra.mxu0 %v1652
    %1662 = vmatpush.msra.mxu0 %v1651
    %1663 = vmatpush.msra.mxu0 %v1650
    %1664 = vmatpush.msra.mxu0 %v1649
    %1665 = vmatpush.msra.mxu0 %v1648
    %1666 = vmatpush.msra.mxu0 %v1647
    %1667 = vmatpush.msra.mxu0 %v1646
    %1668 = vmatpush.msra.mxu0 %v1645
    %1669 = vmatpush.msra.mxu0 %v1644
    %1670 = vmatpush.msra.mxu0 %v1643
    %1671 = vmatpush.msra.mxu0 %v1642
    %1672 = vmatpush.msra.mxu0 %v1641
    %1673 = vmatmul.f32.gmra.mxu0 %v1624
    %v1674 = vpop.f32.mrf.mxu0
    %v1675 = vadd.f32 0.0, %v1674
    %1676 = vmatmul.f32.gmra.mxu0 %v1625
    %v1677 = vpop.f32.mrf.mxu0
    %v1678 = vadd.f32 0.0, %v1677
    %1679 = vmatmul.f32.gmra.mxu0 %v1626
    %v1680 = vpop.f32.mrf.mxu0
    %v1681 = vadd.f32 0.0, %v1680
    %1682 = vmatmul.f32.gmra.mxu0 %v1627
    %v1683 = vpop.f32.mrf.mxu0
    %v1684 = vadd.f32 0.0, %v1683
    %1685 = vmatmul.f32.gmra.mxu0 %v1628
    %v1686 = vpop.f32.mrf.mxu0
    %v1687 = vadd.f32 0.0, %v1686
    %1688 = vmatmul.f32.gmra.mxu0 %v1629
    %v1689 = vpop.f32.mrf.mxu0
    %v1690 = vadd.f32 0.0, %v1689
    %1691 = vmatmul.f32.gmra.mxu0 %v1630
    %v1692 = vpop.f32.mrf.mxu0
    %v1693 = vadd.f32 0.0, %v1692
    %1694 = vmatmul.f32.gmra.mxu0 %v1631
    %v1695 = vpop.f32.mrf.mxu0
    %v1696 = vadd.f32 0.0, %v1695
    %1697 = vmatmul.f32.gmra.mxu0 %v1632
    %v1698 = vpop.f32.mrf.mxu0
    %v1699 = vadd.f32 0.0, %v1698
    %1700 = vmatmul.f32.gmra.mxu0 %v1633
    %v1701 = vpop.f32.mrf.mxu0
    %v1702 = vadd.f32 0.0, %v1701
    %1703 = vmatmul.f32.gmra.mxu0 %v1634
    %v1704 = vpop.f32.mrf.mxu0
    %v1705 = vadd.f32 0.0, %v1704
    %1706 = vmatmul.f32.gmra.mxu0 %v1635
    %v1707 = vpop.f32.mrf.mxu0
    %v1708 = vadd.f32 0.0, %v1707
    %1709 = vmatmul.f32.gmra.mxu0 %v1636
    %v1710 = vpop.f32.mrf.mxu0
    %v1711 = vadd.f32 0.0, %v1710
    %1712 = vmatmul.f32.gmra.mxu0 %v1637
    %v1713 = vpop.f32.mrf.mxu0
    %v1714 = vadd.f32 0.0, %v1713
    %1715 = vmatmul.f32.gmra.mxu0 %v1638
    %v1716 = vpop.f32.mrf.mxu0
    %v1717 = vadd.f32 0.0, %v1716
    %1718 = vmatmul.f32.gmra.mxu0 %v1639
    %v1719 = vpop.f32.mrf.mxu0
    %v1720 = vadd.f32 0.0, %v1719
    %1721 = vdwg.mxu0
    %v1722 = vadd.f32 %v1608, %v1675
    %v1723 = vadd.f32 %v1609, %v1678
    %v1724 = vadd.f32 %v1610, %v1681
    %v1725 = vadd.f32 %v1611, %v1684
    %v1726 = vadd.f32 %v1612, %v1687
    %v1727 = vadd.f32 %v1613, %v1690
    %v1728 = vadd.f32 %v1614, %v1693
    %v1729 = vadd.f32 %v1615, %v1696
    %v1730 = vadd.f32 %v1616, %v1699
    %v1731 = vadd.f32 %v1617, %v1702
    %v1732 = vadd.f32 %v1618, %v1705
    %v1733 = vadd.f32 %v1619, %v1708
    %v1734 = vadd.f32 %v1620, %v1711
    %v1735 = vadd.f32 %v1621, %v1714
    %v1736 = vadd.f32 %v1622, %v1717
    %v1737 = vadd.f32 %v1623, %v1720
    %v1738 = vld [vmem:[%s125 + $0x1] sm:$0xff]
    %v1739 = vld [vmem:[%s125 + $0x11] sm:$0xff]
    %v1740 = vld [vmem:[%s125 + $0x21] sm:$0xff]
    %v1741 = vld [vmem:[%s125 + $0x31] sm:$0xff]
    %v1742 = vld [vmem:[%s125 + $0x41] sm:$0xff]
    %v1743 = vld [vmem:[%s125 + $0x51] sm:$0xff]
    %v1744 = vld [vmem:[%s125 + $0x61] sm:$0xff]
    %v1745 = vld [vmem:[%s125 + $0x71] sm:$0xff]
    %v1746 = vld [vmem:[%s125 + $0xa1] sm:$0xff]
    %v1747 = vld [vmem:[%s125 + $0xb1] sm:$0xff]
    %v1748 = vld [vmem:[%s125 + $0xc1] sm:$0xff]
    %v1749 = vld [vmem:[%s125 + $0xd1] sm:$0xff]
    %v1750 = vld [vmem:[%s125 + $0xe1] sm:$0xff]
    %v1751 = vld [vmem:[%s125 + $0xf1] sm:$0xff]
    %v1752 = vld [vmem:[%s125 + $0x101] sm:$0xff]
    %v1753 = vld [vmem:[%s125 + $0x111] sm:$0xff]
    %s1754 = scalar_lea.vmem [#allocation3], 1664
    %v1755 = vld [vmem:[%s1754] sm:$0xff]
    %v1756 = vld [vmem:[%s1754 + $0x8] sm:$0xff]
    %v1757 = vld [vmem:[%s1754 + $0x10] sm:$0xff]
    %v1758 = vld [vmem:[%s1754 + $0x18] sm:$0xff]
    %v1759 = vld [vmem:[%s1754 + $0x20] sm:$0xff]
    %v1760 = vld [vmem:[%s1754 + $0x28] sm:$0xff]
    %v1761 = vld [vmem:[%s1754 + $0x30] sm:$0xff]
    %v1762 = vld [vmem:[%s1754 + $0x38] sm:$0xff]
    %v1763 = vld [vmem:[%s1754 + $0x40] sm:$0xff]
    %v1764 = vld [vmem:[%s1754 + $0x48] sm:$0xff]
    %v1765 = vld [vmem:[%s1754 + $0x50] sm:$0xff]
    %v1766 = vld [vmem:[%s1754 + $0x58] sm:$0xff]
    %v1767 = vld [vmem:[%s1754 + $0x60] sm:$0xff]
    %v1768 = vld [vmem:[%s1754 + $0x68] sm:$0xff]
    %v1769 = vld [vmem:[%s1754 + $0x70] sm:$0xff]
    %v1770 = vld [vmem:[%s1754 + $0x78] sm:$0xff]
    %1771 = vmatpush.msra.mxu0 %v1770
    %1772 = vmatpush.msra.mxu0 %v1769
    %1773 = vmatpush.msra.mxu0 %v1768
    %1774 = vmatpush.msra.mxu0 %v1767
    %1775 = vmatpush.msra.mxu0 %v1766
    %1776 = vmatpush.msra.mxu0 %v1765
    %1777 = vmatpush.msra.mxu0 %v1764
    %1778 = vmatpush.msra.mxu0 %v1763
    %1779 = vmatpush.msra.mxu0 %v1762
    %1780 = vmatpush.msra.mxu0 %v1761
    %1781 = vmatpush.msra.mxu0 %v1760
    %1782 = vmatpush.msra.mxu0 %v1759
    %1783 = vmatpush.msra.mxu0 %v1758
    %1784 = vmatpush.msra.mxu0 %v1757
    %1785 = vmatpush.msra.mxu0 %v1756
    %1786 = vmatpush.msra.mxu0 %v1755
    %1787 = vmatmul.f32.gmra.mxu0 %v1738
    %v1788 = vpop.f32.mrf.mxu0
    %v1789 = vadd.f32 0.0, %v1788
    %1790 = vmatmul.f32.gmra.mxu0 %v1739
    %v1791 = vpop.f32.mrf.mxu0
    %v1792 = vadd.f32 0.0, %v1791
    %1793 = vmatmul.f32.gmra.mxu0 %v1740
    %v1794 = vpop.f32.mrf.mxu0
    %v1795 = vadd.f32 0.0, %v1794
    %1796 = vmatmul.f32.gmra.mxu0 %v1741
    %v1797 = vpop.f32.mrf.mxu0
    %v1798 = vadd.f32 0.0, %v1797
    %1799 = vmatmul.f32.gmra.mxu0 %v1742
    %v1800 = vpop.f32.mrf.mxu0
    %v1801 = vadd.f32 0.0, %v1800
    %1802 = vmatmul.f32.gmra.mxu0 %v1743
    %v1803 = vpop.f32.mrf.mxu0
    %v1804 = vadd.f32 0.0, %v1803
    %1805 = vmatmul.f32.gmra.mxu0 %v1744
    %v1806 = vpop.f32.mrf.mxu0
    %v1807 = vadd.f32 0.0, %v1806
    %1808 = vmatmul.f32.gmra.mxu0 %v1745
    %v1809 = vpop.f32.mrf.mxu0
    %v1810 = vadd.f32 0.0, %v1809
    %1811 = vmatmul.f32.gmra.mxu0 %v1746
    %v1812 = vpop.f32.mrf.mxu0
    %v1813 = vadd.f32 0.0, %v1812
    %1814 = vmatmul.f32.gmra.mxu0 %v1747
    %v1815 = vpop.f32.mrf.mxu0
    %v1816 = vadd.f32 0.0, %v1815
    %1817 = vmatmul.f32.gmra.mxu0 %v1748
    %v1818 = vpop.f32.mrf.mxu0
    %v1819 = vadd.f32 0.0, %v1818
    %1820 = vmatmul.f32.gmra.mxu0 %v1749
    %v1821 = vpop.f32.mrf.mxu0
    %v1822 = vadd.f32 0.0, %v1821
    %1823 = vmatmul.f32.gmra.mxu0 %v1750
    %v1824 = vpop.f32.mrf.mxu0
    %v1825 = vadd.f32 0.0, %v1824
    %1826 = vmatmul.f32.gmra.mxu0 %v1751
    %v1827 = vpop.f32.mrf.mxu0
    %v1828 = vadd.f32 0.0, %v1827
    %1829 = vmatmul.f32.gmra.mxu0 %v1752
    %v1830 = vpop.f32.mrf.mxu0
    %v1831 = vadd.f32 0.0, %v1830
    %1832 = vmatmul.f32.gmra.mxu0 %v1753
    %v1833 = vpop.f32.mrf.mxu0
    %v1834 = vadd.f32 0.0, %v1833
    %1835 = vdwg.mxu0
    %v1836 = vadd.f32 %v1722, %v1789
    %v1837 = vadd.f32 %v1723, %v1792
    %v1838 = vadd.f32 %v1724, %v1795
    %v1839 = vadd.f32 %v1725, %v1798
    %v1840 = vadd.f32 %v1726, %v1801
    %v1841 = vadd.f32 %v1727, %v1804
    %v1842 = vadd.f32 %v1728, %v1807
    %v1843 = vadd.f32 %v1729, %v1810
    %v1844 = vadd.f32 %v1730, %v1813
    %v1845 = vadd.f32 %v1731, %v1816
    %v1846 = vadd.f32 %v1732, %v1819
    %v1847 = vadd.f32 %v1733, %v1822
    %v1848 = vadd.f32 %v1734, %v1825
    %v1849 = vadd.f32 %v1735, %v1828
    %v1850 = vadd.f32 %v1736, %v1831
    %v1851 = vadd.f32 %v1737, %v1834
    %v1852 = vld [vmem:[%s125 + $0x2] sm:$0xff]
    %v1853 = vld [vmem:[%s125 + $0x12] sm:$0xff]
    %v1854 = vld [vmem:[%s125 + $0x22] sm:$0xff]
    %v1855 = vld [vmem:[%s125 + $0x32] sm:$0xff]
    %v1856 = vld [vmem:[%s125 + $0x42] sm:$0xff]
    %v1857 = vld [vmem:[%s125 + $0x52] sm:$0xff]
    %v1858 = vld [vmem:[%s125 + $0x62] sm:$0xff]
    %v1859 = vld [vmem:[%s125 + $0x72] sm:$0xff]
    %v1860 = vld [vmem:[%s125 + $0xa2] sm:$0xff]
    %v1861 = vld [vmem:[%s125 + $0xb2] sm:$0xff]
    %v1862 = vld [vmem:[%s125 + $0xc2] sm:$0xff]
    %v1863 = vld [vmem:[%s125 + $0xd2] sm:$0xff]
    %v1864 = vld [vmem:[%s125 + $0xe2] sm:$0xff]
    %v1865 = vld [vmem:[%s125 + $0xf2] sm:$0xff]
    %v1866 = vld [vmem:[%s125 + $0x102] sm:$0xff]
    %v1867 = vld [vmem:[%s125 + $0x112] sm:$0xff]
    %s1868 = scalar_lea.vmem [#allocation3], 1792
    %v1869 = vld [vmem:[%s1868] sm:$0xff]
    %v1870 = vld [vmem:[%s1868 + $0x8] sm:$0xff]
    %v1871 = vld [vmem:[%s1868 + $0x10] sm:$0xff]
    %v1872 = vld [vmem:[%s1868 + $0x18] sm:$0xff]
    %v1873 = vld [vmem:[%s1868 + $0x20] sm:$0xff]
    %v1874 = vld [vmem:[%s1868 + $0x28] sm:$0xff]
    %v1875 = vld [vmem:[%s1868 + $0x30] sm:$0xff]
    %v1876 = vld [vmem:[%s1868 + $0x38] sm:$0xff]
    %v1877 = vld [vmem:[%s1868 + $0x40] sm:$0xff]
    %v1878 = vld [vmem:[%s1868 + $0x48] sm:$0xff]
    %v1879 = vld [vmem:[%s1868 + $0x50] sm:$0xff]
    %v1880 = vld [vmem:[%s1868 + $0x58] sm:$0xff]
    %v1881 = vld [vmem:[%s1868 + $0x60] sm:$0xff]
    %v1882 = vld [vmem:[%s1868 + $0x68] sm:$0xff]
    %v1883 = vld [vmem:[%s1868 + $0x70] sm:$0xff]
    %v1884 = vld [vmem:[%s1868 + $0x78] sm:$0xff]
    %1885 = vmatpush.msra.mxu0 %v1884
    %1886 = vmatpush.msra.mxu0 %v1883
    %1887 = vmatpush.msra.mxu0 %v1882
    %1888 = vmatpush.msra.mxu0 %v1881
    %1889 = vmatpush.msra.mxu0 %v1880
    %1890 = vmatpush.msra.mxu0 %v1879
    %1891 = vmatpush.msra.mxu0 %v1878
    %1892 = vmatpush.msra.mxu0 %v1877
    %1893 = vmatpush.msra.mxu0 %v1876
    %1894 = vmatpush.msra.mxu0 %v1875
    %1895 = vmatpush.msra.mxu0 %v1874
    %1896 = vmatpush.msra.mxu0 %v1873
    %1897 = vmatpush.msra.mxu0 %v1872
    %1898 = vmatpush.msra.mxu0 %v1871
    %1899 = vmatpush.msra.mxu0 %v1870
    %1900 = vmatpush.msra.mxu0 %v1869
    %1901 = vmatmul.f32.gmra.mxu0 %v1852
    %v1902 = vpop.f32.mrf.mxu0
    %v1903 = vadd.f32 0.0, %v1902
    %1904 = vmatmul.f32.gmra.mxu0 %v1853
    %v1905 = vpop.f32.mrf.mxu0
    %v1906 = vadd.f32 0.0, %v1905
    %1907 = vmatmul.f32.gmra.mxu0 %v1854
    %v1908 = vpop.f32.mrf.mxu0
    %v1909 = vadd.f32 0.0, %v1908
    %1910 = vmatmul.f32.gmra.mxu0 %v1855
    %v1911 = vpop.f32.mrf.mxu0
    %v1912 = vadd.f32 0.0, %v1911
    %1913 = vmatmul.f32.gmra.mxu0 %v1856
    %v1914 = vpop.f32.mrf.mxu0
    %v1915 = vadd.f32 0.0, %v1914
    %1916 = vmatmul.f32.gmra.mxu0 %v1857
    %v1917 = vpop.f32.mrf.mxu0
    %v1918 = vadd.f32 0.0, %v1917
    %1919 = vmatmul.f32.gmra.mxu0 %v1858
    %v1920 = vpop.f32.mrf.mxu0
    %v1921 = vadd.f32 0.0, %v1920
    %1922 = vmatmul.f32.gmra.mxu0 %v1859
    %v1923 = vpop.f32.mrf.mxu0
    %v1924 = vadd.f32 0.0, %v1923
    %1925 = vmatmul.f32.gmra.mxu0 %v1860
    %v1926 = vpop.f32.mrf.mxu0
    %v1927 = vadd.f32 0.0, %v1926
    %1928 = vmatmul.f32.gmra.mxu0 %v1861
    %v1929 = vpop.f32.mrf.mxu0
    %v1930 = vadd.f32 0.0, %v1929
    %1931 = vmatmul.f32.gmra.mxu0 %v1862
    %v1932 = vpop.f32.mrf.mxu0
    %v1933 = vadd.f32 0.0, %v1932
    %1934 = vmatmul.f32.gmra.mxu0 %v1863
    %v1935 = vpop.f32.mrf.mxu0
    %v1936 = vadd.f32 0.0, %v1935
    %1937 = vmatmul.f32.gmra.mxu0 %v1864
    %v1938 = vpop.f32.mrf.mxu0
    %v1939 = vadd.f32 0.0, %v1938
    %1940 = vmatmul.f32.gmra.mxu0 %v1865
    %v1941 = vpop.f32.mrf.mxu0
    %v1942 = vadd.f32 0.0, %v1941
    %1943 = vmatmul.f32.gmra.mxu0 %v1866
    %v1944 = vpop.f32.mrf.mxu0
    %v1945 = vadd.f32 0.0, %v1944
    %1946 = vmatmul.f32.gmra.mxu0 %v1867
    %v1947 = vpop.f32.mrf.mxu0
    %v1948 = vadd.f32 0.0, %v1947
    %1949 = vdwg.mxu0
    %v1950 = vadd.f32 %v1836, %v1903
    %v1951 = vadd.f32 %v1837, %v1906
    %v1952 = vadd.f32 %v1838, %v1909
    %v1953 = vadd.f32 %v1839, %v1912
    %v1954 = vadd.f32 %v1840, %v1915
    %v1955 = vadd.f32 %v1841, %v1918
    %v1956 = vadd.f32 %v1842, %v1921
    %v1957 = vadd.f32 %v1843, %v1924
    %v1958 = vadd.f32 %v1844, %v1927
    %v1959 = vadd.f32 %v1845, %v1930
    %v1960 = vadd.f32 %v1846, %v1933
    %v1961 = vadd.f32 %v1847, %v1936
    %v1962 = vadd.f32 %v1848, %v1939
    %v1963 = vadd.f32 %v1849, %v1942
    %v1964 = vadd.f32 %v1850, %v1945
    %v1965 = vadd.f32 %v1851, %v1948
    %v1966 = vld [vmem:[%s793] sm:$0xff]
    %v1967 = vld [vmem:[%s793 + $0x10] sm:$0xff]
    %v1968 = vld [vmem:[%s793 + $0x20] sm:$0xff]
    %v1969 = vld [vmem:[%s793 + $0x30] sm:$0xff]
    %v1970 = vld [vmem:[%s793 + $0x40] sm:$0xff]
    %v1971 = vld [vmem:[%s793 + $0x50] sm:$0xff]
    %v1972 = vld [vmem:[%s793 + $0x60] sm:$0xff]
    %v1973 = vld [vmem:[%s793 + $0x70] sm:$0xff]
    %v1974 = vld [vmem:[%s793 + $0xa0] sm:$0xff]
    %v1975 = vld [vmem:[%s793 + $0xb0] sm:$0xff]
    %v1976 = vld [vmem:[%s793 + $0xc0] sm:$0xff]
    %v1977 = vld [vmem:[%s793 + $0xd0] sm:$0xff]
    %v1978 = vld [vmem:[%s793 + $0xe0] sm:$0xff]
    %v1979 = vld [vmem:[%s793 + $0xf0] sm:$0xff]
    %v1980 = vld [vmem:[%s793 + $0x100] sm:$0xff]
    %v1981 = vld [vmem:[%s793 + $0x110] sm:$0xff]
    %s1982 = scalar_lea.vmem [#allocation3], 1920
    %v1983 = vld [vmem:[%s1982] sm:$0xff]
    %v1984 = vld [vmem:[%s1982 + $0x8] sm:$0xff]
    %v1985 = vld [vmem:[%s1982 + $0x10] sm:$0xff]
    %v1986 = vld [vmem:[%s1982 + $0x18] sm:$0xff]
    %v1987 = vld [vmem:[%s1982 + $0x20] sm:$0xff]
    %v1988 = vld [vmem:[%s1982 + $0x28] sm:$0xff]
    %v1989 = vld [vmem:[%s1982 + $0x30] sm:$0xff]
    %v1990 = vld [vmem:[%s1982 + $0x38] sm:$0xff]
    %v1991 = vld [vmem:[%s1982 + $0x40] sm:$0xff]
    %v1992 = vld [vmem:[%s1982 + $0x48] sm:$0xff]
    %v1993 = vld [vmem:[%s1982 + $0x50] sm:$0xff]
    %v1994 = vld [vmem:[%s1982 + $0x58] sm:$0xff]
    %v1995 = vld [vmem:[%s1982 + $0x60] sm:$0xff]
    %v1996 = vld [vmem:[%s1982 + $0x68] sm:$0xff]
    %v1997 = vld [vmem:[%s1982 + $0x70] sm:$0xff]
    %v1998 = vld [vmem:[%s1982 + $0x78] sm:$0xff]
    %1999 = vmatpush.msra.mxu0 %v1998
    %2000 = vmatpush.msra.mxu0 %v1997
    %2001 = vmatpush.msra.mxu0 %v1996
    %2002 = vmatpush.msra.mxu0 %v1995
    %2003 = vmatpush.msra.mxu0 %v1994
    %2004 = vmatpush.msra.mxu0 %v1993
    %2005 = vmatpush.msra.mxu0 %v1992
    %2006 = vmatpush.msra.mxu0 %v1991
    %2007 = vmatpush.msra.mxu0 %v1990
    %2008 = vmatpush.msra.mxu0 %v1989
    %2009 = vmatpush.msra.mxu0 %v1988
    %2010 = vmatpush.msra.mxu0 %v1987
    %2011 = vmatpush.msra.mxu0 %v1986
    %2012 = vmatpush.msra.mxu0 %v1985
    %2013 = vmatpush.msra.mxu0 %v1984
    %2014 = vmatpush.msra.mxu0 %v1983
    %2015 = vmatmul.f32.gmra.mxu0 %v1966
    %v2016 = vpop.f32.mrf.mxu0
    %v2017 = vadd.f32 0.0, %v2016
    %2018 = vmatmul.f32.gmra.mxu0 %v1967
    %v2019 = vpop.f32.mrf.mxu0
    %v2020 = vadd.f32 0.0, %v2019
    %2021 = vmatmul.f32.gmra.mxu0 %v1968
    %v2022 = vpop.f32.mrf.mxu0
    %v2023 = vadd.f32 0.0, %v2022
    %2024 = vmatmul.f32.gmra.mxu0 %v1969
    %v2025 = vpop.f32.mrf.mxu0
    %v2026 = vadd.f32 0.0, %v2025
    %2027 = vmatmul.f32.gmra.mxu0 %v1970
    %v2028 = vpop.f32.mrf.mxu0
    %v2029 = vadd.f32 0.0, %v2028
    %2030 = vmatmul.f32.gmra.mxu0 %v1971
    %v2031 = vpop.f32.mrf.mxu0
    %v2032 = vadd.f32 0.0, %v2031
    %2033 = vmatmul.f32.gmra.mxu0 %v1972
    %v2034 = vpop.f32.mrf.mxu0
    %v2035 = vadd.f32 0.0, %v2034
    %2036 = vmatmul.f32.gmra.mxu0 %v1973
    %v2037 = vpop.f32.mrf.mxu0
    %v2038 = vadd.f32 0.0, %v2037
    %2039 = vmatmul.f32.gmra.mxu0 %v1974
    %v2040 = vpop.f32.mrf.mxu0
    %v2041 = vadd.f32 0.0, %v2040
    %2042 = vmatmul.f32.gmra.mxu0 %v1975
    %v2043 = vpop.f32.mrf.mxu0
    %v2044 = vadd.f32 0.0, %v2043
    %2045 = vmatmul.f32.gmra.mxu0 %v1976
    %v2046 = vpop.f32.mrf.mxu0
    %v2047 = vadd.f32 0.0, %v2046
    %2048 = vmatmul.f32.gmra.mxu0 %v1977
    %v2049 = vpop.f32.mrf.mxu0
    %v2050 = vadd.f32 0.0, %v2049
    %2051 = vmatmul.f32.gmra.mxu0 %v1978
    %v2052 = vpop.f32.mrf.mxu0
    %v2053 = vadd.f32 0.0, %v2052
    %2054 = vmatmul.f32.gmra.mxu0 %v1979
    %v2055 = vpop.f32.mrf.mxu0
    %v2056 = vadd.f32 0.0, %v2055
    %2057 = vmatmul.f32.gmra.mxu0 %v1980
    %v2058 = vpop.f32.mrf.mxu0
    %v2059 = vadd.f32 0.0, %v2058
    %2060 = vmatmul.f32.gmra.mxu0 %v1981
    %v2061 = vpop.f32.mrf.mxu0
    %v2062 = vadd.f32 0.0, %v2061
    %2063 = vdwg.mxu0
    %v2064 = vadd.f32 %v1950, %v2017
    %v2065 = vadd.f32 %v1951, %v2020
    %v2066 = vadd.f32 %v1952, %v2023
    %v2067 = vadd.f32 %v1953, %v2026
    %v2068 = vadd.f32 %v1954, %v2029
    %v2069 = vadd.f32 %v1955, %v2032
    %v2070 = vadd.f32 %v1956, %v2035
    %v2071 = vadd.f32 %v1957, %v2038
    %v2072 = vadd.f32 %v1958, %v2041
    %v2073 = vadd.f32 %v1959, %v2044
    %v2074 = vadd.f32 %v1960, %v2047
    %v2075 = vadd.f32 %v1961, %v2050
    %v2076 = vadd.f32 %v1962, %v2053
    %v2077 = vadd.f32 %v1963, %v2056
    %v2078 = vadd.f32 %v1964, %v2059
    %v2079 = vadd.f32 %v1965, %v2062
    %v2080 = vld [vmem:[%s793 + $0x1] sm:$0xff]
    %v2081 = vld [vmem:[%s793 + $0x11] sm:$0xff]
    %v2082 = vld [vmem:[%s793 + $0x21] sm:$0xff]
    %v2083 = vld [vmem:[%s793 + $0x31] sm:$0xff]
    %v2084 = vld [vmem:[%s793 + $0x41] sm:$0xff]
    %v2085 = vld [vmem:[%s793 + $0x51] sm:$0xff]
    %v2086 = vld [vmem:[%s793 + $0x61] sm:$0xff]
    %v2087 = vld [vmem:[%s793 + $0x71] sm:$0xff]
    %v2088 = vld [vmem:[%s793 + $0xa1] sm:$0xff]
    %v2089 = vld [vmem:[%s793 + $0xb1] sm:$0xff]
    %v2090 = vld [vmem:[%s793 + $0xc1] sm:$0xff]
    %v2091 = vld [vmem:[%s793 + $0xd1] sm:$0xff]
    %v2092 = vld [vmem:[%s793 + $0xe1] sm:$0xff]
    %v2093 = vld [vmem:[%s793 + $0xf1] sm:$0xff]
    %v2094 = vld [vmem:[%s793 + $0x101] sm:$0xff]
    %v2095 = vld [vmem:[%s793 + $0x111] sm:$0xff]
    %s2096 = scalar_lea.vmem [#allocation3], 2048
    %v2097 = vld [vmem:[%s2096] sm:$0xff]
    %v2098 = vld [vmem:[%s2096 + $0x8] sm:$0xff]
    %v2099 = vld [vmem:[%s2096 + $0x10] sm:$0xff]
    %v2100 = vld [vmem:[%s2096 + $0x18] sm:$0xff]
    %v2101 = vld [vmem:[%s2096 + $0x20] sm:$0xff]
    %v2102 = vld [vmem:[%s2096 + $0x28] sm:$0xff]
    %v2103 = vld [vmem:[%s2096 + $0x30] sm:$0xff]
    %v2104 = vld [vmem:[%s2096 + $0x38] sm:$0xff]
    %v2105 = vld [vmem:[%s2096 + $0x40] sm:$0xff]
    %v2106 = vld [vmem:[%s2096 + $0x48] sm:$0xff]
    %v2107 = vld [vmem:[%s2096 + $0x50] sm:$0xff]
    %v2108 = vld [vmem:[%s2096 + $0x58] sm:$0xff]
    %v2109 = vld [vmem:[%s2096 + $0x60] sm:$0xff]
    %v2110 = vld [vmem:[%s2096 + $0x68] sm:$0xff]
    %v2111 = vld [vmem:[%s2096 + $0x70] sm:$0xff]
    %v2112 = vld [vmem:[%s2096 + $0x78] sm:$0xff]
    %2113 = vmatpush.msra.mxu0 %v2112
    %2114 = vmatpush.msra.mxu0 %v2111
    %2115 = vmatpush.msra.mxu0 %v2110
    %2116 = vmatpush.msra.mxu0 %v2109
    %2117 = vmatpush.msra.mxu0 %v2108
    %2118 = vmatpush.msra.mxu0 %v2107
    %2119 = vmatpush.msra.mxu0 %v2106
    %2120 = vmatpush.msra.mxu0 %v2105
    %2121 = vmatpush.msra.mxu0 %v2104
    %2122 = vmatpush.msra.mxu0 %v2103
    %2123 = vmatpush.msra.mxu0 %v2102
    %2124 = vmatpush.msra.mxu0 %v2101
    %2125 = vmatpush.msra.mxu0 %v2100
    %2126 = vmatpush.msra.mxu0 %v2099
    %2127 = vmatpush.msra.mxu0 %v2098
    %2128 = vmatpush.msra.mxu0 %v2097
    %2129 = vmatmul.f32.gmra.mxu0 %v2080
    %v2130 = vpop.f32.mrf.mxu0
    %v2131 = vadd.f32 0.0, %v2130
    %2132 = vmatmul.f32.gmra.mxu0 %v2081
    %v2133 = vpop.f32.mrf.mxu0
    %v2134 = vadd.f32 0.0, %v2133
    %2135 = vmatmul.f32.gmra.mxu0 %v2082
    %v2136 = vpop.f32.mrf.mxu0
    %v2137 = vadd.f32 0.0, %v2136
    %2138 = vmatmul.f32.gmra.mxu0 %v2083
    %v2139 = vpop.f32.mrf.mxu0
    %v2140 = vadd.f32 0.0, %v2139
    %2141 = vmatmul.f32.gmra.mxu0 %v2084
    %v2142 = vpop.f32.mrf.mxu0
    %v2143 = vadd.f32 0.0, %v2142
    %2144 = vmatmul.f32.gmra.mxu0 %v2085
    %v2145 = vpop.f32.mrf.mxu0
    %v2146 = vadd.f32 0.0, %v2145
    %2147 = vmatmul.f32.gmra.mxu0 %v2086
    %v2148 = vpop.f32.mrf.mxu0
    %v2149 = vadd.f32 0.0, %v2148
    %2150 = vmatmul.f32.gmra.mxu0 %v2087
    %v2151 = vpop.f32.mrf.mxu0
    %v2152 = vadd.f32 0.0, %v2151
    %2153 = vmatmul.f32.gmra.mxu0 %v2088
    %v2154 = vpop.f32.mrf.mxu0
    %v2155 = vadd.f32 0.0, %v2154
    %2156 = vmatmul.f32.gmra.mxu0 %v2089
    %v2157 = vpop.f32.mrf.mxu0
    %v2158 = vadd.f32 0.0, %v2157
    %2159 = vmatmul.f32.gmra.mxu0 %v2090
    %v2160 = vpop.f32.mrf.mxu0
    %v2161 = vadd.f32 0.0, %v2160
    %2162 = vmatmul.f32.gmra.mxu0 %v2091
    %v2163 = vpop.f32.mrf.mxu0
    %v2164 = vadd.f32 0.0, %v2163
    %2165 = vmatmul.f32.gmra.mxu0 %v2092
    %v2166 = vpop.f32.mrf.mxu0
    %v2167 = vadd.f32 0.0, %v2166
    %2168 = vmatmul.f32.gmra.mxu0 %v2093
    %v2169 = vpop.f32.mrf.mxu0
    %v2170 = vadd.f32 0.0, %v2169
    %2171 = vmatmul.f32.gmra.mxu0 %v2094
    %v2172 = vpop.f32.mrf.mxu0
    %v2173 = vadd.f32 0.0, %v2172
    %2174 = vmatmul.f32.gmra.mxu0 %v2095
    %v2175 = vpop.f32.mrf.mxu0
    %v2176 = vadd.f32 0.0, %v2175
    %2177 = vdwg.mxu0
    %v2178 = vadd.f32 %v2064, %v2131
    %v2179 = vadd.f32 %v2065, %v2134
    %v2180 = vadd.f32 %v2066, %v2137
    %v2181 = vadd.f32 %v2067, %v2140
    %v2182 = vadd.f32 %v2068, %v2143
    %v2183 = vadd.f32 %v2069, %v2146
    %v2184 = vadd.f32 %v2070, %v2149
    %v2185 = vadd.f32 %v2071, %v2152
    %v2186 = vadd.f32 %v2072, %v2155
    %v2187 = vadd.f32 %v2073, %v2158
    %v2188 = vadd.f32 %v2074, %v2161
    %v2189 = vadd.f32 %v2075, %v2164
    %v2190 = vadd.f32 %v2076, %v2167
    %v2191 = vadd.f32 %v2077, %v2170
    %v2192 = vadd.f32 %v2078, %v2173
    %v2193 = vadd.f32 %v2079, %v2176
    %v2194 = vld [vmem:[%s793 + $0x2] sm:$0xff]
    %v2195 = vld [vmem:[%s793 + $0x12] sm:$0xff]
    %v2196 = vld [vmem:[%s793 + $0x22] sm:$0xff]
    %v2197 = vld [vmem:[%s793 + $0x32] sm:$0xff]
    %v2198 = vld [vmem:[%s793 + $0x42] sm:$0xff]
    %v2199 = vld [vmem:[%s793 + $0x52] sm:$0xff]
    %v2200 = vld [vmem:[%s793 + $0x62] sm:$0xff]
    %v2201 = vld [vmem:[%s793 + $0x72] sm:$0xff]
    %v2202 = vld [vmem:[%s793 + $0xa2] sm:$0xff]
    %v2203 = vld [vmem:[%s793 + $0xb2] sm:$0xff]
    %v2204 = vld [vmem:[%s793 + $0xc2] sm:$0xff]
    %v2205 = vld [vmem:[%s793 + $0xd2] sm:$0xff]
    %v2206 = vld [vmem:[%s793 + $0xe2] sm:$0xff]
    %v2207 = vld [vmem:[%s793 + $0xf2] sm:$0xff]
    %v2208 = vld [vmem:[%s793 + $0x102] sm:$0xff]
    %v2209 = vld [vmem:[%s793 + $0x112] sm:$0xff]
    %s2210 = scalar_lea.vmem [#allocation3], 2176
    %v2211 = vld [vmem:[%s2210] sm:$0xff]
    %v2212 = vld [vmem:[%s2210 + $0x8] sm:$0xff]
    %v2213 = vld [vmem:[%s2210 + $0x10] sm:$0xff]
    %v2214 = vld [vmem:[%s2210 + $0x18] sm:$0xff]
    %v2215 = vld [vmem:[%s2210 + $0x20] sm:$0xff]
    %v2216 = vld [vmem:[%s2210 + $0x28] sm:$0xff]
    %v2217 = vld [vmem:[%s2210 + $0x30] sm:$0xff]
    %v2218 = vld [vmem:[%s2210 + $0x38] sm:$0xff]
    %v2219 = vld [vmem:[%s2210 + $0x40] sm:$0xff]
    %v2220 = vld [vmem:[%s2210 + $0x48] sm:$0xff]
    %v2221 = vld [vmem:[%s2210 + $0x50] sm:$0xff]
    %v2222 = vld [vmem:[%s2210 + $0x58] sm:$0xff]
    %v2223 = vld [vmem:[%s2210 + $0x60] sm:$0xff]
    %v2224 = vld [vmem:[%s2210 + $0x68] sm:$0xff]
    %v2225 = vld [vmem:[%s2210 + $0x70] sm:$0xff]
    %v2226 = vld [vmem:[%s2210 + $0x78] sm:$0xff]
    %2227 = vmatpush.msra.mxu0 %v2226
    %2228 = vmatpush.msra.mxu0 %v2225
    %2229 = vmatpush.msra.mxu0 %v2224
    %2230 = vmatpush.msra.mxu0 %v2223
    %2231 = vmatpush.msra.mxu0 %v2222
    %2232 = vmatpush.msra.mxu0 %v2221
    %2233 = vmatpush.msra.mxu0 %v2220
    %2234 = vmatpush.msra.mxu0 %v2219
    %2235 = vmatpush.msra.mxu0 %v2218
    %2236 = vmatpush.msra.mxu0 %v2217
    %2237 = vmatpush.msra.mxu0 %v2216
    %2238 = vmatpush.msra.mxu0 %v2215
    %2239 = vmatpush.msra.mxu0 %v2214
    %2240 = vmatpush.msra.mxu0 %v2213
    %2241 = vmatpush.msra.mxu0 %v2212
    %2242 = vmatpush.msra.mxu0 %v2211
    %2243 = vmatmul.f32.gmra.mxu0 %v2194
    %v2244 = vpop.f32.mrf.mxu0
    %v2245 = vadd.f32 0.0, %v2244
    %2246 = vmatmul.f32.gmra.mxu0 %v2195
    %v2247 = vpop.f32.mrf.mxu0
    %v2248 = vadd.f32 0.0, %v2247
    %2249 = vmatmul.f32.gmra.mxu0 %v2196
    %v2250 = vpop.f32.mrf.mxu0
    %v2251 = vadd.f32 0.0, %v2250
    %2252 = vmatmul.f32.gmra.mxu0 %v2197
    %v2253 = vpop.f32.mrf.mxu0
    %v2254 = vadd.f32 0.0, %v2253
    %2255 = vmatmul.f32.gmra.mxu0 %v2198
    %v2256 = vpop.f32.mrf.mxu0
    %v2257 = vadd.f32 0.0, %v2256
    %2258 = vmatmul.f32.gmra.mxu0 %v2199
    %v2259 = vpop.f32.mrf.mxu0
    %v2260 = vadd.f32 0.0, %v2259
    %2261 = vmatmul.f32.gmra.mxu0 %v2200
    %v2262 = vpop.f32.mrf.mxu0
    %v2263 = vadd.f32 0.0, %v2262
    %2264 = vmatmul.f32.gmra.mxu0 %v2201
    %v2265 = vpop.f32.mrf.mxu0
    %v2266 = vadd.f32 0.0, %v2265
    %2267 = vmatmul.f32.gmra.mxu0 %v2202
    %v2268 = vpop.f32.mrf.mxu0
    %v2269 = vadd.f32 0.0, %v2268
    %2270 = vmatmul.f32.gmra.mxu0 %v2203
    %v2271 = vpop.f32.mrf.mxu0
    %v2272 = vadd.f32 0.0, %v2271
    %2273 = vmatmul.f32.gmra.mxu0 %v2204
    %v2274 = vpop.f32.mrf.mxu0
    %v2275 = vadd.f32 0.0, %v2274
    %2276 = vmatmul.f32.gmra.mxu0 %v2205
    %v2277 = vpop.f32.mrf.mxu0
    %v2278 = vadd.f32 0.0, %v2277
    %2279 = vmatmul.f32.gmra.mxu0 %v2206
    %v2280 = vpop.f32.mrf.mxu0
    %v2281 = vadd.f32 0.0, %v2280
    %2282 = vmatmul.f32.gmra.mxu0 %v2207
    %v2283 = vpop.f32.mrf.mxu0
    %v2284 = vadd.f32 0.0, %v2283
    %2285 = vmatmul.f32.gmra.mxu0 %v2208
    %v2286 = vpop.f32.mrf.mxu0
    %v2287 = vadd.f32 0.0, %v2286
    %2288 = vmatmul.f32.gmra.mxu0 %v2209
    %v2289 = vpop.f32.mrf.mxu0
    %v2290 = vadd.f32 0.0, %v2289
    %2291 = vdwg.mxu0
    %v2292 = vadd.f32 %v2178, %v2245
    %v2293 = vadd.f32 %v2179, %v2248
    %v2294 = vadd.f32 %v2180, %v2251
    %v2295 = vadd.f32 %v2181, %v2254
    %v2296 = vadd.f32 %v2182, %v2257
    %v2297 = vadd.f32 %v2183, %v2260
    %v2298 = vadd.f32 %v2184, %v2263
    %v2299 = vadd.f32 %v2185, %v2266
    %v2300 = vadd.f32 %v2186, %v2269
    %v2301 = vadd.f32 %v2187, %v2272
    %v2302 = vadd.f32 %v2188, %v2275
    %v2303 = vadd.f32 %v2189, %v2278
    %v2304 = vadd.f32 %v2190, %v2281
    %v2305 = vadd.f32 %v2191, %v2284
    %v2306 = vadd.f32 %v2192, %v2287
    %v2307 = vadd.f32 %v2193, %v2290
    %v2308 = vadd.f32 %v2292, %v2293
    %v2309 = vadd.f32 %v2308, %v2294
    %v2310 = vadd.f32 %v2309, %v2295
    %v2311 = vadd.f32 %v2310, %v2296
    %v2312 = vadd.f32 %v2311, %v2297
    %v2313 = vadd.f32 %v2312, %v2298
    %v2314 = vadd.f32 %v2313, %v2299
    %v2315 = vadd.f32 %v2314, %v2300
    %v2316 = vadd.f32 %v2315, %v2301
    %v2317 = vadd.f32 %v2316, %v2302
    %v2318 = vadd.f32 %v2317, %v2303
    %v2319 = vadd.f32 %v2318, %v2304
    %v2320 = vadd.f32 %v2319, %v2305
    %v2321 = vadd.f32 %v2320, %v2306
    %v2322 = vadd.f32 %v2321, %v2307
    %v2323 = vrot.slane %v2322, 4
    %v2324 = vadd.f32 %v2322, %v2323
    %v2325 = vrot.slane %v2324, 2
    %v2326 = vadd.f32 %v2324, %v2325
    %v2327 = vrot.slane %v2326, 1
    %v2328 = vadd.f32 %v2326, %v2327
    %v2329 = vmul.f32 %v2328, %v1163
    %v2330 = vsub.f32 %v2292, %v2329
    %v2331 = vsub.f32 %v2293, %v2329
    %v2332 = vsub.f32 %v2294, %v2329
    %v2333 = vsub.f32 %v2295, %v2329
    %v2334 = vsub.f32 %v2296, %v2329
    %v2335 = vsub.f32 %v2297, %v2329
    %v2336 = vsub.f32 %v2298, %v2329
    %v2337 = vsub.f32 %v2299, %v2329
    %v2338 = vsub.f32 %v2300, %v2329
    %v2339 = vsub.f32 %v2301, %v2329
    %v2340 = vsub.f32 %v2302, %v2329
    %v2341 = vsub.f32 %v2303, %v2329
    %v2342 = vsub.f32 %v2304, %v2329
    %v2343 = vsub.f32 %v2305, %v2329
    %v2344 = vsub.f32 %v2306, %v2329
    %v2345 = vsub.f32 %v2307, %v2329
    %v2346 = vmul.f32 %v2330, %v2330
    %v2347 = vmul.f32 %v2331, %v2331
    %v2348 = vmul.f32 %v2332, %v2332
    %v2349 = vmul.f32 %v2333, %v2333
    %v2350 = vmul.f32 %v2334, %v2334
    %v2351 = vmul.f32 %v2335, %v2335
    %v2352 = vmul.f32 %v2336, %v2336
    %v2353 = vmul.f32 %v2337, %v2337
    %v2354 = vmul.f32 %v2338, %v2338
    %v2355 = vmul.f32 %v2339, %v2339
    %v2356 = vmul.f32 %v2340, %v2340
    %v2357 = vmul.f32 %v2341, %v2341
    %v2358 = vmul.f32 %v2342, %v2342
    %v2359 = vmul.f32 %v2343, %v2343
    %v2360 = vmul.f32 %v2344, %v2344
    %v2361 = vmul.f32 %v2345, %v2345
    %v2362 = vadd.f32 %v2346, %v2347
    %v2363 = vadd.f32 %v2362, %v2348
    %v2364 = vadd.f32 %v2363, %v2349
    %v2365 = vadd.f32 %v2364, %v2350
    %v2366 = vadd.f32 %v2365, %v2351
    %v2367 = vadd.f32 %v2366, %v2352
    %v2368 = vadd.f32 %v2367, %v2353
    %v2369 = vadd.f32 %v2368, %v2354
    %v2370 = vadd.f32 %v2369, %v2355
    %v2371 = vadd.f32 %v2370, %v2356
    %v2372 = vadd.f32 %v2371, %v2357
    %v2373 = vadd.f32 %v2372, %v2358
    %v2374 = vadd.f32 %v2373, %v2359
    %v2375 = vadd.f32 %v2374, %v2360
    %v2376 = vadd.f32 %v2375, %v2361
    %v2377 = vrot.slane %v2376, 4
    %v2378 = vadd.f32 %v2376, %v2377
    %v2379 = vrot.slane %v2378, 2
    %v2380 = vadd.f32 %v2378, %v2379
    %v2381 = vrot.slane %v2380, 1
    %v2382 = vadd.f32 %v2380, %v2381
    %v2383 = vmul.f32 %v2382, %v1163
    %v2384 = vld [vmem:[#allocation6 + $0x1] sm:$0x1]
    %v2385 = vld [vmem:[#allocation6 + $0x7] sm:$0x1]
    %v2386 = vadd.f32 %v2383, 1e-05
    %v2387 = vrsqrt.pop %v2386
    %v2388 = vmul.f32 %v2387, %v2386
    %v2389 = vmul.f32 %v2388, %v2387
    %v2390 = vmul.f32 0.5, %v2389
    %v2391 = vsub.f32 1.5, %v2390
    %v2392 = vmul.f32 %v2387, %v2391
    %vm2393 = vweird.f32 %v2386
    %vm2394 = vweird.f32 %v2387
    %vm2395 = vmor %vm2393, %vm2394
    %v2396 = vsel %vm2395, %v2387, %v2392
    %v2397 = vmul.f32 %v2330, %v2396
    %v2398 = vmul.f32 %v2331, %v2396
    %v2399 = vmul.f32 %v2332, %v2396
    %v2400 = vmul.f32 %v2333, %v2396
    %v2401 = vmul.f32 %v2334, %v2396
    %v2402 = vmul.f32 %v2335, %v2396
    %v2403 = vmul.f32 %v2336, %v2396
    %v2404 = vmul.f32 %v2337, %v2396
    %v2405 = vmul.f32 %v2338, %v2396
    %v2406 = vmul.f32 %v2339, %v2396
    %v2407 = vmul.f32 %v2340, %v2396
    %v2408 = vmul.f32 %v2341, %v2396
    %v2409 = vmul.f32 %v2342, %v2396
    %v2410 = vmul.f32 %v2343, %v2396
    %v2411 = vmul.f32 %v2344, %v2396
    %v2412 = vmul.f32 %v2345, %v2396
    %v2413 = vperm.slane %v2384, 0
    %v2414 = vmul.f32 %v2397, %v2413
    %v2415 = vmul.f32 %v2398, %v2413
    %v2416 = vmul.f32 %v2399, %v2413
    %v2417 = vmul.f32 %v2400, %v2413
    %v2418 = vmul.f32 %v2401, %v2413
    %v2419 = vmul.f32 %v2402, %v2413
    %v2420 = vmul.f32 %v2403, %v2413
    %v2421 = vmul.f32 %v2404, %v2413
    %v2422 = vmul.f32 %v2405, %v2413
    %v2423 = vmul.f32 %v2406, %v2413
    %v2424 = vmul.f32 %v2407, %v2413
    %v2425 = vmul.f32 %v2408, %v2413
    %v2426 = vmul.f32 %v2409, %v2413
    %v2427 = vmul.f32 %v2410, %v2413
    %v2428 = vmul.f32 %v2411, %v2413
    %v2429 = vmul.f32 %v2412, %v2413
    %v2430 = vperm.slane %v2385, 0
    %v2431 = vadd.f32 %v2414, %v2430
    %v2432 = vadd.f32 %v2415, %v2430
    %v2433 = vadd.f32 %v2416, %v2430
    %v2434 = vadd.f32 %v2417, %v2430
    %v2435 = vadd.f32 %v2418, %v2430
    %v2436 = vadd.f32 %v2419, %v2430
    %v2437 = vadd.f32 %v2420, %v2430
    %v2438 = vadd.f32 %v2421, %v2430
    %v2439 = vadd.f32 %v2422, %v2430
    %v2440 = vadd.f32 %v2423, %v2430
    %v2441 = vadd.f32 %v2424, %v2430
    %v2442 = vadd.f32 %v2425, %v2430
    %v2443 = vadd.f32 %v2426, %v2430
    %v2444 = vadd.f32 %v2427, %v2430
    %v2445 = vadd.f32 %v2428, %v2430
    %v2446 = vadd.f32 %v2429, %v2430
    %v2447 = vmax.f32 %v2431, 0.0
    %v2448 = vmax.f32 %v2432, 0.0
    %v2449 = vmax.f32 %v2433, 0.0
    %v2450 = vmax.f32 %v2434, 0.0
    %v2451 = vmax.f32 %v2435, 0.0
    %v2452 = vmax.f32 %v2436, 0.0
    %v2453 = vmax.f32 %v2437, 0.0
    %v2454 = vmax.f32 %v2438, 0.0
    %v2455 = vmax.f32 %v2439, 0.0
    %v2456 = vmax.f32 %v2440, 0.0
    %v2457 = vmax.f32 %v2441, 0.0
    %v2458 = vmax.f32 %v2442, 0.0
    %v2459 = vmax.f32 %v2443, 0.0
    %v2460 = vmax.f32 %v2444, 0.0
    %v2461 = vmax.f32 %v2445, 0.0
    %v2462 = vmax.f32 %v2446, 0.0
    %2463 = vst [vmem:[%s125 + $0x1] sm:$0xff] %v2447
    %2464 = vst [vmem:[%s125 + $0x11] sm:$0xff] %v2448
    %2465 = vst [vmem:[%s125 + $0x21] sm:$0xff] %v2449
    %2466 = vst [vmem:[%s125 + $0x31] sm:$0xff] %v2450
    %2467 = vst [vmem:[%s125 + $0x41] sm:$0xff] %v2451
    %2468 = vst [vmem:[%s125 + $0x51] sm:$0xff] %v2452
    %2469 = vst [vmem:[%s125 + $0x61] sm:$0xff] %v2453
    %2470 = vst [vmem:[%s125 + $0x71] sm:$0xff] %v2454
    %2471 = vst [vmem:[%s125 + $0xa1] sm:$0xff] %v2455
    %2472 = vst [vmem:[%s125 + $0xb1] sm:$0xff] %v2456
    %2473 = vst [vmem:[%s125 + $0xc1] sm:$0xff] %v2457
    %2474 = vst [vmem:[%s125 + $0xd1] sm:$0xff] %v2458
    %2475 = vst [vmem:[%s125 + $0xe1] sm:$0xff] %v2459
    %2476 = vst [vmem:[%s125 + $0xf1] sm:$0xff] %v2460
    %2477 = vst [vmem:[%s125 + $0x101] sm:$0xff] %v2461
    %2478 = vst [vmem:[%s125 + $0x111] sm:$0xff] %v2462
    %v2479 = vld [vmem:[#allocation2] sm:$0xff]
    %v2480 = vld [vmem:[#allocation2 + $0x10] sm:$0xff]
    %v2481 = vld [vmem:[#allocation2 + $0x20] sm:$0xff]
    %v2482 = vld [vmem:[#allocation2 + $0x30] sm:$0xff]
    %v2483 = vld [vmem:[#allocation2 + $0x40] sm:$0xff]
    %v2484 = vld [vmem:[#allocation2 + $0x50] sm:$0xff]
    %v2485 = vld [vmem:[#allocation2 + $0x60] sm:$0xff]
    %v2486 = vld [vmem:[#allocation2 + $0x70] sm:$0xff]
    %v2487 = vld [vmem:[#allocation2 + $0xa0] sm:$0xff]
    %v2488 = vld [vmem:[#allocation2 + $0xb0] sm:$0xff]
    %v2489 = vld [vmem:[#allocation2 + $0xc0] sm:$0xff]
    %v2490 = vld [vmem:[#allocation2 + $0xd0] sm:$0xff]
    %v2491 = vld [vmem:[#allocation2 + $0xe0] sm:$0xff]
    %v2492 = vld [vmem:[#allocation2 + $0xf0] sm:$0xff]
    %v2493 = vld [vmem:[#allocation2 + $0x100] sm:$0xff]
    %v2494 = vld [vmem:[#allocation2 + $0x110] sm:$0xff]
    %s2495 = scalar_lea.vmem [#allocation3], 2304
    %v2496 = vld [vmem:[%s2495] sm:$0xff]
    %v2497 = vld [vmem:[%s2495 + $0x8] sm:$0xff]
    %v2498 = vld [vmem:[%s2495 + $0x10] sm:$0xff]
    %v2499 = vld [vmem:[%s2495 + $0x18] sm:$0xff]
    %v2500 = vld [vmem:[%s2495 + $0x20] sm:$0xff]
    %v2501 = vld [vmem:[%s2495 + $0x28] sm:$0xff]
    %v2502 = vld [vmem:[%s2495 + $0x30] sm:$0xff]
    %v2503 = vld [vmem:[%s2495 + $0x38] sm:$0xff]
    %v2504 = vld [vmem:[%s2495 + $0x40] sm:$0xff]
    %v2505 = vld [vmem:[%s2495 + $0x48] sm:$0xff]
    %v2506 = vld [vmem:[%s2495 + $0x50] sm:$0xff]
    %v2507 = vld [vmem:[%s2495 + $0x58] sm:$0xff]
    %v2508 = vld [vmem:[%s2495 + $0x60] sm:$0xff]
    %v2509 = vld [vmem:[%s2495 + $0x68] sm:$0xff]
    %v2510 = vld [vmem:[%s2495 + $0x70] sm:$0xff]
    %v2511 = vld [vmem:[%s2495 + $0x78] sm:$0xff]
    %v2512 = vld [vmem:[#allocation2 + $0x1] sm:$0xff]
    %v2513 = vld [vmem:[#allocation2 + $0x11] sm:$0xff]
    %v2514 = vld [vmem:[#allocation2 + $0x21] sm:$0xff]
    %v2515 = vld [vmem:[#allocation2 + $0x31] sm:$0xff]
    %v2516 = vld [vmem:[#allocation2 + $0x41] sm:$0xff]
    %v2517 = vld [vmem:[#allocation2 + $0x51] sm:$0xff]
    %v2518 = vld [vmem:[#allocation2 + $0x61] sm:$0xff]
    %v2519 = vld [vmem:[#allocation2 + $0x71] sm:$0xff]
    %v2520 = vld [vmem:[#allocation2 + $0xa1] sm:$0xff]
    %v2521 = vld [vmem:[#allocation2 + $0xb1] sm:$0xff]
    %v2522 = vld [vmem:[#allocation2 + $0xc1] sm:$0xff]
    %v2523 = vld [vmem:[#allocation2 + $0xd1] sm:$0xff]
    %v2524 = vld [vmem:[#allocation2 + $0xe1] sm:$0xff]
    %v2525 = vld [vmem:[#allocation2 + $0xf1] sm:$0xff]
    %v2526 = vld [vmem:[#allocation2 + $0x101] sm:$0xff]
    %v2527 = vld [vmem:[#allocation2 + $0x111] sm:$0xff]
    %s2528 = scalar_lea.vmem [#allocation3], 2432
    %v2529 = vld [vmem:[%s2528] sm:$0xff]
    %v2530 = vld [vmem:[%s2528 + $0x8] sm:$0xff]
    %v2531 = vld [vmem:[%s2528 + $0x10] sm:$0xff]
    %v2532 = vld [vmem:[%s2528 + $0x18] sm:$0xff]
    %v2533 = vld [vmem:[%s2528 + $0x20] sm:$0xff]
    %v2534 = vld [vmem:[%s2528 + $0x28] sm:$0xff]
    %v2535 = vld [vmem:[%s2528 + $0x30] sm:$0xff]
    %v2536 = vld [vmem:[%s2528 + $0x38] sm:$0xff]
    %v2537 = vld [vmem:[%s2528 + $0x40] sm:$0xff]
    %v2538 = vld [vmem:[%s2528 + $0x48] sm:$0xff]
    %v2539 = vld [vmem:[%s2528 + $0x50] sm:$0xff]
    %v2540 = vld [vmem:[%s2528 + $0x58] sm:$0xff]
    %v2541 = vld [vmem:[%s2528 + $0x60] sm:$0xff]
    %v2542 = vld [vmem:[%s2528 + $0x68] sm:$0xff]
    %v2543 = vld [vmem:[%s2528 + $0x70] sm:$0xff]
    %v2544 = vld [vmem:[%s2528 + $0x78] sm:$0xff]
    %2545 = vmatpush.msra.mxu0 %v2544
    %2546 = vmatpush.msra.mxu0 %v2543
    %2547 = vmatpush.msra.mxu0 %v2542
    %2548 = vmatpush.msra.mxu0 %v2541
    %2549 = vmatpush.msra.mxu0 %v2540
    %2550 = vmatpush.msra.mxu0 %v2539
    %2551 = vmatpush.msra.mxu0 %v2538
    %2552 = vmatpush.msra.mxu0 %v2537
    %2553 = vmatpush.msra.mxu0 %v2536
    %2554 = vmatpush.msra.mxu0 %v2535
    %2555 = vmatpush.msra.mxu0 %v2534
    %2556 = vmatpush.msra.mxu0 %v2533
    %2557 = vmatpush.msra.mxu0 %v2532
    %2558 = vmatpush.msra.mxu0 %v2531
    %2559 = vmatpush.msra.mxu0 %v2530
    %2560 = vmatpush.msra.mxu0 %v2529
    %2561 = vmatmul.f32.gmra.mxu0 %v2512
    %v2562 = vpop.f32.mrf.mxu0
    %v2563 = vadd.f32 0.0, %v2562
    %2564 = vmatmul.f32.gmra.mxu0 %v2513
    %v2565 = vpop.f32.mrf.mxu0
    %v2566 = vadd.f32 0.0, %v2565
    %2567 = vmatmul.f32.gmra.mxu0 %v2514
    %v2568 = vpop.f32.mrf.mxu0
    %v2569 = vadd.f32 0.0, %v2568
    %2570 = vmatmul.f32.gmra.mxu0 %v2515
    %v2571 = vpop.f32.mrf.mxu0
    %v2572 = vadd.f32 0.0, %v2571
    %2573 = vmatmul.f32.gmra.mxu0 %v2516
    %v2574 = vpop.f32.mrf.mxu0
    %v2575 = vadd.f32 0.0, %v2574
    %2576 = vmatmul.f32.gmra.mxu0 %v2517
    %v2577 = vpop.f32.mrf.mxu0
    %v2578 = vadd.f32 0.0, %v2577
    %2579 = vmatmul.f32.gmra.mxu0 %v2518
    %v2580 = vpop.f32.mrf.mxu0
    %v2581 = vadd.f32 0.0, %v2580
    %2582 = vmatmul.f32.gmra.mxu0 %v2519
    %v2583 = vpop.f32.mrf.mxu0
    %v2584 = vadd.f32 0.0, %v2583
    %2585 = vmatmul.f32.gmra.mxu0 %v2520
    %v2586 = vpop.f32.mrf.mxu0
    %v2587 = vadd.f32 0.0, %v2586
    %2588 = vmatmul.f32.gmra.mxu0 %v2521
    %v2589 = vpop.f32.mrf.mxu0
    %v2590 = vadd.f32 0.0, %v2589
    %2591 = vmatmul.f32.gmra.mxu0 %v2522
    %v2592 = vpop.f32.mrf.mxu0
    %v2593 = vadd.f32 0.0, %v2592
    %2594 = vmatmul.f32.gmra.mxu0 %v2523
    %v2595 = vpop.f32.mrf.mxu0
    %v2596 = vadd.f32 0.0, %v2595
    %2597 = vmatmul.f32.gmra.mxu0 %v2524
    %v2598 = vpop.f32.mrf.mxu0
    %v2599 = vadd.f32 0.0, %v2598
    %2600 = vmatmul.f32.gmra.mxu0 %v2525
    %v2601 = vpop.f32.mrf.mxu0
    %v2602 = vadd.f32 0.0, %v2601
    %2603 = vmatmul.f32.gmra.mxu0 %v2526
    %v2604 = vpop.f32.mrf.mxu0
    %v2605 = vadd.f32 0.0, %v2604
    %2606 = vmatmul.f32.gmra.mxu0 %v2527
    %v2607 = vpop.f32.mrf.mxu0
    %v2608 = vadd.f32 0.0, %v2607
    %2609 = vdwg.mxu0
    %2610 = vmatpush.msra.mxu0 %v2511
    %2611 = vmatpush.msra.mxu0 %v2510
    %2612 = vmatpush.msra.mxu0 %v2509
    %2613 = vmatpush.msra.mxu0 %v2508
    %2614 = vmatpush.msra.mxu0 %v2507
    %2615 = vmatpush.msra.mxu0 %v2506
    %2616 = vmatpush.msra.mxu0 %v2505
    %2617 = vmatpush.msra.mxu0 %v2504
    %2618 = vmatpush.msra.mxu0 %v2503
    %2619 = vmatpush.msra.mxu0 %v2502
    %2620 = vmatpush.msra.mxu0 %v2501
    %2621 = vmatpush.msra.mxu0 %v2500
    %2622 = vmatpush.msra.mxu0 %v2499
    %2623 = vmatpush.msra.mxu0 %v2498
    %2624 = vmatpush.msra.mxu0 %v2497
    %2625 = vmatpush.msra.mxu0 %v2496
    %2626 = vmatmul.f32.gmra.mxu0 %v2479
    %v2627 = vpop.f32.mrf.mxu0
    %v2628 = vadd.f32 %v2563, %v2627
    %2629 = vmatmul.f32.gmra.mxu0 %v2480
    %v2630 = vpop.f32.mrf.mxu0
    %v2631 = vadd.f32 %v2566, %v2630
    %2632 = vmatmul.f32.gmra.mxu0 %v2481
    %v2633 = vpop.f32.mrf.mxu0
    %v2634 = vadd.f32 %v2569, %v2633
    %2635 = vmatmul.f32.gmra.mxu0 %v2482
    %v2636 = vpop.f32.mrf.mxu0
    %v2637 = vadd.f32 %v2572, %v2636
    %2638 = vmatmul.f32.gmra.mxu0 %v2483
    %v2639 = vpop.f32.mrf.mxu0
    %v2640 = vadd.f32 %v2575, %v2639
    %2641 = vmatmul.f32.gmra.mxu0 %v2484
    %v2642 = vpop.f32.mrf.mxu0
    %v2643 = vadd.f32 %v2578, %v2642
    %2644 = vmatmul.f32.gmra.mxu0 %v2485
    %v2645 = vpop.f32.mrf.mxu0
    %v2646 = vadd.f32 %v2581, %v2645
    %2647 = vmatmul.f32.gmra.mxu0 %v2486
    %v2648 = vpop.f32.mrf.mxu0
    %v2649 = vadd.f32 %v2584, %v2648
    %2650 = vmatmul.f32.gmra.mxu0 %v2487
    %v2651 = vpop.f32.mrf.mxu0
    %v2652 = vadd.f32 %v2587, %v2651
    %2653 = vmatmul.f32.gmra.mxu0 %v2488
    %v2654 = vpop.f32.mrf.mxu0
    %v2655 = vadd.f32 %v2590, %v2654
    %2656 = vmatmul.f32.gmra.mxu0 %v2489
    %v2657 = vpop.f32.mrf.mxu0
    %v2658 = vadd.f32 %v2593, %v2657
    %2659 = vmatmul.f32.gmra.mxu0 %v2490
    %v2660 = vpop.f32.mrf.mxu0
    %v2661 = vadd.f32 %v2596, %v2660
    %2662 = vmatmul.f32.gmra.mxu0 %v2491
    %v2663 = vpop.f32.mrf.mxu0
    %v2664 = vadd.f32 %v2599, %v2663
    %2665 = vmatmul.f32.gmra.mxu0 %v2492
    %v2666 = vpop.f32.mrf.mxu0
    %v2667 = vadd.f32 %v2602, %v2666
    %2668 = vmatmul.f32.gmra.mxu0 %v2493
    %v2669 = vpop.f32.mrf.mxu0
    %v2670 = vadd.f32 %v2605, %v2669
    %2671 = vmatmul.f32.gmra.mxu0 %v2494
    %v2672 = vpop.f32.mrf.mxu0
    %v2673 = vadd.f32 %v2608, %v2672
    %2674 = vdwg.mxu0
    %v2675 = vld [vmem:[#allocation2 + $0x2] sm:$0xff]
    %v2676 = vld [vmem:[#allocation2 + $0x12] sm:$0xff]
    %v2677 = vld [vmem:[#allocation2 + $0x22] sm:$0xff]
    %v2678 = vld [vmem:[#allocation2 + $0x32] sm:$0xff]
    %v2679 = vld [vmem:[#allocation2 + $0x42] sm:$0xff]
    %v2680 = vld [vmem:[#allocation2 + $0x52] sm:$0xff]
    %v2681 = vld [vmem:[#allocation2 + $0x62] sm:$0xff]
    %v2682 = vld [vmem:[#allocation2 + $0x72] sm:$0xff]
    %v2683 = vld [vmem:[#allocation2 + $0xa2] sm:$0xff]
    %v2684 = vld [vmem:[#allocation2 + $0xb2] sm:$0xff]
    %v2685 = vld [vmem:[#allocation2 + $0xc2] sm:$0xff]
    %v2686 = vld [vmem:[#allocation2 + $0xd2] sm:$0xff]
    %v2687 = vld [vmem:[#allocation2 + $0xe2] sm:$0xff]
    %v2688 = vld [vmem:[#allocation2 + $0xf2] sm:$0xff]
    %v2689 = vld [vmem:[#allocation2 + $0x102] sm:$0xff]
    %v2690 = vld [vmem:[#allocation2 + $0x112] sm:$0xff]
    %s2691 = scalar_lea.vmem [#allocation3], 2560
    %v2692 = vld [vmem:[%s2691] sm:$0xff]
    %v2693 = vld [vmem:[%s2691 + $0x8] sm:$0xff]
    %v2694 = vld [vmem:[%s2691 + $0x10] sm:$0xff]
    %v2695 = vld [vmem:[%s2691 + $0x18] sm:$0xff]
    %v2696 = vld [vmem:[%s2691 + $0x20] sm:$0xff]
    %v2697 = vld [vmem:[%s2691 + $0x28] sm:$0xff]
    %v2698 = vld [vmem:[%s2691 + $0x30] sm:$0xff]
    %v2699 = vld [vmem:[%s2691 + $0x38] sm:$0xff]
    %v2700 = vld [vmem:[%s2691 + $0x40] sm:$0xff]
    %v2701 = vld [vmem:[%s2691 + $0x48] sm:$0xff]
    %v2702 = vld [vmem:[%s2691 + $0x50] sm:$0xff]
    %v2703 = vld [vmem:[%s2691 + $0x58] sm:$0xff]
    %v2704 = vld [vmem:[%s2691 + $0x60] sm:$0xff]
    %v2705 = vld [vmem:[%s2691 + $0x68] sm:$0xff]
    %v2706 = vld [vmem:[%s2691 + $0x70] sm:$0xff]
    %v2707 = vld [vmem:[%s2691 + $0x78] sm:$0xff]
    %2708 = vmatpush.msra.mxu0 %v2707
    %2709 = vmatpush.msra.mxu0 %v2706
    %2710 = vmatpush.msra.mxu0 %v2705
    %2711 = vmatpush.msra.mxu0 %v2704
    %2712 = vmatpush.msra.mxu0 %v2703
    %2713 = vmatpush.msra.mxu0 %v2702
    %2714 = vmatpush.msra.mxu0 %v2701
    %2715 = vmatpush.msra.mxu0 %v2700
    %2716 = vmatpush.msra.mxu0 %v2699
    %2717 = vmatpush.msra.mxu0 %v2698
    %2718 = vmatpush.msra.mxu0 %v2697
    %2719 = vmatpush.msra.mxu0 %v2696
    %2720 = vmatpush.msra.mxu0 %v2695
    %2721 = vmatpush.msra.mxu0 %v2694
    %2722 = vmatpush.msra.mxu0 %v2693
    %2723 = vmatpush.msra.mxu0 %v2692
    %2724 = vmatmul.f32.gmra.mxu0 %v2675
    %v2725 = vpop.f32.mrf.mxu0
    %v2726 = vadd.f32 0.0, %v2725
    %2727 = vmatmul.f32.gmra.mxu0 %v2676
    %v2728 = vpop.f32.mrf.mxu0
    %v2729 = vadd.f32 0.0, %v2728
    %2730 = vmatmul.f32.gmra.mxu0 %v2677
    %v2731 = vpop.f32.mrf.mxu0
    %v2732 = vadd.f32 0.0, %v2731
    %2733 = vmatmul.f32.gmra.mxu0 %v2678
    %v2734 = vpop.f32.mrf.mxu0
    %v2735 = vadd.f32 0.0, %v2734
    %2736 = vmatmul.f32.gmra.mxu0 %v2679
    %v2737 = vpop.f32.mrf.mxu0
    %v2738 = vadd.f32 0.0, %v2737
    %2739 = vmatmul.f32.gmra.mxu0 %v2680
    %v2740 = vpop.f32.mrf.mxu0
    %v2741 = vadd.f32 0.0, %v2740
    %2742 = vmatmul.f32.gmra.mxu0 %v2681
    %v2743 = vpop.f32.mrf.mxu0
    %v2744 = vadd.f32 0.0, %v2743
    %2745 = vmatmul.f32.gmra.mxu0 %v2682
    %v2746 = vpop.f32.mrf.mxu0
    %v2747 = vadd.f32 0.0, %v2746
    %2748 = vmatmul.f32.gmra.mxu0 %v2683
    %v2749 = vpop.f32.mrf.mxu0
    %v2750 = vadd.f32 0.0, %v2749
    %2751 = vmatmul.f32.gmra.mxu0 %v2684
    %v2752 = vpop.f32.mrf.mxu0
    %v2753 = vadd.f32 0.0, %v2752
    %2754 = vmatmul.f32.gmra.mxu0 %v2685
    %v2755 = vpop.f32.mrf.mxu0
    %v2756 = vadd.f32 0.0, %v2755
    %2757 = vmatmul.f32.gmra.mxu0 %v2686
    %v2758 = vpop.f32.mrf.mxu0
    %v2759 = vadd.f32 0.0, %v2758
    %2760 = vmatmul.f32.gmra.mxu0 %v2687
    %v2761 = vpop.f32.mrf.mxu0
    %v2762 = vadd.f32 0.0, %v2761
    %2763 = vmatmul.f32.gmra.mxu0 %v2688
    %v2764 = vpop.f32.mrf.mxu0
    %v2765 = vadd.f32 0.0, %v2764
    %2766 = vmatmul.f32.gmra.mxu0 %v2689
    %v2767 = vpop.f32.mrf.mxu0
    %v2768 = vadd.f32 0.0, %v2767
    %2769 = vmatmul.f32.gmra.mxu0 %v2690
    %v2770 = vpop.f32.mrf.mxu0
    %v2771 = vadd.f32 0.0, %v2770
    %2772 = vdwg.mxu0
    %v2773 = vadd.f32 %v2628, %v2726
    %v2774 = vadd.f32 %v2631, %v2729
    %v2775 = vadd.f32 %v2634, %v2732
    %v2776 = vadd.f32 %v2637, %v2735
    %v2777 = vadd.f32 %v2640, %v2738
    %v2778 = vadd.f32 %v2643, %v2741
    %v2779 = vadd.f32 %v2646, %v2744
    %v2780 = vadd.f32 %v2649, %v2747
    %v2781 = vadd.f32 %v2652, %v2750
    %v2782 = vadd.f32 %v2655, %v2753
    %v2783 = vadd.f32 %v2658, %v2756
    %v2784 = vadd.f32 %v2661, %v2759
    %v2785 = vadd.f32 %v2664, %v2762
    %v2786 = vadd.f32 %v2667, %v2765
    %v2787 = vadd.f32 %v2670, %v2768
    %v2788 = vadd.f32 %v2673, %v2771
    %v2789 = vld [vmem:[%s125] sm:$0xff]
    %v2790 = vld [vmem:[%s125 + $0x10] sm:$0xff]
    %v2791 = vld [vmem:[%s125 + $0x20] sm:$0xff]
    %v2792 = vld [vmem:[%s125 + $0x30] sm:$0xff]
    %v2793 = vld [vmem:[%s125 + $0x40] sm:$0xff]
    %v2794 = vld [vmem:[%s125 + $0x50] sm:$0xff]
    %v2795 = vld [vmem:[%s125 + $0x60] sm:$0xff]
    %v2796 = vld [vmem:[%s125 + $0x70] sm:$0xff]
    %v2797 = vld [vmem:[%s125 + $0xa0] sm:$0xff]
    %v2798 = vld [vmem:[%s125 + $0xb0] sm:$0xff]
    %v2799 = vld [vmem:[%s125 + $0xc0] sm:$0xff]
    %v2800 = vld [vmem:[%s125 + $0xd0] sm:$0xff]
    %v2801 = vld [vmem:[%s125 + $0xe0] sm:$0xff]
    %v2802 = vld [vmem:[%s125 + $0xf0] sm:$0xff]
    %v2803 = vld [vmem:[%s125 + $0x100] sm:$0xff]
    %v2804 = vld [vmem:[%s125 + $0x110] sm:$0xff]
    %s2805 = scalar_lea.vmem [#allocation3], 2688
    %v2806 = vld [vmem:[%s2805] sm:$0xff]
    %v2807 = vld [vmem:[%s2805 + $0x8] sm:$0xff]
    %v2808 = vld [vmem:[%s2805 + $0x10] sm:$0xff]
    %v2809 = vld [vmem:[%s2805 + $0x18] sm:$0xff]
    %v2810 = vld [vmem:[%s2805 + $0x20] sm:$0xff]
    %v2811 = vld [vmem:[%s2805 + $0x28] sm:$0xff]
    %v2812 = vld [vmem:[%s2805 + $0x30] sm:$0xff]
    %v2813 = vld [vmem:[%s2805 + $0x38] sm:$0xff]
    %v2814 = vld [vmem:[%s2805 + $0x40] sm:$0xff]
    %v2815 = vld [vmem:[%s2805 + $0x48] sm:$0xff]
    %v2816 = vld [vmem:[%s2805 + $0x50] sm:$0xff]
    %v2817 = vld [vmem:[%s2805 + $0x58] sm:$0xff]
    %v2818 = vld [vmem:[%s2805 + $0x60] sm:$0xff]
    %v2819 = vld [vmem:[%s2805 + $0x68] sm:$0xff]
    %v2820 = vld [vmem:[%s2805 + $0x70] sm:$0xff]
    %v2821 = vld [vmem:[%s2805 + $0x78] sm:$0xff]
    %2822 = vmatpush.msra.mxu0 %v2821
    %2823 = vmatpush.msra.mxu0 %v2820
    %2824 = vmatpush.msra.mxu0 %v2819
    %2825 = vmatpush.msra.mxu0 %v2818
    %2826 = vmatpush.msra.mxu0 %v2817
    %2827 = vmatpush.msra.mxu0 %v2816
    %2828 = vmatpush.msra.mxu0 %v2815
    %2829 = vmatpush.msra.mxu0 %v2814
    %2830 = vmatpush.msra.mxu0 %v2813
    %2831 = vmatpush.msra.mxu0 %v2812
    %2832 = vmatpush.msra.mxu0 %v2811
    %2833 = vmatpush.msra.mxu0 %v2810
    %2834 = vmatpush.msra.mxu0 %v2809
    %2835 = vmatpush.msra.mxu0 %v2808
    %2836 = vmatpush.msra.mxu0 %v2807
    %2837 = vmatpush.msra.mxu0 %v2806
    %2838 = vmatmul.f32.gmra.mxu0 %v2789
    %v2839 = vpop.f32.mrf.mxu0
    %v2840 = vadd.f32 0.0, %v2839
    %2841 = vmatmul.f32.gmra.mxu0 %v2790
    %v2842 = vpop.f32.mrf.mxu0
    %v2843 = vadd.f32 0.0, %v2842
    %2844 = vmatmul.f32.gmra.mxu0 %v2791
    %v2845 = vpop.f32.mrf.mxu0
    %v2846 = vadd.f32 0.0, %v2845
    %2847 = vmatmul.f32.gmra.mxu0 %v2792
    %v2848 = vpop.f32.mrf.mxu0
    %v2849 = vadd.f32 0.0, %v2848
    %2850 = vmatmul.f32.gmra.mxu0 %v2793
    %v2851 = vpop.f32.mrf.mxu0
    %v2852 = vadd.f32 0.0, %v2851
    %2853 = vmatmul.f32.gmra.mxu0 %v2794
    %v2854 = vpop.f32.mrf.mxu0
    %v2855 = vadd.f32 0.0, %v2854
    %2856 = vmatmul.f32.gmra.mxu0 %v2795
    %v2857 = vpop.f32.mrf.mxu0
    %v2858 = vadd.f32 0.0, %v2857
    %2859 = vmatmul.f32.gmra.mxu0 %v2796
    %v2860 = vpop.f32.mrf.mxu0
    %v2861 = vadd.f32 0.0, %v2860
    %2862 = vmatmul.f32.gmra.mxu0 %v2797
    %v2863 = vpop.f32.mrf.mxu0
    %v2864 = vadd.f32 0.0, %v2863
    %2865 = vmatmul.f32.gmra.mxu0 %v2798
    %v2866 = vpop.f32.mrf.mxu0
    %v2867 = vadd.f32 0.0, %v2866
    %2868 = vmatmul.f32.gmra.mxu0 %v2799
    %v2869 = vpop.f32.mrf.mxu0
    %v2870 = vadd.f32 0.0, %v2869
    %2871 = vmatmul.f32.gmra.mxu0 %v2800
    %v2872 = vpop.f32.mrf.mxu0
    %v2873 = vadd.f32 0.0, %v2872
    %2874 = vmatmul.f32.gmra.mxu0 %v2801
    %v2875 = vpop.f32.mrf.mxu0
    %v2876 = vadd.f32 0.0, %v2875
    %2877 = vmatmul.f32.gmra.mxu0 %v2802
    %v2878 = vpop.f32.mrf.mxu0
    %v2879 = vadd.f32 0.0, %v2878
    %2880 = vmatmul.f32.gmra.mxu0 %v2803
    %v2881 = vpop.f32.mrf.mxu0
    %v2882 = vadd.f32 0.0, %v2881
    %2883 = vmatmul.f32.gmra.mxu0 %v2804
    %v2884 = vpop.f32.mrf.mxu0
    %v2885 = vadd.f32 0.0, %v2884
    %2886 = vdwg.mxu0
    %v2887 = vadd.f32 %v2773, %v2840
    %v2888 = vadd.f32 %v2774, %v2843
    %v2889 = vadd.f32 %v2775, %v2846
    %v2890 = vadd.f32 %v2776, %v2849
    %v2891 = vadd.f32 %v2777, %v2852
    %v2892 = vadd.f32 %v2778, %v2855
    %v2893 = vadd.f32 %v2779, %v2858
    %v2894 = vadd.f32 %v2780, %v2861
    %v2895 = vadd.f32 %v2781, %v2864
    %v2896 = vadd.f32 %v2782, %v2867
    %v2897 = vadd.f32 %v2783, %v2870
    %v2898 = vadd.f32 %v2784, %v2873
    %v2899 = vadd.f32 %v2785, %v2876
    %v2900 = vadd.f32 %v2786, %v2879
    %v2901 = vadd.f32 %v2787, %v2882
    %v2902 = vadd.f32 %v2788, %v2885
    %v2903 = vld [vmem:[%s125 + $0x1] sm:$0xff]
    %v2904 = vld [vmem:[%s125 + $0x11] sm:$0xff]
    %v2905 = vld [vmem:[%s125 + $0x21] sm:$0xff]
    %v2906 = vld [vmem:[%s125 + $0x31] sm:$0xff]
    %v2907 = vld [vmem:[%s125 + $0x41] sm:$0xff]
    %v2908 = vld [vmem:[%s125 + $0x51] sm:$0xff]
    %v2909 = vld [vmem:[%s125 + $0x61] sm:$0xff]
    %v2910 = vld [vmem:[%s125 + $0x71] sm:$0xff]
    %v2911 = vld [vmem:[%s125 + $0xa1] sm:$0xff]
    %v2912 = vld [vmem:[%s125 + $0xb1] sm:$0xff]
    %v2913 = vld [vmem:[%s125 + $0xc1] sm:$0xff]
    %v2914 = vld [vmem:[%s125 + $0xd1] sm:$0xff]
    %v2915 = vld [vmem:[%s125 + $0xe1] sm:$0xff]
    %v2916 = vld [vmem:[%s125 + $0xf1] sm:$0xff]
    %v2917 = vld [vmem:[%s125 + $0x101] sm:$0xff]
    %v2918 = vld [vmem:[%s125 + $0x111] sm:$0xff]
    %s2919 = scalar_lea.vmem [#allocation3], 2816
    %v2920 = vld [vmem:[%s2919] sm:$0xff]
    %v2921 = vld [vmem:[%s2919 + $0x8] sm:$0xff]
    %v2922 = vld [vmem:[%s2919 + $0x10] sm:$0xff]
    %v2923 = vld [vmem:[%s2919 + $0x18] sm:$0xff]
    %v2924 = vld [vmem:[%s2919 + $0x20] sm:$0xff]
    %v2925 = vld [vmem:[%s2919 + $0x28] sm:$0xff]
    %v2926 = vld [vmem:[%s2919 + $0x30] sm:$0xff]
    %v2927 = vld [vmem:[%s2919 + $0x38] sm:$0xff]
    %v2928 = vld [vmem:[%s2919 + $0x40] sm:$0xff]
    %v2929 = vld [vmem:[%s2919 + $0x48] sm:$0xff]
    %v2930 = vld [vmem:[%s2919 + $0x50] sm:$0xff]
    %v2931 = vld [vmem:[%s2919 + $0x58] sm:$0xff]
    %v2932 = vld [vmem:[%s2919 + $0x60] sm:$0xff]
    %v2933 = vld [vmem:[%s2919 + $0x68] sm:$0xff]
    %v2934 = vld [vmem:[%s2919 + $0x70] sm:$0xff]
    %v2935 = vld [vmem:[%s2919 + $0x78] sm:$0xff]
    %2936 = vmatpush.msra.mxu0 %v2935
    %2937 = vmatpush.msra.mxu0 %v2934
    %2938 = vmatpush.msra.mxu0 %v2933
    %2939 = vmatpush.msra.mxu0 %v2932
    %2940 = vmatpush.msra.mxu0 %v2931
    %2941 = vmatpush.msra.mxu0 %v2930
    %2942 = vmatpush.msra.mxu0 %v2929
    %2943 = vmatpush.msra.mxu0 %v2928
    %2944 = vmatpush.msra.mxu0 %v2927
    %2945 = vmatpush.msra.mxu0 %v2926
    %2946 = vmatpush.msra.mxu0 %v2925
    %2947 = vmatpush.msra.mxu0 %v2924
    %2948 = vmatpush.msra.mxu0 %v2923
    %2949 = vmatpush.msra.mxu0 %v2922
    %2950 = vmatpush.msra.mxu0 %v2921
    %2951 = vmatpush.msra.mxu0 %v2920
    %2952 = vmatmul.f32.gmra.mxu0 %v2903
    %v2953 = vpop.f32.mrf.mxu0
    %v2954 = vadd.f32 0.0, %v2953
    %2955 = vmatmul.f32.gmra.mxu0 %v2904
    %v2956 = vpop.f32.mrf.mxu0
    %v2957 = vadd.f32 0.0, %v2956
    %2958 = vmatmul.f32.gmra.mxu0 %v2905
    %v2959 = vpop.f32.mrf.mxu0
    %v2960 = vadd.f32 0.0, %v2959
    %2961 = vmatmul.f32.gmra.mxu0 %v2906
    %v2962 = vpop.f32.mrf.mxu0
    %v2963 = vadd.f32 0.0, %v2962
    %2964 = vmatmul.f32.gmra.mxu0 %v2907
    %v2965 = vpop.f32.mrf.mxu0
    %v2966 = vadd.f32 0.0, %v2965
    %2967 = vmatmul.f32.gmra.mxu0 %v2908
    %v2968 = vpop.f32.mrf.mxu0
    %v2969 = vadd.f32 0.0, %v2968
    %2970 = vmatmul.f32.gmra.mxu0 %v2909
    %v2971 = vpop.f32.mrf.mxu0
    %v2972 = vadd.f32 0.0, %v2971
    %2973 = vmatmul.f32.gmra.mxu0 %v2910
    %v2974 = vpop.f32.mrf.mxu0
    %v2975 = vadd.f32 0.0, %v2974
    %2976 = vmatmul.f32.gmra.mxu0 %v2911
    %v2977 = vpop.f32.mrf.mxu0
    %v2978 = vadd.f32 0.0, %v2977
    %2979 = vmatmul.f32.gmra.mxu0 %v2912
    %v2980 = vpop.f32.mrf.mxu0
    %v2981 = vadd.f32 0.0, %v2980
    %2982 = vmatmul.f32.gmra.mxu0 %v2913
    %v2983 = vpop.f32.mrf.mxu0
    %v2984 = vadd.f32 0.0, %v2983
    %2985 = vmatmul.f32.gmra.mxu0 %v2914
    %v2986 = vpop.f32.mrf.mxu0
    %v2987 = vadd.f32 0.0, %v2986
    %2988 = vmatmul.f32.gmra.mxu0 %v2915
    %v2989 = vpop.f32.mrf.mxu0
    %v2990 = vadd.f32 0.0, %v2989
    %2991 = vmatmul.f32.gmra.mxu0 %v2916
    %v2992 = vpop.f32.mrf.mxu0
    %v2993 = vadd.f32 0.0, %v2992
    %2994 = vmatmul.f32.gmra.mxu0 %v2917
    %v2995 = vpop.f32.mrf.mxu0
    %v2996 = vadd.f32 0.0, %v2995
    %2997 = vmatmul.f32.gmra.mxu0 %v2918
    %v2998 = vpop.f32.mrf.mxu0
    %v2999 = vadd.f32 0.0, %v2998
    %3000 = vdwg.mxu0
    %v3001 = vadd.f32 %v2887, %v2954
    %v3002 = vadd.f32 %v2888, %v2957
    %v3003 = vadd.f32 %v2889, %v2960
    %v3004 = vadd.f32 %v2890, %v2963
    %v3005 = vadd.f32 %v2891, %v2966
    %v3006 = vadd.f32 %v2892, %v2969
    %v3007 = vadd.f32 %v2893, %v2972
    %v3008 = vadd.f32 %v2894, %v2975
    %v3009 = vadd.f32 %v2895, %v2978
    %v3010 = vadd.f32 %v2896, %v2981
    %v3011 = vadd.f32 %v2897, %v2984
    %v3012 = vadd.f32 %v2898, %v2987
    %v3013 = vadd.f32 %v2899, %v2990
    %v3014 = vadd.f32 %v2900, %v2993
    %v3015 = vadd.f32 %v2901, %v2996
    %v3016 = vadd.f32 %v2902, %v2999
    %v3017 = vld [vmem:[%s125 + $0x2] sm:$0xff]
    %v3018 = vld [vmem:[%s125 + $0x12] sm:$0xff]
    %v3019 = vld [vmem:[%s125 + $0x22] sm:$0xff]
    %v3020 = vld [vmem:[%s125 + $0x32] sm:$0xff]
    %v3021 = vld [vmem:[%s125 + $0x42] sm:$0xff]
    %v3022 = vld [vmem:[%s125 + $0x52] sm:$0xff]
    %v3023 = vld [vmem:[%s125 + $0x62] sm:$0xff]
    %v3024 = vld [vmem:[%s125 + $0x72] sm:$0xff]
    %v3025 = vld [vmem:[%s125 + $0xa2] sm:$0xff]
    %v3026 = vld [vmem:[%s125 + $0xb2] sm:$0xff]
    %v3027 = vld [vmem:[%s125 + $0xc2] sm:$0xff]
    %v3028 = vld [vmem:[%s125 + $0xd2] sm:$0xff]
    %v3029 = vld [vmem:[%s125 + $0xe2] sm:$0xff]
    %v3030 = vld [vmem:[%s125 + $0xf2] sm:$0xff]
    %v3031 = vld [vmem:[%s125 + $0x102] sm:$0xff]
    %v3032 = vld [vmem:[%s125 + $0x112] sm:$0xff]
    %s3033 = scalar_lea.vmem [#allocation3], 2944
    %v3034 = vld [vmem:[%s3033] sm:$0xff]
    %v3035 = vld [vmem:[%s3033 + $0x8] sm:$0xff]
    %v3036 = vld [vmem:[%s3033 + $0x10] sm:$0xff]
    %v3037 = vld [vmem:[%s3033 + $0x18] sm:$0xff]
    %v3038 = vld [vmem:[%s3033 + $0x20] sm:$0xff]
    %v3039 = vld [vmem:[%s3033 + $0x28] sm:$0xff]
    %v3040 = vld [vmem:[%s3033 + $0x30] sm:$0xff]
    %v3041 = vld [vmem:[%s3033 + $0x38] sm:$0xff]
    %v3042 = vld [vmem:[%s3033 + $0x40] sm:$0xff]
    %v3043 = vld [vmem:[%s3033 + $0x48] sm:$0xff]
    %v3044 = vld [vmem:[%s3033 + $0x50] sm:$0xff]
    %v3045 = vld [vmem:[%s3033 + $0x58] sm:$0xff]
    %v3046 = vld [vmem:[%s3033 + $0x60] sm:$0xff]
    %v3047 = vld [vmem:[%s3033 + $0x68] sm:$0xff]
    %v3048 = vld [vmem:[%s3033 + $0x70] sm:$0xff]
    %v3049 = vld [vmem:[%s3033 + $0x78] sm:$0xff]
    %3050 = vmatpush.msra.mxu0 %v3049
    %3051 = vmatpush.msra.mxu0 %v3048
    %3052 = vmatpush.msra.mxu0 %v3047
    %3053 = vmatpush.msra.mxu0 %v3046
    %3054 = vmatpush.msra.mxu0 %v3045
    %3055 = vmatpush.msra.mxu0 %v3044
    %3056 = vmatpush.msra.mxu0 %v3043
    %3057 = vmatpush.msra.mxu0 %v3042
    %3058 = vmatpush.msra.mxu0 %v3041
    %3059 = vmatpush.msra.mxu0 %v3040
    %3060 = vmatpush.msra.mxu0 %v3039
    %3061 = vmatpush.msra.mxu0 %v3038
    %3062 = vmatpush.msra.mxu0 %v3037
    %3063 = vmatpush.msra.mxu0 %v3036
    %3064 = vmatpush.msra.mxu0 %v3035
    %3065 = vmatpush.msra.mxu0 %v3034
    %3066 = vmatmul.f32.gmra.mxu0 %v3017
    %v3067 = vpop.f32.mrf.mxu0
    %v3068 = vadd.f32 0.0, %v3067
    %3069 = vmatmul.f32.gmra.mxu0 %v3018
    %v3070 = vpop.f32.mrf.mxu0
    %v3071 = vadd.f32 0.0, %v3070
    %3072 = vmatmul.f32.gmra.mxu0 %v3019
    %v3073 = vpop.f32.mrf.mxu0
    %v3074 = vadd.f32 0.0, %v3073
    %3075 = vmatmul.f32.gmra.mxu0 %v3020
    %v3076 = vpop.f32.mrf.mxu0
    %v3077 = vadd.f32 0.0, %v3076
    %3078 = vmatmul.f32.gmra.mxu0 %v3021
    %v3079 = vpop.f32.mrf.mxu0
    %v3080 = vadd.f32 0.0, %v3079
    %3081 = vmatmul.f32.gmra.mxu0 %v3022
    %v3082 = vpop.f32.mrf.mxu0
    %v3083 = vadd.f32 0.0, %v3082
    %3084 = vmatmul.f32.gmra.mxu0 %v3023
    %v3085 = vpop.f32.mrf.mxu0
    %v3086 = vadd.f32 0.0, %v3085
    %3087 = vmatmul.f32.gmra.mxu0 %v3024
    %v3088 = vpop.f32.mrf.mxu0
    %v3089 = vadd.f32 0.0, %v3088
    %3090 = vmatmul.f32.gmra.mxu0 %v3025
    %v3091 = vpop.f32.mrf.mxu0
    %v3092 = vadd.f32 0.0, %v3091
    %3093 = vmatmul.f32.gmra.mxu0 %v3026
    %v3094 = vpop.f32.mrf.mxu0
    %v3095 = vadd.f32 0.0, %v3094
    %3096 = vmatmul.f32.gmra.mxu0 %v3027
    %v3097 = vpop.f32.mrf.mxu0
    %v3098 = vadd.f32 0.0, %v3097
    %3099 = vmatmul.f32.gmra.mxu0 %v3028
    %v3100 = vpop.f32.mrf.mxu0
    %v3101 = vadd.f32 0.0, %v3100
    %3102 = vmatmul.f32.gmra.mxu0 %v3029
    %v3103 = vpop.f32.mrf.mxu0
    %v3104 = vadd.f32 0.0, %v3103
    %3105 = vmatmul.f32.gmra.mxu0 %v3030
    %v3106 = vpop.f32.mrf.mxu0
    %v3107 = vadd.f32 0.0, %v3106
    %3108 = vmatmul.f32.gmra.mxu0 %v3031
    %v3109 = vpop.f32.mrf.mxu0
    %v3110 = vadd.f32 0.0, %v3109
    %3111 = vmatmul.f32.gmra.mxu0 %v3032
    %v3112 = vpop.f32.mrf.mxu0
    %v3113 = vadd.f32 0.0, %v3112
    %3114 = vdwg.mxu0
    %v3115 = vadd.f32 %v3001, %v3068
    %v3116 = vadd.f32 %v3002, %v3071
    %v3117 = vadd.f32 %v3003, %v3074
    %v3118 = vadd.f32 %v3004, %v3077
    %v3119 = vadd.f32 %v3005, %v3080
    %v3120 = vadd.f32 %v3006, %v3083
    %v3121 = vadd.f32 %v3007, %v3086
    %v3122 = vadd.f32 %v3008, %v3089
    %v3123 = vadd.f32 %v3009, %v3092
    %v3124 = vadd.f32 %v3010, %v3095
    %v3125 = vadd.f32 %v3011, %v3098
    %v3126 = vadd.f32 %v3012, %v3101
    %v3127 = vadd.f32 %v3013, %v3104
    %v3128 = vadd.f32 %v3014, %v3107
    %v3129 = vadd.f32 %v3015, %v3110
    %v3130 = vadd.f32 %v3016, %v3113
    %v3131 = vld [vmem:[%s793] sm:$0xff]
    %v3132 = vld [vmem:[%s793 + $0x10] sm:$0xff]
    %v3133 = vld [vmem:[%s793 + $0x20] sm:$0xff]
    %v3134 = vld [vmem:[%s793 + $0x30] sm:$0xff]
    %v3135 = vld [vmem:[%s793 + $0x40] sm:$0xff]
    %v3136 = vld [vmem:[%s793 + $0x50] sm:$0xff]
    %v3137 = vld [vmem:[%s793 + $0x60] sm:$0xff]
    %v3138 = vld [vmem:[%s793 + $0x70] sm:$0xff]
    %v3139 = vld [vmem:[%s793 + $0xa0] sm:$0xff]
    %v3140 = vld [vmem:[%s793 + $0xb0] sm:$0xff]
    %v3141 = vld [vmem:[%s793 + $0xc0] sm:$0xff]
    %v3142 = vld [vmem:[%s793 + $0xd0] sm:$0xff]
    %v3143 = vld [vmem:[%s793 + $0xe0] sm:$0xff]
    %v3144 = vld [vmem:[%s793 + $0xf0] sm:$0xff]
    %v3145 = vld [vmem:[%s793 + $0x100] sm:$0xff]
    %v3146 = vld [vmem:[%s793 + $0x110] sm:$0xff]
    %s3147 = scalar_lea.vmem [#allocation3], 3072
    %v3148 = vld [vmem:[%s3147] sm:$0xff]
    %v3149 = vld [vmem:[%s3147 + $0x8] sm:$0xff]
    %v3150 = vld [vmem:[%s3147 + $0x10] sm:$0xff]
    %v3151 = vld [vmem:[%s3147 + $0x18] sm:$0xff]
    %v3152 = vld [vmem:[%s3147 + $0x20] sm:$0xff]
    %v3153 = vld [vmem:[%s3147 + $0x28] sm:$0xff]
    %v3154 = vld [vmem:[%s3147 + $0x30] sm:$0xff]
    %v3155 = vld [vmem:[%s3147 + $0x38] sm:$0xff]
    %v3156 = vld [vmem:[%s3147 + $0x40] sm:$0xff]
    %v3157 = vld [vmem:[%s3147 + $0x48] sm:$0xff]
    %v3158 = vld [vmem:[%s3147 + $0x50] sm:$0xff]
    %v3159 = vld [vmem:[%s3147 + $0x58] sm:$0xff]
    %v3160 = vld [vmem:[%s3147 + $0x60] sm:$0xff]
    %v3161 = vld [vmem:[%s3147 + $0x68] sm:$0xff]
    %v3162 = vld [vmem:[%s3147 + $0x70] sm:$0xff]
    %v3163 = vld [vmem:[%s3147 + $0x78] sm:$0xff]
    %3164 = vmatpush.msra.mxu0 %v3163
    %3165 = vmatpush.msra.mxu0 %v3162
    %3166 = vmatpush.msra.mxu0 %v3161
    %3167 = vmatpush.msra.mxu0 %v3160
    %3168 = vmatpush.msra.mxu0 %v3159
    %3169 = vmatpush.msra.mxu0 %v3158
    %3170 = vmatpush.msra.mxu0 %v3157
    %3171 = vmatpush.msra.mxu0 %v3156
    %3172 = vmatpush.msra.mxu0 %v3155
    %3173 = vmatpush.msra.mxu0 %v3154
    %3174 = vmatpush.msra.mxu0 %v3153
    %3175 = vmatpush.msra.mxu0 %v3152
    %3176 = vmatpush.msra.mxu0 %v3151
    %3177 = vmatpush.msra.mxu0 %v3150
    %3178 = vmatpush.msra.mxu0 %v3149
    %3179 = vmatpush.msra.mxu0 %v3148
    %3180 = vmatmul.f32.gmra.mxu0 %v3131
    %v3181 = vpop.f32.mrf.mxu0
    %v3182 = vadd.f32 0.0, %v3181
    %3183 = vmatmul.f32.gmra.mxu0 %v3132
    %v3184 = vpop.f32.mrf.mxu0
    %v3185 = vadd.f32 0.0, %v3184
    %3186 = vmatmul.f32.gmra.mxu0 %v3133
    %v3187 = vpop.f32.mrf.mxu0
    %v3188 = vadd.f32 0.0, %v3187
    %3189 = vmatmul.f32.gmra.mxu0 %v3134
    %v3190 = vpop.f32.mrf.mxu0
    %v3191 = vadd.f32 0.0, %v3190
    %3192 = vmatmul.f32.gmra.mxu0 %v3135
    %v3193 = vpop.f32.mrf.mxu0
    %v3194 = vadd.f32 0.0, %v3193
    %3195 = vmatmul.f32.gmra.mxu0 %v3136
    %v3196 = vpop.f32.mrf.mxu0
    %v3197 = vadd.f32 0.0, %v3196
    %3198 = vmatmul.f32.gmra.mxu0 %v3137
    %v3199 = vpop.f32.mrf.mxu0
    %v3200 = vadd.f32 0.0, %v3199
    %3201 = vmatmul.f32.gmra.mxu0 %v3138
    %v3202 = vpop.f32.mrf.mxu0
    %v3203 = vadd.f32 0.0, %v3202
    %3204 = vmatmul.f32.gmra.mxu0 %v3139
    %v3205 = vpop.f32.mrf.mxu0
    %v3206 = vadd.f32 0.0, %v3205
    %3207 = vmatmul.f32.gmra.mxu0 %v3140
    %v3208 = vpop.f32.mrf.mxu0
    %v3209 = vadd.f32 0.0, %v3208
    %3210 = vmatmul.f32.gmra.mxu0 %v3141
    %v3211 = vpop.f32.mrf.mxu0
    %v3212 = vadd.f32 0.0, %v3211
    %3213 = vmatmul.f32.gmra.mxu0 %v3142
    %v3214 = vpop.f32.mrf.mxu0
    %v3215 = vadd.f32 0.0, %v3214
    %3216 = vmatmul.f32.gmra.mxu0 %v3143
    %v3217 = vpop.f32.mrf.mxu0
    %v3218 = vadd.f32 0.0, %v3217
    %3219 = vmatmul.f32.gmra.mxu0 %v3144
    %v3220 = vpop.f32.mrf.mxu0
    %v3221 = vadd.f32 0.0, %v3220
    %3222 = vmatmul.f32.gmra.mxu0 %v3145
    %v3223 = vpop.f32.mrf.mxu0
    %v3224 = vadd.f32 0.0, %v3223
    %3225 = vmatmul.f32.gmra.mxu0 %v3146
    %v3226 = vpop.f32.mrf.mxu0
    %v3227 = vadd.f32 0.0, %v3226
    %3228 = vdwg.mxu0
    %v3229 = vadd.f32 %v3115, %v3182
    %v3230 = vadd.f32 %v3116, %v3185
    %v3231 = vadd.f32 %v3117, %v3188
    %v3232 = vadd.f32 %v3118, %v3191
    %v3233 = vadd.f32 %v3119, %v3194
    %v3234 = vadd.f32 %v3120, %v3197
    %v3235 = vadd.f32 %v3121, %v3200
    %v3236 = vadd.f32 %v3122, %v3203
    %v3237 = vadd.f32 %v3123, %v3206
    %v3238 = vadd.f32 %v3124, %v3209
    %v3239 = vadd.f32 %v3125, %v3212
    %v3240 = vadd.f32 %v3126, %v3215
    %v3241 = vadd.f32 %v3127, %v3218
    %v3242 = vadd.f32 %v3128, %v3221
    %v3243 = vadd.f32 %v3129, %v3224
    %v3244 = vadd.f32 %v3130, %v3227
    %v3245 = vld [vmem:[%s793 + $0x1] sm:$0xff]
    %v3246 = vld [vmem:[%s793 + $0x11] sm:$0xff]
    %v3247 = vld [vmem:[%s793 + $0x21] sm:$0xff]
    %v3248 = vld [vmem:[%s793 + $0x31] sm:$0xff]
    %v3249 = vld [vmem:[%s793 + $0x41] sm:$0xff]
    %v3250 = vld [vmem:[%s793 + $0x51] sm:$0xff]
    %v3251 = vld [vmem:[%s793 + $0x61] sm:$0xff]
    %v3252 = vld [vmem:[%s793 + $0x71] sm:$0xff]
    %v3253 = vld [vmem:[%s793 + $0xa1] sm:$0xff]
    %v3254 = vld [vmem:[%s793 + $0xb1] sm:$0xff]
    %v3255 = vld [vmem:[%s793 + $0xc1] sm:$0xff]
    %v3256 = vld [vmem:[%s793 + $0xd1] sm:$0xff]
    %v3257 = vld [vmem:[%s793 + $0xe1] sm:$0xff]
    %v3258 = vld [vmem:[%s793 + $0xf1] sm:$0xff]
    %v3259 = vld [vmem:[%s793 + $0x101] sm:$0xff]
    %v3260 = vld [vmem:[%s793 + $0x111] sm:$0xff]
    %s3261 = scalar_lea.vmem [#allocation3], 3200
    %v3262 = vld [vmem:[%s3261] sm:$0xff]
    %v3263 = vld [vmem:[%s3261 + $0x8] sm:$0xff]
    %v3264 = vld [vmem:[%s3261 + $0x10] sm:$0xff]
    %v3265 = vld [vmem:[%s3261 + $0x18] sm:$0xff]
    %v3266 = vld [vmem:[%s3261 + $0x20] sm:$0xff]
    %v3267 = vld [vmem:[%s3261 + $0x28] sm:$0xff]
    %v3268 = vld [vmem:[%s3261 + $0x30] sm:$0xff]
    %v3269 = vld [vmem:[%s3261 + $0x38] sm:$0xff]
    %v3270 = vld [vmem:[%s3261 + $0x40] sm:$0xff]
    %v3271 = vld [vmem:[%s3261 + $0x48] sm:$0xff]
    %v3272 = vld [vmem:[%s3261 + $0x50] sm:$0xff]
    %v3273 = vld [vmem:[%s3261 + $0x58] sm:$0xff]
    %v3274 = vld [vmem:[%s3261 + $0x60] sm:$0xff]
    %v3275 = vld [vmem:[%s3261 + $0x68] sm:$0xff]
    %v3276 = vld [vmem:[%s3261 + $0x70] sm:$0xff]
    %v3277 = vld [vmem:[%s3261 + $0x78] sm:$0xff]
    %3278 = vmatpush.msra.mxu0 %v3277
    %3279 = vmatpush.msra.mxu0 %v3276
    %3280 = vmatpush.msra.mxu0 %v3275
    %3281 = vmatpush.msra.mxu0 %v3274
    %3282 = vmatpush.msra.mxu0 %v3273
    %3283 = vmatpush.msra.mxu0 %v3272
    %3284 = vmatpush.msra.mxu0 %v3271
    %3285 = vmatpush.msra.mxu0 %v3270
    %3286 = vmatpush.msra.mxu0 %v3269
    %3287 = vmatpush.msra.mxu0 %v3268
    %3288 = vmatpush.msra.mxu0 %v3267
    %3289 = vmatpush.msra.mxu0 %v3266
    %3290 = vmatpush.msra.mxu0 %v3265
    %3291 = vmatpush.msra.mxu0 %v3264
    %3292 = vmatpush.msra.mxu0 %v3263
    %3293 = vmatpush.msra.mxu0 %v3262
    %3294 = vmatmul.f32.gmra.mxu0 %v3245
    %v3295 = vpop.f32.mrf.mxu0
    %v3296 = vadd.f32 0.0, %v3295
    %3297 = vmatmul.f32.gmra.mxu0 %v3246
    %v3298 = vpop.f32.mrf.mxu0
    %v3299 = vadd.f32 0.0, %v3298
    %3300 = vmatmul.f32.gmra.mxu0 %v3247
    %v3301 = vpop.f32.mrf.mxu0
    %v3302 = vadd.f32 0.0, %v3301
    %3303 = vmatmul.f32.gmra.mxu0 %v3248
    %v3304 = vpop.f32.mrf.mxu0
    %v3305 = vadd.f32 0.0, %v3304
    %3306 = vmatmul.f32.gmra.mxu0 %v3249
    %v3307 = vpop.f32.mrf.mxu0
    %v3308 = vadd.f32 0.0, %v3307
    %3309 = vmatmul.f32.gmra.mxu0 %v3250
    %v3310 = vpop.f32.mrf.mxu0
    %v3311 = vadd.f32 0.0, %v3310
    %3312 = vmatmul.f32.gmra.mxu0 %v3251
    %v3313 = vpop.f32.mrf.mxu0
    %v3314 = vadd.f32 0.0, %v3313
    %3315 = vmatmul.f32.gmra.mxu0 %v3252
    %v3316 = vpop.f32.mrf.mxu0
    %v3317 = vadd.f32 0.0, %v3316
    %3318 = vmatmul.f32.gmra.mxu0 %v3253
    %v3319 = vpop.f32.mrf.mxu0
    %v3320 = vadd.f32 0.0, %v3319
    %3321 = vmatmul.f32.gmra.mxu0 %v3254
    %v3322 = vpop.f32.mrf.mxu0
    %v3323 = vadd.f32 0.0, %v3322
    %3324 = vmatmul.f32.gmra.mxu0 %v3255
    %v3325 = vpop.f32.mrf.mxu0
    %v3326 = vadd.f32 0.0, %v3325
    %3327 = vmatmul.f32.gmra.mxu0 %v3256
    %v3328 = vpop.f32.mrf.mxu0
    %v3329 = vadd.f32 0.0, %v3328
    %3330 = vmatmul.f32.gmra.mxu0 %v3257
    %v3331 = vpop.f32.mrf.mxu0
    %v3332 = vadd.f32 0.0, %v3331
    %3333 = vmatmul.f32.gmra.mxu0 %v3258
    %v3334 = vpop.f32.mrf.mxu0
    %v3335 = vadd.f32 0.0, %v3334
    %3336 = vmatmul.f32.gmra.mxu0 %v3259
    %v3337 = vpop.f32.mrf.mxu0
    %v3338 = vadd.f32 0.0, %v3337
    %3339 = vmatmul.f32.gmra.mxu0 %v3260
    %v3340 = vpop.f32.mrf.mxu0
    %v3341 = vadd.f32 0.0, %v3340
    %3342 = vdwg.mxu0
    %v3343 = vadd.f32 %v3229, %v3296
    %v3344 = vadd.f32 %v3230, %v3299
    %v3345 = vadd.f32 %v3231, %v3302
    %v3346 = vadd.f32 %v3232, %v3305
    %v3347 = vadd.f32 %v3233, %v3308
    %v3348 = vadd.f32 %v3234, %v3311
    %v3349 = vadd.f32 %v3235, %v3314
    %v3350 = vadd.f32 %v3236, %v3317
    %v3351 = vadd.f32 %v3237, %v3320
    %v3352 = vadd.f32 %v3238, %v3323
    %v3353 = vadd.f32 %v3239, %v3326
    %v3354 = vadd.f32 %v3240, %v3329
    %v3355 = vadd.f32 %v3241, %v3332
    %v3356 = vadd.f32 %v3242, %v3335
    %v3357 = vadd.f32 %v3243, %v3338
    %v3358 = vadd.f32 %v3244, %v3341
    %v3359 = vld [vmem:[%s793 + $0x2] sm:$0xff]
    %v3360 = vld [vmem:[%s793 + $0x12] sm:$0xff]
    %v3361 = vld [vmem:[%s793 + $0x22] sm:$0xff]
    %v3362 = vld [vmem:[%s793 + $0x32] sm:$0xff]
    %v3363 = vld [vmem:[%s793 + $0x42] sm:$0xff]
    %v3364 = vld [vmem:[%s793 + $0x52] sm:$0xff]
    %v3365 = vld [vmem:[%s793 + $0x62] sm:$0xff]
    %v3366 = vld [vmem:[%s793 + $0x72] sm:$0xff]
    %v3367 = vld [vmem:[%s793 + $0xa2] sm:$0xff]
    %v3368 = vld [vmem:[%s793 + $0xb2] sm:$0xff]
    %v3369 = vld [vmem:[%s793 + $0xc2] sm:$0xff]
    %v3370 = vld [vmem:[%s793 + $0xd2] sm:$0xff]
    %v3371 = vld [vmem:[%s793 + $0xe2] sm:$0xff]
    %v3372 = vld [vmem:[%s793 + $0xf2] sm:$0xff]
    %v3373 = vld [vmem:[%s793 + $0x102] sm:$0xff]
    %v3374 = vld [vmem:[%s793 + $0x112] sm:$0xff]
    %s3375 = scalar_lea.vmem [#allocation3], 3328
    %v3376 = vld [vmem:[%s3375] sm:$0xff]
    %v3377 = vld [vmem:[%s3375 + $0x8] sm:$0xff]
    %v3378 = vld [vmem:[%s3375 + $0x10] sm:$0xff]
    %v3379 = vld [vmem:[%s3375 + $0x18] sm:$0xff]
    %v3380 = vld [vmem:[%s3375 + $0x20] sm:$0xff]
    %v3381 = vld [vmem:[%s3375 + $0x28] sm:$0xff]
    %v3382 = vld [vmem:[%s3375 + $0x30] sm:$0xff]
    %v3383 = vld [vmem:[%s3375 + $0x38] sm:$0xff]
    %v3384 = vld [vmem:[%s3375 + $0x40] sm:$0xff]
    %v3385 = vld [vmem:[%s3375 + $0x48] sm:$0xff]
    %v3386 = vld [vmem:[%s3375 + $0x50] sm:$0xff]
    %v3387 = vld [vmem:[%s3375 + $0x58] sm:$0xff]
    %v3388 = vld [vmem:[%s3375 + $0x60] sm:$0xff]
    %v3389 = vld [vmem:[%s3375 + $0x68] sm:$0xff]
    %v3390 = vld [vmem:[%s3375 + $0x70] sm:$0xff]
    %v3391 = vld [vmem:[%s3375 + $0x78] sm:$0xff]
    %3392 = vmatpush.msra.mxu0 %v3391
    %3393 = vmatpush.msra.mxu0 %v3390
    %3394 = vmatpush.msra.mxu0 %v3389
    %3395 = vmatpush.msra.mxu0 %v3388
    %3396 = vmatpush.msra.mxu0 %v3387
    %3397 = vmatpush.msra.mxu0 %v3386
    %3398 = vmatpush.msra.mxu0 %v3385
    %3399 = vmatpush.msra.mxu0 %v3384
    %3400 = vmatpush.msra.mxu0 %v3383
    %3401 = vmatpush.msra.mxu0 %v3382
    %3402 = vmatpush.msra.mxu0 %v3381
    %3403 = vmatpush.msra.mxu0 %v3380
    %3404 = vmatpush.msra.mxu0 %v3379
    %3405 = vmatpush.msra.mxu0 %v3378
    %3406 = vmatpush.msra.mxu0 %v3377
    %3407 = vmatpush.msra.mxu0 %v3376
    %3408 = vmatmul.f32.gmra.mxu0 %v3359
    %v3409 = vpop.f32.mrf.mxu0
    %v3410 = vadd.f32 0.0, %v3409
    %3411 = vmatmul.f32.gmra.mxu0 %v3360
    %v3412 = vpop.f32.mrf.mxu0
    %v3413 = vadd.f32 0.0, %v3412
    %3414 = vmatmul.f32.gmra.mxu0 %v3361
    %v3415 = vpop.f32.mrf.mxu0
    %v3416 = vadd.f32 0.0, %v3415
    %3417 = vmatmul.f32.gmra.mxu0 %v3362
    %v3418 = vpop.f32.mrf.mxu0
    %v3419 = vadd.f32 0.0, %v3418
    %3420 = vmatmul.f32.gmra.mxu0 %v3363
    %v3421 = vpop.f32.mrf.mxu0
    %v3422 = vadd.f32 0.0, %v3421
    %3423 = vmatmul.f32.gmra.mxu0 %v3364
    %v3424 = vpop.f32.mrf.mxu0
    %v3425 = vadd.f32 0.0, %v3424
    %3426 = vmatmul.f32.gmra.mxu0 %v3365
    %v3427 = vpop.f32.mrf.mxu0
    %v3428 = vadd.f32 0.0, %v3427
    %3429 = vmatmul.f32.gmra.mxu0 %v3366
    %v3430 = vpop.f32.mrf.mxu0
    %v3431 = vadd.f32 0.0, %v3430
    %3432 = vmatmul.f32.gmra.mxu0 %v3367
    %v3433 = vpop.f32.mrf.mxu0
    %v3434 = vadd.f32 0.0, %v3433
    %3435 = vmatmul.f32.gmra.mxu0 %v3368
    %v3436 = vpop.f32.mrf.mxu0
    %v3437 = vadd.f32 0.0, %v3436
    %3438 = vmatmul.f32.gmra.mxu0 %v3369
    %v3439 = vpop.f32.mrf.mxu0
    %v3440 = vadd.f32 0.0, %v3439
    %3441 = vmatmul.f32.gmra.mxu0 %v3370
    %v3442 = vpop.f32.mrf.mxu0
    %v3443 = vadd.f32 0.0, %v3442
    %3444 = vmatmul.f32.gmra.mxu0 %v3371
    %v3445 = vpop.f32.mrf.mxu0
    %v3446 = vadd.f32 0.0, %v3445
    %3447 = vmatmul.f32.gmra.mxu0 %v3372
    %v3448 = vpop.f32.mrf.mxu0
    %v3449 = vadd.f32 0.0, %v3448
    %3450 = vmatmul.f32.gmra.mxu0 %v3373
    %v3451 = vpop.f32.mrf.mxu0
    %v3452 = vadd.f32 0.0, %v3451
    %3453 = vmatmul.f32.gmra.mxu0 %v3374
    %v3454 = vpop.f32.mrf.mxu0
    %v3455 = vadd.f32 0.0, %v3454
    %3456 = vdwg.mxu0
    %v3457 = vadd.f32 %v3343, %v3410
    %v3458 = vadd.f32 %v3344, %v3413
    %v3459 = vadd.f32 %v3345, %v3416
    %v3460 = vadd.f32 %v3346, %v3419
    %v3461 = vadd.f32 %v3347, %v3422
    %v3462 = vadd.f32 %v3348, %v3425
    %v3463 = vadd.f32 %v3349, %v3428
    %v3464 = vadd.f32 %v3350, %v3431
    %v3465 = vadd.f32 %v3351, %v3434
    %v3466 = vadd.f32 %v3352, %v3437
    %v3467 = vadd.f32 %v3353, %v3440
    %v3468 = vadd.f32 %v3354, %v3443
    %v3469 = vadd.f32 %v3355, %v3446
    %v3470 = vadd.f32 %v3356, %v3449
    %v3471 = vadd.f32 %v3357, %v3452
    %v3472 = vadd.f32 %v3358, %v3455
    %v3473 = vadd.f32 %v3457, %v3458
    %v3474 = vadd.f32 %v3473, %v3459
    %v3475 = vadd.f32 %v3474, %v3460
    %v3476 = vadd.f32 %v3475, %v3461
    %v3477 = vadd.f32 %v3476, %v3462
    %v3478 = vadd.f32 %v3477, %v3463
    %v3479 = vadd.f32 %v3478, %v3464
    %v3480 = vadd.f32 %v3479, %v3465
    %v3481 = vadd.f32 %v3480, %v3466
    %v3482 = vadd.f32 %v3481, %v3467
    %v3483 = vadd.f32 %v3482, %v3468
    %v3484 = vadd.f32 %v3483, %v3469
    %v3485 = vadd.f32 %v3484, %v3470
    %v3486 = vadd.f32 %v3485, %v3471
    %v3487 = vadd.f32 %v3486, %v3472
    %v3488 = vrot.slane %v3487, 4
    %v3489 = vadd.f32 %v3487, %v3488
    %v3490 = vrot.slane %v3489, 2
    %v3491 = vadd.f32 %v3489, %v3490
    %v3492 = vrot.slane %v3491, 1
    %v3493 = vadd.f32 %v3491, %v3492
    %v3494 = vmul.f32 %v3493, %v1163
    %v3495 = vsub.f32 %v3457, %v3494
    %v3496 = vsub.f32 %v3458, %v3494
    %v3497 = vsub.f32 %v3459, %v3494
    %v3498 = vsub.f32 %v3460, %v3494
    %v3499 = vsub.f32 %v3461, %v3494
    %v3500 = vsub.f32 %v3462, %v3494
    %v3501 = vsub.f32 %v3463, %v3494
    %v3502 = vsub.f32 %v3464, %v3494
    %v3503 = vsub.f32 %v3465, %v3494
    %v3504 = vsub.f32 %v3466, %v3494
    %v3505 = vsub.f32 %v3467, %v3494
    %v3506 = vsub.f32 %v3468, %v3494
    %v3507 = vsub.f32 %v3469, %v3494
    %v3508 = vsub.f32 %v3470, %v3494
    %v3509 = vsub.f32 %v3471, %v3494
    %v3510 = vsub.f32 %v3472, %v3494
    %v3511 = vmul.f32 %v3495, %v3495
    %v3512 = vmul.f32 %v3496, %v3496
    %v3513 = vmul.f32 %v3497, %v3497
    %v3514 = vmul.f32 %v3498, %v3498
    %v3515 = vmul.f32 %v3499, %v3499
    %v3516 = vmul.f32 %v3500, %v3500
    %v3517 = vmul.f32 %v3501, %v3501
    %v3518 = vmul.f32 %v3502, %v3502
    %v3519 = vmul.f32 %v3503, %v3503
    %v3520 = vmul.f32 %v3504, %v3504
    %v3521 = vmul.f32 %v3505, %v3505
    %v3522 = vmul.f32 %v3506, %v3506
    %v3523 = vmul.f32 %v3507, %v3507
    %v3524 = vmul.f32 %v3508, %v3508
    %v3525 = vmul.f32 %v3509, %v3509
    %v3526 = vmul.f32 %v3510, %v3510
    %v3527 = vadd.f32 %v3511, %v3512
    %v3528 = vadd.f32 %v3527, %v3513
    %v3529 = vadd.f32 %v3528, %v3514
    %v3530 = vadd.f32 %v3529, %v3515
    %v3531 = vadd.f32 %v3530, %v3516
    %v3532 = vadd.f32 %v3531, %v3517
    %v3533 = vadd.f32 %v3532, %v3518
    %v3534 = vadd.f32 %v3533, %v3519
    %v3535 = vadd.f32 %v3534, %v3520
    %v3536 = vadd.f32 %v3535, %v3521
    %v3537 = vadd.f32 %v3536, %v3522
    %v3538 = vadd.f32 %v3537, %v3523
    %v3539 = vadd.f32 %v3538, %v3524
    %v3540 = vadd.f32 %v3539, %v3525
    %v3541 = vadd.f32 %v3540, %v3526
    %v3542 = vrot.slane %v3541, 4
    %v3543 = vadd.f32 %v3541, %v3542
    %v3544 = vrot.slane %v3543, 2
    %v3545 = vadd.f32 %v3543, %v3544
    %v3546 = vrot.slane %v3545, 1
    %v3547 = vadd.f32 %v3545, %v3546
    %v3548 = vmul.f32 %v3547, %v1163
    %v3549 = vld [vmem:[#allocation6 + $0x2] sm:$0x1]
    %v3550 = vld [vmem:[#allocation6 + $0x8] sm:$0x1]
    %v3551 = vadd.f32 %v3548, 1e-05
    %v3552 = vrsqrt.pop %v3551
    %v3553 = vmul.f32 %v3552, %v3551
    %v3554 = vmul.f32 %v3553, %v3552
    %v3555 = vmul.f32 0.5, %v3554
    %v3556 = vsub.f32 1.5, %v3555
    %v3557 = vmul.f32 %v3552, %v3556
    %vm3558 = vweird.f32 %v3551
    %vm3559 = vweird.f32 %v3552
    %vm3560 = vmor %vm3558, %vm3559
    %v3561 = vsel %vm3560, %v3552, %v3557
    %v3562 = vmul.f32 %v3495, %v3561
    %v3563 = vmul.f32 %v3496, %v3561
    %v3564 = vmul.f32 %v3497, %v3561
    %v3565 = vmul.f32 %v3498, %v3561
    %v3566 = vmul.f32 %v3499, %v3561
    %v3567 = vmul.f32 %v3500, %v3561
    %v3568 = vmul.f32 %v3501, %v3561
    %v3569 = vmul.f32 %v3502, %v3561
    %v3570 = vmul.f32 %v3503, %v3561
    %v3571 = vmul.f32 %v3504, %v3561
    %v3572 = vmul.f32 %v3505, %v3561
    %v3573 = vmul.f32 %v3506, %v3561
    %v3574 = vmul.f32 %v3507, %v3561
    %v3575 = vmul.f32 %v3508, %v3561
    %v3576 = vmul.f32 %v3509, %v3561
    %v3577 = vmul.f32 %v3510, %v3561
    %v3578 = vperm.slane %v3549, 0
    %v3579 = vmul.f32 %v3562, %v3578
    %v3580 = vmul.f32 %v3563, %v3578
    %v3581 = vmul.f32 %v3564, %v3578
    %v3582 = vmul.f32 %v3565, %v3578
    %v3583 = vmul.f32 %v3566, %v3578
    %v3584 = vmul.f32 %v3567, %v3578
    %v3585 = vmul.f32 %v3568, %v3578
    %v3586 = vmul.f32 %v3569, %v3578
    %v3587 = vmul.f32 %v3570, %v3578
    %v3588 = vmul.f32 %v3571, %v3578
    %v3589 = vmul.f32 %v3572, %v3578
    %v3590 = vmul.f32 %v3573, %v3578
    %v3591 = vmul.f32 %v3574, %v3578
    %v3592 = vmul.f32 %v3575, %v3578
    %v3593 = vmul.f32 %v3576, %v3578
    %v3594 = vmul.f32 %v3577, %v3578
    %v3595 = vperm.slane %v3550, 0
    %v3596 = vadd.f32 %v3579, %v3595
    %v3597 = vadd.f32 %v3580, %v3595
    %v3598 = vadd.f32 %v3581, %v3595
    %v3599 = vadd.f32 %v3582, %v3595
    %v3600 = vadd.f32 %v3583, %v3595
    %v3601 = vadd.f32 %v3584, %v3595
    %v3602 = vadd.f32 %v3585, %v3595
    %v3603 = vadd.f32 %v3586, %v3595
    %v3604 = vadd.f32 %v3587, %v3595
    %v3605 = vadd.f32 %v3588, %v3595
    %v3606 = vadd.f32 %v3589, %v3595
    %v3607 = vadd.f32 %v3590, %v3595
    %v3608 = vadd.f32 %v3591, %v3595
    %v3609 = vadd.f32 %v3592, %v3595
    %v3610 = vadd.f32 %v3593, %v3595
    %v3611 = vadd.f32 %v3594, %v3595
    %v3612 = vmax.f32 %v3596, %v3598
    %v3613 = vmax.f32 %v3597, %v3599
    %v3614 = vmax.f32 %v3612, %v3600
    %v3615 = vmax.f32 %v3613, %v3601
    %v3616 = vmax.f32 %v3614, %v3602
    %v3617 = vmax.f32 %v3615, %v3603
    %v3618 = vmax.f32 %v3616, %v3617
    %v3619 = vmax.f32 %v3604, %v3606
    %v3620 = vmax.f32 %v3605, %v3607
    %v3621 = vmax.f32 %v3619, %v3608
    %v3622 = vmax.f32 %v3620, %v3609
    %v3623 = vmax.f32 %v3621, %v3610
    %v3624 = vmax.f32 %v3622, %v3611
    %v3625 = vmax.f32 %v3623, %v3624
    %v3626 = vsub.f32 %v3596, %v3618
    %v3627 = vsub.f32 %v3597, %v3618
    %v3628 = vsub.f32 %v3598, %v3618
    %v3629 = vsub.f32 %v3599, %v3618
    %v3630 = vsub.f32 %v3600, %v3618
    %v3631 = vsub.f32 %v3601, %v3618
    %v3632 = vsub.f32 %v3602, %v3618
    %v3633 = vsub.f32 %v3603, %v3618
    %v3634 = vsub.f32 %v3604, %v3625
    %v3635 = vsub.f32 %v3605, %v3625
    %v3636 = vsub.f32 %v3606, %v3625
    %v3637 = vsub.f32 %v3607, %v3625
    %v3638 = vsub.f32 %v3608, %v3625
    %v3639 = vsub.f32 %v3609, %v3625
    %v3640 = vsub.f32 %v3610, %v3625
    %v3641 = vsub.f32 %v3611, %v3625
    %v3642 = vmul.f32 %v3626, 1.442695
    %v3643 = vpow.pop %v3642
    %v3644 = vmul.f32 %v3627, 1.442695
    %v3645 = vpow.pop %v3644
    %v3646 = vmul.f32 %v3628, 1.442695
    %v3647 = vpow.pop %v3646
    %v3648 = vmul.f32 %v3629, 1.442695
    %v3649 = vpow.pop %v3648
    %v3650 = vmul.f32 %v3630, 1.442695
    %v3651 = vpow.pop %v3650
    %v3652 = vmul.f32 %v3631, 1.442695
    %v3653 = vpow.pop %v3652
    %v3654 = vmul.f32 %v3632, 1.442695
    %v3655 = vpow.pop %v3654
    %v3656 = vmul.f32 %v3633, 1.442695
    %v3657 = vpow.pop %v3656
    %v3658 = vmul.f32 %v3634, 1.442695
    %v3659 = vpow.pop %v3658
    %v3660 = vmul.f32 %v3635, 1.442695
    %v3661 = vpow.pop %v3660
    %v3662 = vmul.f32 %v3636, 1.442695
    %v3663 = vpow.pop %v3662
    %v3664 = vmul.f32 %v3637, 1.442695
    %v3665 = vpow.pop %v3664
    %v3666 = vmul.f32 %v3638, 1.442695
    %v3667 = vpow.pop %v3666
    %v3668 = vmul.f32 %v3639, 1.442695
    %v3669 = vpow.pop %v3668
    %v3670 = vmul.f32 %v3640, 1.442695
    %v3671 = vpow.pop %v3670
    %v3672 = vmul.f32 %v3641, 1.442695
    %v3673 = vpow.pop %v3672
    %v3674 = vadd.f32 %v3643, %v3645
    %v3675 = vadd.f32 %v3674, %v3647
    %v3676 = vadd.f32 %v3675, %v3649
    %v3677 = vadd.f32 %v3676, %v3651
    %v3678 = vadd.f32 %v3677, %v3653
    %v3679 = vadd.f32 %v3678, %v3655
    %v3680 = vadd.f32 %v3679, %v3657
    %v3681 = vadd.f32 %v3659, %v3661
    %v3682 = vadd.f32 %v3681, %v3663
    %v3683 = vadd.f32 %v3682, %v3665
    %v3684 = vadd.f32 %v3683, %v3667
    %v3685 = vadd.f32 %v3684, %v3669
    %v3686 = vadd.f32 %v3685, %v3671
    %v3687 = vadd.f32 %v3686, %v3673
    %v3688 = vrcp.pop %v3680
    %v3689 = vmul.f32 %v3680, %v3688
    %v3690 = vsub.f32 1.0, %v3689
    %v3691 = vmul.f32 %v3688, %v3690
    %v3692 = vadd.f32 %v3688, %v3691
    %vm3693 = vweird.f32 %v3680
    %vm3694 = vweird.f32 %v3688
    %vm3695 = vmor %vm3693, %vm3694
    %v3696 = vsel %vm3695, %v3688, %v3692
    %v3697 = vand.u32 2147483647, %v3680
    %vm3698 = vcmp.eq.f32.partialorder %v3697, 8.507059e+37
    %v3699 = vand.u32 %v3680, 2147483648
    %v3700 = vor.u32 1.1754944e-38, %v3699
    %v3701 = vsel %vm3698, %v3700, %v3696
    %v3702 = vmul.f32 %v3643, %v3701
    %v3703 = vmul.f32 %v3645, %v3701
    %v3704 = vmul.f32 %v3647, %v3701
    %v3705 = vmul.f32 %v3649, %v3701
    %v3706 = vmul.f32 %v3651, %v3701
    %v3707 = vmul.f32 %v3653, %v3701
    %v3708 = vmul.f32 %v3655, %v3701
    %v3709 = vmul.f32 %v3657, %v3701
    %v3710 = vrcp.pop %v3687
    %v3711 = vmul.f32 %v3687, %v3710
    %v3712 = vsub.f32 1.0, %v3711
    %v3713 = vmul.f32 %v3710, %v3712
    %v3714 = vadd.f32 %v3710, %v3713
    %vm3715 = vweird.f32 %v3687
    %vm3716 = vweird.f32 %v3710
    %vm3717 = vmor %vm3715, %vm3716
    %v3718 = vsel %vm3717, %v3710, %v3714
    %v3719 = vand.u32 2147483647, %v3687
    %vm3720 = vcmp.eq.f32.partialorder %v3719, 8.507059e+37
    %v3721 = vand.u32 %v3687, 2147483648
    %v3722 = vor.u32 1.1754944e-38, %v3721
    %v3723 = vsel %vm3720, %v3722, %v3718
    %v3724 = vmul.f32 %v3659, %v3723
    %v3725 = vmul.f32 %v3661, %v3723
    %v3726 = vmul.f32 %v3663, %v3723
    %v3727 = vmul.f32 %v3665, %v3723
    %v3728 = vmul.f32 %v3667, %v3723
    %v3729 = vmul.f32 %v3669, %v3723
    %v3730 = vmul.f32 %v3671, %v3723
    %v3731 = vmul.f32 %v3673, %v3723
    %vm3732 = vcmask 89088
    %3733 = vst.msk [vmem:[#allocation9] sm:$0xff] %vm3732, %v3702
    %3734 = vst.msk [vmem:[#allocation9 + $0x8] sm:$0xff] %vm3732, %v3703
    %3735 = vst.msk [vmem:[#allocation9 + $0x10] sm:$0xff] %vm3732, %v3704
    %3736 = vst.msk [vmem:[#allocation9 + $0x18] sm:$0xff] %vm3732, %v3705
    %3737 = vst.msk [vmem:[#allocation9 + $0x20] sm:$0xff] %vm3732, %v3706
    %3738 = vst.msk [vmem:[#allocation9 + $0x28] sm:$0xff] %vm3732, %v3707
    %3739 = vst.msk [vmem:[#allocation9 + $0x30] sm:$0xff] %vm3732, %v3708
    %3740 = vst.msk [vmem:[#allocation9 + $0x38] sm:$0xff] %vm3732, %v3709
    %3741 = vst.msk [vmem:[#allocation9 + $0x40] sm:$0xff] %vm3732, %v3724
    %3742 = vst.msk [vmem:[#allocation9 + $0x48] sm:$0xff] %vm3732, %v3725
    %3743 = vst.msk [vmem:[#allocation9 + $0x50] sm:$0xff] %vm3732, %v3726
    %3744 = vst.msk [vmem:[#allocation9 + $0x58] sm:$0xff] %vm3732, %v3727
    %3745 = vst.msk [vmem:[#allocation9 + $0x60] sm:$0xff] %vm3732, %v3728
    %3746 = vst.msk [vmem:[#allocation9 + $0x68] sm:$0xff] %vm3732, %v3729
    %3747 = vst.msk [vmem:[#allocation9 + $0x70] sm:$0xff] %vm3732, %v3730
    %3748 = vst.msk [vmem:[#allocation9 + $0x78] sm:$0xff] %vm3732, %v3731
    %v3749 = vld [vmem:[#allocation8] sm:$0xff]
    %v3750 = vld [vmem:[#allocation8 + $0x8] sm:$0xff]
    %v3751 = vld [vmem:[#allocation8 + $0x10] sm:$0xff]
    %v3752 = vld [vmem:[#allocation8 + $0x18] sm:$0xff]
    %v3753 = vld [vmem:[#allocation8 + $0x20] sm:$0xff]
    %v3754 = vld [vmem:[#allocation8 + $0x28] sm:$0xff]
    %v3755 = vld [vmem:[#allocation8 + $0x30] sm:$0xff]
    %v3756 = vld [vmem:[#allocation8 + $0x38] sm:$0xff]
    %v3757 = vld [vmem:[#allocation8 + $0x40] sm:$0xff]
    %v3758 = vld [vmem:[#allocation8 + $0x48] sm:$0xff]
    %v3759 = vld [vmem:[#allocation8 + $0x50] sm:$0xff]
    %v3760 = vld [vmem:[#allocation8 + $0x58] sm:$0xff]
    %v3761 = vld [vmem:[#allocation8 + $0x60] sm:$0xff]
    %v3762 = vld [vmem:[#allocation8 + $0x68] sm:$0xff]
    %v3763 = vld [vmem:[#allocation8 + $0x70] sm:$0xff]
    %v3764 = vld [vmem:[#allocation8 + $0x78] sm:$0xff]
    %3765 = vmatpush.msra.mxu0 %v3764
    %3766 = vmatpush.msra.mxu0 %v3763
    %3767 = vmatpush.msra.mxu0 %v3762
    %3768 = vmatpush.msra.mxu0 %v3761
    %3769 = vmatpush.msra.mxu0 %v3760
    %3770 = vmatpush.msra.mxu0 %v3759
    %3771 = vmatpush.msra.mxu0 %v3758
    %3772 = vmatpush.msra.mxu0 %v3757
    %3773 = vmatpush.msra.mxu0 %v3756
    %3774 = vmatpush.msra.mxu0 %v3755
    %3775 = vmatpush.msra.mxu0 %v3754
    %3776 = vmatpush.msra.mxu0 %v3753
    %3777 = vmatpush.msra.mxu0 %v3752
    %3778 = vmatpush.msra.mxu0 %v3751
    %3779 = vmatpush.msra.mxu0 %v3750
    %3780 = vmatpush.msra.mxu0 %v3749
    %3781 = vmatmul.f32.gmra.mxu0 %v3702
    %v3782 = vpop.f32.mrf.mxu0
    %v3783 = vadd.f32 0.0, %v3782
    %3784 = vmatmul.f32.gmra.mxu0 %v3703
    %v3785 = vpop.f32.mrf.mxu0
    %v3786 = vadd.f32 0.0, %v3785
    %3787 = vmatmul.f32.gmra.mxu0 %v3704
    %v3788 = vpop.f32.mrf.mxu0
    %v3789 = vadd.f32 0.0, %v3788
    %3790 = vmatmul.f32.gmra.mxu0 %v3705
    %v3791 = vpop.f32.mrf.mxu0
    %v3792 = vadd.f32 0.0, %v3791
    %3793 = vmatmul.f32.gmra.mxu0 %v3706
    %v3794 = vpop.f32.mrf.mxu0
    %v3795 = vadd.f32 0.0, %v3794
    %3796 = vmatmul.f32.gmra.mxu0 %v3707
    %v3797 = vpop.f32.mrf.mxu0
    %v3798 = vadd.f32 0.0, %v3797
    %3799 = vmatmul.f32.gmra.mxu0 %v3708
    %v3800 = vpop.f32.mrf.mxu0
    %v3801 = vadd.f32 0.0, %v3800
    %3802 = vmatmul.f32.gmra.mxu0 %v3709
    %v3803 = vpop.f32.mrf.mxu0
    %v3804 = vadd.f32 0.0, %v3803
    %3805 = vmatmul.f32.gmra.mxu0 %v3724
    %v3806 = vpop.f32.mrf.mxu0
    %v3807 = vadd.f32 0.0, %v3806
    %3808 = vmatmul.f32.gmra.mxu0 %v3725
    %v3809 = vpop.f32.mrf.mxu0
    %v3810 = vadd.f32 0.0, %v3809
    %3811 = vmatmul.f32.gmra.mxu0 %v3726
    %v3812 = vpop.f32.mrf.mxu0
    %v3813 = vadd.f32 0.0, %v3812
    %3814 = vmatmul.f32.gmra.mxu0 %v3727
    %v3815 = vpop.f32.mrf.mxu0
    %v3816 = vadd.f32 0.0, %v3815
    %3817 = vmatmul.f32.gmra.mxu0 %v3728
    %v3818 = vpop.f32.mrf.mxu0
    %v3819 = vadd.f32 0.0, %v3818
    %3820 = vmatmul.f32.gmra.mxu0 %v3729
    %v3821 = vpop.f32.mrf.mxu0
    %v3822 = vadd.f32 0.0, %v3821
    %3823 = vmatmul.f32.gmra.mxu0 %v3730
    %v3824 = vpop.f32.mrf.mxu0
    %v3825 = vadd.f32 0.0, %v3824
    %3826 = vmatmul.f32.gmra.mxu0 %v3731
    %v3827 = vpop.f32.mrf.mxu0
    %v3828 = vadd.f32 0.0, %v3827
    %3829 = vdwg.mxu0
    %v3830 = vmul.f32 %v3783, %v109
    %v3831 = vmul.f32 %v3786, %v110
    %v3832 = vmul.f32 %v3789, %v111
    %v3833 = vmul.f32 %v3792, %v112
    %v3834 = vmul.f32 %v3795, %v113
    %v3835 = vmul.f32 %v3798, %v114
    %v3836 = vmul.f32 %v3801, %v115
    %v3837 = vmul.f32 %v3804, %v116
    %v3838 = vmul.f32 %v3807, %v117
    %v3839 = vmul.f32 %v3810, %v118
    %v3840 = vmul.f32 %v3813, %v119
    %v3841 = vmul.f32 %v3816, %v120
    %v3842 = vmul.f32 %v3819, %v121
    %v3843 = vmul.f32 %v3822, %v122
    %v3844 = vmul.f32 %v3825, %v123
    %v3845 = vmul.f32 %v3828, %v124
    %vm3846 = vcmask 179200
    %3847 = vst.msk [vmem:[#allocation10] sm:$0xff] %vm3846, %v3830
    %3848 = vst.msk [vmem:[#allocation10 + $0x8] sm:$0xff] %vm3846, %v3831
    %3849 = vst.msk [vmem:[#allocation10 + $0x10] sm:$0xff] %vm3846, %v3832
    %3850 = vst.msk [vmem:[#allocation10 + $0x18] sm:$0xff] %vm3846, %v3833
    %3851 = vst.msk [vmem:[#allocation10 + $0x20] sm:$0xff] %vm3846, %v3834
    %3852 = vst.msk [vmem:[#allocation10 + $0x28] sm:$0xff] %vm3846, %v3835
    %3853 = vst.msk [vmem:[#allocation10 + $0x30] sm:$0xff] %vm3846, %v3836
    %3854 = vst.msk [vmem:[#allocation10 + $0x38] sm:$0xff] %vm3846, %v3837
    %3855 = vst.msk [vmem:[#allocation10 + $0x40] sm:$0xff] %vm3846, %v3838
    %3856 = vst.msk [vmem:[#allocation10 + $0x48] sm:$0xff] %vm3846, %v3839
    %3857 = vst.msk [vmem:[#allocation10 + $0x50] sm:$0xff] %vm3846, %v3840
    %3858 = vst.msk [vmem:[#allocation10 + $0x58] sm:$0xff] %vm3846, %v3841
    %3859 = vst.msk [vmem:[#allocation10 + $0x60] sm:$0xff] %vm3846, %v3842
    %3860 = vst.msk [vmem:[#allocation10 + $0x68] sm:$0xff] %vm3846, %v3843
    %3861 = vst.msk [vmem:[#allocation10 + $0x70] sm:$0xff] %vm3846, %v3844
    %3862 = vst.msk [vmem:[#allocation10 + $0x78] sm:$0xff] %vm3846, %v3845
    %3863 = vst [vmem:[%s125 + $0x1] sm:$0xff] %v3830
    %3864 = vst [vmem:[%s125 + $0x11] sm:$0xff] %v3831
    %3865 = vst [vmem:[%s125 + $0x21] sm:$0xff] %v3832
    %3866 = vst [vmem:[%s125 + $0x31] sm:$0xff] %v3833
    %3867 = vst [vmem:[%s125 + $0x41] sm:$0xff] %v3834
    %3868 = vst [vmem:[%s125 + $0x51] sm:$0xff] %v3835
    %3869 = vst [vmem:[%s125 + $0x61] sm:$0xff] %v3836
    %3870 = vst [vmem:[%s125 + $0x71] sm:$0xff] %v3837
    %3871 = vst [vmem:[%s125 + $0xa1] sm:$0xff] %v3838
    %3872 = vst [vmem:[%s125 + $0xb1] sm:$0xff] %v3839
    %3873 = vst [vmem:[%s125 + $0xc1] sm:$0xff] %v3840
    %3874 = vst [vmem:[%s125 + $0xd1] sm:$0xff] %v3841
    %3875 = vst [vmem:[%s125 + $0xe1] sm:$0xff] %v3842
    %3876 = vst [vmem:[%s125 + $0xf1] sm:$0xff] %v3843
    %3877 = vst [vmem:[%s125 + $0x101] sm:$0xff] %v3844
    %3878 = vst [vmem:[%s125 + $0x111] sm:$0xff] %v3845
    %v3879 = vld [vmem:[#allocation2] sm:$0xff]
    %v3880 = vld [vmem:[#allocation2 + $0x10] sm:$0xff]
    %v3881 = vld [vmem:[#allocation2 + $0x20] sm:$0xff]
    %v3882 = vld [vmem:[#allocation2 + $0x30] sm:$0xff]
    %v3883 = vld [vmem:[#allocation2 + $0x40] sm:$0xff]
    %v3884 = vld [vmem:[#allocation2 + $0x50] sm:$0xff]
    %v3885 = vld [vmem:[#allocation2 + $0x60] sm:$0xff]
    %v3886 = vld [vmem:[#allocation2 + $0x70] sm:$0xff]
    %v3887 = vld [vmem:[#allocation2 + $0xa0] sm:$0xff]
    %v3888 = vld [vmem:[#allocation2 + $0xb0] sm:$0xff]
    %v3889 = vld [vmem:[#allocation2 + $0xc0] sm:$0xff]
    %v3890 = vld [vmem:[#allocation2 + $0xd0] sm:$0xff]
    %v3891 = vld [vmem:[#allocation2 + $0xe0] sm:$0xff]
    %v3892 = vld [vmem:[#allocation2 + $0xf0] sm:$0xff]
    %v3893 = vld [vmem:[#allocation2 + $0x100] sm:$0xff]
    %v3894 = vld [vmem:[#allocation2 + $0x110] sm:$0xff]
    %s3895 = scalar_lea.vmem [#allocation3], 3456
    %v3896 = vld [vmem:[%s3895] sm:$0xff]
    %v3897 = vld [vmem:[%s3895 + $0x8] sm:$0xff]
    %v3898 = vld [vmem:[%s3895 + $0x10] sm:$0xff]
    %v3899 = vld [vmem:[%s3895 + $0x18] sm:$0xff]
    %v3900 = vld [vmem:[%s3895 + $0x20] sm:$0xff]
    %v3901 = vld [vmem:[%s3895 + $0x28] sm:$0xff]
    %v3902 = vld [vmem:[%s3895 + $0x30] sm:$0xff]
    %v3903 = vld [vmem:[%s3895 + $0x38] sm:$0xff]
    %v3904 = vld [vmem:[%s3895 + $0x40] sm:$0xff]
    %v3905 = vld [vmem:[%s3895 + $0x48] sm:$0xff]
    %v3906 = vld [vmem:[%s3895 + $0x50] sm:$0xff]
    %v3907 = vld [vmem:[%s3895 + $0x58] sm:$0xff]
    %v3908 = vld [vmem:[%s3895 + $0x60] sm:$0xff]
    %v3909 = vld [vmem:[%s3895 + $0x68] sm:$0xff]
    %v3910 = vld [vmem:[%s3895 + $0x70] sm:$0xff]
    %v3911 = vld [vmem:[%s3895 + $0x78] sm:$0xff]
    %v3912 = vld [vmem:[#allocation2 + $0x1] sm:$0xff]
    %v3913 = vld [vmem:[#allocation2 + $0x11] sm:$0xff]
    %v3914 = vld [vmem:[#allocation2 + $0x21] sm:$0xff]
    %v3915 = vld [vmem:[#allocation2 + $0x31] sm:$0xff]
    %v3916 = vld [vmem:[#allocation2 + $0x41] sm:$0xff]
    %v3917 = vld [vmem:[#allocation2 + $0x51] sm:$0xff]
    %v3918 = vld [vmem:[#allocation2 + $0x61] sm:$0xff]
    %v3919 = vld [vmem:[#allocation2 + $0x71] sm:$0xff]
    %v3920 = vld [vmem:[#allocation2 + $0xa1] sm:$0xff]
    %v3921 = vld [vmem:[#allocation2 + $0xb1] sm:$0xff]
    %v3922 = vld [vmem:[#allocation2 + $0xc1] sm:$0xff]
    %v3923 = vld [vmem:[#allocation2 + $0xd1] sm:$0xff]
    %v3924 = vld [vmem:[#allocation2 + $0xe1] sm:$0xff]
    %v3925 = vld [vmem:[#allocation2 + $0xf1] sm:$0xff]
    %v3926 = vld [vmem:[#allocation2 + $0x101] sm:$0xff]
    %v3927 = vld [vmem:[#allocation2 + $0x111] sm:$0xff]
    %s3928 = scalar_lea.vmem [#allocation3], 3584
    %v3929 = vld [vmem:[%s3928] sm:$0xff]
    %v3930 = vld [vmem:[%s3928 + $0x8] sm:$0xff]
    %v3931 = vld [vmem:[%s3928 + $0x10] sm:$0xff]
    %v3932 = vld [vmem:[%s3928 + $0x18] sm:$0xff]
    %v3933 = vld [vmem:[%s3928 + $0x20] sm:$0xff]
    %v3934 = vld [vmem:[%s3928 + $0x28] sm:$0xff]
    %v3935 = vld [vmem:[%s3928 + $0x30] sm:$0xff]
    %v3936 = vld [vmem:[%s3928 + $0x38] sm:$0xff]
    %v3937 = vld [vmem:[%s3928 + $0x40] sm:$0xff]
    %v3938 = vld [vmem:[%s3928 + $0x48] sm:$0xff]
    %v3939 = vld [vmem:[%s3928 + $0x50] sm:$0xff]
    %v3940 = vld [vmem:[%s3928 + $0x58] sm:$0xff]
    %v3941 = vld [vmem:[%s3928 + $0x60] sm:$0xff]
    %v3942 = vld [vmem:[%s3928 + $0x68] sm:$0xff]
    %v3943 = vld [vmem:[%s3928 + $0x70] sm:$0xff]
    %v3944 = vld [vmem:[%s3928 + $0x78] sm:$0xff]
    %3945 = vmatpush.msra.mxu0 %v3944
    %3946 = vmatpush.msra.mxu0 %v3943
    %3947 = vmatpush.msra.mxu0 %v3942
    %3948 = vmatpush.msra.mxu0 %v3941
    %3949 = vmatpush.msra.mxu0 %v3940
    %3950 = vmatpush.msra.mxu0 %v3939
    %3951 = vmatpush.msra.mxu0 %v3938
    %3952 = vmatpush.msra.mxu0 %v3937
    %3953 = vmatpush.msra.mxu0 %v3936
    %3954 = vmatpush.msra.mxu0 %v3935
    %3955 = vmatpush.msra.mxu0 %v3934
    %3956 = vmatpush.msra.mxu0 %v3933
    %3957 = vmatpush.msra.mxu0 %v3932
    %3958 = vmatpush.msra.mxu0 %v3931
    %3959 = vmatpush.msra.mxu0 %v3930
    %3960 = vmatpush.msra.mxu0 %v3929
    %3961 = vmatmul.f32.gmra.mxu0 %v3912
    %v3962 = vpop.f32.mrf.mxu0
    %v3963 = vadd.f32 0.0, %v3962
    %3964 = vmatmul.f32.gmra.mxu0 %v3913
    %v3965 = vpop.f32.mrf.mxu0
    %v3966 = vadd.f32 0.0, %v3965
    %3967 = vmatmul.f32.gmra.mxu0 %v3914
    %v3968 = vpop.f32.mrf.mxu0
    %v3969 = vadd.f32 0.0, %v3968
    %3970 = vmatmul.f32.gmra.mxu0 %v3915
    %v3971 = vpop.f32.mrf.mxu0
    %v3972 = vadd.f32 0.0, %v3971
    %3973 = vmatmul.f32.gmra.mxu0 %v3916
    %v3974 = vpop.f32.mrf.mxu0
    %v3975 = vadd.f32 0.0, %v3974
    %3976 = vmatmul.f32.gmra.mxu0 %v3917
    %v3977 = vpop.f32.mrf.mxu0
    %v3978 = vadd.f32 0.0, %v3977
    %3979 = vmatmul.f32.gmra.mxu0 %v3918
    %v3980 = vpop.f32.mrf.mxu0
    %v3981 = vadd.f32 0.0, %v3980
    %3982 = vmatmul.f32.gmra.mxu0 %v3919
    %v3983 = vpop.f32.mrf.mxu0
    %v3984 = vadd.f32 0.0, %v3983
    %3985 = vmatmul.f32.gmra.mxu0 %v3920
    %v3986 = vpop.f32.mrf.mxu0
    %v3987 = vadd.f32 0.0, %v3986
    %3988 = vmatmul.f32.gmra.mxu0 %v3921
    %v3989 = vpop.f32.mrf.mxu0
    %v3990 = vadd.f32 0.0, %v3989
    %3991 = vmatmul.f32.gmra.mxu0 %v3922
    %v3992 = vpop.f32.mrf.mxu0
    %v3993 = vadd.f32 0.0, %v3992
    %3994 = vmatmul.f32.gmra.mxu0 %v3923
    %v3995 = vpop.f32.mrf.mxu0
    %v3996 = vadd.f32 0.0, %v3995
    %3997 = vmatmul.f32.gmra.mxu0 %v3924
    %v3998 = vpop.f32.mrf.mxu0
    %v3999 = vadd.f32 0.0, %v3998
    %4000 = vmatmul.f32.gmra.mxu0 %v3925
    %v4001 = vpop.f32.mrf.mxu0
    %v4002 = vadd.f32 0.0, %v4001
    %4003 = vmatmul.f32.gmra.mxu0 %v3926
    %v4004 = vpop.f32.mrf.mxu0
    %v4005 = vadd.f32 0.0, %v4004
    %4006 = vmatmul.f32.gmra.mxu0 %v3927
    %v4007 = vpop.f32.mrf.mxu0
    %v4008 = vadd.f32 0.0, %v4007
    %4009 = vdwg.mxu0
    %4010 = vmatpush.msra.mxu0 %v3911
    %4011 = vmatpush.msra.mxu0 %v3910
    %4012 = vmatpush.msra.mxu0 %v3909
    %4013 = vmatpush.msra.mxu0 %v3908
    %4014 = vmatpush.msra.mxu0 %v3907
    %4015 = vmatpush.msra.mxu0 %v3906
    %4016 = vmatpush.msra.mxu0 %v3905
    %4017 = vmatpush.msra.mxu0 %v3904
    %4018 = vmatpush.msra.mxu0 %v3903
    %4019 = vmatpush.msra.mxu0 %v3902
    %4020 = vmatpush.msra.mxu0 %v3901
    %4021 = vmatpush.msra.mxu0 %v3900
    %4022 = vmatpush.msra.mxu0 %v3899
    %4023 = vmatpush.msra.mxu0 %v3898
    %4024 = vmatpush.msra.mxu0 %v3897
    %4025 = vmatpush.msra.mxu0 %v3896
    %4026 = vmatmul.f32.gmra.mxu0 %v3879
    %v4027 = vpop.f32.mrf.mxu0
    %v4028 = vadd.f32 %v3963, %v4027
    %4029 = vmatmul.f32.gmra.mxu0 %v3880
    %v4030 = vpop.f32.mrf.mxu0
    %v4031 = vadd.f32 %v3966, %v4030
    %4032 = vmatmul.f32.gmra.mxu0 %v3881
    %v4033 = vpop.f32.mrf.mxu0
    %v4034 = vadd.f32 %v3969, %v4033
    %4035 = vmatmul.f32.gmra.mxu0 %v3882
    %v4036 = vpop.f32.mrf.mxu0
    %v4037 = vadd.f32 %v3972, %v4036
    %4038 = vmatmul.f32.gmra.mxu0 %v3883
    %v4039 = vpop.f32.mrf.mxu0
    %v4040 = vadd.f32 %v3975, %v4039
    %4041 = vmatmul.f32.gmra.mxu0 %v3884
    %v4042 = vpop.f32.mrf.mxu0
    %v4043 = vadd.f32 %v3978, %v4042
    %4044 = vmatmul.f32.gmra.mxu0 %v3885
    %v4045 = vpop.f32.mrf.mxu0
    %v4046 = vadd.f32 %v3981, %v4045
    %4047 = vmatmul.f32.gmra.mxu0 %v3886
    %v4048 = vpop.f32.mrf.mxu0
    %v4049 = vadd.f32 %v3984, %v4048
    %4050 = vmatmul.f32.gmra.mxu0 %v3887
    %v4051 = vpop.f32.mrf.mxu0
    %v4052 = vadd.f32 %v3987, %v4051
    %4053 = vmatmul.f32.gmra.mxu0 %v3888
    %v4054 = vpop.f32.mrf.mxu0
    %v4055 = vadd.f32 %v3990, %v4054
    %4056 = vmatmul.f32.gmra.mxu0 %v3889
    %v4057 = vpop.f32.mrf.mxu0
    %v4058 = vadd.f32 %v3993, %v4057
    %4059 = vmatmul.f32.gmra.mxu0 %v3890
    %v4060 = vpop.f32.mrf.mxu0
    %v4061 = vadd.f32 %v3996, %v4060
    %4062 = vmatmul.f32.gmra.mxu0 %v3891
    %v4063 = vpop.f32.mrf.mxu0
    %v4064 = vadd.f32 %v3999, %v4063
    %4065 = vmatmul.f32.gmra.mxu0 %v3892
    %v4066 = vpop.f32.mrf.mxu0
    %v4067 = vadd.f32 %v4002, %v4066
    %4068 = vmatmul.f32.gmra.mxu0 %v3893
    %v4069 = vpop.f32.mrf.mxu0
    %v4070 = vadd.f32 %v4005, %v4069
    %4071 = vmatmul.f32.gmra.mxu0 %v3894
    %v4072 = vpop.f32.mrf.mxu0
    %v4073 = vadd.f32 %v4008, %v4072
    %4074 = vdwg.mxu0
    %v4075 = vld [vmem:[#allocation2 + $0x2] sm:$0xff]
    %v4076 = vld [vmem:[#allocation2 + $0x12] sm:$0xff]
    %v4077 = vld [vmem:[#allocation2 + $0x22] sm:$0xff]
    %v4078 = vld [vmem:[#allocation2 + $0x32] sm:$0xff]
    %v4079 = vld [vmem:[#allocation2 + $0x42] sm:$0xff]
    %v4080 = vld [vmem:[#allocation2 + $0x52] sm:$0xff]
    %v4081 = vld [vmem:[#allocation2 + $0x62] sm:$0xff]
    %v4082 = vld [vmem:[#allocation2 + $0x72] sm:$0xff]
    %v4083 = vld [vmem:[#allocation2 + $0xa2] sm:$0xff]
    %v4084 = vld [vmem:[#allocation2 + $0xb2] sm:$0xff]
    %v4085 = vld [vmem:[#allocation2 + $0xc2] sm:$0xff]
    %v4086 = vld [vmem:[#allocation2 + $0xd2] sm:$0xff]
    %v4087 = vld [vmem:[#allocation2 + $0xe2] sm:$0xff]
    %v4088 = vld [vmem:[#allocation2 + $0xf2] sm:$0xff]
    %v4089 = vld [vmem:[#allocation2 + $0x102] sm:$0xff]
    %v4090 = vld [vmem:[#allocation2 + $0x112] sm:$0xff]
    %s4091 = scalar_lea.vmem [#allocation3], 3712
    %v4092 = vld [vmem:[%s4091] sm:$0xff]
    %v4093 = vld [vmem:[%s4091 + $0x8] sm:$0xff]
    %v4094 = vld [vmem:[%s4091 + $0x10] sm:$0xff]
    %v4095 = vld [vmem:[%s4091 + $0x18] sm:$0xff]
    %v4096 = vld [vmem:[%s4091 + $0x20] sm:$0xff]
    %v4097 = vld [vmem:[%s4091 + $0x28] sm:$0xff]
    %v4098 = vld [vmem:[%s4091 + $0x30] sm:$0xff]
    %v4099 = vld [vmem:[%s4091 + $0x38] sm:$0xff]
    %v4100 = vld [vmem:[%s4091 + $0x40] sm:$0xff]
    %v4101 = vld [vmem:[%s4091 + $0x48] sm:$0xff]
    %v4102 = vld [vmem:[%s4091 + $0x50] sm:$0xff]
    %v4103 = vld [vmem:[%s4091 + $0x58] sm:$0xff]
    %v4104 = vld [vmem:[%s4091 + $0x60] sm:$0xff]
    %v4105 = vld [vmem:[%s4091 + $0x68] sm:$0xff]
    %v4106 = vld [vmem:[%s4091 + $0x70] sm:$0xff]
    %v4107 = vld [vmem:[%s4091 + $0x78] sm:$0xff]
    %4108 = vmatpush.msra.mxu0 %v4107
    %4109 = vmatpush.msra.mxu0 %v4106
    %4110 = vmatpush.msra.mxu0 %v4105
    %4111 = vmatpush.msra.mxu0 %v4104
    %4112 = vmatpush.msra.mxu0 %v4103
    %4113 = vmatpush.msra.mxu0 %v4102
    %4114 = vmatpush.msra.mxu0 %v4101
    %4115 = vmatpush.msra.mxu0 %v4100
    %4116 = vmatpush.msra.mxu0 %v4099
    %4117 = vmatpush.msra.mxu0 %v4098
    %4118 = vmatpush.msra.mxu0 %v4097
    %4119 = vmatpush.msra.mxu0 %v4096
    %4120 = vmatpush.msra.mxu0 %v4095
    %4121 = vmatpush.msra.mxu0 %v4094
    %4122 = vmatpush.msra.mxu0 %v4093
    %4123 = vmatpush.msra.mxu0 %v4092
    %4124 = vmatmul.f32.gmra.mxu0 %v4075
    %v4125 = vpop.f32.mrf.mxu0
    %v4126 = vadd.f32 0.0, %v4125
    %4127 = vmatmul.f32.gmra.mxu0 %v4076
    %v4128 = vpop.f32.mrf.mxu0
    %v4129 = vadd.f32 0.0, %v4128
    %4130 = vmatmul.f32.gmra.mxu0 %v4077
    %v4131 = vpop.f32.mrf.mxu0
    %v4132 = vadd.f32 0.0, %v4131
    %4133 = vmatmul.f32.gmra.mxu0 %v4078
    %v4134 = vpop.f32.mrf.mxu0
    %v4135 = vadd.f32 0.0, %v4134
    %4136 = vmatmul.f32.gmra.mxu0 %v4079
    %v4137 = vpop.f32.mrf.mxu0
    %v4138 = vadd.f32 0.0, %v4137
    %4139 = vmatmul.f32.gmra.mxu0 %v4080
    %v4140 = vpop.f32.mrf.mxu0
    %v4141 = vadd.f32 0.0, %v4140
    %4142 = vmatmul.f32.gmra.mxu0 %v4081
    %v4143 = vpop.f32.mrf.mxu0
    %v4144 = vadd.f32 0.0, %v4143
    %4145 = vmatmul.f32.gmra.mxu0 %v4082
    %v4146 = vpop.f32.mrf.mxu0
    %v4147 = vadd.f32 0.0, %v4146
    %4148 = vmatmul.f32.gmra.mxu0 %v4083
    %v4149 = vpop.f32.mrf.mxu0
    %v4150 = vadd.f32 0.0, %v4149
    %4151 = vmatmul.f32.gmra.mxu0 %v4084
    %v4152 = vpop.f32.mrf.mxu0
    %v4153 = vadd.f32 0.0, %v4152
    %4154 = vmatmul.f32.gmra.mxu0 %v4085
    %v4155 = vpop.f32.mrf.mxu0
    %v4156 = vadd.f32 0.0, %v4155
    %4157 = vmatmul.f32.gmra.mxu0 %v4086
    %v4158 = vpop.f32.mrf.mxu0
    %v4159 = vadd.f32 0.0, %v4158
    %4160 = vmatmul.f32.gmra.mxu0 %v4087
    %v4161 = vpop.f32.mrf.mxu0
    %v4162 = vadd.f32 0.0, %v4161
    %4163 = vmatmul.f32.gmra.mxu0 %v4088
    %v4164 = vpop.f32.mrf.mxu0
    %v4165 = vadd.f32 0.0, %v4164
    %4166 = vmatmul.f32.gmra.mxu0 %v4089
    %v4167 = vpop.f32.mrf.mxu0
    %v4168 = vadd.f32 0.0, %v4167
    %4169 = vmatmul.f32.gmra.mxu0 %v4090
    %v4170 = vpop.f32.mrf.mxu0
    %v4171 = vadd.f32 0.0, %v4170
    %4172 = vdwg.mxu0
    %v4173 = vadd.f32 %v4028, %v4126
    %v4174 = vadd.f32 %v4031, %v4129
    %v4175 = vadd.f32 %v4034, %v4132
    %v4176 = vadd.f32 %v4037, %v4135
    %v4177 = vadd.f32 %v4040, %v4138
    %v4178 = vadd.f32 %v4043, %v4141
    %v4179 = vadd.f32 %v4046, %v4144
    %v4180 = vadd.f32 %v4049, %v4147
    %v4181 = vadd.f32 %v4052, %v4150
    %v4182 = vadd.f32 %v4055, %v4153
    %v4183 = vadd.f32 %v4058, %v4156
    %v4184 = vadd.f32 %v4061, %v4159
    %v4185 = vadd.f32 %v4064, %v4162
    %v4186 = vadd.f32 %v4067, %v4165
    %v4187 = vadd.f32 %v4070, %v4168
    %v4188 = vadd.f32 %v4073, %v4171
    %v4189 = vld [vmem:[%s125] sm:$0xff]
    %v4190 = vld [vmem:[%s125 + $0x10] sm:$0xff]
    %v4191 = vld [vmem:[%s125 + $0x20] sm:$0xff]
    %v4192 = vld [vmem:[%s125 + $0x30] sm:$0xff]
    %v4193 = vld [vmem:[%s125 + $0x40] sm:$0xff]
    %v4194 = vld [vmem:[%s125 + $0x50] sm:$0xff]
    %v4195 = vld [vmem:[%s125 + $0x60] sm:$0xff]
    %v4196 = vld [vmem:[%s125 + $0x70] sm:$0xff]
    %v4197 = vld [vmem:[%s125 + $0xa0] sm:$0xff]
    %v4198 = vld [vmem:[%s125 + $0xb0] sm:$0xff]
    %v4199 = vld [vmem:[%s125 + $0xc0] sm:$0xff]
    %v4200 = vld [vmem:[%s125 + $0xd0] sm:$0xff]
    %v4201 = vld [vmem:[%s125 + $0xe0] sm:$0xff]
    %v4202 = vld [vmem:[%s125 + $0xf0] sm:$0xff]
    %v4203 = vld [vmem:[%s125 + $0x100] sm:$0xff]
    %v4204 = vld [vmem:[%s125 + $0x110] sm:$0xff]
    %s4205 = scalar_lea.vmem [#allocation3], 3840
    %v4206 = vld [vmem:[%s4205] sm:$0xff]
    %v4207 = vld [vmem:[%s4205 + $0x8] sm:$0xff]
    %v4208 = vld [vmem:[%s4205 + $0x10] sm:$0xff]
    %v4209 = vld [vmem:[%s4205 + $0x18] sm:$0xff]
    %v4210 = vld [vmem:[%s4205 + $0x20] sm:$0xff]
    %v4211 = vld [vmem:[%s4205 + $0x28] sm:$0xff]
    %v4212 = vld [vmem:[%s4205 + $0x30] sm:$0xff]
    %v4213 = vld [vmem:[%s4205 + $0x38] sm:$0xff]
    %v4214 = vld [vmem:[%s4205 + $0x40] sm:$0xff]
    %v4215 = vld [vmem:[%s4205 + $0x48] sm:$0xff]
    %v4216 = vld [vmem:[%s4205 + $0x50] sm:$0xff]
    %v4217 = vld [vmem:[%s4205 + $0x58] sm:$0xff]
    %v4218 = vld [vmem:[%s4205 + $0x60] sm:$0xff]
    %v4219 = vld [vmem:[%s4205 + $0x68] sm:$0xff]
    %v4220 = vld [vmem:[%s4205 + $0x70] sm:$0xff]
    %v4221 = vld [vmem:[%s4205 + $0x78] sm:$0xff]
    %4222 = vmatpush.msra.mxu0 %v4221
    %4223 = vmatpush.msra.mxu0 %v4220
    %4224 = vmatpush.msra.mxu0 %v4219
    %4225 = vmatpush.msra.mxu0 %v4218
    %4226 = vmatpush.msra.mxu0 %v4217
    %4227 = vmatpush.msra.mxu0 %v4216
    %4228 = vmatpush.msra.mxu0 %v4215
    %4229 = vmatpush.msra.mxu0 %v4214
    %4230 = vmatpush.msra.mxu0 %v4213
    %4231 = vmatpush.msra.mxu0 %v4212
    %4232 = vmatpush.msra.mxu0 %v4211
    %4233 = vmatpush.msra.mxu0 %v4210
    %4234 = vmatpush.msra.mxu0 %v4209
    %4235 = vmatpush.msra.mxu0 %v4208
    %4236 = vmatpush.msra.mxu0 %v4207
    %4237 = vmatpush.msra.mxu0 %v4206
    %4238 = vmatmul.f32.gmra.mxu0 %v4189
    %v4239 = vpop.f32.mrf.mxu0
    %v4240 = vadd.f32 0.0, %v4239
    %4241 = vmatmul.f32.gmra.mxu0 %v4190
    %v4242 = vpop.f32.mrf.mxu0
    %v4243 = vadd.f32 0.0, %v4242
    %4244 = vmatmul.f32.gmra.mxu0 %v4191
    %v4245 = vpop.f32.mrf.mxu0
    %v4246 = vadd.f32 0.0, %v4245
    %4247 = vmatmul.f32.gmra.mxu0 %v4192
    %v4248 = vpop.f32.mrf.mxu0
    %v4249 = vadd.f32 0.0, %v4248
    %4250 = vmatmul.f32.gmra.mxu0 %v4193
    %v4251 = vpop.f32.mrf.mxu0
    %v4252 = vadd.f32 0.0, %v4251
    %4253 = vmatmul.f32.gmra.mxu0 %v4194
    %v4254 = vpop.f32.mrf.mxu0
    %v4255 = vadd.f32 0.0, %v4254
    %4256 = vmatmul.f32.gmra.mxu0 %v4195
    %v4257 = vpop.f32.mrf.mxu0
    %v4258 = vadd.f32 0.0, %v4257
    %4259 = vmatmul.f32.gmra.mxu0 %v4196
    %v4260 = vpop.f32.mrf.mxu0
    %v4261 = vadd.f32 0.0, %v4260
    %4262 = vmatmul.f32.gmra.mxu0 %v4197
    %v4263 = vpop.f32.mrf.mxu0
    %v4264 = vadd.f32 0.0, %v4263
    %4265 = vmatmul.f32.gmra.mxu0 %v4198
    %v4266 = vpop.f32.mrf.mxu0
    %v4267 = vadd.f32 0.0, %v4266
    %4268 = vmatmul.f32.gmra.mxu0 %v4199
    %v4269 = vpop.f32.mrf.mxu0
    %v4270 = vadd.f32 0.0, %v4269
    %4271 = vmatmul.f32.gmra.mxu0 %v4200
    %v4272 = vpop.f32.mrf.mxu0
    %v4273 = vadd.f32 0.0, %v4272
    %4274 = vmatmul.f32.gmra.mxu0 %v4201
    %v4275 = vpop.f32.mrf.mxu0
    %v4276 = vadd.f32 0.0, %v4275
    %4277 = vmatmul.f32.gmra.mxu0 %v4202
    %v4278 = vpop.f32.mrf.mxu0
    %v4279 = vadd.f32 0.0, %v4278
    %4280 = vmatmul.f32.gmra.mxu0 %v4203
    %v4281 = vpop.f32.mrf.mxu0
    %v4282 = vadd.f32 0.0, %v4281
    %4283 = vmatmul.f32.gmra.mxu0 %v4204
    %v4284 = vpop.f32.mrf.mxu0
    %v4285 = vadd.f32 0.0, %v4284
    %4286 = vdwg.mxu0
    %v4287 = vadd.f32 %v4173, %v4240
    %v4288 = vadd.f32 %v4174, %v4243
    %v4289 = vadd.f32 %v4175, %v4246
    %v4290 = vadd.f32 %v4176, %v4249
    %v4291 = vadd.f32 %v4177, %v4252
    %v4292 = vadd.f32 %v4178, %v4255
    %v4293 = vadd.f32 %v4179, %v4258
    %v4294 = vadd.f32 %v4180, %v4261
    %v4295 = vadd.f32 %v4181, %v4264
    %v4296 = vadd.f32 %v4182, %v4267
    %v4297 = vadd.f32 %v4183, %v4270
    %v4298 = vadd.f32 %v4184, %v4273
    %v4299 = vadd.f32 %v4185, %v4276
    %v4300 = vadd.f32 %v4186, %v4279
    %v4301 = vadd.f32 %v4187, %v4282
    %v4302 = vadd.f32 %v4188, %v4285
    %v4303 = vld [vmem:[%s125 + $0x1] sm:$0xff]
    %v4304 = vld [vmem:[%s125 + $0x11] sm:$0xff]
    %v4305 = vld [vmem:[%s125 + $0x21] sm:$0xff]
    %v4306 = vld [vmem:[%s125 + $0x31] sm:$0xff]
    %v4307 = vld [vmem:[%s125 + $0x41] sm:$0xff]
    %v4308 = vld [vmem:[%s125 + $0x51] sm:$0xff]
    %v4309 = vld [vmem:[%s125 + $0x61] sm:$0xff]
    %v4310 = vld [vmem:[%s125 + $0x71] sm:$0xff]
    %v4311 = vld [vmem:[%s125 + $0xa1] sm:$0xff]
    %v4312 = vld [vmem:[%s125 + $0xb1] sm:$0xff]
    %v4313 = vld [vmem:[%s125 + $0xc1] sm:$0xff]
    %v4314 = vld [vmem:[%s125 + $0xd1] sm:$0xff]
    %v4315 = vld [vmem:[%s125 + $0xe1] sm:$0xff]
    %v4316 = vld [vmem:[%s125 + $0xf1] sm:$0xff]
    %v4317 = vld [vmem:[%s125 + $0x101] sm:$0xff]
    %v4318 = vld [vmem:[%s125 + $0x111] sm:$0xff]
    %s4319 = scalar_lea.vmem [#allocation3], 3968
    %v4320 = vld [vmem:[%s4319] sm:$0xff]
    %v4321 = vld [vmem:[%s4319 + $0x8] sm:$0xff]
    %v4322 = vld [vmem:[%s4319 + $0x10] sm:$0xff]
    %v4323 = vld [vmem:[%s4319 + $0x18] sm:$0xff]
    %v4324 = vld [vmem:[%s4319 + $0x20] sm:$0xff]
    %v4325 = vld [vmem:[%s4319 + $0x28] sm:$0xff]
    %v4326 = vld [vmem:[%s4319 + $0x30] sm:$0xff]
    %v4327 = vld [vmem:[%s4319 + $0x38] sm:$0xff]
    %v4328 = vld [vmem:[%s4319 + $0x40] sm:$0xff]
    %v4329 = vld [vmem:[%s4319 + $0x48] sm:$0xff]
    %v4330 = vld [vmem:[%s4319 + $0x50] sm:$0xff]
    %v4331 = vld [vmem:[%s4319 + $0x58] sm:$0xff]
    %v4332 = vld [vmem:[%s4319 + $0x60] sm:$0xff]
    %v4333 = vld [vmem:[%s4319 + $0x68] sm:$0xff]
    %v4334 = vld [vmem:[%s4319 + $0x70] sm:$0xff]
    %v4335 = vld [vmem:[%s4319 + $0x78] sm:$0xff]
    %4336 = vmatpush.msra.mxu0 %v4335
    %4337 = vmatpush.msra.mxu0 %v4334
    %4338 = vmatpush.msra.mxu0 %v4333
    %4339 = vmatpush.msra.mxu0 %v4332
    %4340 = vmatpush.msra.mxu0 %v4331
    %4341 = vmatpush.msra.mxu0 %v4330
    %4342 = vmatpush.msra.mxu0 %v4329
    %4343 = vmatpush.msra.mxu0 %v4328
    %4344 = vmatpush.msra.mxu0 %v4327
    %4345 = vmatpush.msra.mxu0 %v4326
    %4346 = vmatpush.msra.mxu0 %v4325
    %4347 = vmatpush.msra.mxu0 %v4324
    %4348 = vmatpush.msra.mxu0 %v4323
    %4349 = vmatpush.msra.mxu0 %v4322
    %4350 = vmatpush.msra.mxu0 %v4321
    %4351 = vmatpush.msra.mxu0 %v4320
    %4352 = vmatmul.f32.gmra.mxu0 %v4303
    %v4353 = vpop.f32.mrf.mxu0
    %v4354 = vadd.f32 0.0, %v4353
    %4355 = vmatmul.f32.gmra.mxu0 %v4304
    %v4356 = vpop.f32.mrf.mxu0
    %v4357 = vadd.f32 0.0, %v4356
    %4358 = vmatmul.f32.gmra.mxu0 %v4305
    %v4359 = vpop.f32.mrf.mxu0
    %v4360 = vadd.f32 0.0, %v4359
    %4361 = vmatmul.f32.gmra.mxu0 %v4306
    %v4362 = vpop.f32.mrf.mxu0
    %v4363 = vadd.f32 0.0, %v4362
    %4364 = vmatmul.f32.gmra.mxu0 %v4307
    %v4365 = vpop.f32.mrf.mxu0
    %v4366 = vadd.f32 0.0, %v4365
    %4367 = vmatmul.f32.gmra.mxu0 %v4308
    %v4368 = vpop.f32.mrf.mxu0
    %v4369 = vadd.f32 0.0, %v4368
    %4370 = vmatmul.f32.gmra.mxu0 %v4309
    %v4371 = vpop.f32.mrf.mxu0
    %v4372 = vadd.f32 0.0, %v4371
    %4373 = vmatmul.f32.gmra.mxu0 %v4310
    %v4374 = vpop.f32.mrf.mxu0
    %v4375 = vadd.f32 0.0, %v4374
    %4376 = vmatmul.f32.gmra.mxu0 %v4311
    %v4377 = vpop.f32.mrf.mxu0
    %v4378 = vadd.f32 0.0, %v4377
    %4379 = vmatmul.f32.gmra.mxu0 %v4312
    %v4380 = vpop.f32.mrf.mxu0
    %v4381 = vadd.f32 0.0, %v4380
    %4382 = vmatmul.f32.gmra.mxu0 %v4313
    %v4383 = vpop.f32.mrf.mxu0
    %v4384 = vadd.f32 0.0, %v4383
    %4385 = vmatmul.f32.gmra.mxu0 %v4314
    %v4386 = vpop.f32.mrf.mxu0
    %v4387 = vadd.f32 0.0, %v4386
    %4388 = vmatmul.f32.gmra.mxu0 %v4315
    %v4389 = vpop.f32.mrf.mxu0
    %v4390 = vadd.f32 0.0, %v4389
    %4391 = vmatmul.f32.gmra.mxu0 %v4316
    %v4392 = vpop.f32.mrf.mxu0
    %v4393 = vadd.f32 0.0, %v4392
    %4394 = vmatmul.f32.gmra.mxu0 %v4317
    %v4395 = vpop.f32.mrf.mxu0
    %v4396 = vadd.f32 0.0, %v4395
    %4397 = vmatmul.f32.gmra.mxu0 %v4318
    %v4398 = vpop.f32.mrf.mxu0
    %v4399 = vadd.f32 0.0, %v4398
    %4400 = vdwg.mxu0
    %v4401 = vadd.f32 %v4287, %v4354
    %v4402 = vadd.f32 %v4288, %v4357
    %v4403 = vadd.f32 %v4289, %v4360
    %v4404 = vadd.f32 %v4290, %v4363
    %v4405 = vadd.f32 %v4291, %v4366
    %v4406 = vadd.f32 %v4292, %v4369
    %v4407 = vadd.f32 %v4293, %v4372
    %v4408 = vadd.f32 %v4294, %v4375
    %v4409 = vadd.f32 %v4295, %v4378
    %v4410 = vadd.f32 %v4296, %v4381
    %v4411 = vadd.f32 %v4297, %v4384
    %v4412 = vadd.f32 %v4298, %v4387
    %v4413 = vadd.f32 %v4299, %v4390
    %v4414 = vadd.f32 %v4300, %v4393
    %v4415 = vadd.f32 %v4301, %v4396
    %v4416 = vadd.f32 %v4302, %v4399
    %v4417 = vld [vmem:[%s125 + $0x2] sm:$0xff]
    %v4418 = vld [vmem:[%s125 + $0x12] sm:$0xff]
    %v4419 = vld [vmem:[%s125 + $0x22] sm:$0xff]
    %v4420 = vld [vmem:[%s125 + $0x32] sm:$0xff]
    %v4421 = vld [vmem:[%s125 + $0x42] sm:$0xff]
    %v4422 = vld [vmem:[%s125 + $0x52] sm:$0xff]
    %v4423 = vld [vmem:[%s125 + $0x62] sm:$0xff]
    %v4424 = vld [vmem:[%s125 + $0x72] sm:$0xff]
    %v4425 = vld [vmem:[%s125 + $0xa2] sm:$0xff]
    %v4426 = vld [vmem:[%s125 + $0xb2] sm:$0xff]
    %v4427 = vld [vmem:[%s125 + $0xc2] sm:$0xff]
    %v4428 = vld [vmem:[%s125 + $0xd2] sm:$0xff]
    %v4429 = vld [vmem:[%s125 + $0xe2] sm:$0xff]
    %v4430 = vld [vmem:[%s125 + $0xf2] sm:$0xff]
    %v4431 = vld [vmem:[%s125 + $0x102] sm:$0xff]
    %v4432 = vld [vmem:[%s125 + $0x112] sm:$0xff]
    %s4433 = scalar_lea.vmem [#allocation3], 4096
    %v4434 = vld [vmem:[%s4433] sm:$0xff]
    %v4435 = vld [vmem:[%s4433 + $0x8] sm:$0xff]
    %v4436 = vld [vmem:[%s4433 + $0x10] sm:$0xff]
    %v4437 = vld [vmem:[%s4433 + $0x18] sm:$0xff]
    %v4438 = vld [vmem:[%s4433 + $0x20] sm:$0xff]
    %v4439 = vld [vmem:[%s4433 + $0x28] sm:$0xff]
    %v4440 = vld [vmem:[%s4433 + $0x30] sm:$0xff]
    %v4441 = vld [vmem:[%s4433 + $0x38] sm:$0xff]
    %v4442 = vld [vmem:[%s4433 + $0x40] sm:$0xff]
    %v4443 = vld [vmem:[%s4433 + $0x48] sm:$0xff]
    %v4444 = vld [vmem:[%s4433 + $0x50] sm:$0xff]
    %v4445 = vld [vmem:[%s4433 + $0x58] sm:$0xff]
    %v4446 = vld [vmem:[%s4433 + $0x60] sm:$0xff]
    %v4447 = vld [vmem:[%s4433 + $0x68] sm:$0xff]
    %v4448 = vld [vmem:[%s4433 + $0x70] sm:$0xff]
    %v4449 = vld [vmem:[%s4433 + $0x78] sm:$0xff]
    %4450 = vmatpush.msra.mxu0 %v4449
    %4451 = vmatpush.msra.mxu0 %v4448
    %4452 = vmatpush.msra.mxu0 %v4447
    %4453 = vmatpush.msra.mxu0 %v4446
    %4454 = vmatpush.msra.mxu0 %v4445
    %4455 = vmatpush.msra.mxu0 %v4444
    %4456 = vmatpush.msra.mxu0 %v4443
    %4457 = vmatpush.msra.mxu0 %v4442
    %4458 = vmatpush.msra.mxu0 %v4441
    %4459 = vmatpush.msra.mxu0 %v4440
    %4460 = vmatpush.msra.mxu0 %v4439
    %4461 = vmatpush.msra.mxu0 %v4438
    %4462 = vmatpush.msra.mxu0 %v4437
    %4463 = vmatpush.msra.mxu0 %v4436
    %4464 = vmatpush.msra.mxu0 %v4435
    %4465 = vmatpush.msra.mxu0 %v4434
    %4466 = vmatmul.f32.gmra.mxu0 %v4417
    %v4467 = vpop.f32.mrf.mxu0
    %v4468 = vadd.f32 0.0, %v4467
    %4469 = vmatmul.f32.gmra.mxu0 %v4418
    %v4470 = vpop.f32.mrf.mxu0
    %v4471 = vadd.f32 0.0, %v4470
    %4472 = vmatmul.f32.gmra.mxu0 %v4419
    %v4473 = vpop.f32.mrf.mxu0
    %v4474 = vadd.f32 0.0, %v4473
    %4475 = vmatmul.f32.gmra.mxu0 %v4420
    %v4476 = vpop.f32.mrf.mxu0
    %v4477 = vadd.f32 0.0, %v4476
    %4478 = vmatmul.f32.gmra.mxu0 %v4421
    %v4479 = vpop.f32.mrf.mxu0
    %v4480 = vadd.f32 0.0, %v4479
    %4481 = vmatmul.f32.gmra.mxu0 %v4422
    %v4482 = vpop.f32.mrf.mxu0
    %v4483 = vadd.f32 0.0, %v4482
    %4484 = vmatmul.f32.gmra.mxu0 %v4423
    %v4485 = vpop.f32.mrf.mxu0
    %v4486 = vadd.f32 0.0, %v4485
    %4487 = vmatmul.f32.gmra.mxu0 %v4424
    %v4488 = vpop.f32.mrf.mxu0
    %v4489 = vadd.f32 0.0, %v4488
    %4490 = vmatmul.f32.gmra.mxu0 %v4425
    %v4491 = vpop.f32.mrf.mxu0
    %v4492 = vadd.f32 0.0, %v4491
    %4493 = vmatmul.f32.gmra.mxu0 %v4426
    %v4494 = vpop.f32.mrf.mxu0
    %v4495 = vadd.f32 0.0, %v4494
    %4496 = vmatmul.f32.gmra.mxu0 %v4427
    %v4497 = vpop.f32.mrf.mxu0
    %v4498 = vadd.f32 0.0, %v4497
    %4499 = vmatmul.f32.gmra.mxu0 %v4428
    %v4500 = vpop.f32.mrf.mxu0
    %v4501 = vadd.f32 0.0, %v4500
    %4502 = vmatmul.f32.gmra.mxu0 %v4429
    %v4503 = vpop.f32.mrf.mxu0
    %v4504 = vadd.f32 0.0, %v4503
    %4505 = vmatmul.f32.gmra.mxu0 %v4430
    %v4506 = vpop.f32.mrf.mxu0
    %v4507 = vadd.f32 0.0, %v4506
    %4508 = vmatmul.f32.gmra.mxu0 %v4431
    %v4509 = vpop.f32.mrf.mxu0
    %v4510 = vadd.f32 0.0, %v4509
    %4511 = vmatmul.f32.gmra.mxu0 %v4432
    %v4512 = vpop.f32.mrf.mxu0
    %v4513 = vadd.f32 0.0, %v4512
    %4514 = vdwg.mxu0
    %v4515 = vadd.f32 %v4401, %v4468
    %v4516 = vadd.f32 %v4402, %v4471
    %v4517 = vadd.f32 %v4403, %v4474
    %v4518 = vadd.f32 %v4404, %v4477
    %v4519 = vadd.f32 %v4405, %v4480
    %v4520 = vadd.f32 %v4406, %v4483
    %v4521 = vadd.f32 %v4407, %v4486
    %v4522 = vadd.f32 %v4408, %v4489
    %v4523 = vadd.f32 %v4409, %v4492
    %v4524 = vadd.f32 %v4410, %v4495
    %v4525 = vadd.f32 %v4411, %v4498
    %v4526 = vadd.f32 %v4412, %v4501
    %v4527 = vadd.f32 %v4413, %v4504
    %v4528 = vadd.f32 %v4414, %v4507
    %v4529 = vadd.f32 %v4415, %v4510
    %v4530 = vadd.f32 %v4416, %v4513
    %v4531 = vld [vmem:[%s793] sm:$0xff]
    %v4532 = vld [vmem:[%s793 + $0x10] sm:$0xff]
    %v4533 = vld [vmem:[%s793 + $0x20] sm:$0xff]
    %v4534 = vld [vmem:[%s793 + $0x30] sm:$0xff]
    %v4535 = vld [vmem:[%s793 + $0x40] sm:$0xff]
    %v4536 = vld [vmem:[%s793 + $0x50] sm:$0xff]
    %v4537 = vld [vmem:[%s793 + $0x60] sm:$0xff]
    %v4538 = vld [vmem:[%s793 + $0x70] sm:$0xff]
    %v4539 = vld [vmem:[%s793 + $0xa0] sm:$0xff]
    %v4540 = vld [vmem:[%s793 + $0xb0] sm:$0xff]
    %v4541 = vld [vmem:[%s793 + $0xc0] sm:$0xff]
    %v4542 = vld [vmem:[%s793 + $0xd0] sm:$0xff]
    %v4543 = vld [vmem:[%s793 + $0xe0] sm:$0xff]
    %v4544 = vld [vmem:[%s793 + $0xf0] sm:$0xff]
    %v4545 = vld [vmem:[%s793 + $0x100] sm:$0xff]
    %v4546 = vld [vmem:[%s793 + $0x110] sm:$0xff]
    %s4547 = scalar_lea.vmem [#allocation3], 4224
    %v4548 = vld [vmem:[%s4547] sm:$0xff]
    %v4549 = vld [vmem:[%s4547 + $0x8] sm:$0xff]
    %v4550 = vld [vmem:[%s4547 + $0x10] sm:$0xff]
    %v4551 = vld [vmem:[%s4547 + $0x18] sm:$0xff]
    %v4552 = vld [vmem:[%s4547 + $0x20] sm:$0xff]
    %v4553 = vld [vmem:[%s4547 + $0x28] sm:$0xff]
    %v4554 = vld [vmem:[%s4547 + $0x30] sm:$0xff]
    %v4555 = vld [vmem:[%s4547 + $0x38] sm:$0xff]
    %v4556 = vld [vmem:[%s4547 + $0x40] sm:$0xff]
    %v4557 = vld [vmem:[%s4547 + $0x48] sm:$0xff]
    %v4558 = vld [vmem:[%s4547 + $0x50] sm:$0xff]
    %v4559 = vld [vmem:[%s4547 + $0x58] sm:$0xff]
    %v4560 = vld [vmem:[%s4547 + $0x60] sm:$0xff]
    %v4561 = vld [vmem:[%s4547 + $0x68] sm:$0xff]
    %v4562 = vld [vmem:[%s4547 + $0x70] sm:$0xff]
    %v4563 = vld [vmem:[%s4547 + $0x78] sm:$0xff]
    %4564 = vmatpush.msra.mxu0 %v4563
    %4565 = vmatpush.msra.mxu0 %v4562
    %4566 = vmatpush.msra.mxu0 %v4561
    %4567 = vmatpush.msra.mxu0 %v4560
    %4568 = vmatpush.msra.mxu0 %v4559
    %4569 = vmatpush.msra.mxu0 %v4558
    %4570 = vmatpush.msra.mxu0 %v4557
    %4571 = vmatpush.msra.mxu0 %v4556
    %4572 = vmatpush.msra.mxu0 %v4555
    %4573 = vmatpush.msra.mxu0 %v4554
    %4574 = vmatpush.msra.mxu0 %v4553
    %4575 = vmatpush.msra.mxu0 %v4552
    %4576 = vmatpush.msra.mxu0 %v4551
    %4577 = vmatpush.msra.mxu0 %v4550
    %4578 = vmatpush.msra.mxu0 %v4549
    %4579 = vmatpush.msra.mxu0 %v4548
    %4580 = vmatmul.f32.gmra.mxu0 %v4531
    %v4581 = vpop.f32.mrf.mxu0
    %v4582 = vadd.f32 0.0, %v4581
    %4583 = vmatmul.f32.gmra.mxu0 %v4532
    %v4584 = vpop.f32.mrf.mxu0
    %v4585 = vadd.f32 0.0, %v4584
    %4586 = vmatmul.f32.gmra.mxu0 %v4533
    %v4587 = vpop.f32.mrf.mxu0
    %v4588 = vadd.f32 0.0, %v4587
    %4589 = vmatmul.f32.gmra.mxu0 %v4534
    %v4590 = vpop.f32.mrf.mxu0
    %v4591 = vadd.f32 0.0, %v4590
    %4592 = vmatmul.f32.gmra.mxu0 %v4535
    %v4593 = vpop.f32.mrf.mxu0
    %v4594 = vadd.f32 0.0, %v4593
    %4595 = vmatmul.f32.gmra.mxu0 %v4536
    %v4596 = vpop.f32.mrf.mxu0
    %v4597 = vadd.f32 0.0, %v4596
    %4598 = vmatmul.f32.gmra.mxu0 %v4537
    %v4599 = vpop.f32.mrf.mxu0
    %v4600 = vadd.f32 0.0, %v4599
    %4601 = vmatmul.f32.gmra.mxu0 %v4538
    %v4602 = vpop.f32.mrf.mxu0
    %v4603 = vadd.f32 0.0, %v4602
    %4604 = vmatmul.f32.gmra.mxu0 %v4539
    %v4605 = vpop.f32.mrf.mxu0
    %v4606 = vadd.f32 0.0, %v4605
    %4607 = vmatmul.f32.gmra.mxu0 %v4540
    %v4608 = vpop.f32.mrf.mxu0
    %v4609 = vadd.f32 0.0, %v4608
    %4610 = vmatmul.f32.gmra.mxu0 %v4541
    %v4611 = vpop.f32.mrf.mxu0
    %v4612 = vadd.f32 0.0, %v4611
    %4613 = vmatmul.f32.gmra.mxu0 %v4542
    %v4614 = vpop.f32.mrf.mxu0
    %v4615 = vadd.f32 0.0, %v4614
    %4616 = vmatmul.f32.gmra.mxu0 %v4543
    %v4617 = vpop.f32.mrf.mxu0
    %v4618 = vadd.f32 0.0, %v4617
    %4619 = vmatmul.f32.gmra.mxu0 %v4544
    %v4620 = vpop.f32.mrf.mxu0
    %v4621 = vadd.f32 0.0, %v4620
    %4622 = vmatmul.f32.gmra.mxu0 %v4545
    %v4623 = vpop.f32.mrf.mxu0
    %v4624 = vadd.f32 0.0, %v4623
    %4625 = vmatmul.f32.gmra.mxu0 %v4546
    %v4626 = vpop.f32.mrf.mxu0
    %v4627 = vadd.f32 0.0, %v4626
    %4628 = vdwg.mxu0
    %v4629 = vadd.f32 %v4515, %v4582
    %v4630 = vadd.f32 %v4516, %v4585
    %v4631 = vadd.f32 %v4517, %v4588
    %v4632 = vadd.f32 %v4518, %v4591
    %v4633 = vadd.f32 %v4519, %v4594
    %v4634 = vadd.f32 %v4520, %v4597
    %v4635 = vadd.f32 %v4521, %v4600
    %v4636 = vadd.f32 %v4522, %v4603
    %v4637 = vadd.f32 %v4523, %v4606
    %v4638 = vadd.f32 %v4524, %v4609
    %v4639 = vadd.f32 %v4525, %v4612
    %v4640 = vadd.f32 %v4526, %v4615
    %v4641 = vadd.f32 %v4527, %v4618
    %v4642 = vadd.f32 %v4528, %v4621
    %v4643 = vadd.f32 %v4529, %v4624
    %v4644 = vadd.f32 %v4530, %v4627
    %v4645 = vld [vmem:[%s793 + $0x1] sm:$0xff]
    %v4646 = vld [vmem:[%s793 + $0x11] sm:$0xff]
    %v4647 = vld [vmem:[%s793 + $0x21] sm:$0xff]
    %v4648 = vld [vmem:[%s793 + $0x31] sm:$0xff]
    %v4649 = vld [vmem:[%s793 + $0x41] sm:$0xff]
    %v4650 = vld [vmem:[%s793 + $0x51] sm:$0xff]
    %v4651 = vld [vmem:[%s793 + $0x61] sm:$0xff]
    %v4652 = vld [vmem:[%s793 + $0x71] sm:$0xff]
    %v4653 = vld [vmem:[%s793 + $0xa1] sm:$0xff]
    %v4654 = vld [vmem:[%s793 + $0xb1] sm:$0xff]
    %v4655 = vld [vmem:[%s793 + $0xc1] sm:$0xff]
    %v4656 = vld [vmem:[%s793 + $0xd1] sm:$0xff]
    %v4657 = vld [vmem:[%s793 + $0xe1] sm:$0xff]
    %v4658 = vld [vmem:[%s793 + $0xf1] sm:$0xff]
    %v4659 = vld [vmem:[%s793 + $0x101] sm:$0xff]
    %v4660 = vld [vmem:[%s793 + $0x111] sm:$0xff]
    %s4661 = scalar_lea.vmem [#allocation3], 4352
    %v4662 = vld [vmem:[%s4661] sm:$0xff]
    %v4663 = vld [vmem:[%s4661 + $0x8] sm:$0xff]
    %v4664 = vld [vmem:[%s4661 + $0x10] sm:$0xff]
    %v4665 = vld [vmem:[%s4661 + $0x18] sm:$0xff]
    %v4666 = vld [vmem:[%s4661 + $0x20] sm:$0xff]
    %v4667 = vld [vmem:[%s4661 + $0x28] sm:$0xff]
    %v4668 = vld [vmem:[%s4661 + $0x30] sm:$0xff]
    %v4669 = vld [vmem:[%s4661 + $0x38] sm:$0xff]
    %v4670 = vld [vmem:[%s4661 + $0x40] sm:$0xff]
    %v4671 = vld [vmem:[%s4661 + $0x48] sm:$0xff]
    %v4672 = vld [vmem:[%s4661 + $0x50] sm:$0xff]
    %v4673 = vld [vmem:[%s4661 + $0x58] sm:$0xff]
    %v4674 = vld [vmem:[%s4661 + $0x60] sm:$0xff]
    %v4675 = vld [vmem:[%s4661 + $0x68] sm:$0xff]
    %v4676 = vld [vmem:[%s4661 + $0x70] sm:$0xff]
    %v4677 = vld [vmem:[%s4661 + $0x78] sm:$0xff]
    %4678 = vmatpush.msra.mxu0 %v4677
    %4679 = vmatpush.msra.mxu0 %v4676
    %4680 = vmatpush.msra.mxu0 %v4675
    %4681 = vmatpush.msra.mxu0 %v4674
    %4682 = vmatpush.msra.mxu0 %v4673
    %4683 = vmatpush.msra.mxu0 %v4672
    %4684 = vmatpush.msra.mxu0 %v4671
    %4685 = vmatpush.msra.mxu0 %v4670
    %4686 = vmatpush.msra.mxu0 %v4669
    %4687 = vmatpush.msra.mxu0 %v4668
    %4688 = vmatpush.msra.mxu0 %v4667
    %4689 = vmatpush.msra.mxu0 %v4666
    %4690 = vmatpush.msra.mxu0 %v4665
    %4691 = vmatpush.msra.mxu0 %v4664
    %4692 = vmatpush.msra.mxu0 %v4663
    %4693 = vmatpush.msra.mxu0 %v4662
    %4694 = vmatmul.f32.gmra.mxu0 %v4645
    %v4695 = vpop.f32.mrf.mxu0
    %v4696 = vadd.f32 0.0, %v4695
    %4697 = vmatmul.f32.gmra.mxu0 %v4646
    %v4698 = vpop.f32.mrf.mxu0
    %v4699 = vadd.f32 0.0, %v4698
    %4700 = vmatmul.f32.gmra.mxu0 %v4647
    %v4701 = vpop.f32.mrf.mxu0
    %v4702 = vadd.f32 0.0, %v4701
    %4703 = vmatmul.f32.gmra.mxu0 %v4648
    %v4704 = vpop.f32.mrf.mxu0
    %v4705 = vadd.f32 0.0, %v4704
    %4706 = vmatmul.f32.gmra.mxu0 %v4649
    %v4707 = vpop.f32.mrf.mxu0
    %v4708 = vadd.f32 0.0, %v4707
    %4709 = vmatmul.f32.gmra.mxu0 %v4650
    %v4710 = vpop.f32.mrf.mxu0
    %v4711 = vadd.f32 0.0, %v4710
    %4712 = vmatmul.f32.gmra.mxu0 %v4651
    %v4713 = vpop.f32.mrf.mxu0
    %v4714 = vadd.f32 0.0, %v4713
    %4715 = vmatmul.f32.gmra.mxu0 %v4652
    %v4716 = vpop.f32.mrf.mxu0
    %v4717 = vadd.f32 0.0, %v4716
    %4718 = vmatmul.f32.gmra.mxu0 %v4653
    %v4719 = vpop.f32.mrf.mxu0
    %v4720 = vadd.f32 0.0, %v4719
    %4721 = vmatmul.f32.gmra.mxu0 %v4654
    %v4722 = vpop.f32.mrf.mxu0
    %v4723 = vadd.f32 0.0, %v4722
    %4724 = vmatmul.f32.gmra.mxu0 %v4655
    %v4725 = vpop.f32.mrf.mxu0
    %v4726 = vadd.f32 0.0, %v4725
    %4727 = vmatmul.f32.gmra.mxu0 %v4656
    %v4728 = vpop.f32.mrf.mxu0
    %v4729 = vadd.f32 0.0, %v4728
    %4730 = vmatmul.f32.gmra.mxu0 %v4657
    %v4731 = vpop.f32.mrf.mxu0
    %v4732 = vadd.f32 0.0, %v4731
    %4733 = vmatmul.f32.gmra.mxu0 %v4658
    %v4734 = vpop.f32.mrf.mxu0
    %v4735 = vadd.f32 0.0, %v4734
    %4736 = vmatmul.f32.gmra.mxu0 %v4659
    %v4737 = vpop.f32.mrf.mxu0
    %v4738 = vadd.f32 0.0, %v4737
    %4739 = vmatmul.f32.gmra.mxu0 %v4660
    %v4740 = vpop.f32.mrf.mxu0
    %v4741 = vadd.f32 0.0, %v4740
    %4742 = vdwg.mxu0
    %v4743 = vadd.f32 %v4629, %v4696
    %v4744 = vadd.f32 %v4630, %v4699
    %v4745 = vadd.f32 %v4631, %v4702
    %v4746 = vadd.f32 %v4632, %v4705
    %v4747 = vadd.f32 %v4633, %v4708
    %v4748 = vadd.f32 %v4634, %v4711
    %v4749 = vadd.f32 %v4635, %v4714
    %v4750 = vadd.f32 %v4636, %v4717
    %v4751 = vadd.f32 %v4637, %v4720
    %v4752 = vadd.f32 %v4638, %v4723
    %v4753 = vadd.f32 %v4639, %v4726
    %v4754 = vadd.f32 %v4640, %v4729
    %v4755 = vadd.f32 %v4641, %v4732
    %v4756 = vadd.f32 %v4642, %v4735
    %v4757 = vadd.f32 %v4643, %v4738
    %v4758 = vadd.f32 %v4644, %v4741
    %v4759 = vld [vmem:[%s793 + $0x2] sm:$0xff]
    %v4760 = vld [vmem:[%s793 + $0x12] sm:$0xff]
    %v4761 = vld [vmem:[%s793 + $0x22] sm:$0xff]
    %v4762 = vld [vmem:[%s793 + $0x32] sm:$0xff]
    %v4763 = vld [vmem:[%s793 + $0x42] sm:$0xff]
    %v4764 = vld [vmem:[%s793 + $0x52] sm:$0xff]
    %v4765 = vld [vmem:[%s793 + $0x62] sm:$0xff]
    %v4766 = vld [vmem:[%s793 + $0x72] sm:$0xff]
    %v4767 = vld [vmem:[%s793 + $0xa2] sm:$0xff]
    %v4768 = vld [vmem:[%s793 + $0xb2] sm:$0xff]
    %v4769 = vld [vmem:[%s793 + $0xc2] sm:$0xff]
    %v4770 = vld [vmem:[%s793 + $0xd2] sm:$0xff]
    %v4771 = vld [vmem:[%s793 + $0xe2] sm:$0xff]
    %v4772 = vld [vmem:[%s793 + $0xf2] sm:$0xff]
    %v4773 = vld [vmem:[%s793 + $0x102] sm:$0xff]
    %v4774 = vld [vmem:[%s793 + $0x112] sm:$0xff]
    %s4775 = scalar_lea.vmem [#allocation3], 4480
    %v4776 = vld [vmem:[%s4775] sm:$0xff]
    %v4777 = vld [vmem:[%s4775 + $0x8] sm:$0xff]
    %v4778 = vld [vmem:[%s4775 + $0x10] sm:$0xff]
    %v4779 = vld [vmem:[%s4775 + $0x18] sm:$0xff]
    %v4780 = vld [vmem:[%s4775 + $0x20] sm:$0xff]
    %v4781 = vld [vmem:[%s4775 + $0x28] sm:$0xff]
    %v4782 = vld [vmem:[%s4775 + $0x30] sm:$0xff]
    %v4783 = vld [vmem:[%s4775 + $0x38] sm:$0xff]
    %v4784 = vld [vmem:[%s4775 + $0x40] sm:$0xff]
    %v4785 = vld [vmem:[%s4775 + $0x48] sm:$0xff]
    %v4786 = vld [vmem:[%s4775 + $0x50] sm:$0xff]
    %v4787 = vld [vmem:[%s4775 + $0x58] sm:$0xff]
    %v4788 = vld [vmem:[%s4775 + $0x60] sm:$0xff]
    %v4789 = vld [vmem:[%s4775 + $0x68] sm:$0xff]
    %v4790 = vld [vmem:[%s4775 + $0x70] sm:$0xff]
    %v4791 = vld [vmem:[%s4775 + $0x78] sm:$0xff]
    %4792 = vmatpush.msra.mxu0 %v4791
    %4793 = vmatpush.msra.mxu0 %v4790
    %4794 = vmatpush.msra.mxu0 %v4789
    %4795 = vmatpush.msra.mxu0 %v4788
    %4796 = vmatpush.msra.mxu0 %v4787
    %4797 = vmatpush.msra.mxu0 %v4786
    %4798 = vmatpush.msra.mxu0 %v4785
    %4799 = vmatpush.msra.mxu0 %v4784
    %4800 = vmatpush.msra.mxu0 %v4783
    %4801 = vmatpush.msra.mxu0 %v4782
    %4802 = vmatpush.msra.mxu0 %v4781
    %4803 = vmatpush.msra.mxu0 %v4780
    %4804 = vmatpush.msra.mxu0 %v4779
    %4805 = vmatpush.msra.mxu0 %v4778
    %4806 = vmatpush.msra.mxu0 %v4777
    %4807 = vmatpush.msra.mxu0 %v4776
    %4808 = vmatmul.f32.gmra.mxu0 %v4759
    %v4809 = vpop.f32.mrf.mxu0
    %v4810 = vadd.f32 0.0, %v4809
    %4811 = vmatmul.f32.gmra.mxu0 %v4760
    %v4812 = vpop.f32.mrf.mxu0
    %v4813 = vadd.f32 0.0, %v4812
    %4814 = vmatmul.f32.gmra.mxu0 %v4761
    %v4815 = vpop.f32.mrf.mxu0
    %v4816 = vadd.f32 0.0, %v4815
    %4817 = vmatmul.f32.gmra.mxu0 %v4762
    %v4818 = vpop.f32.mrf.mxu0
    %v4819 = vadd.f32 0.0, %v4818
    %4820 = vmatmul.f32.gmra.mxu0 %v4763
    %v4821 = vpop.f32.mrf.mxu0
    %v4822 = vadd.f32 0.0, %v4821
    %4823 = vmatmul.f32.gmra.mxu0 %v4764
    %v4824 = vpop.f32.mrf.mxu0
    %v4825 = vadd.f32 0.0, %v4824
    %4826 = vmatmul.f32.gmra.mxu0 %v4765
    %v4827 = vpop.f32.mrf.mxu0
    %v4828 = vadd.f32 0.0, %v4827
    %4829 = vmatmul.f32.gmra.mxu0 %v4766
    %v4830 = vpop.f32.mrf.mxu0
    %v4831 = vadd.f32 0.0, %v4830
    %4832 = vmatmul.f32.gmra.mxu0 %v4767
    %v4833 = vpop.f32.mrf.mxu0
    %v4834 = vadd.f32 0.0, %v4833
    %4835 = vmatmul.f32.gmra.mxu0 %v4768
    %v4836 = vpop.f32.mrf.mxu0
    %v4837 = vadd.f32 0.0, %v4836
    %4838 = vmatmul.f32.gmra.mxu0 %v4769
    %v4839 = vpop.f32.mrf.mxu0
    %v4840 = vadd.f32 0.0, %v4839
    %4841 = vmatmul.f32.gmra.mxu0 %v4770
    %v4842 = vpop.f32.mrf.mxu0
    %v4843 = vadd.f32 0.0, %v4842
    %4844 = vmatmul.f32.gmra.mxu0 %v4771
    %v4845 = vpop.f32.mrf.mxu0
    %v4846 = vadd.f32 0.0, %v4845
    %4847 = vmatmul.f32.gmra.mxu0 %v4772
    %v4848 = vpop.f32.mrf.mxu0
    %v4849 = vadd.f32 0.0, %v4848
    %4850 = vmatmul.f32.gmra.mxu0 %v4773
    %v4851 = vpop.f32.mrf.mxu0
    %v4852 = vadd.f32 0.0, %v4851
    %4853 = vmatmul.f32.gmra.mxu0 %v4774
    %v4854 = vpop.f32.mrf.mxu0
    %v4855 = vadd.f32 0.0, %v4854
    %4856 = vdwg.mxu0
    %v4857 = vadd.f32 %v4743, %v4810
    %v4858 = vadd.f32 %v4744, %v4813
    %v4859 = vadd.f32 %v4745, %v4816
    %v4860 = vadd.f32 %v4746, %v4819
    %v4861 = vadd.f32 %v4747, %v4822
    %v4862 = vadd.f32 %v4748, %v4825
    %v4863 = vadd.f32 %v4749, %v4828
    %v4864 = vadd.f32 %v4750, %v4831
    %v4865 = vadd.f32 %v4751, %v4834
    %v4866 = vadd.f32 %v4752, %v4837
    %v4867 = vadd.f32 %v4753, %v4840
    %v4868 = vadd.f32 %v4754, %v4843
    %v4869 = vadd.f32 %v4755, %v4846
    %v4870 = vadd.f32 %v4756, %v4849
    %v4871 = vadd.f32 %v4757, %v4852
    %v4872 = vadd.f32 %v4758, %v4855
    %v4873 = vadd.f32 %v4857, %v4858
    %v4874 = vadd.f32 %v4873, %v4859
    %v4875 = vadd.f32 %v4874, %v4860
    %v4876 = vadd.f32 %v4875, %v4861
    %v4877 = vadd.f32 %v4876, %v4862
    %v4878 = vadd.f32 %v4877, %v4863
    %v4879 = vadd.f32 %v4878, %v4864
    %v4880 = vadd.f32 %v4879, %v4865
    %v4881 = vadd.f32 %v4880, %v4866
    %v4882 = vadd.f32 %v4881, %v4867
    %v4883 = vadd.f32 %v4882, %v4868
    %v4884 = vadd.f32 %v4883, %v4869
    %v4885 = vadd.f32 %v4884, %v4870
    %v4886 = vadd.f32 %v4885, %v4871
    %v4887 = vadd.f32 %v4886, %v4872
    %v4888 = vrot.slane %v4887, 4
    %v4889 = vadd.f32 %v4887, %v4888
    %v4890 = vrot.slane %v4889, 2
    %v4891 = vadd.f32 %v4889, %v4890
    %v4892 = vrot.slane %v4891, 1
    %v4893 = vadd.f32 %v4891, %v4892
    %v4894 = vmul.f32 %v4893, %v1163
    %v4895 = vsub.f32 %v4857, %v4894
    %v4896 = vsub.f32 %v4858, %v4894
    %v4897 = vsub.f32 %v4859, %v4894
    %v4898 = vsub.f32 %v4860, %v4894
    %v4899 = vsub.f32 %v4861, %v4894
    %v4900 = vsub.f32 %v4862, %v4894
    %v4901 = vsub.f32 %v4863, %v4894
    %v4902 = vsub.f32 %v4864, %v4894
    %v4903 = vsub.f32 %v4865, %v4894
    %v4904 = vsub.f32 %v4866, %v4894
    %v4905 = vsub.f32 %v4867, %v4894
    %v4906 = vsub.f32 %v4868, %v4894
    %v4907 = vsub.f32 %v4869, %v4894
    %v4908 = vsub.f32 %v4870, %v4894
    %v4909 = vsub.f32 %v4871, %v4894
    %v4910 = vsub.f32 %v4872, %v4894
    %v4911 = vmul.f32 %v4895, %v4895
    %v4912 = vmul.f32 %v4896, %v4896
    %v4913 = vmul.f32 %v4897, %v4897
    %v4914 = vmul.f32 %v4898, %v4898
    %v4915 = vmul.f32 %v4899, %v4899
    %v4916 = vmul.f32 %v4900, %v4900
    %v4917 = vmul.f32 %v4901, %v4901
    %v4918 = vmul.f32 %v4902, %v4902
    %v4919 = vmul.f32 %v4903, %v4903
    %v4920 = vmul.f32 %v4904, %v4904
    %v4921 = vmul.f32 %v4905, %v4905
    %v4922 = vmul.f32 %v4906, %v4906
    %v4923 = vmul.f32 %v4907, %v4907
    %v4924 = vmul.f32 %v4908, %v4908
    %v4925 = vmul.f32 %v4909, %v4909
    %v4926 = vmul.f32 %v4910, %v4910
    %v4927 = vadd.f32 %v4911, %v4912
    %v4928 = vadd.f32 %v4927, %v4913
    %v4929 = vadd.f32 %v4928, %v4914
    %v4930 = vadd.f32 %v4929, %v4915
    %v4931 = vadd.f32 %v4930, %v4916
    %v4932 = vadd.f32 %v4931, %v4917
    %v4933 = vadd.f32 %v4932, %v4918
    %v4934 = vadd.f32 %v4933, %v4919
    %v4935 = vadd.f32 %v4934, %v4920
    %v4936 = vadd.f32 %v4935, %v4921
    %v4937 = vadd.f32 %v4936, %v4922
    %v4938 = vadd.f32 %v4937, %v4923
    %v4939 = vadd.f32 %v4938, %v4924
    %v4940 = vadd.f32 %v4939, %v4925
    %v4941 = vadd.f32 %v4940, %v4926
    %v4942 = vrot.slane %v4941, 4
    %v4943 = vadd.f32 %v4941, %v4942
    %v4944 = vrot.slane %v4943, 2
    %v4945 = vadd.f32 %v4943, %v4944
    %v4946 = vrot.slane %v4945, 1
    %v4947 = vadd.f32 %v4945, %v4946
    %v4948 = vmul.f32 %v4947, %v1163
    %v4949 = vld [vmem:[#allocation6 + $0x3] sm:$0x1]
    %v4950 = vld [vmem:[#allocation6 + $0x9] sm:$0x1]
    %v4951 = vadd.f32 %v4948, 1e-05
    %v4952 = vrsqrt.pop %v4951
    %v4953 = vmul.f32 %v4952, %v4951
    %v4954 = vmul.f32 %v4953, %v4952
    %v4955 = vmul.f32 0.5, %v4954
    %v4956 = vsub.f32 1.5, %v4955
    %v4957 = vmul.f32 %v4952, %v4956
    %vm4958 = vweird.f32 %v4951
    %vm4959 = vweird.f32 %v4952
    %vm4960 = vmor %vm4958, %vm4959
    %v4961 = vsel %vm4960, %v4952, %v4957
    %v4962 = vmul.f32 %v4895, %v4961
    %v4963 = vmul.f32 %v4896, %v4961
    %v4964 = vmul.f32 %v4897, %v4961
    %v4965 = vmul.f32 %v4898, %v4961
    %v4966 = vmul.f32 %v4899, %v4961
    %v4967 = vmul.f32 %v4900, %v4961
    %v4968 = vmul.f32 %v4901, %v4961
    %v4969 = vmul.f32 %v4902, %v4961
    %v4970 = vmul.f32 %v4903, %v4961
    %v4971 = vmul.f32 %v4904, %v4961
    %v4972 = vmul.f32 %v4905, %v4961
    %v4973 = vmul.f32 %v4906, %v4961
    %v4974 = vmul.f32 %v4907, %v4961
    %v4975 = vmul.f32 %v4908, %v4961
    %v4976 = vmul.f32 %v4909, %v4961
    %v4977 = vmul.f32 %v4910, %v4961
    %v4978 = vperm.slane %v4949, 0
    %v4979 = vmul.f32 %v4962, %v4978
    %v4980 = vmul.f32 %v4963, %v4978
    %v4981 = vmul.f32 %v4964, %v4978
    %v4982 = vmul.f32 %v4965, %v4978
    %v4983 = vmul.f32 %v4966, %v4978
    %v4984 = vmul.f32 %v4967, %v4978
    %v4985 = vmul.f32 %v4968, %v4978
    %v4986 = vmul.f32 %v4969, %v4978
    %v4987 = vmul.f32 %v4970, %v4978
    %v4988 = vmul.f32 %v4971, %v4978
    %v4989 = vmul.f32 %v4972, %v4978
    %v4990 = vmul.f32 %v4973, %v4978
    %v4991 = vmul.f32 %v4974, %v4978
    %v4992 = vmul.f32 %v4975, %v4978
    %v4993 = vmul.f32 %v4976, %v4978
    %v4994 = vmul.f32 %v4977, %v4978
    %v4995 = vperm.slane %v4950, 0
    %v4996 = vadd.f32 %v4979, %v4995
    %v4997 = vadd.f32 %v4980, %v4995
    %v4998 = vadd.f32 %v4981, %v4995
    %v4999 = vadd.f32 %v4982, %v4995
    %v5000 = vadd.f32 %v4983, %v4995
    %v5001 = vadd.f32 %v4984, %v4995
    %v5002 = vadd.f32 %v4985, %v4995
    %v5003 = vadd.f32 %v4986, %v4995
    %v5004 = vadd.f32 %v4987, %v4995
    %v5005 = vadd.f32 %v4988, %v4995
    %v5006 = vadd.f32 %v4989, %v4995
    %v5007 = vadd.f32 %v4990, %v4995
    %v5008 = vadd.f32 %v4991, %v4995
    %v5009 = vadd.f32 %v4992, %v4995
    %v5010 = vadd.f32 %v4993, %v4995
    %v5011 = vadd.f32 %v4994, %v4995
    %v5012 = vmax.f32 %v4996, 0.0
    %v5013 = vmax.f32 %v4997, 0.0
    %v5014 = vmax.f32 %v4998, 0.0
    %v5015 = vmax.f32 %v4999, 0.0
    %v5016 = vmax.f32 %v5000, 0.0
    %v5017 = vmax.f32 %v5001, 0.0
    %v5018 = vmax.f32 %v5002, 0.0
    %v5019 = vmax.f32 %v5003, 0.0
    %v5020 = vmax.f32 %v5004, 0.0
    %v5021 = vmax.f32 %v5005, 0.0
    %v5022 = vmax.f32 %v5006, 0.0
    %v5023 = vmax.f32 %v5007, 0.0
    %v5024 = vmax.f32 %v5008, 0.0
    %v5025 = vmax.f32 %v5009, 0.0
    %v5026 = vmax.f32 %v5010, 0.0
    %v5027 = vmax.f32 %v5011, 0.0
    %5028 = vst [vmem:[%s125 + $0x1] sm:$0xff] %v5012
    %5029 = vst [vmem:[%s125 + $0x11] sm:$0xff] %v5013
    %5030 = vst [vmem:[%s125 + $0x21] sm:$0xff] %v5014
    %5031 = vst [vmem:[%s125 + $0x31] sm:$0xff] %v5015
    %5032 = vst [vmem:[%s125 + $0x41] sm:$0xff] %v5016
    %5033 = vst [vmem:[%s125 + $0x51] sm:$0xff] %v5017
    %5034 = vst [vmem:[%s125 + $0x61] sm:$0xff] %v5018
    %5035 = vst [vmem:[%s125 + $0x71] sm:$0xff] %v5019
    %5036 = vst [vmem:[%s125 + $0xa1] sm:$0xff] %v5020
    %5037 = vst [vmem:[%s125 + $0xb1] sm:$0xff] %v5021
    %5038 = vst [vmem:[%s125 + $0xc1] sm:$0xff] %v5022
    %5039 = vst [vmem:[%s125 + $0xd1] sm:$0xff] %v5023
    %5040 = vst [vmem:[%s125 + $0xe1] sm:$0xff] %v5024
    %5041 = vst [vmem:[%s125 + $0xf1] sm:$0xff] %v5025
    %5042 = vst [vmem:[%s125 + $0x101] sm:$0xff] %v5026
    %5043 = vst [vmem:[%s125 + $0x111] sm:$0xff] %v5027
    %v5044 = vld [vmem:[#allocation2] sm:$0xff]
    %v5045 = vld [vmem:[#allocation2 + $0x10] sm:$0xff]
    %v5046 = vld [vmem:[#allocation2 + $0x20] sm:$0xff]
    %v5047 = vld [vmem:[#allocation2 + $0x30] sm:$0xff]
    %v5048 = vld [vmem:[#allocation2 + $0x40] sm:$0xff]
    %v5049 = vld [vmem:[#allocation2 + $0x50] sm:$0xff]
    %v5050 = vld [vmem:[#allocation2 + $0x60] sm:$0xff]
    %v5051 = vld [vmem:[#allocation2 + $0x70] sm:$0xff]
    %v5052 = vld [vmem:[#allocation2 + $0xa0] sm:$0xff]
    %v5053 = vld [vmem:[#allocation2 + $0xb0] sm:$0xff]
    %v5054 = vld [vmem:[#allocation2 + $0xc0] sm:$0xff]
    %v5055 = vld [vmem:[#allocation2 + $0xd0] sm:$0xff]
    %v5056 = vld [vmem:[#allocation2 + $0xe0] sm:$0xff]
    %v5057 = vld [vmem:[#allocation2 + $0xf0] sm:$0xff]
    %v5058 = vld [vmem:[#allocation2 + $0x100] sm:$0xff]
    %v5059 = vld [vmem:[#allocation2 + $0x110] sm:$0xff]
    %s5060 = scalar_lea.vmem [#allocation3], 4608
    %v5061 = vld [vmem:[%s5060] sm:$0xff]
    %v5062 = vld [vmem:[%s5060 + $0x8] sm:$0xff]
    %v5063 = vld [vmem:[%s5060 + $0x10] sm:$0xff]
    %v5064 = vld [vmem:[%s5060 + $0x18] sm:$0xff]
    %v5065 = vld [vmem:[%s5060 + $0x20] sm:$0xff]
    %v5066 = vld [vmem:[%s5060 + $0x28] sm:$0xff]
    %v5067 = vld [vmem:[%s5060 + $0x30] sm:$0xff]
    %v5068 = vld [vmem:[%s5060 + $0x38] sm:$0xff]
    %v5069 = vld [vmem:[%s5060 + $0x40] sm:$0xff]
    %v5070 = vld [vmem:[%s5060 + $0x48] sm:$0xff]
    %v5071 = vld [vmem:[%s5060 + $0x50] sm:$0xff]
    %v5072 = vld [vmem:[%s5060 + $0x58] sm:$0xff]
    %v5073 = vld [vmem:[%s5060 + $0x60] sm:$0xff]
    %v5074 = vld [vmem:[%s5060 + $0x68] sm:$0xff]
    %v5075 = vld [vmem:[%s5060 + $0x70] sm:$0xff]
    %v5076 = vld [vmem:[%s5060 + $0x78] sm:$0xff]
    %v5077 = vld [vmem:[#allocation2 + $0x1] sm:$0xff]
    %v5078 = vld [vmem:[#allocation2 + $0x11] sm:$0xff]
    %v5079 = vld [vmem:[#allocation2 + $0x21] sm:$0xff]
    %v5080 = vld [vmem:[#allocation2 + $0x31] sm:$0xff]
    %v5081 = vld [vmem:[#allocation2 + $0x41] sm:$0xff]
    %v5082 = vld [vmem:[#allocation2 + $0x51] sm:$0xff]
    %v5083 = vld [vmem:[#allocation2 + $0x61] sm:$0xff]
    %v5084 = vld [vmem:[#allocation2 + $0x71] sm:$0xff]
    %v5085 = vld [vmem:[#allocation2 + $0xa1] sm:$0xff]
    %v5086 = vld [vmem:[#allocation2 + $0xb1] sm:$0xff]
    %v5087 = vld [vmem:[#allocation2 + $0xc1] sm:$0xff]
    %v5088 = vld [vmem:[#allocation2 + $0xd1] sm:$0xff]
    %v5089 = vld [vmem:[#allocation2 + $0xe1] sm:$0xff]
    %v5090 = vld [vmem:[#allocation2 + $0xf1] sm:$0xff]
    %v5091 = vld [vmem:[#allocation2 + $0x101] sm:$0xff]
    %v5092 = vld [vmem:[#allocation2 + $0x111] sm:$0xff]
    %s5093 = scalar_lea.vmem [#allocation3], 4736
    %v5094 = vld [vmem:[%s5093] sm:$0xff]
    %v5095 = vld [vmem:[%s5093 + $0x8] sm:$0xff]
    %v5096 = vld [vmem:[%s5093 + $0x10] sm:$0xff]
    %v5097 = vld [vmem:[%s5093 + $0x18] sm:$0xff]
    %v5098 = vld [vmem:[%s5093 + $0x20] sm:$0xff]
    %v5099 = vld [vmem:[%s5093 + $0x28] sm:$0xff]
    %v5100 = vld [vmem:[%s5093 + $0x30] sm:$0xff]
    %v5101 = vld [vmem:[%s5093 + $0x38] sm:$0xff]
    %v5102 = vld [vmem:[%s5093 + $0x40] sm:$0xff]
    %v5103 = vld [vmem:[%s5093 + $0x48] sm:$0xff]
    %v5104 = vld [vmem:[%s5093 + $0x50] sm:$0xff]
    %v5105 = vld [vmem:[%s5093 + $0x58] sm:$0xff]
    %v5106 = vld [vmem:[%s5093 + $0x60] sm:$0xff]
    %v5107 = vld [vmem:[%s5093 + $0x68] sm:$0xff]
    %v5108 = vld [vmem:[%s5093 + $0x70] sm:$0xff]
    %v5109 = vld [vmem:[%s5093 + $0x78] sm:$0xff]
    %5110 = vmatpush.msra.mxu0 %v5109
    %5111 = vmatpush.msra.mxu0 %v5108
    %5112 = vmatpush.msra.mxu0 %v5107
    %5113 = vmatpush.msra.mxu0 %v5106
    %5114 = vmatpush.msra.mxu0 %v5105
    %5115 = vmatpush.msra.mxu0 %v5104
    %5116 = vmatpush.msra.mxu0 %v5103
    %5117 = vmatpush.msra.mxu0 %v5102
    %5118 = vmatpush.msra.mxu0 %v5101
    %5119 = vmatpush.msra.mxu0 %v5100
    %5120 = vmatpush.msra.mxu0 %v5099
    %5121 = vmatpush.msra.mxu0 %v5098
    %5122 = vmatpush.msra.mxu0 %v5097
    %5123 = vmatpush.msra.mxu0 %v5096
    %5124 = vmatpush.msra.mxu0 %v5095
    %5125 = vmatpush.msra.mxu0 %v5094
    %5126 = vmatmul.f32.gmra.mxu0 %v5077
    %v5127 = vpop.f32.mrf.mxu0
    %v5128 = vadd.f32 0.0, %v5127
    %5129 = vmatmul.f32.gmra.mxu0 %v5078
    %v5130 = vpop.f32.mrf.mxu0
    %v5131 = vadd.f32 0.0, %v5130
    %5132 = vmatmul.f32.gmra.mxu0 %v5079
    %v5133 = vpop.f32.mrf.mxu0
    %v5134 = vadd.f32 0.0, %v5133
    %5135 = vmatmul.f32.gmra.mxu0 %v5080
    %v5136 = vpop.f32.mrf.mxu0
    %v5137 = vadd.f32 0.0, %v5136
    %5138 = vmatmul.f32.gmra.mxu0 %v5081
    %v5139 = vpop.f32.mrf.mxu0
    %v5140 = vadd.f32 0.0, %v5139
    %5141 = vmatmul.f32.gmra.mxu0 %v5082
    %v5142 = vpop.f32.mrf.mxu0
    %v5143 = vadd.f32 0.0, %v5142
    %5144 = vmatmul.f32.gmra.mxu0 %v5083
    %v5145 = vpop.f32.mrf.mxu0
    %v5146 = vadd.f32 0.0, %v5145
    %5147 = vmatmul.f32.gmra.mxu0 %v5084
    %v5148 = vpop.f32.mrf.mxu0
    %v5149 = vadd.f32 0.0, %v5148
    %5150 = vmatmul.f32.gmra.mxu0 %v5085
    %v5151 = vpop.f32.mrf.mxu0
    %v5152 = vadd.f32 0.0, %v5151
    %5153 = vmatmul.f32.gmra.mxu0 %v5086
    %v5154 = vpop.f32.mrf.mxu0
    %v5155 = vadd.f32 0.0, %v5154
    %5156 = vmatmul.f32.gmra.mxu0 %v5087
    %v5157 = vpop.f32.mrf.mxu0
    %v5158 = vadd.f32 0.0, %v5157
    %5159 = vmatmul.f32.gmra.mxu0 %v5088
    %v5160 = vpop.f32.mrf.mxu0
    %v5161 = vadd.f32 0.0, %v5160
    %5162 = vmatmul.f32.gmra.mxu0 %v5089
    %v5163 = vpop.f32.mrf.mxu0
    %v5164 = vadd.f32 0.0, %v5163
    %5165 = vmatmul.f32.gmra.mxu0 %v5090
    %v5166 = vpop.f32.mrf.mxu0
    %v5167 = vadd.f32 0.0, %v5166
    %5168 = vmatmul.f32.gmra.mxu0 %v5091
    %v5169 = vpop.f32.mrf.mxu0
    %v5170 = vadd.f32 0.0, %v5169
    %5171 = vmatmul.f32.gmra.mxu0 %v5092
    %v5172 = vpop.f32.mrf.mxu0
    %v5173 = vadd.f32 0.0, %v5172
    %5174 = vdwg.mxu0
    %5175 = vmatpush.msra.mxu0 %v5076
    %5176 = vmatpush.msra.mxu0 %v5075
    %5177 = vmatpush.msra.mxu0 %v5074
    %5178 = vmatpush.msra.mxu0 %v5073
    %5179 = vmatpush.msra.mxu0 %v5072
    %5180 = vmatpush.msra.mxu0 %v5071
    %5181 = vmatpush.msra.mxu0 %v5070
    %5182 = vmatpush.msra.mxu0 %v5069
    %5183 = vmatpush.msra.mxu0 %v5068
    %5184 = vmatpush.msra.mxu0 %v5067
    %5185 = vmatpush.msra.mxu0 %v5066
    %5186 = vmatpush.msra.mxu0 %v5065
    %5187 = vmatpush.msra.mxu0 %v5064
    %5188 = vmatpush.msra.mxu0 %v5063
    %5189 = vmatpush.msra.mxu0 %v5062
    %5190 = vmatpush.msra.mxu0 %v5061
    %5191 = vmatmul.f32.gmra.mxu0 %v5044
    %v5192 = vpop.f32.mrf.mxu0
    %v5193 = vadd.f32 %v5128, %v5192
    %5194 = vmatmul.f32.gmra.mxu0 %v5045
    %v5195 = vpop.f32.mrf.mxu0
    %v5196 = vadd.f32 %v5131, %v5195
    %5197 = vmatmul.f32.gmra.mxu0 %v5046
    %v5198 = vpop.f32.mrf.mxu0
    %v5199 = vadd.f32 %v5134, %v5198
    %5200 = vmatmul.f32.gmra.mxu0 %v5047
    %v5201 = vpop.f32.mrf.mxu0
    %v5202 = vadd.f32 %v5137, %v5201
    %5203 = vmatmul.f32.gmra.mxu0 %v5048
    %v5204 = vpop.f32.mrf.mxu0
    %v5205 = vadd.f32 %v5140, %v5204
    %5206 = vmatmul.f32.gmra.mxu0 %v5049
    %v5207 = vpop.f32.mrf.mxu0
    %v5208 = vadd.f32 %v5143, %v5207
    %5209 = vmatmul.f32.gmra.mxu0 %v5050
    %v5210 = vpop.f32.mrf.mxu0
    %v5211 = vadd.f32 %v5146, %v5210
    %5212 = vmatmul.f32.gmra.mxu0 %v5051
    %v5213 = vpop.f32.mrf.mxu0
    %v5214 = vadd.f32 %v5149, %v5213
    %5215 = vmatmul.f32.gmra.mxu0 %v5052
    %v5216 = vpop.f32.mrf.mxu0
    %v5217 = vadd.f32 %v5152, %v5216
    %5218 = vmatmul.f32.gmra.mxu0 %v5053
    %v5219 = vpop.f32.mrf.mxu0
    %v5220 = vadd.f32 %v5155, %v5219
    %5221 = vmatmul.f32.gmra.mxu0 %v5054
    %v5222 = vpop.f32.mrf.mxu0
    %v5223 = vadd.f32 %v5158, %v5222
    %5224 = vmatmul.f32.gmra.mxu0 %v5055
    %v5225 = vpop.f32.mrf.mxu0
    %v5226 = vadd.f32 %v5161, %v5225
    %5227 = vmatmul.f32.gmra.mxu0 %v5056
    %v5228 = vpop.f32.mrf.mxu0
    %v5229 = vadd.f32 %v5164, %v5228
    %5230 = vmatmul.f32.gmra.mxu0 %v5057
    %v5231 = vpop.f32.mrf.mxu0
    %v5232 = vadd.f32 %v5167, %v5231
    %5233 = vmatmul.f32.gmra.mxu0 %v5058
    %v5234 = vpop.f32.mrf.mxu0
    %v5235 = vadd.f32 %v5170, %v5234
    %5236 = vmatmul.f32.gmra.mxu0 %v5059
    %v5237 = vpop.f32.mrf.mxu0
    %v5238 = vadd.f32 %v5173, %v5237
    %5239 = vdwg.mxu0
    %v5240 = vld [vmem:[#allocation2 + $0x2] sm:$0xff]
    %v5241 = vld [vmem:[#allocation2 + $0x12] sm:$0xff]
    %v5242 = vld [vmem:[#allocation2 + $0x22] sm:$0xff]
    %v5243 = vld [vmem:[#allocation2 + $0x32] sm:$0xff]
    %v5244 = vld [vmem:[#allocation2 + $0x42] sm:$0xff]
    %v5245 = vld [vmem:[#allocation2 + $0x52] sm:$0xff]
    %v5246 = vld [vmem:[#allocation2 + $0x62] sm:$0xff]
    %v5247 = vld [vmem:[#allocation2 + $0x72] sm:$0xff]
    %v5248 = vld [vmem:[#allocation2 + $0xa2] sm:$0xff]
    %v5249 = vld [vmem:[#allocation2 + $0xb2] sm:$0xff]
    %v5250 = vld [vmem:[#allocation2 + $0xc2] sm:$0xff]
    %v5251 = vld [vmem:[#allocation2 + $0xd2] sm:$0xff]
    %v5252 = vld [vmem:[#allocation2 + $0xe2] sm:$0xff]
    %v5253 = vld [vmem:[#allocation2 + $0xf2] sm:$0xff]
    %v5254 = vld [vmem:[#allocation2 + $0x102] sm:$0xff]
    %v5255 = vld [vmem:[#allocation2 + $0x112] sm:$0xff]
    %s5256 = scalar_lea.vmem [#allocation3], 4864
    %v5257 = vld [vmem:[%s5256] sm:$0xff]
    %v5258 = vld [vmem:[%s5256 + $0x8] sm:$0xff]
    %v5259 = vld [vmem:[%s5256 + $0x10] sm:$0xff]
    %v5260 = vld [vmem:[%s5256 + $0x18] sm:$0xff]
    %v5261 = vld [vmem:[%s5256 + $0x20] sm:$0xff]
    %v5262 = vld [vmem:[%s5256 + $0x28] sm:$0xff]
    %v5263 = vld [vmem:[%s5256 + $0x30] sm:$0xff]
    %v5264 = vld [vmem:[%s5256 + $0x38] sm:$0xff]
    %v5265 = vld [vmem:[%s5256 + $0x40] sm:$0xff]
    %v5266 = vld [vmem:[%s5256 + $0x48] sm:$0xff]
    %v5267 = vld [vmem:[%s5256 + $0x50] sm:$0xff]
    %v5268 = vld [vmem:[%s5256 + $0x58] sm:$0xff]
    %v5269 = vld [vmem:[%s5256 + $0x60] sm:$0xff]
    %v5270 = vld [vmem:[%s5256 + $0x68] sm:$0xff]
    %v5271 = vld [vmem:[%s5256 + $0x70] sm:$0xff]
    %v5272 = vld [vmem:[%s5256 + $0x78] sm:$0xff]
    %5273 = vmatpush.msra.mxu0 %v5272
    %5274 = vmatpush.msra.mxu0 %v5271
    %5275 = vmatpush.msra.mxu0 %v5270
    %5276 = vmatpush.msra.mxu0 %v5269
    %5277 = vmatpush.msra.mxu0 %v5268
    %5278 = vmatpush.msra.mxu0 %v5267
    %5279 = vmatpush.msra.mxu0 %v5266
    %5280 = vmatpush.msra.mxu0 %v5265
    %5281 = vmatpush.msra.mxu0 %v5264
    %5282 = vmatpush.msra.mxu0 %v5263
    %5283 = vmatpush.msra.mxu0 %v5262
    %5284 = vmatpush.msra.mxu0 %v5261
    %5285 = vmatpush.msra.mxu0 %v5260
    %5286 = vmatpush.msra.mxu0 %v5259
    %5287 = vmatpush.msra.mxu0 %v5258
    %5288 = vmatpush.msra.mxu0 %v5257
    %5289 = vmatmul.f32.gmra.mxu0 %v5240
    %v5290 = vpop.f32.mrf.mxu0
    %v5291 = vadd.f32 0.0, %v5290
    %5292 = vmatmul.f32.gmra.mxu0 %v5241
    %v5293 = vpop.f32.mrf.mxu0
    %v5294 = vadd.f32 0.0, %v5293
    %5295 = vmatmul.f32.gmra.mxu0 %v5242
    %v5296 = vpop.f32.mrf.mxu0
    %v5297 = vadd.f32 0.0, %v5296
    %5298 = vmatmul.f32.gmra.mxu0 %v5243
    %v5299 = vpop.f32.mrf.mxu0
    %v5300 = vadd.f32 0.0, %v5299
    %5301 = vmatmul.f32.gmra.mxu0 %v5244
    %v5302 = vpop.f32.mrf.mxu0
    %v5303 = vadd.f32 0.0, %v5302
    %5304 = vmatmul.f32.gmra.mxu0 %v5245
    %v5305 = vpop.f32.mrf.mxu0
    %v5306 = vadd.f32 0.0, %v5305
    %5307 = vmatmul.f32.gmra.mxu0 %v5246
    %v5308 = vpop.f32.mrf.mxu0
    %v5309 = vadd.f32 0.0, %v5308
    %5310 = vmatmul.f32.gmra.mxu0 %v5247
    %v5311 = vpop.f32.mrf.mxu0
    %v5312 = vadd.f32 0.0, %v5311
    %5313 = vmatmul.f32.gmra.mxu0 %v5248
    %v5314 = vpop.f32.mrf.mxu0
    %v5315 = vadd.f32 0.0, %v5314
    %5316 = vmatmul.f32.gmra.mxu0 %v5249
    %v5317 = vpop.f32.mrf.mxu0
    %v5318 = vadd.f32 0.0, %v5317
    %5319 = vmatmul.f32.gmra.mxu0 %v5250
    %v5320 = vpop.f32.mrf.mxu0
    %v5321 = vadd.f32 0.0, %v5320
    %5322 = vmatmul.f32.gmra.mxu0 %v5251
    %v5323 = vpop.f32.mrf.mxu0
    %v5324 = vadd.f32 0.0, %v5323
    %5325 = vmatmul.f32.gmra.mxu0 %v5252
    %v5326 = vpop.f32.mrf.mxu0
    %v5327 = vadd.f32 0.0, %v5326
    %5328 = vmatmul.f32.gmra.mxu0 %v5253
    %v5329 = vpop.f32.mrf.mxu0
    %v5330 = vadd.f32 0.0, %v5329
    %5331 = vmatmul.f32.gmra.mxu0 %v5254
    %v5332 = vpop.f32.mrf.mxu0
    %v5333 = vadd.f32 0.0, %v5332
    %5334 = vmatmul.f32.gmra.mxu0 %v5255
    %v5335 = vpop.f32.mrf.mxu0
    %v5336 = vadd.f32 0.0, %v5335
    %5337 = vdwg.mxu0
    %v5338 = vadd.f32 %v5193, %v5291
    %v5339 = vadd.f32 %v5196, %v5294
    %v5340 = vadd.f32 %v5199, %v5297
    %v5341 = vadd.f32 %v5202, %v5300
    %v5342 = vadd.f32 %v5205, %v5303
    %v5343 = vadd.f32 %v5208, %v5306
    %v5344 = vadd.f32 %v5211, %v5309
    %v5345 = vadd.f32 %v5214, %v5312
    %v5346 = vadd.f32 %v5217, %v5315
    %v5347 = vadd.f32 %v5220, %v5318
    %v5348 = vadd.f32 %v5223, %v5321
    %v5349 = vadd.f32 %v5226, %v5324
    %v5350 = vadd.f32 %v5229, %v5327
    %v5351 = vadd.f32 %v5232, %v5330
    %v5352 = vadd.f32 %v5235, %v5333
    %v5353 = vadd.f32 %v5238, %v5336
    %v5354 = vld [vmem:[%s125] sm:$0xff]
    %v5355 = vld [vmem:[%s125 + $0x10] sm:$0xff]
    %v5356 = vld [vmem:[%s125 + $0x20] sm:$0xff]
    %v5357 = vld [vmem:[%s125 + $0x30] sm:$0xff]
    %v5358 = vld [vmem:[%s125 + $0x40] sm:$0xff]
    %v5359 = vld [vmem:[%s125 + $0x50] sm:$0xff]
    %v5360 = vld [vmem:[%s125 + $0x60] sm:$0xff]
    %v5361 = vld [vmem:[%s125 + $0x70] sm:$0xff]
    %v5362 = vld [vmem:[%s125 + $0xa0] sm:$0xff]
    %v5363 = vld [vmem:[%s125 + $0xb0] sm:$0xff]
    %v5364 = vld [vmem:[%s125 + $0xc0] sm:$0xff]
    %v5365 = vld [vmem:[%s125 + $0xd0] sm:$0xff]
    %v5366 = vld [vmem:[%s125 + $0xe0] sm:$0xff]
    %v5367 = vld [vmem:[%s125 + $0xf0] sm:$0xff]
    %v5368 = vld [vmem:[%s125 + $0x100] sm:$0xff]
    %v5369 = vld [vmem:[%s125 + $0x110] sm:$0xff]
    %s5370 = scalar_lea.vmem [#allocation3], 4992
    %v5371 = vld [vmem:[%s5370] sm:$0xff]
    %v5372 = vld [vmem:[%s5370 + $0x8] sm:$0xff]
    %v5373 = vld [vmem:[%s5370 + $0x10] sm:$0xff]
    %v5374 = vld [vmem:[%s5370 + $0x18] sm:$0xff]
    %v5375 = vld [vmem:[%s5370 + $0x20] sm:$0xff]
    %v5376 = vld [vmem:[%s5370 + $0x28] sm:$0xff]
    %v5377 = vld [vmem:[%s5370 + $0x30] sm:$0xff]
    %v5378 = vld [vmem:[%s5370 + $0x38] sm:$0xff]
    %v5379 = vld [vmem:[%s5370 + $0x40] sm:$0xff]
    %v5380 = vld [vmem:[%s5370 + $0x48] sm:$0xff]
    %v5381 = vld [vmem:[%s5370 + $0x50] sm:$0xff]
    %v5382 = vld [vmem:[%s5370 + $0x58] sm:$0xff]
    %v5383 = vld [vmem:[%s5370 + $0x60] sm:$0xff]
    %v5384 = vld [vmem:[%s5370 + $0x68] sm:$0xff]
    %v5385 = vld [vmem:[%s5370 + $0x70] sm:$0xff]
    %v5386 = vld [vmem:[%s5370 + $0x78] sm:$0xff]
    %5387 = vmatpush.msra.mxu0 %v5386
    %5388 = vmatpush.msra.mxu0 %v5385
    %5389 = vmatpush.msra.mxu0 %v5384
    %5390 = vmatpush.msra.mxu0 %v5383
    %5391 = vmatpush.msra.mxu0 %v5382
    %5392 = vmatpush.msra.mxu0 %v5381
    %5393 = vmatpush.msra.mxu0 %v5380
    %5394 = vmatpush.msra.mxu0 %v5379
    %5395 = vmatpush.msra.mxu0 %v5378
    %5396 = vmatpush.msra.mxu0 %v5377
    %5397 = vmatpush.msra.mxu0 %v5376
    %5398 = vmatpush.msra.mxu0 %v5375
    %5399 = vmatpush.msra.mxu0 %v5374
    %5400 = vmatpush.msra.mxu0 %v5373
    %5401 = vmatpush.msra.mxu0 %v5372
    %5402 = vmatpush.msra.mxu0 %v5371
    %5403 = vmatmul.f32.gmra.mxu0 %v5354
    %v5404 = vpop.f32.mrf.mxu0
    %v5405 = vadd.f32 0.0, %v5404
    %5406 = vmatmul.f32.gmra.mxu0 %v5355
    %v5407 = vpop.f32.mrf.mxu0
    %v5408 = vadd.f32 0.0, %v5407
    %5409 = vmatmul.f32.gmra.mxu0 %v5356
    %v5410 = vpop.f32.mrf.mxu0
    %v5411 = vadd.f32 0.0, %v5410
    %5412 = vmatmul.f32.gmra.mxu0 %v5357
    %v5413 = vpop.f32.mrf.mxu0
    %v5414 = vadd.f32 0.0, %v5413
    %5415 = vmatmul.f32.gmra.mxu0 %v5358
    %v5416 = vpop.f32.mrf.mxu0
    %v5417 = vadd.f32 0.0, %v5416
    %5418 = vmatmul.f32.gmra.mxu0 %v5359
    %v5419 = vpop.f32.mrf.mxu0
    %v5420 = vadd.f32 0.0, %v5419
    %5421 = vmatmul.f32.gmra.mxu0 %v5360
    %v5422 = vpop.f32.mrf.mxu0
    %v5423 = vadd.f32 0.0, %v5422
    %5424 = vmatmul.f32.gmra.mxu0 %v5361
    %v5425 = vpop.f32.mrf.mxu0
    %v5426 = vadd.f32 0.0, %v5425
    %5427 = vmatmul.f32.gmra.mxu0 %v5362
    %v5428 = vpop.f32.mrf.mxu0
    %v5429 = vadd.f32 0.0, %v5428
    %5430 = vmatmul.f32.gmra.mxu0 %v5363
    %v5431 = vpop.f32.mrf.mxu0
    %v5432 = vadd.f32 0.0, %v5431
    %5433 = vmatmul.f32.gmra.mxu0 %v5364
    %v5434 = vpop.f32.mrf.mxu0
    %v5435 = vadd.f32 0.0, %v5434
    %5436 = vmatmul.f32.gmra.mxu0 %v5365
    %v5437 = vpop.f32.mrf.mxu0
    %v5438 = vadd.f32 0.0, %v5437
    %5439 = vmatmul.f32.gmra.mxu0 %v5366
    %v5440 = vpop.f32.mrf.mxu0
    %v5441 = vadd.f32 0.0, %v5440
    %5442 = vmatmul.f32.gmra.mxu0 %v5367
    %v5443 = vpop.f32.mrf.mxu0
    %v5444 = vadd.f32 0.0, %v5443
    %5445 = vmatmul.f32.gmra.mxu0 %v5368
    %v5446 = vpop.f32.mrf.mxu0
    %v5447 = vadd.f32 0.0, %v5446
    %5448 = vmatmul.f32.gmra.mxu0 %v5369
    %v5449 = vpop.f32.mrf.mxu0
    %v5450 = vadd.f32 0.0, %v5449
    %5451 = vdwg.mxu0
    %v5452 = vadd.f32 %v5338, %v5405
    %v5453 = vadd.f32 %v5339, %v5408
    %v5454 = vadd.f32 %v5340, %v5411
    %v5455 = vadd.f32 %v5341, %v5414
    %v5456 = vadd.f32 %v5342, %v5417
    %v5457 = vadd.f32 %v5343, %v5420
    %v5458 = vadd.f32 %v5344, %v5423
    %v5459 = vadd.f32 %v5345, %v5426
    %v5460 = vadd.f32 %v5346, %v5429
    %v5461 = vadd.f32 %v5347, %v5432
    %v5462 = vadd.f32 %v5348, %v5435
    %v5463 = vadd.f32 %v5349, %v5438
    %v5464 = vadd.f32 %v5350, %v5441
    %v5465 = vadd.f32 %v5351, %v5444
    %v5466 = vadd.f32 %v5352, %v5447
    %v5467 = vadd.f32 %v5353, %v5450
    %v5468 = vld [vmem:[%s125 + $0x1] sm:$0xff]
    %v5469 = vld [vmem:[%s125 + $0x11] sm:$0xff]
    %v5470 = vld [vmem:[%s125 + $0x21] sm:$0xff]
    %v5471 = vld [vmem:[%s125 + $0x31] sm:$0xff]
    %v5472 = vld [vmem:[%s125 + $0x41] sm:$0xff]
    %v5473 = vld [vmem:[%s125 + $0x51] sm:$0xff]
    %v5474 = vld [vmem:[%s125 + $0x61] sm:$0xff]
    %v5475 = vld [vmem:[%s125 + $0x71] sm:$0xff]
    %v5476 = vld [vmem:[%s125 + $0xa1] sm:$0xff]
    %v5477 = vld [vmem:[%s125 + $0xb1] sm:$0xff]
    %v5478 = vld [vmem:[%s125 + $0xc1] sm:$0xff]
    %v5479 = vld [vmem:[%s125 + $0xd1] sm:$0xff]
    %v5480 = vld [vmem:[%s125 + $0xe1] sm:$0xff]
    %v5481 = vld [vmem:[%s125 + $0xf1] sm:$0xff]
    %v5482 = vld [vmem:[%s125 + $0x101] sm:$0xff]
    %v5483 = vld [vmem:[%s125 + $0x111] sm:$0xff]
    %s5484 = scalar_lea.vmem [#allocation3], 5120
    %v5485 = vld [vmem:[%s5484] sm:$0xff]
    %v5486 = vld [vmem:[%s5484 + $0x8] sm:$0xff]
    %v5487 = vld [vmem:[%s5484 + $0x10] sm:$0xff]
    %v5488 = vld [vmem:[%s5484 + $0x18] sm:$0xff]
    %v5489 = vld [vmem:[%s5484 + $0x20] sm:$0xff]
    %v5490 = vld [vmem:[%s5484 + $0x28] sm:$0xff]
    %v5491 = vld [vmem:[%s5484 + $0x30] sm:$0xff]
    %v5492 = vld [vmem:[%s5484 + $0x38] sm:$0xff]
    %v5493 = vld [vmem:[%s5484 + $0x40] sm:$0xff]
    %v5494 = vld [vmem:[%s5484 + $0x48] sm:$0xff]
    %v5495 = vld [vmem:[%s5484 + $0x50] sm:$0xff]
    %v5496 = vld [vmem:[%s5484 + $0x58] sm:$0xff]
    %v5497 = vld [vmem:[%s5484 + $0x60] sm:$0xff]
    %v5498 = vld [vmem:[%s5484 + $0x68] sm:$0xff]
    %v5499 = vld [vmem:[%s5484 + $0x70] sm:$0xff]
    %v5500 = vld [vmem:[%s5484 + $0x78] sm:$0xff]
    %5501 = vmatpush.msra.mxu0 %v5500
    %5502 = vmatpush.msra.mxu0 %v5499
    %5503 = vmatpush.msra.mxu0 %v5498
    %5504 = vmatpush.msra.mxu0 %v5497
    %5505 = vmatpush.msra.mxu0 %v5496
    %5506 = vmatpush.msra.mxu0 %v5495
    %5507 = vmatpush.msra.mxu0 %v5494
    %5508 = vmatpush.msra.mxu0 %v5493
    %5509 = vmatpush.msra.mxu0 %v5492
    %5510 = vmatpush.msra.mxu0 %v5491
    %5511 = vmatpush.msra.mxu0 %v5490
    %5512 = vmatpush.msra.mxu0 %v5489
    %5513 = vmatpush.msra.mxu0 %v5488
    %5514 = vmatpush.msra.mxu0 %v5487
    %5515 = vmatpush.msra.mxu0 %v5486
    %5516 = vmatpush.msra.mxu0 %v5485
    %5517 = vmatmul.f32.gmra.mxu0 %v5468
    %v5518 = vpop.f32.mrf.mxu0
    %v5519 = vadd.f32 0.0, %v5518
    %5520 = vmatmul.f32.gmra.mxu0 %v5469
    %v5521 = vpop.f32.mrf.mxu0
    %v5522 = vadd.f32 0.0, %v5521
    %5523 = vmatmul.f32.gmra.mxu0 %v5470
    %v5524 = vpop.f32.mrf.mxu0
    %v5525 = vadd.f32 0.0, %v5524
    %5526 = vmatmul.f32.gmra.mxu0 %v5471
    %v5527 = vpop.f32.mrf.mxu0
    %v5528 = vadd.f32 0.0, %v5527
    %5529 = vmatmul.f32.gmra.mxu0 %v5472
    %v5530 = vpop.f32.mrf.mxu0
    %v5531 = vadd.f32 0.0, %v5530
    %5532 = vmatmul.f32.gmra.mxu0 %v5473
    %v5533 = vpop.f32.mrf.mxu0
    %v5534 = vadd.f32 0.0, %v5533
    %5535 = vmatmul.f32.gmra.mxu0 %v5474
    %v5536 = vpop.f32.mrf.mxu0
    %v5537 = vadd.f32 0.0, %v5536
    %5538 = vmatmul.f32.gmra.mxu0 %v5475
    %v5539 = vpop.f32.mrf.mxu0
    %v5540 = vadd.f32 0.0, %v5539
    %5541 = vmatmul.f32.gmra.mxu0 %v5476
    %v5542 = vpop.f32.mrf.mxu0
    %v5543 = vadd.f32 0.0, %v5542
    %5544 = vmatmul.f32.gmra.mxu0 %v5477
    %v5545 = vpop.f32.mrf.mxu0
    %v5546 = vadd.f32 0.0, %v5545
    %5547 = vmatmul.f32.gmra.mxu0 %v5478
    %v5548 = vpop.f32.mrf.mxu0
    %v5549 = vadd.f32 0.0, %v5548
    %5550 = vmatmul.f32.gmra.mxu0 %v5479
    %v5551 = vpop.f32.mrf.mxu0
    %v5552 = vadd.f32 0.0, %v5551
    %5553 = vmatmul.f32.gmra.mxu0 %v5480
    %v5554 = vpop.f32.mrf.mxu0
    %v5555 = vadd.f32 0.0, %v5554
    %5556 = vmatmul.f32.gmra.mxu0 %v5481
    %v5557 = vpop.f32.mrf.mxu0
    %v5558 = vadd.f32 0.0, %v5557
    %5559 = vmatmul.f32.gmra.mxu0 %v5482
    %v5560 = vpop.f32.mrf.mxu0
    %v5561 = vadd.f32 0.0, %v5560
    %5562 = vmatmul.f32.gmra.mxu0 %v5483
    %v5563 = vpop.f32.mrf.mxu0
    %v5564 = vadd.f32 0.0, %v5563
    %5565 = vdwg.mxu0
    %v5566 = vadd.f32 %v5452, %v5519
    %v5567 = vadd.f32 %v5453, %v5522
    %v5568 = vadd.f32 %v5454, %v5525
    %v5569 = vadd.f32 %v5455, %v5528
    %v5570 = vadd.f32 %v5456, %v5531
    %v5571 = vadd.f32 %v5457, %v5534
    %v5572 = vadd.f32 %v5458, %v5537
    %v5573 = vadd.f32 %v5459, %v5540
    %v5574 = vadd.f32 %v5460, %v5543
    %v5575 = vadd.f32 %v5461, %v5546
    %v5576 = vadd.f32 %v5462, %v5549
    %v5577 = vadd.f32 %v5463, %v5552
    %v5578 = vadd.f32 %v5464, %v5555
    %v5579 = vadd.f32 %v5465, %v5558
    %v5580 = vadd.f32 %v5466, %v5561
    %v5581 = vadd.f32 %v5467, %v5564
    %v5582 = vld [vmem:[%s125 + $0x2] sm:$0xff]
    %v5583 = vld [vmem:[%s125 + $0x12] sm:$0xff]
    %v5584 = vld [vmem:[%s125 + $0x22] sm:$0xff]
    %v5585 = vld [vmem:[%s125 + $0x32] sm:$0xff]
    %v5586 = vld [vmem:[%s125 + $0x42] sm:$0xff]
    %v5587 = vld [vmem:[%s125 + $0x52] sm:$0xff]
    %v5588 = vld [vmem:[%s125 + $0x62] sm:$0xff]
    %v5589 = vld [vmem:[%s125 + $0x72] sm:$0xff]
    %v5590 = vld [vmem:[%s125 + $0xa2] sm:$0xff]
    %v5591 = vld [vmem:[%s125 + $0xb2] sm:$0xff]
    %v5592 = vld [vmem:[%s125 + $0xc2] sm:$0xff]
    %v5593 = vld [vmem:[%s125 + $0xd2] sm:$0xff]
    %v5594 = vld [vmem:[%s125 + $0xe2] sm:$0xff]
    %v5595 = vld [vmem:[%s125 + $0xf2] sm:$0xff]
    %v5596 = vld [vmem:[%s125 + $0x102] sm:$0xff]
    %v5597 = vld [vmem:[%s125 + $0x112] sm:$0xff]
    %s5598 = scalar_lea.vmem [#allocation3], 5248
    %v5599 = vld [vmem:[%s5598] sm:$0xff]
    %v5600 = vld [vmem:[%s5598 + $0x8] sm:$0xff]
    %v5601 = vld [vmem:[%s5598 + $0x10] sm:$0xff]
    %v5602 = vld [vmem:[%s5598 + $0x18] sm:$0xff]
    %v5603 = vld [vmem:[%s5598 + $0x20] sm:$0xff]
    %v5604 = vld [vmem:[%s5598 + $0x28] sm:$0xff]
    %v5605 = vld [vmem:[%s5598 + $0x30] sm:$0xff]
    %v5606 = vld [vmem:[%s5598 + $0x38] sm:$0xff]
    %v5607 = vld [vmem:[%s5598 + $0x40] sm:$0xff]
    %v5608 = vld [vmem:[%s5598 + $0x48] sm:$0xff]
    %v5609 = vld [vmem:[%s5598 + $0x50] sm:$0xff]
    %v5610 = vld [vmem:[%s5598 + $0x58] sm:$0xff]
    %v5611 = vld [vmem:[%s5598 + $0x60] sm:$0xff]
    %v5612 = vld [vmem:[%s5598 + $0x68] sm:$0xff]
    %v5613 = vld [vmem:[%s5598 + $0x70] sm:$0xff]
    %v5614 = vld [vmem:[%s5598 + $0x78] sm:$0xff]
    %5615 = vmatpush.msra.mxu0 %v5614
    %5616 = vmatpush.msra.mxu0 %v5613
    %5617 = vmatpush.msra.mxu0 %v5612
    %5618 = vmatpush.msra.mxu0 %v5611
    %5619 = vmatpush.msra.mxu0 %v5610
    %5620 = vmatpush.msra.mxu0 %v5609
    %5621 = vmatpush.msra.mxu0 %v5608
    %5622 = vmatpush.msra.mxu0 %v5607
    %5623 = vmatpush.msra.mxu0 %v5606
    %5624 = vmatpush.msra.mxu0 %v5605
    %5625 = vmatpush.msra.mxu0 %v5604
    %5626 = vmatpush.msra.mxu0 %v5603
    %5627 = vmatpush.msra.mxu0 %v5602
    %5628 = vmatpush.msra.mxu0 %v5601
    %5629 = vmatpush.msra.mxu0 %v5600
    %5630 = vmatpush.msra.mxu0 %v5599
    %5631 = vmatmul.f32.gmra.mxu0 %v5582
    %v5632 = vpop.f32.mrf.mxu0
    %v5633 = vadd.f32 0.0, %v5632
    %5634 = vmatmul.f32.gmra.mxu0 %v5583
    %v5635 = vpop.f32.mrf.mxu0
    %v5636 = vadd.f32 0.0, %v5635
    %5637 = vmatmul.f32.gmra.mxu0 %v5584
    %v5638 = vpop.f32.mrf.mxu0
    %v5639 = vadd.f32 0.0, %v5638
    %5640 = vmatmul.f32.gmra.mxu0 %v5585
    %v5641 = vpop.f32.mrf.mxu0
    %v5642 = vadd.f32 0.0, %v5641
    %5643 = vmatmul.f32.gmra.mxu0 %v5586
    %v5644 = vpop.f32.mrf.mxu0
    %v5645 = vadd.f32 0.0, %v5644
    %5646 = vmatmul.f32.gmra.mxu0 %v5587
    %v5647 = vpop.f32.mrf.mxu0
    %v5648 = vadd.f32 0.0, %v5647
    %5649 = vmatmul.f32.gmra.mxu0 %v5588
    %v5650 = vpop.f32.mrf.mxu0
    %v5651 = vadd.f32 0.0, %v5650
    %5652 = vmatmul.f32.gmra.mxu0 %v5589
    %v5653 = vpop.f32.mrf.mxu0
    %v5654 = vadd.f32 0.0, %v5653
    %5655 = vmatmul.f32.gmra.mxu0 %v5590
    %v5656 = vpop.f32.mrf.mxu0
    %v5657 = vadd.f32 0.0, %v5656
    %5658 = vmatmul.f32.gmra.mxu0 %v5591
    %v5659 = vpop.f32.mrf.mxu0
    %v5660 = vadd.f32 0.0, %v5659
    %5661 = vmatmul.f32.gmra.mxu0 %v5592
    %v5662 = vpop.f32.mrf.mxu0
    %v5663 = vadd.f32 0.0, %v5662
    %5664 = vmatmul.f32.gmra.mxu0 %v5593
    %v5665 = vpop.f32.mrf.mxu0
    %v5666 = vadd.f32 0.0, %v5665
    %5667 = vmatmul.f32.gmra.mxu0 %v5594
    %v5668 = vpop.f32.mrf.mxu0
    %v5669 = vadd.f32 0.0, %v5668
    %5670 = vmatmul.f32.gmra.mxu0 %v5595
    %v5671 = vpop.f32.mrf.mxu0
    %v5672 = vadd.f32 0.0, %v5671
    %5673 = vmatmul.f32.gmra.mxu0 %v5596
    %v5674 = vpop.f32.mrf.mxu0
    %v5675 = vadd.f32 0.0, %v5674
    %5676 = vmatmul.f32.gmra.mxu0 %v5597
    %v5677 = vpop.f32.mrf.mxu0
    %v5678 = vadd.f32 0.0, %v5677
    %5679 = vdwg.mxu0
    %v5680 = vadd.f32 %v5566, %v5633
    %v5681 = vadd.f32 %v5567, %v5636
    %v5682 = vadd.f32 %v5568, %v5639
    %v5683 = vadd.f32 %v5569, %v5642
    %v5684 = vadd.f32 %v5570, %v5645
    %v5685 = vadd.f32 %v5571, %v5648
    %v5686 = vadd.f32 %v5572, %v5651
    %v5687 = vadd.f32 %v5573, %v5654
    %v5688 = vadd.f32 %v5574, %v5657
    %v5689 = vadd.f32 %v5575, %v5660
    %v5690 = vadd.f32 %v5576, %v5663
    %v5691 = vadd.f32 %v5577, %v5666
    %v5692 = vadd.f32 %v5578, %v5669
    %v5693 = vadd.f32 %v5579, %v5672
    %v5694 = vadd.f32 %v5580, %v5675
    %v5695 = vadd.f32 %v5581, %v5678
    %v5696 = vld [vmem:[%s793] sm:$0xff]
    %v5697 = vld [vmem:[%s793 + $0x10] sm:$0xff]
    %v5698 = vld [vmem:[%s793 + $0x20] sm:$0xff]
    %v5699 = vld [vmem:[%s793 + $0x30] sm:$0xff]
    %v5700 = vld [vmem:[%s793 + $0x40] sm:$0xff]
    %v5701 = vld [vmem:[%s793 + $0x50] sm:$0xff]
    %v5702 = vld [vmem:[%s793 + $0x60] sm:$0xff]
    %v5703 = vld [vmem:[%s793 + $0x70] sm:$0xff]
    %v5704 = vld [vmem:[%s793 + $0xa0] sm:$0xff]
    %v5705 = vld [vmem:[%s793 + $0xb0] sm:$0xff]
    %v5706 = vld [vmem:[%s793 + $0xc0] sm:$0xff]
    %v5707 = vld [vmem:[%s793 + $0xd0] sm:$0xff]
    %v5708 = vld [vmem:[%s793 + $0xe0] sm:$0xff]
    %v5709 = vld [vmem:[%s793 + $0xf0] sm:$0xff]
    %v5710 = vld [vmem:[%s793 + $0x100] sm:$0xff]
    %v5711 = vld [vmem:[%s793 + $0x110] sm:$0xff]
    %s5712 = scalar_lea.vmem [#allocation3], 5376
    %v5713 = vld [vmem:[%s5712] sm:$0xff]
    %v5714 = vld [vmem:[%s5712 + $0x8] sm:$0xff]
    %v5715 = vld [vmem:[%s5712 + $0x10] sm:$0xff]
    %v5716 = vld [vmem:[%s5712 + $0x18] sm:$0xff]
    %v5717 = vld [vmem:[%s5712 + $0x20] sm:$0xff]
    %v5718 = vld [vmem:[%s5712 + $0x28] sm:$0xff]
    %v5719 = vld [vmem:[%s5712 + $0x30] sm:$0xff]
    %v5720 = vld [vmem:[%s5712 + $0x38] sm:$0xff]
    %v5721 = vld [vmem:[%s5712 + $0x40] sm:$0xff]
    %v5722 = vld [vmem:[%s5712 + $0x48] sm:$0xff]
    %v5723 = vld [vmem:[%s5712 + $0x50] sm:$0xff]
    %v5724 = vld [vmem:[%s5712 + $0x58] sm:$0xff]
    %v5725 = vld [vmem:[%s5712 + $0x60] sm:$0xff]
    %v5726 = vld [vmem:[%s5712 + $0x68] sm:$0xff]
    %v5727 = vld [vmem:[%s5712 + $0x70] sm:$0xff]
    %v5728 = vld [vmem:[%s5712 + $0x78] sm:$0xff]
    %5729 = vmatpush.msra.mxu0 %v5728
    %5730 = vmatpush.msra.mxu0 %v5727
    %5731 = vmatpush.msra.mxu0 %v5726
    %5732 = vmatpush.msra.mxu0 %v5725
    %5733 = vmatpush.msra.mxu0 %v5724
    %5734 = vmatpush.msra.mxu0 %v5723
    %5735 = vmatpush.msra.mxu0 %v5722
    %5736 = vmatpush.msra.mxu0 %v5721
    %5737 = vmatpush.msra.mxu0 %v5720
    %5738 = vmatpush.msra.mxu0 %v5719
    %5739 = vmatpush.msra.mxu0 %v5718
    %5740 = vmatpush.msra.mxu0 %v5717
    %5741 = vmatpush.msra.mxu0 %v5716
    %5742 = vmatpush.msra.mxu0 %v5715
    %5743 = vmatpush.msra.mxu0 %v5714
    %5744 = vmatpush.msra.mxu0 %v5713
    %5745 = vmatmul.f32.gmra.mxu0 %v5696
    %v5746 = vpop.f32.mrf.mxu0
    %v5747 = vadd.f32 0.0, %v5746
    %5748 = vmatmul.f32.gmra.mxu0 %v5697
    %v5749 = vpop.f32.mrf.mxu0
    %v5750 = vadd.f32 0.0, %v5749
    %5751 = vmatmul.f32.gmra.mxu0 %v5698
    %v5752 = vpop.f32.mrf.mxu0
    %v5753 = vadd.f32 0.0, %v5752
    %5754 = vmatmul.f32.gmra.mxu0 %v5699
    %v5755 = vpop.f32.mrf.mxu0
    %v5756 = vadd.f32 0.0, %v5755
    %5757 = vmatmul.f32.gmra.mxu0 %v5700
    %v5758 = vpop.f32.mrf.mxu0
    %v5759 = vadd.f32 0.0, %v5758
    %5760 = vmatmul.f32.gmra.mxu0 %v5701
    %v5761 = vpop.f32.mrf.mxu0
    %v5762 = vadd.f32 0.0, %v5761
    %5763 = vmatmul.f32.gmra.mxu0 %v5702
    %v5764 = vpop.f32.mrf.mxu0
    %v5765 = vadd.f32 0.0, %v5764
    %5766 = vmatmul.f32.gmra.mxu0 %v5703
    %v5767 = vpop.f32.mrf.mxu0
    %v5768 = vadd.f32 0.0, %v5767
    %5769 = vmatmul.f32.gmra.mxu0 %v5704
    %v5770 = vpop.f32.mrf.mxu0
    %v5771 = vadd.f32 0.0, %v5770
    %5772 = vmatmul.f32.gmra.mxu0 %v5705
    %v5773 = vpop.f32.mrf.mxu0
    %v5774 = vadd.f32 0.0, %v5773
    %5775 = vmatmul.f32.gmra.mxu0 %v5706
    %v5776 = vpop.f32.mrf.mxu0
    %v5777 = vadd.f32 0.0, %v5776
    %5778 = vmatmul.f32.gmra.mxu0 %v5707
    %v5779 = vpop.f32.mrf.mxu0
    %v5780 = vadd.f32 0.0, %v5779
    %5781 = vmatmul.f32.gmra.mxu0 %v5708
    %v5782 = vpop.f32.mrf.mxu0
    %v5783 = vadd.f32 0.0, %v5782
    %5784 = vmatmul.f32.gmra.mxu0 %v5709
    %v5785 = vpop.f32.mrf.mxu0
    %v5786 = vadd.f32 0.0, %v5785
    %5787 = vmatmul.f32.gmra.mxu0 %v5710
    %v5788 = vpop.f32.mrf.mxu0
    %v5789 = vadd.f32 0.0, %v5788
    %5790 = vmatmul.f32.gmra.mxu0 %v5711
    %v5791 = vpop.f32.mrf.mxu0
    %v5792 = vadd.f32 0.0, %v5791
    %5793 = vdwg.mxu0
    %v5794 = vadd.f32 %v5680, %v5747
    %v5795 = vadd.f32 %v5681, %v5750
    %v5796 = vadd.f32 %v5682, %v5753
    %v5797 = vadd.f32 %v5683, %v5756
    %v5798 = vadd.f32 %v5684, %v5759
    %v5799 = vadd.f32 %v5685, %v5762
    %v5800 = vadd.f32 %v5686, %v5765
    %v5801 = vadd.f32 %v5687, %v5768
    %v5802 = vadd.f32 %v5688, %v5771
    %v5803 = vadd.f32 %v5689, %v5774
    %v5804 = vadd.f32 %v5690, %v5777
    %v5805 = vadd.f32 %v5691, %v5780
    %v5806 = vadd.f32 %v5692, %v5783
    %v5807 = vadd.f32 %v5693, %v5786
    %v5808 = vadd.f32 %v5694, %v5789
    %v5809 = vadd.f32 %v5695, %v5792
    %v5810 = vld [vmem:[%s793 + $0x1] sm:$0xff]
    %v5811 = vld [vmem:[%s793 + $0x11] sm:$0xff]
    %v5812 = vld [vmem:[%s793 + $0x21] sm:$0xff]
    %v5813 = vld [vmem:[%s793 + $0x31] sm:$0xff]
    %v5814 = vld [vmem:[%s793 + $0x41] sm:$0xff]
    %v5815 = vld [vmem:[%s793 + $0x51] sm:$0xff]
    %v5816 = vld [vmem:[%s793 + $0x61] sm:$0xff]
    %v5817 = vld [vmem:[%s793 + $0x71] sm:$0xff]
    %v5818 = vld [vmem:[%s793 + $0xa1] sm:$0xff]
    %v5819 = vld [vmem:[%s793 + $0xb1] sm:$0xff]
    %v5820 = vld [vmem:[%s793 + $0xc1] sm:$0xff]
    %v5821 = vld [vmem:[%s793 + $0xd1] sm:$0xff]
    %v5822 = vld [vmem:[%s793 + $0xe1] sm:$0xff]
    %v5823 = vld [vmem:[%s793 + $0xf1] sm:$0xff]
    %v5824 = vld [vmem:[%s793 + $0x101] sm:$0xff]
    %v5825 = vld [vmem:[%s793 + $0x111] sm:$0xff]
    %s5826 = scalar_lea.vmem [#allocation3], 5504
    %v5827 = vld [vmem:[%s5826] sm:$0xff]
    %v5828 = vld [vmem:[%s5826 + $0x8] sm:$0xff]
    %v5829 = vld [vmem:[%s5826 + $0x10] sm:$0xff]
    %v5830 = vld [vmem:[%s5826 + $0x18] sm:$0xff]
    %v5831 = vld [vmem:[%s5826 + $0x20] sm:$0xff]
    %v5832 = vld [vmem:[%s5826 + $0x28] sm:$0xff]
    %v5833 = vld [vmem:[%s5826 + $0x30] sm:$0xff]
    %v5834 = vld [vmem:[%s5826 + $0x38] sm:$0xff]
    %v5835 = vld [vmem:[%s5826 + $0x40] sm:$0xff]
    %v5836 = vld [vmem:[%s5826 + $0x48] sm:$0xff]
    %v5837 = vld [vmem:[%s5826 + $0x50] sm:$0xff]
    %v5838 = vld [vmem:[%s5826 + $0x58] sm:$0xff]
    %v5839 = vld [vmem:[%s5826 + $0x60] sm:$0xff]
    %v5840 = vld [vmem:[%s5826 + $0x68] sm:$0xff]
    %v5841 = vld [vmem:[%s5826 + $0x70] sm:$0xff]
    %v5842 = vld [vmem:[%s5826 + $0x78] sm:$0xff]
    %5843 = vmatpush.msra.mxu0 %v5842
    %5844 = vmatpush.msra.mxu0 %v5841
    %5845 = vmatpush.msra.mxu0 %v5840
    %5846 = vmatpush.msra.mxu0 %v5839
    %5847 = vmatpush.msra.mxu0 %v5838
    %5848 = vmatpush.msra.mxu0 %v5837
    %5849 = vmatpush.msra.mxu0 %v5836
    %5850 = vmatpush.msra.mxu0 %v5835
    %5851 = vmatpush.msra.mxu0 %v5834
    %5852 = vmatpush.msra.mxu0 %v5833
    %5853 = vmatpush.msra.mxu0 %v5832
    %5854 = vmatpush.msra.mxu0 %v5831
    %5855 = vmatpush.msra.mxu0 %v5830
    %5856 = vmatpush.msra.mxu0 %v5829
    %5857 = vmatpush.msra.mxu0 %v5828
    %5858 = vmatpush.msra.mxu0 %v5827
    %5859 = vmatmul.f32.gmra.mxu0 %v5810
    %v5860 = vpop.f32.mrf.mxu0
    %v5861 = vadd.f32 0.0, %v5860
    %5862 = vmatmul.f32.gmra.mxu0 %v5811
    %v5863 = vpop.f32.mrf.mxu0
    %v5864 = vadd.f32 0.0, %v5863
    %5865 = vmatmul.f32.gmra.mxu0 %v5812
    %v5866 = vpop.f32.mrf.mxu0
    %v5867 = vadd.f32 0.0, %v5866
    %5868 = vmatmul.f32.gmra.mxu0 %v5813
    %v5869 = vpop.f32.mrf.mxu0
    %v5870 = vadd.f32 0.0, %v5869
    %5871 = vmatmul.f32.gmra.mxu0 %v5814
    %v5872 = vpop.f32.mrf.mxu0
    %v5873 = vadd.f32 0.0, %v5872
    %5874 = vmatmul.f32.gmra.mxu0 %v5815
    %v5875 = vpop.f32.mrf.mxu0
    %v5876 = vadd.f32 0.0, %v5875
    %5877 = vmatmul.f32.gmra.mxu0 %v5816
    %v5878 = vpop.f32.mrf.mxu0
    %v5879 = vadd.f32 0.0, %v5878
    %5880 = vmatmul.f32.gmra.mxu0 %v5817
    %v5881 = vpop.f32.mrf.mxu0
    %v5882 = vadd.f32 0.0, %v5881
    %5883 = vmatmul.f32.gmra.mxu0 %v5818
    %v5884 = vpop.f32.mrf.mxu0
    %v5885 = vadd.f32 0.0, %v5884
    %5886 = vmatmul.f32.gmra.mxu0 %v5819
    %v5887 = vpop.f32.mrf.mxu0
    %v5888 = vadd.f32 0.0, %v5887
    %5889 = vmatmul.f32.gmra.mxu0 %v5820
    %v5890 = vpop.f32.mrf.mxu0
    %v5891 = vadd.f32 0.0, %v5890
    %5892 = vmatmul.f32.gmra.mxu0 %v5821
    %v5893 = vpop.f32.mrf.mxu0
    %v5894 = vadd.f32 0.0, %v5893
    %5895 = vmatmul.f32.gmra.mxu0 %v5822
    %v5896 = vpop.f32.mrf.mxu0
    %v5897 = vadd.f32 0.0, %v5896
    %5898 = vmatmul.f32.gmra.mxu0 %v5823
    %v5899 = vpop.f32.mrf.mxu0
    %v5900 = vadd.f32 0.0, %v5899
    %5901 = vmatmul.f32.gmra.mxu0 %v5824
    %v5902 = vpop.f32.mrf.mxu0
    %v5903 = vadd.f32 0.0, %v5902
    %5904 = vmatmul.f32.gmra.mxu0 %v5825
    %v5905 = vpop.f32.mrf.mxu0
    %v5906 = vadd.f32 0.0, %v5905
    %5907 = vdwg.mxu0
    %v5908 = vadd.f32 %v5794, %v5861
    %v5909 = vadd.f32 %v5795, %v5864
    %v5910 = vadd.f32 %v5796, %v5867
    %v5911 = vadd.f32 %v5797, %v5870
    %v5912 = vadd.f32 %v5798, %v5873
    %v5913 = vadd.f32 %v5799, %v5876
    %v5914 = vadd.f32 %v5800, %v5879
    %v5915 = vadd.f32 %v5801, %v5882
    %v5916 = vadd.f32 %v5802, %v5885
    %v5917 = vadd.f32 %v5803, %v5888
    %v5918 = vadd.f32 %v5804, %v5891
    %v5919 = vadd.f32 %v5805, %v5894
    %v5920 = vadd.f32 %v5806, %v5897
    %v5921 = vadd.f32 %v5807, %v5900
    %v5922 = vadd.f32 %v5808, %v5903
    %v5923 = vadd.f32 %v5809, %v5906
    %v5924 = vld [vmem:[%s793 + $0x2] sm:$0xff]
    %v5925 = vld [vmem:[%s793 + $0x12] sm:$0xff]
    %v5926 = vld [vmem:[%s793 + $0x22] sm:$0xff]
    %v5927 = vld [vmem:[%s793 + $0x32] sm:$0xff]
    %v5928 = vld [vmem:[%s793 + $0x42] sm:$0xff]
    %v5929 = vld [vmem:[%s793 + $0x52] sm:$0xff]
    %v5930 = vld [vmem:[%s793 + $0x62] sm:$0xff]
    %v5931 = vld [vmem:[%s793 + $0x72] sm:$0xff]
    %v5932 = vld [vmem:[%s793 + $0xa2] sm:$0xff]
    %v5933 = vld [vmem:[%s793 + $0xb2] sm:$0xff]
    %v5934 = vld [vmem:[%s793 + $0xc2] sm:$0xff]
    %v5935 = vld [vmem:[%s793 + $0xd2] sm:$0xff]
    %v5936 = vld [vmem:[%s793 + $0xe2] sm:$0xff]
    %v5937 = vld [vmem:[%s793 + $0xf2] sm:$0xff]
    %v5938 = vld [vmem:[%s793 + $0x102] sm:$0xff]
    %v5939 = vld [vmem:[%s793 + $0x112] sm:$0xff]
    %s5940 = scalar_lea.vmem [#allocation3], 5632
    %v5941 = vld [vmem:[%s5940] sm:$0xff]
    %v5942 = vld [vmem:[%s5940 + $0x8] sm:$0xff]
    %v5943 = vld [vmem:[%s5940 + $0x10] sm:$0xff]
    %v5944 = vld [vmem:[%s5940 + $0x18] sm:$0xff]
    %v5945 = vld [vmem:[%s5940 + $0x20] sm:$0xff]
    %v5946 = vld [vmem:[%s5940 + $0x28] sm:$0xff]
    %v5947 = vld [vmem:[%s5940 + $0x30] sm:$0xff]
    %v5948 = vld [vmem:[%s5940 + $0x38] sm:$0xff]
    %v5949 = vld [vmem:[%s5940 + $0x40] sm:$0xff]
    %v5950 = vld [vmem:[%s5940 + $0x48] sm:$0xff]
    %v5951 = vld [vmem:[%s5940 + $0x50] sm:$0xff]
    %v5952 = vld [vmem:[%s5940 + $0x58] sm:$0xff]
    %v5953 = vld [vmem:[%s5940 + $0x60] sm:$0xff]
    %v5954 = vld [vmem:[%s5940 + $0x68] sm:$0xff]
    %v5955 = vld [vmem:[%s5940 + $0x70] sm:$0xff]
    %v5956 = vld [vmem:[%s5940 + $0x78] sm:$0xff]
    %5957 = vmatpush.msra.mxu0 %v5956
    %5958 = vmatpush.msra.mxu0 %v5955
    %5959 = vmatpush.msra.mxu0 %v5954
    %5960 = vmatpush.msra.mxu0 %v5953
    %5961 = vmatpush.msra.mxu0 %v5952
    %5962 = vmatpush.msra.mxu0 %v5951
    %5963 = vmatpush.msra.mxu0 %v5950
    %5964 = vmatpush.msra.mxu0 %v5949
    %5965 = vmatpush.msra.mxu0 %v5948
    %5966 = vmatpush.msra.mxu0 %v5947
    %5967 = vmatpush.msra.mxu0 %v5946
    %5968 = vmatpush.msra.mxu0 %v5945
    %5969 = vmatpush.msra.mxu0 %v5944
    %5970 = vmatpush.msra.mxu0 %v5943
    %5971 = vmatpush.msra.mxu0 %v5942
    %5972 = vmatpush.msra.mxu0 %v5941
    %5973 = vmatmul.f32.gmra.mxu0 %v5924
    %v5974 = vpop.f32.mrf.mxu0
    %v5975 = vadd.f32 0.0, %v5974
    %5976 = vmatmul.f32.gmra.mxu0 %v5925
    %v5977 = vpop.f32.mrf.mxu0
    %v5978 = vadd.f32 0.0, %v5977
    %5979 = vmatmul.f32.gmra.mxu0 %v5926
    %v5980 = vpop.f32.mrf.mxu0
    %v5981 = vadd.f32 0.0, %v5980
    %5982 = vmatmul.f32.gmra.mxu0 %v5927
    %v5983 = vpop.f32.mrf.mxu0
    %v5984 = vadd.f32 0.0, %v5983
    %5985 = vmatmul.f32.gmra.mxu0 %v5928
    %v5986 = vpop.f32.mrf.mxu0
    %v5987 = vadd.f32 0.0, %v5986
    %5988 = vmatmul.f32.gmra.mxu0 %v5929
    %v5989 = vpop.f32.mrf.mxu0
    %v5990 = vadd.f32 0.0, %v5989
    %5991 = vmatmul.f32.gmra.mxu0 %v5930
    %v5992 = vpop.f32.mrf.mxu0
    %v5993 = vadd.f32 0.0, %v5992
    %5994 = vmatmul.f32.gmra.mxu0 %v5931
    %v5995 = vpop.f32.mrf.mxu0
    %v5996 = vadd.f32 0.0, %v5995
    %5997 = vmatmul.f32.gmra.mxu0 %v5932
    %v5998 = vpop.f32.mrf.mxu0
    %v5999 = vadd.f32 0.0, %v5998
    %6000 = vmatmul.f32.gmra.mxu0 %v5933
    %v6001 = vpop.f32.mrf.mxu0
    %v6002 = vadd.f32 0.0, %v6001
    %6003 = vmatmul.f32.gmra.mxu0 %v5934
    %v6004 = vpop.f32.mrf.mxu0
    %v6005 = vadd.f32 0.0, %v6004
    %6006 = vmatmul.f32.gmra.mxu0 %v5935
    %v6007 = vpop.f32.mrf.mxu0
    %v6008 = vadd.f32 0.0, %v6007
    %6009 = vmatmul.f32.gmra.mxu0 %v5936
    %v6010 = vpop.f32.mrf.mxu0
    %v6011 = vadd.f32 0.0, %v6010
    %6012 = vmatmul.f32.gmra.mxu0 %v5937
    %v6013 = vpop.f32.mrf.mxu0
    %v6014 = vadd.f32 0.0, %v6013
    %6015 = vmatmul.f32.gmra.mxu0 %v5938
    %v6016 = vpop.f32.mrf.mxu0
    %v6017 = vadd.f32 0.0, %v6016
    %6018 = vmatmul.f32.gmra.mxu0 %v5939
    %v6019 = vpop.f32.mrf.mxu0
    %v6020 = vadd.f32 0.0, %v6019
    %6021 = vdwg.mxu0
    %v6022 = vadd.f32 %v5908, %v5975
    %v6023 = vadd.f32 %v5909, %v5978
    %v6024 = vadd.f32 %v5910, %v5981
    %v6025 = vadd.f32 %v5911, %v5984
    %v6026 = vadd.f32 %v5912, %v5987
    %v6027 = vadd.f32 %v5913, %v5990
    %v6028 = vadd.f32 %v5914, %v5993
    %v6029 = vadd.f32 %v5915, %v5996
    %v6030 = vadd.f32 %v5916, %v5999
    %v6031 = vadd.f32 %v5917, %v6002
    %v6032 = vadd.f32 %v5918, %v6005
    %v6033 = vadd.f32 %v5919, %v6008
    %v6034 = vadd.f32 %v5920, %v6011
    %v6035 = vadd.f32 %v5921, %v6014
    %v6036 = vadd.f32 %v5922, %v6017
    %v6037 = vadd.f32 %v5923, %v6020
    %v6038 = vadd.f32 %v6022, %v6023
    %v6039 = vadd.f32 %v6038, %v6024
    %v6040 = vadd.f32 %v6039, %v6025
    %v6041 = vadd.f32 %v6040, %v6026
    %v6042 = vadd.f32 %v6041, %v6027
    %v6043 = vadd.f32 %v6042, %v6028
    %v6044 = vadd.f32 %v6043, %v6029
    %v6045 = vadd.f32 %v6044, %v6030
    %v6046 = vadd.f32 %v6045, %v6031
    %v6047 = vadd.f32 %v6046, %v6032
    %v6048 = vadd.f32 %v6047, %v6033
    %v6049 = vadd.f32 %v6048, %v6034
    %v6050 = vadd.f32 %v6049, %v6035
    %v6051 = vadd.f32 %v6050, %v6036
    %v6052 = vadd.f32 %v6051, %v6037
    %v6053 = vrot.slane %v6052, 4
    %v6054 = vadd.f32 %v6052, %v6053
    %v6055 = vrot.slane %v6054, 2
    %v6056 = vadd.f32 %v6054, %v6055
    %v6057 = vrot.slane %v6056, 1
    %v6058 = vadd.f32 %v6056, %v6057
    %v6059 = vmul.f32 %v6058, %v1163
    %v6060 = vsub.f32 %v6022, %v6059
    %v6061 = vsub.f32 %v6023, %v6059
    %v6062 = vsub.f32 %v6024, %v6059
    %v6063 = vsub.f32 %v6025, %v6059
    %v6064 = vsub.f32 %v6026, %v6059
    %v6065 = vsub.f32 %v6027, %v6059
    %v6066 = vsub.f32 %v6028, %v6059
    %v6067 = vsub.f32 %v6029, %v6059
    %v6068 = vsub.f32 %v6030, %v6059
    %v6069 = vsub.f32 %v6031, %v6059
    %v6070 = vsub.f32 %v6032, %v6059
    %v6071 = vsub.f32 %v6033, %v6059
    %v6072 = vsub.f32 %v6034, %v6059
    %v6073 = vsub.f32 %v6035, %v6059
    %v6074 = vsub.f32 %v6036, %v6059
    %v6075 = vsub.f32 %v6037, %v6059
    %v6076 = vmul.f32 %v6060, %v6060
    %v6077 = vmul.f32 %v6061, %v6061
    %v6078 = vmul.f32 %v6062, %v6062
    %v6079 = vmul.f32 %v6063, %v6063
    %v6080 = vmul.f32 %v6064, %v6064
    %v6081 = vmul.f32 %v6065, %v6065
    %v6082 = vmul.f32 %v6066, %v6066
    %v6083 = vmul.f32 %v6067, %v6067
    %v6084 = vmul.f32 %v6068, %v6068
    %v6085 = vmul.f32 %v6069, %v6069
    %v6086 = vmul.f32 %v6070, %v6070
    %v6087 = vmul.f32 %v6071, %v6071
    %v6088 = vmul.f32 %v6072, %v6072
    %v6089 = vmul.f32 %v6073, %v6073
    %v6090 = vmul.f32 %v6074, %v6074
    %v6091 = vmul.f32 %v6075, %v6075
    %v6092 = vadd.f32 %v6076, %v6077
    %v6093 = vadd.f32 %v6092, %v6078
    %v6094 = vadd.f32 %v6093, %v6079
    %v6095 = vadd.f32 %v6094, %v6080
    %v6096 = vadd.f32 %v6095, %v6081
    %v6097 = vadd.f32 %v6096, %v6082
    %v6098 = vadd.f32 %v6097, %v6083
    %v6099 = vadd.f32 %v6098, %v6084
    %v6100 = vadd.f32 %v6099, %v6085
    %v6101 = vadd.f32 %v6100, %v6086
    %v6102 = vadd.f32 %v6101, %v6087
    %v6103 = vadd.f32 %v6102, %v6088
    %v6104 = vadd.f32 %v6103, %v6089
    %v6105 = vadd.f32 %v6104, %v6090
    %v6106 = vadd.f32 %v6105, %v6091
    %v6107 = vrot.slane %v6106, 4
    %v6108 = vadd.f32 %v6106, %v6107
    %v6109 = vrot.slane %v6108, 2
    %v6110 = vadd.f32 %v6108, %v6109
    %v6111 = vrot.slane %v6110, 1
    %v6112 = vadd.f32 %v6110, %v6111
    %v6113 = vmul.f32 %v6112, %v1163
    %v6114 = vld [vmem:[#allocation6 + $0x4] sm:$0x1]
    %v6115 = vld [vmem:[#allocation6 + $0xa] sm:$0x1]
    %v6116 = vadd.f32 %v6113, 1e-05
    %v6117 = vrsqrt.pop %v6116
    %v6118 = vmul.f32 %v6117, %v6116
    %v6119 = vmul.f32 %v6118, %v6117
    %v6120 = vmul.f32 0.5, %v6119
    %v6121 = vsub.f32 1.5, %v6120
    %v6122 = vmul.f32 %v6117, %v6121
    %vm6123 = vweird.f32 %v6116
    %vm6124 = vweird.f32 %v6117
    %vm6125 = vmor %vm6123, %vm6124
    %v6126 = vsel %vm6125, %v6117, %v6122
    %v6127 = vmul.f32 %v6060, %v6126
    %v6128 = vmul.f32 %v6061, %v6126
    %v6129 = vmul.f32 %v6062, %v6126
    %v6130 = vmul.f32 %v6063, %v6126
    %v6131 = vmul.f32 %v6064, %v6126
    %v6132 = vmul.f32 %v6065, %v6126
    %v6133 = vmul.f32 %v6066, %v6126
    %v6134 = vmul.f32 %v6067, %v6126
    %v6135 = vmul.f32 %v6068, %v6126
    %v6136 = vmul.f32 %v6069, %v6126
    %v6137 = vmul.f32 %v6070, %v6126
    %v6138 = vmul.f32 %v6071, %v6126
    %v6139 = vmul.f32 %v6072, %v6126
    %v6140 = vmul.f32 %v6073, %v6126
    %v6141 = vmul.f32 %v6074, %v6126
    %v6142 = vmul.f32 %v6075, %v6126
    %v6143 = vperm.slane %v6114, 0
    %v6144 = vmul.f32 %v6127, %v6143
    %v6145 = vmul.f32 %v6128, %v6143
    %v6146 = vmul.f32 %v6129, %v6143
    %v6147 = vmul.f32 %v6130, %v6143
    %v6148 = vmul.f32 %v6131, %v6143
    %v6149 = vmul.f32 %v6132, %v6143
    %v6150 = vmul.f32 %v6133, %v6143
    %v6151 = vmul.f32 %v6134, %v6143
    %v6152 = vmul.f32 %v6135, %v6143
    %v6153 = vmul.f32 %v6136, %v6143
    %v6154 = vmul.f32 %v6137, %v6143
    %v6155 = vmul.f32 %v6138, %v6143
    %v6156 = vmul.f32 %v6139, %v6143
    %v6157 = vmul.f32 %v6140, %v6143
    %v6158 = vmul.f32 %v6141, %v6143
    %v6159 = vmul.f32 %v6142, %v6143
    %v6160 = vperm.slane %v6115, 0
    %v6161 = vadd.f32 %v6144, %v6160
    %v6162 = vadd.f32 %v6145, %v6160
    %v6163 = vadd.f32 %v6146, %v6160
    %v6164 = vadd.f32 %v6147, %v6160
    %v6165 = vadd.f32 %v6148, %v6160
    %v6166 = vadd.f32 %v6149, %v6160
    %v6167 = vadd.f32 %v6150, %v6160
    %v6168 = vadd.f32 %v6151, %v6160
    %v6169 = vadd.f32 %v6152, %v6160
    %v6170 = vadd.f32 %v6153, %v6160
    %v6171 = vadd.f32 %v6154, %v6160
    %v6172 = vadd.f32 %v6155, %v6160
    %v6173 = vadd.f32 %v6156, %v6160
    %v6174 = vadd.f32 %v6157, %v6160
    %v6175 = vadd.f32 %v6158, %v6160
    %v6176 = vadd.f32 %v6159, %v6160
    %v6177 = vmax.f32 %v6161, 0.0
    %v6178 = vmax.f32 %v6162, 0.0
    %v6179 = vmax.f32 %v6163, 0.0
    %v6180 = vmax.f32 %v6164, 0.0
    %v6181 = vmax.f32 %v6165, 0.0
    %v6182 = vmax.f32 %v6166, 0.0
    %v6183 = vmax.f32 %v6167, 0.0
    %v6184 = vmax.f32 %v6168, 0.0
    %v6185 = vmax.f32 %v6169, 0.0
    %v6186 = vmax.f32 %v6170, 0.0
    %v6187 = vmax.f32 %v6171, 0.0
    %v6188 = vmax.f32 %v6172, 0.0
    %v6189 = vmax.f32 %v6173, 0.0
    %v6190 = vmax.f32 %v6174, 0.0
    %v6191 = vmax.f32 %v6175, 0.0
    %v6192 = vmax.f32 %v6176, 0.0
    %6193 = vst [vmem:[%s125 + $0x1] sm:$0xff] %v6177
    %6194 = vst [vmem:[%s125 + $0x11] sm:$0xff] %v6178
    %6195 = vst [vmem:[%s125 + $0x21] sm:$0xff] %v6179
    %6196 = vst [vmem:[%s125 + $0x31] sm:$0xff] %v6180
    %6197 = vst [vmem:[%s125 + $0x41] sm:$0xff] %v6181
    %6198 = vst [vmem:[%s125 + $0x51] sm:$0xff] %v6182
    %6199 = vst [vmem:[%s125 + $0x61] sm:$0xff] %v6183
    %6200 = vst [vmem:[%s125 + $0x71] sm:$0xff] %v6184
    %6201 = vst [vmem:[%s125 + $0xa1] sm:$0xff] %v6185
    %6202 = vst [vmem:[%s125 + $0xb1] sm:$0xff] %v6186
    %6203 = vst [vmem:[%s125 + $0xc1] sm:$0xff] %v6187
    %6204 = vst [vmem:[%s125 + $0xd1] sm:$0xff] %v6188
    %6205 = vst [vmem:[%s125 + $0xe1] sm:$0xff] %v6189
    %6206 = vst [vmem:[%s125 + $0xf1] sm:$0xff] %v6190
    %6207 = vst [vmem:[%s125 + $0x101] sm:$0xff] %v6191
    %6208 = vst [vmem:[%s125 + $0x111] sm:$0xff] %v6192
    %v6209 = vld [vmem:[#allocation2] sm:$0xff]
    %v6210 = vld [vmem:[#allocation2 + $0x10] sm:$0xff]
    %v6211 = vld [vmem:[#allocation2 + $0x20] sm:$0xff]
    %v6212 = vld [vmem:[#allocation2 + $0x30] sm:$0xff]
    %v6213 = vld [vmem:[#allocation2 + $0x40] sm:$0xff]
    %v6214 = vld [vmem:[#allocation2 + $0x50] sm:$0xff]
    %v6215 = vld [vmem:[#allocation2 + $0x60] sm:$0xff]
    %v6216 = vld [vmem:[#allocation2 + $0x70] sm:$0xff]
    %v6217 = vld [vmem:[#allocation2 + $0xa0] sm:$0xff]
    %v6218 = vld [vmem:[#allocation2 + $0xb0] sm:$0xff]
    %v6219 = vld [vmem:[#allocation2 + $0xc0] sm:$0xff]
    %v6220 = vld [vmem:[#allocation2 + $0xd0] sm:$0xff]
    %v6221 = vld [vmem:[#allocation2 + $0xe0] sm:$0xff]
    %v6222 = vld [vmem:[#allocation2 + $0xf0] sm:$0xff]
    %v6223 = vld [vmem:[#allocation2 + $0x100] sm:$0xff]
    %v6224 = vld [vmem:[#allocation2 + $0x110] sm:$0xff]
    %s6225 = scalar_lea.vmem [#allocation3], 5760
    %v6226 = vld [vmem:[%s6225] sm:$0xff]
    %v6227 = vld [vmem:[%s6225 + $0x8] sm:$0xff]
    %v6228 = vld [vmem:[%s6225 + $0x10] sm:$0xff]
    %v6229 = vld [vmem:[%s6225 + $0x18] sm:$0xff]
    %v6230 = vld [vmem:[%s6225 + $0x20] sm:$0xff]
    %v6231 = vld [vmem:[%s6225 + $0x28] sm:$0xff]
    %v6232 = vld [vmem:[%s6225 + $0x30] sm:$0xff]
    %v6233 = vld [vmem:[%s6225 + $0x38] sm:$0xff]
    %v6234 = vld [vmem:[%s6225 + $0x40] sm:$0xff]
    %v6235 = vld [vmem:[%s6225 + $0x48] sm:$0xff]
    %v6236 = vld [vmem:[%s6225 + $0x50] sm:$0xff]
    %v6237 = vld [vmem:[%s6225 + $0x58] sm:$0xff]
    %v6238 = vld [vmem:[%s6225 + $0x60] sm:$0xff]
    %v6239 = vld [vmem:[%s6225 + $0x68] sm:$0xff]
    %v6240 = vld [vmem:[%s6225 + $0x70] sm:$0xff]
    %v6241 = vld [vmem:[%s6225 + $0x78] sm:$0xff]
    %v6242 = vld [vmem:[#allocation2 + $0x1] sm:$0xff]
    %v6243 = vld [vmem:[#allocation2 + $0x11] sm:$0xff]
    %v6244 = vld [vmem:[#allocation2 + $0x21] sm:$0xff]
    %v6245 = vld [vmem:[#allocation2 + $0x31] sm:$0xff]
    %v6246 = vld [vmem:[#allocation2 + $0x41] sm:$0xff]
    %v6247 = vld [vmem:[#allocation2 + $0x51] sm:$0xff]
    %v6248 = vld [vmem:[#allocation2 + $0x61] sm:$0xff]
    %v6249 = vld [vmem:[#allocation2 + $0x71] sm:$0xff]
    %v6250 = vld [vmem:[#allocation2 + $0xa1] sm:$0xff]
    %v6251 = vld [vmem:[#allocation2 + $0xb1] sm:$0xff]
    %v6252 = vld [vmem:[#allocation2 + $0xc1] sm:$0xff]
    %v6253 = vld [vmem:[#allocation2 + $0xd1] sm:$0xff]
    %v6254 = vld [vmem:[#allocation2 + $0xe1] sm:$0xff]
    %v6255 = vld [vmem:[#allocation2 + $0xf1] sm:$0xff]
    %v6256 = vld [vmem:[#allocation2 + $0x101] sm:$0xff]
    %v6257 = vld [vmem:[#allocation2 + $0x111] sm:$0xff]
    %s6258 = scalar_lea.vmem [#allocation3], 5888
    %v6259 = vld [vmem:[%s6258] sm:$0xff]
    %v6260 = vld [vmem:[%s6258 + $0x8] sm:$0xff]
    %v6261 = vld [vmem:[%s6258 + $0x10] sm:$0xff]
    %v6262 = vld [vmem:[%s6258 + $0x18] sm:$0xff]
    %v6263 = vld [vmem:[%s6258 + $0x20] sm:$0xff]
    %v6264 = vld [vmem:[%s6258 + $0x28] sm:$0xff]
    %v6265 = vld [vmem:[%s6258 + $0x30] sm:$0xff]
    %v6266 = vld [vmem:[%s6258 + $0x38] sm:$0xff]
    %v6267 = vld [vmem:[%s6258 + $0x40] sm:$0xff]
    %v6268 = vld [vmem:[%s6258 + $0x48] sm:$0xff]
    %v6269 = vld [vmem:[%s6258 + $0x50] sm:$0xff]
    %v6270 = vld [vmem:[%s6258 + $0x58] sm:$0xff]
    %v6271 = vld [vmem:[%s6258 + $0x60] sm:$0xff]
    %v6272 = vld [vmem:[%s6258 + $0x68] sm:$0xff]
    %v6273 = vld [vmem:[%s6258 + $0x70] sm:$0xff]
    %v6274 = vld [vmem:[%s6258 + $0x78] sm:$0xff]
    %6275 = vmatpush.msra.mxu0 %v6274
    %6276 = vmatpush.msra.mxu0 %v6273
    %6277 = vmatpush.msra.mxu0 %v6272
    %6278 = vmatpush.msra.mxu0 %v6271
    %6279 = vmatpush.msra.mxu0 %v6270
    %6280 = vmatpush.msra.mxu0 %v6269
    %6281 = vmatpush.msra.mxu0 %v6268
    %6282 = vmatpush.msra.mxu0 %v6267
    %6283 = vmatpush.msra.mxu0 %v6266
    %6284 = vmatpush.msra.mxu0 %v6265
    %6285 = vmatpush.msra.mxu0 %v6264
    %6286 = vmatpush.msra.mxu0 %v6263
    %6287 = vmatpush.msra.mxu0 %v6262
    %6288 = vmatpush.msra.mxu0 %v6261
    %6289 = vmatpush.msra.mxu0 %v6260
    %6290 = vmatpush.msra.mxu0 %v6259
    %6291 = vmatmul.f32.gmra.mxu0 %v6242
    %v6292 = vpop.f32.mrf.mxu0
    %v6293 = vadd.f32 0.0, %v6292
    %6294 = vmatmul.f32.gmra.mxu0 %v6243
    %v6295 = vpop.f32.mrf.mxu0
    %v6296 = vadd.f32 0.0, %v6295
    %6297 = vmatmul.f32.gmra.mxu0 %v6244
    %v6298 = vpop.f32.mrf.mxu0
    %v6299 = vadd.f32 0.0, %v6298
    %6300 = vmatmul.f32.gmra.mxu0 %v6245
    %v6301 = vpop.f32.mrf.mxu0
    %v6302 = vadd.f32 0.0, %v6301
    %6303 = vmatmul.f32.gmra.mxu0 %v6246
    %v6304 = vpop.f32.mrf.mxu0
    %v6305 = vadd.f32 0.0, %v6304
    %6306 = vmatmul.f32.gmra.mxu0 %v6247
    %v6307 = vpop.f32.mrf.mxu0
    %v6308 = vadd.f32 0.0, %v6307
    %6309 = vmatmul.f32.gmra.mxu0 %v6248
    %v6310 = vpop.f32.mrf.mxu0
    %v6311 = vadd.f32 0.0, %v6310
    %6312 = vmatmul.f32.gmra.mxu0 %v6249
    %v6313 = vpop.f32.mrf.mxu0
    %v6314 = vadd.f32 0.0, %v6313
    %6315 = vmatmul.f32.gmra.mxu0 %v6250
    %v6316 = vpop.f32.mrf.mxu0
    %v6317 = vadd.f32 0.0, %v6316
    %6318 = vmatmul.f32.gmra.mxu0 %v6251
    %v6319 = vpop.f32.mrf.mxu0
    %v6320 = vadd.f32 0.0, %v6319
    %6321 = vmatmul.f32.gmra.mxu0 %v6252
    %v6322 = vpop.f32.mrf.mxu0
    %v6323 = vadd.f32 0.0, %v6322
    %6324 = vmatmul.f32.gmra.mxu0 %v6253
    %v6325 = vpop.f32.mrf.mxu0
    %v6326 = vadd.f32 0.0, %v6325
    %6327 = vmatmul.f32.gmra.mxu0 %v6254
    %v6328 = vpop.f32.mrf.mxu0
    %v6329 = vadd.f32 0.0, %v6328
    %6330 = vmatmul.f32.gmra.mxu0 %v6255
    %v6331 = vpop.f32.mrf.mxu0
    %v6332 = vadd.f32 0.0, %v6331
    %6333 = vmatmul.f32.gmra.mxu0 %v6256
    %v6334 = vpop.f32.mrf.mxu0
    %v6335 = vadd.f32 0.0, %v6334
    %6336 = vmatmul.f32.gmra.mxu0 %v6257
    %v6337 = vpop.f32.mrf.mxu0
    %v6338 = vadd.f32 0.0, %v6337
    %6339 = vdwg.mxu0
    %6340 = vmatpush.msra.mxu0 %v6241
    %6341 = vmatpush.msra.mxu0 %v6240
    %6342 = vmatpush.msra.mxu0 %v6239
    %6343 = vmatpush.msra.mxu0 %v6238
    %6344 = vmatpush.msra.mxu0 %v6237
    %6345 = vmatpush.msra.mxu0 %v6236
    %6346 = vmatpush.msra.mxu0 %v6235
    %6347 = vmatpush.msra.mxu0 %v6234
    %6348 = vmatpush.msra.mxu0 %v6233
    %6349 = vmatpush.msra.mxu0 %v6232
    %6350 = vmatpush.msra.mxu0 %v6231
    %6351 = vmatpush.msra.mxu0 %v6230
    %6352 = vmatpush.msra.mxu0 %v6229
    %6353 = vmatpush.msra.mxu0 %v6228
    %6354 = vmatpush.msra.mxu0 %v6227
    %6355 = vmatpush.msra.mxu0 %v6226
    %6356 = vmatmul.f32.gmra.mxu0 %v6209
    %v6357 = vpop.f32.mrf.mxu0
    %v6358 = vadd.f32 %v6293, %v6357
    %6359 = vmatmul.f32.gmra.mxu0 %v6210
    %v6360 = vpop.f32.mrf.mxu0
    %v6361 = vadd.f32 %v6296, %v6360
    %6362 = vmatmul.f32.gmra.mxu0 %v6211
    %v6363 = vpop.f32.mrf.mxu0
    %v6364 = vadd.f32 %v6299, %v6363
    %6365 = vmatmul.f32.gmra.mxu0 %v6212
    %v6366 = vpop.f32.mrf.mxu0
    %v6367 = vadd.f32 %v6302, %v6366
    %6368 = vmatmul.f32.gmra.mxu0 %v6213
    %v6369 = vpop.f32.mrf.mxu0
    %v6370 = vadd.f32 %v6305, %v6369
    %6371 = vmatmul.f32.gmra.mxu0 %v6214
    %v6372 = vpop.f32.mrf.mxu0
    %v6373 = vadd.f32 %v6308, %v6372
    %6374 = vmatmul.f32.gmra.mxu0 %v6215
    %v6375 = vpop.f32.mrf.mxu0
    %v6376 = vadd.f32 %v6311, %v6375
    %6377 = vmatmul.f32.gmra.mxu0 %v6216
    %v6378 = vpop.f32.mrf.mxu0
    %v6379 = vadd.f32 %v6314, %v6378
    %6380 = vmatmul.f32.gmra.mxu0 %v6217
    %v6381 = vpop.f32.mrf.mxu0
    %v6382 = vadd.f32 %v6317, %v6381
    %6383 = vmatmul.f32.gmra.mxu0 %v6218
    %v6384 = vpop.f32.mrf.mxu0
    %v6385 = vadd.f32 %v6320, %v6384
    %6386 = vmatmul.f32.gmra.mxu0 %v6219
    %v6387 = vpop.f32.mrf.mxu0
    %v6388 = vadd.f32 %v6323, %v6387
    %6389 = vmatmul.f32.gmra.mxu0 %v6220
    %v6390 = vpop.f32.mrf.mxu0
    %v6391 = vadd.f32 %v6326, %v6390
    %6392 = vmatmul.f32.gmra.mxu0 %v6221
    %v6393 = vpop.f32.mrf.mxu0
    %v6394 = vadd.f32 %v6329, %v6393
    %6395 = vmatmul.f32.gmra.mxu0 %v6222
    %v6396 = vpop.f32.mrf.mxu0
    %v6397 = vadd.f32 %v6332, %v6396
    %6398 = vmatmul.f32.gmra.mxu0 %v6223
    %v6399 = vpop.f32.mrf.mxu0
    %v6400 = vadd.f32 %v6335, %v6399
    %6401 = vmatmul.f32.gmra.mxu0 %v6224
    %v6402 = vpop.f32.mrf.mxu0
    %v6403 = vadd.f32 %v6338, %v6402
    %6404 = vdwg.mxu0
    %v6405 = vld [vmem:[#allocation2 + $0x2] sm:$0xff]
    %v6406 = vld [vmem:[#allocation2 + $0x12] sm:$0xff]
    %v6407 = vld [vmem:[#allocation2 + $0x22] sm:$0xff]
    %v6408 = vld [vmem:[#allocation2 + $0x32] sm:$0xff]
    %v6409 = vld [vmem:[#allocation2 + $0x42] sm:$0xff]
    %v6410 = vld [vmem:[#allocation2 + $0x52] sm:$0xff]
    %v6411 = vld [vmem:[#allocation2 + $0x62] sm:$0xff]
    %v6412 = vld [vmem:[#allocation2 + $0x72] sm:$0xff]
    %v6413 = vld [vmem:[#allocation2 + $0xa2] sm:$0xff]
    %v6414 = vld [vmem:[#allocation2 + $0xb2] sm:$0xff]
    %v6415 = vld [vmem:[#allocation2 + $0xc2] sm:$0xff]
    %v6416 = vld [vmem:[#allocation2 + $0xd2] sm:$0xff]
    %v6417 = vld [vmem:[#allocation2 + $0xe2] sm:$0xff]
    %v6418 = vld [vmem:[#allocation2 + $0xf2] sm:$0xff]
    %v6419 = vld [vmem:[#allocation2 + $0x102] sm:$0xff]
    %v6420 = vld [vmem:[#allocation2 + $0x112] sm:$0xff]
    %s6421 = scalar_lea.vmem [#allocation3], 6016
    %v6422 = vld [vmem:[%s6421] sm:$0xff]
    %v6423 = vld [vmem:[%s6421 + $0x8] sm:$0xff]
    %v6424 = vld [vmem:[%s6421 + $0x10] sm:$0xff]
    %v6425 = vld [vmem:[%s6421 + $0x18] sm:$0xff]
    %v6426 = vld [vmem:[%s6421 + $0x20] sm:$0xff]
    %v6427 = vld [vmem:[%s6421 + $0x28] sm:$0xff]
    %v6428 = vld [vmem:[%s6421 + $0x30] sm:$0xff]
    %v6429 = vld [vmem:[%s6421 + $0x38] sm:$0xff]
    %v6430 = vld [vmem:[%s6421 + $0x40] sm:$0xff]
    %v6431 = vld [vmem:[%s6421 + $0x48] sm:$0xff]
    %v6432 = vld [vmem:[%s6421 + $0x50] sm:$0xff]
    %v6433 = vld [vmem:[%s6421 + $0x58] sm:$0xff]
    %v6434 = vld [vmem:[%s6421 + $0x60] sm:$0xff]
    %v6435 = vld [vmem:[%s6421 + $0x68] sm:$0xff]
    %v6436 = vld [vmem:[%s6421 + $0x70] sm:$0xff]
    %v6437 = vld [vmem:[%s6421 + $0x78] sm:$0xff]
    %6438 = vmatpush.msra.mxu0 %v6437
    %6439 = vmatpush.msra.mxu0 %v6436
    %6440 = vmatpush.msra.mxu0 %v6435
    %6441 = vmatpush.msra.mxu0 %v6434
    %6442 = vmatpush.msra.mxu0 %v6433
    %6443 = vmatpush.msra.mxu0 %v6432
    %6444 = vmatpush.msra.mxu0 %v6431
    %6445 = vmatpush.msra.mxu0 %v6430
    %6446 = vmatpush.msra.mxu0 %v6429
    %6447 = vmatpush.msra.mxu0 %v6428
    %6448 = vmatpush.msra.mxu0 %v6427
    %6449 = vmatpush.msra.mxu0 %v6426
    %6450 = vmatpush.msra.mxu0 %v6425
    %6451 = vmatpush.msra.mxu0 %v6424
    %6452 = vmatpush.msra.mxu0 %v6423
    %6453 = vmatpush.msra.mxu0 %v6422
    %6454 = vmatmul.f32.gmra.mxu0 %v6405
    %v6455 = vpop.f32.mrf.mxu0
    %v6456 = vadd.f32 0.0, %v6455
    %6457 = vmatmul.f32.gmra.mxu0 %v6406
    %v6458 = vpop.f32.mrf.mxu0
    %v6459 = vadd.f32 0.0, %v6458
    %6460 = vmatmul.f32.gmra.mxu0 %v6407
    %v6461 = vpop.f32.mrf.mxu0
    %v6462 = vadd.f32 0.0, %v6461
    %6463 = vmatmul.f32.gmra.mxu0 %v6408
    %v6464 = vpop.f32.mrf.mxu0
    %v6465 = vadd.f32 0.0, %v6464
    %6466 = vmatmul.f32.gmra.mxu0 %v6409
    %v6467 = vpop.f32.mrf.mxu0
    %v6468 = vadd.f32 0.0, %v6467
    %6469 = vmatmul.f32.gmra.mxu0 %v6410
    %v6470 = vpop.f32.mrf.mxu0
    %v6471 = vadd.f32 0.0, %v6470
    %6472 = vmatmul.f32.gmra.mxu0 %v6411
    %v6473 = vpop.f32.mrf.mxu0
    %v6474 = vadd.f32 0.0, %v6473
    %6475 = vmatmul.f32.gmra.mxu0 %v6412
    %v6476 = vpop.f32.mrf.mxu0
    %v6477 = vadd.f32 0.0, %v6476
    %6478 = vmatmul.f32.gmra.mxu0 %v6413
    %v6479 = vpop.f32.mrf.mxu0
    %v6480 = vadd.f32 0.0, %v6479
    %6481 = vmatmul.f32.gmra.mxu0 %v6414
    %v6482 = vpop.f32.mrf.mxu0
    %v6483 = vadd.f32 0.0, %v6482
    %6484 = vmatmul.f32.gmra.mxu0 %v6415
    %v6485 = vpop.f32.mrf.mxu0
    %v6486 = vadd.f32 0.0, %v6485
    %6487 = vmatmul.f32.gmra.mxu0 %v6416
    %v6488 = vpop.f32.mrf.mxu0
    %v6489 = vadd.f32 0.0, %v6488
    %6490 = vmatmul.f32.gmra.mxu0 %v6417
    %v6491 = vpop.f32.mrf.mxu0
    %v6492 = vadd.f32 0.0, %v6491
    %6493 = vmatmul.f32.gmra.mxu0 %v6418
    %v6494 = vpop.f32.mrf.mxu0
    %v6495 = vadd.f32 0.0, %v6494
    %6496 = vmatmul.f32.gmra.mxu0 %v6419
    %v6497 = vpop.f32.mrf.mxu0
    %v6498 = vadd.f32 0.0, %v6497
    %6499 = vmatmul.f32.gmra.mxu0 %v6420
    %v6500 = vpop.f32.mrf.mxu0
    %v6501 = vadd.f32 0.0, %v6500
    %6502 = vdwg.mxu0
    %v6503 = vadd.f32 %v6358, %v6456
    %v6504 = vadd.f32 %v6361, %v6459
    %v6505 = vadd.f32 %v6364, %v6462
    %v6506 = vadd.f32 %v6367, %v6465
    %v6507 = vadd.f32 %v6370, %v6468
    %v6508 = vadd.f32 %v6373, %v6471
    %v6509 = vadd.f32 %v6376, %v6474
    %v6510 = vadd.f32 %v6379, %v6477
    %v6511 = vadd.f32 %v6382, %v6480
    %v6512 = vadd.f32 %v6385, %v6483
    %v6513 = vadd.f32 %v6388, %v6486
    %v6514 = vadd.f32 %v6391, %v6489
    %v6515 = vadd.f32 %v6394, %v6492
    %v6516 = vadd.f32 %v6397, %v6495
    %v6517 = vadd.f32 %v6400, %v6498
    %v6518 = vadd.f32 %v6403, %v6501
    %v6519 = vld [vmem:[%s125] sm:$0xff]
    %v6520 = vld [vmem:[%s125 + $0x10] sm:$0xff]
    %v6521 = vld [vmem:[%s125 + $0x20] sm:$0xff]
    %v6522 = vld [vmem:[%s125 + $0x30] sm:$0xff]
    %v6523 = vld [vmem:[%s125 + $0x40] sm:$0xff]
    %v6524 = vld [vmem:[%s125 + $0x50] sm:$0xff]
    %v6525 = vld [vmem:[%s125 + $0x60] sm:$0xff]
    %v6526 = vld [vmem:[%s125 + $0x70] sm:$0xff]
    %v6527 = vld [vmem:[%s125 + $0xa0] sm:$0xff]
    %v6528 = vld [vmem:[%s125 + $0xb0] sm:$0xff]
    %v6529 = vld [vmem:[%s125 + $0xc0] sm:$0xff]
    %v6530 = vld [vmem:[%s125 + $0xd0] sm:$0xff]
    %v6531 = vld [vmem:[%s125 + $0xe0] sm:$0xff]
    %v6532 = vld [vmem:[%s125 + $0xf0] sm:$0xff]
    %v6533 = vld [vmem:[%s125 + $0x100] sm:$0xff]
    %v6534 = vld [vmem:[%s125 + $0x110] sm:$0xff]
    %s6535 = scalar_lea.vmem [#allocation3], 6144
    %v6536 = vld [vmem:[%s6535] sm:$0xff]
    %v6537 = vld [vmem:[%s6535 + $0x8] sm:$0xff]
    %v6538 = vld [vmem:[%s6535 + $0x10] sm:$0xff]
    %v6539 = vld [vmem:[%s6535 + $0x18] sm:$0xff]
    %v6540 = vld [vmem:[%s6535 + $0x20] sm:$0xff]
    %v6541 = vld [vmem:[%s6535 + $0x28] sm:$0xff]
    %v6542 = vld [vmem:[%s6535 + $0x30] sm:$0xff]
    %v6543 = vld [vmem:[%s6535 + $0x38] sm:$0xff]
    %v6544 = vld [vmem:[%s6535 + $0x40] sm:$0xff]
    %v6545 = vld [vmem:[%s6535 + $0x48] sm:$0xff]
    %v6546 = vld [vmem:[%s6535 + $0x50] sm:$0xff]
    %v6547 = vld [vmem:[%s6535 + $0x58] sm:$0xff]
    %v6548 = vld [vmem:[%s6535 + $0x60] sm:$0xff]
    %v6549 = vld [vmem:[%s6535 + $0x68] sm:$0xff]
    %v6550 = vld [vmem:[%s6535 + $0x70] sm:$0xff]
    %v6551 = vld [vmem:[%s6535 + $0x78] sm:$0xff]
    %6552 = vmatpush.msra.mxu0 %v6551
    %6553 = vmatpush.msra.mxu0 %v6550
    %6554 = vmatpush.msra.mxu0 %v6549
    %6555 = vmatpush.msra.mxu0 %v6548
    %6556 = vmatpush.msra.mxu0 %v6547
    %6557 = vmatpush.msra.mxu0 %v6546
    %6558 = vmatpush.msra.mxu0 %v6545
    %6559 = vmatpush.msra.mxu0 %v6544
    %6560 = vmatpush.msra.mxu0 %v6543
    %6561 = vmatpush.msra.mxu0 %v6542
    %6562 = vmatpush.msra.mxu0 %v6541
    %6563 = vmatpush.msra.mxu0 %v6540
    %6564 = vmatpush.msra.mxu0 %v6539
    %6565 = vmatpush.msra.mxu0 %v6538
    %6566 = vmatpush.msra.mxu0 %v6537
    %6567 = vmatpush.msra.mxu0 %v6536
    %6568 = vmatmul.f32.gmra.mxu0 %v6519
    %v6569 = vpop.f32.mrf.mxu0
    %v6570 = vadd.f32 0.0, %v6569
    %6571 = vmatmul.f32.gmra.mxu0 %v6520
    %v6572 = vpop.f32.mrf.mxu0
    %v6573 = vadd.f32 0.0, %v6572
    %6574 = vmatmul.f32.gmra.mxu0 %v6521
    %v6575 = vpop.f32.mrf.mxu0
    %v6576 = vadd.f32 0.0, %v6575
    %6577 = vmatmul.f32.gmra.mxu0 %v6522
    %v6578 = vpop.f32.mrf.mxu0
    %v6579 = vadd.f32 0.0, %v6578
    %6580 = vmatmul.f32.gmra.mxu0 %v6523
    %v6581 = vpop.f32.mrf.mxu0
    %v6582 = vadd.f32 0.0, %v6581
    %6583 = vmatmul.f32.gmra.mxu0 %v6524
    %v6584 = vpop.f32.mrf.mxu0
    %v6585 = vadd.f32 0.0, %v6584
    %6586 = vmatmul.f32.gmra.mxu0 %v6525
    %v6587 = vpop.f32.mrf.mxu0
    %v6588 = vadd.f32 0.0, %v6587
    %6589 = vmatmul.f32.gmra.mxu0 %v6526
    %v6590 = vpop.f32.mrf.mxu0
    %v6591 = vadd.f32 0.0, %v6590
    %6592 = vmatmul.f32.gmra.mxu0 %v6527
    %v6593 = vpop.f32.mrf.mxu0
    %v6594 = vadd.f32 0.0, %v6593
    %6595 = vmatmul.f32.gmra.mxu0 %v6528
    %v6596 = vpop.f32.mrf.mxu0
    %v6597 = vadd.f32 0.0, %v6596
    %6598 = vmatmul.f32.gmra.mxu0 %v6529
    %v6599 = vpop.f32.mrf.mxu0
    %v6600 = vadd.f32 0.0, %v6599
    %6601 = vmatmul.f32.gmra.mxu0 %v6530
    %v6602 = vpop.f32.mrf.mxu0
    %v6603 = vadd.f32 0.0, %v6602
    %6604 = vmatmul.f32.gmra.mxu0 %v6531
    %v6605 = vpop.f32.mrf.mxu0
    %v6606 = vadd.f32 0.0, %v6605
    %6607 = vmatmul.f32.gmra.mxu0 %v6532
    %v6608 = vpop.f32.mrf.mxu0
    %v6609 = vadd.f32 0.0, %v6608
    %6610 = vmatmul.f32.gmra.mxu0 %v6533
    %v6611 = vpop.f32.mrf.mxu0
    %v6612 = vadd.f32 0.0, %v6611
    %6613 = vmatmul.f32.gmra.mxu0 %v6534
    %v6614 = vpop.f32.mrf.mxu0
    %v6615 = vadd.f32 0.0, %v6614
    %6616 = vdwg.mxu0
    %v6617 = vadd.f32 %v6503, %v6570
    %v6618 = vadd.f32 %v6504, %v6573
    %v6619 = vadd.f32 %v6505, %v6576
    %v6620 = vadd.f32 %v6506, %v6579
    %v6621 = vadd.f32 %v6507, %v6582
    %v6622 = vadd.f32 %v6508, %v6585
    %v6623 = vadd.f32 %v6509, %v6588
    %v6624 = vadd.f32 %v6510, %v6591
    %v6625 = vadd.f32 %v6511, %v6594
    %v6626 = vadd.f32 %v6512, %v6597
    %v6627 = vadd.f32 %v6513, %v6600
    %v6628 = vadd.f32 %v6514, %v6603
    %v6629 = vadd.f32 %v6515, %v6606
    %v6630 = vadd.f32 %v6516, %v6609
    %v6631 = vadd.f32 %v6517, %v6612
    %v6632 = vadd.f32 %v6518, %v6615
    %v6633 = vld [vmem:[%s125 + $0x1] sm:$0xff]
    %v6634 = vld [vmem:[%s125 + $0x11] sm:$0xff]
    %v6635 = vld [vmem:[%s125 + $0x21] sm:$0xff]
    %v6636 = vld [vmem:[%s125 + $0x31] sm:$0xff]
    %v6637 = vld [vmem:[%s125 + $0x41] sm:$0xff]
    %v6638 = vld [vmem:[%s125 + $0x51] sm:$0xff]
    %v6639 = vld [vmem:[%s125 + $0x61] sm:$0xff]
    %v6640 = vld [vmem:[%s125 + $0x71] sm:$0xff]
    %v6641 = vld [vmem:[%s125 + $0xa1] sm:$0xff]
    %v6642 = vld [vmem:[%s125 + $0xb1] sm:$0xff]
    %v6643 = vld [vmem:[%s125 + $0xc1] sm:$0xff]
    %v6644 = vld [vmem:[%s125 + $0xd1] sm:$0xff]
    %v6645 = vld [vmem:[%s125 + $0xe1] sm:$0xff]
    %v6646 = vld [vmem:[%s125 + $0xf1] sm:$0xff]
    %v6647 = vld [vmem:[%s125 + $0x101] sm:$0xff]
    %v6648 = vld [vmem:[%s125 + $0x111] sm:$0xff]
    %s6649 = scalar_lea.vmem [#allocation3], 6272
    %v6650 = vld [vmem:[%s6649] sm:$0xff]
    %v6651 = vld [vmem:[%s6649 + $0x8] sm:$0xff]
    %v6652 = vld [vmem:[%s6649 + $0x10] sm:$0xff]
    %v6653 = vld [vmem:[%s6649 + $0x18] sm:$0xff]
    %v6654 = vld [vmem:[%s6649 + $0x20] sm:$0xff]
    %v6655 = vld [vmem:[%s6649 + $0x28] sm:$0xff]
    %v6656 = vld [vmem:[%s6649 + $0x30] sm:$0xff]
    %v6657 = vld [vmem:[%s6649 + $0x38] sm:$0xff]
    %v6658 = vld [vmem:[%s6649 + $0x40] sm:$0xff]
    %v6659 = vld [vmem:[%s6649 + $0x48] sm:$0xff]
    %v6660 = vld [vmem:[%s6649 + $0x50] sm:$0xff]
    %v6661 = vld [vmem:[%s6649 + $0x58] sm:$0xff]
    %v6662 = vld [vmem:[%s6649 + $0x60] sm:$0xff]
    %v6663 = vld [vmem:[%s6649 + $0x68] sm:$0xff]
    %v6664 = vld [vmem:[%s6649 + $0x70] sm:$0xff]
    %v6665 = vld [vmem:[%s6649 + $0x78] sm:$0xff]
    %6666 = vmatpush.msra.mxu0 %v6665
    %6667 = vmatpush.msra.mxu0 %v6664
    %6668 = vmatpush.msra.mxu0 %v6663
    %6669 = vmatpush.msra.mxu0 %v6662
    %6670 = vmatpush.msra.mxu0 %v6661
    %6671 = vmatpush.msra.mxu0 %v6660
    %6672 = vmatpush.msra.mxu0 %v6659
    %6673 = vmatpush.msra.mxu0 %v6658
    %6674 = vmatpush.msra.mxu0 %v6657
    %6675 = vmatpush.msra.mxu0 %v6656
    %6676 = vmatpush.msra.mxu0 %v6655
    %6677 = vmatpush.msra.mxu0 %v6654
    %6678 = vmatpush.msra.mxu0 %v6653
    %6679 = vmatpush.msra.mxu0 %v6652
    %6680 = vmatpush.msra.mxu0 %v6651
    %6681 = vmatpush.msra.mxu0 %v6650
    %6682 = vmatmul.f32.gmra.mxu0 %v6633
    %v6683 = vpop.f32.mrf.mxu0
    %v6684 = vadd.f32 0.0, %v6683
    %6685 = vmatmul.f32.gmra.mxu0 %v6634
    %v6686 = vpop.f32.mrf.mxu0
    %v6687 = vadd.f32 0.0, %v6686
    %6688 = vmatmul.f32.gmra.mxu0 %v6635
    %v6689 = vpop.f32.mrf.mxu0
    %v6690 = vadd.f32 0.0, %v6689
    %6691 = vmatmul.f32.gmra.mxu0 %v6636
    %v6692 = vpop.f32.mrf.mxu0
    %v6693 = vadd.f32 0.0, %v6692
    %6694 = vmatmul.f32.gmra.mxu0 %v6637
    %v6695 = vpop.f32.mrf.mxu0
    %v6696 = vadd.f32 0.0, %v6695
    %6697 = vmatmul.f32.gmra.mxu0 %v6638
    %v6698 = vpop.f32.mrf.mxu0
    %v6699 = vadd.f32 0.0, %v6698
    %6700 = vmatmul.f32.gmra.mxu0 %v6639
    %v6701 = vpop.f32.mrf.mxu0
    %v6702 = vadd.f32 0.0, %v6701
    %6703 = vmatmul.f32.gmra.mxu0 %v6640
    %v6704 = vpop.f32.mrf.mxu0
    %v6705 = vadd.f32 0.0, %v6704
    %6706 = vmatmul.f32.gmra.mxu0 %v6641
    %v6707 = vpop.f32.mrf.mxu0
    %v6708 = vadd.f32 0.0, %v6707
    %6709 = vmatmul.f32.gmra.mxu0 %v6642
    %v6710 = vpop.f32.mrf.mxu0
    %v6711 = vadd.f32 0.0, %v6710
    %6712 = vmatmul.f32.gmra.mxu0 %v6643
    %v6713 = vpop.f32.mrf.mxu0
    %v6714 = vadd.f32 0.0, %v6713
    %6715 = vmatmul.f32.gmra.mxu0 %v6644
    %v6716 = vpop.f32.mrf.mxu0
    %v6717 = vadd.f32 0.0, %v6716
    %6718 = vmatmul.f32.gmra.mxu0 %v6645
    %v6719 = vpop.f32.mrf.mxu0
    %v6720 = vadd.f32 0.0, %v6719
    %6721 = vmatmul.f32.gmra.mxu0 %v6646
    %v6722 = vpop.f32.mrf.mxu0
    %v6723 = vadd.f32 0.0, %v6722
    %6724 = vmatmul.f32.gmra.mxu0 %v6647
    %v6725 = vpop.f32.mrf.mxu0
    %v6726 = vadd.f32 0.0, %v6725
    %6727 = vmatmul.f32.gmra.mxu0 %v6648
    %v6728 = vpop.f32.mrf.mxu0
    %v6729 = vadd.f32 0.0, %v6728
    %6730 = vdwg.mxu0
    %v6731 = vadd.f32 %v6617, %v6684
    %v6732 = vadd.f32 %v6618, %v6687
    %v6733 = vadd.f32 %v6619, %v6690
    %v6734 = vadd.f32 %v6620, %v6693
    %v6735 = vadd.f32 %v6621, %v6696
    %v6736 = vadd.f32 %v6622, %v6699
    %v6737 = vadd.f32 %v6623, %v6702
    %v6738 = vadd.f32 %v6624, %v6705
    %v6739 = vadd.f32 %v6625, %v6708
    %v6740 = vadd.f32 %v6626, %v6711
    %v6741 = vadd.f32 %v6627, %v6714
    %v6742 = vadd.f32 %v6628, %v6717
    %v6743 = vadd.f32 %v6629, %v6720
    %v6744 = vadd.f32 %v6630, %v6723
    %v6745 = vadd.f32 %v6631, %v6726
    %v6746 = vadd.f32 %v6632, %v6729
    %v6747 = vld [vmem:[%s125 + $0x2] sm:$0xff]
    %v6748 = vld [vmem:[%s125 + $0x12] sm:$0xff]
    %v6749 = vld [vmem:[%s125 + $0x22] sm:$0xff]
    %v6750 = vld [vmem:[%s125 + $0x32] sm:$0xff]
    %v6751 = vld [vmem:[%s125 + $0x42] sm:$0xff]
    %v6752 = vld [vmem:[%s125 + $0x52] sm:$0xff]
    %v6753 = vld [vmem:[%s125 + $0x62] sm:$0xff]
    %v6754 = vld [vmem:[%s125 + $0x72] sm:$0xff]
    %v6755 = vld [vmem:[%s125 + $0xa2] sm:$0xff]
    %v6756 = vld [vmem:[%s125 + $0xb2] sm:$0xff]
    %v6757 = vld [vmem:[%s125 + $0xc2] sm:$0xff]
    %v6758 = vld [vmem:[%s125 + $0xd2] sm:$0xff]
    %v6759 = vld [vmem:[%s125 + $0xe2] sm:$0xff]
    %v6760 = vld [vmem:[%s125 + $0xf2] sm:$0xff]
    %v6761 = vld [vmem:[%s125 + $0x102] sm:$0xff]
    %v6762 = vld [vmem:[%s125 + $0x112] sm:$0xff]
    %s6763 = scalar_lea.vmem [#allocation3], 6400
    %v6764 = vld [vmem:[%s6763] sm:$0xff]
    %v6765 = vld [vmem:[%s6763 + $0x8] sm:$0xff]
    %v6766 = vld [vmem:[%s6763 + $0x10] sm:$0xff]
    %v6767 = vld [vmem:[%s6763 + $0x18] sm:$0xff]
    %v6768 = vld [vmem:[%s6763 + $0x20] sm:$0xff]
    %v6769 = vld [vmem:[%s6763 + $0x28] sm:$0xff]
    %v6770 = vld [vmem:[%s6763 + $0x30] sm:$0xff]
    %v6771 = vld [vmem:[%s6763 + $0x38] sm:$0xff]
    %v6772 = vld [vmem:[%s6763 + $0x40] sm:$0xff]
    %v6773 = vld [vmem:[%s6763 + $0x48] sm:$0xff]
    %v6774 = vld [vmem:[%s6763 + $0x50] sm:$0xff]
    %v6775 = vld [vmem:[%s6763 + $0x58] sm:$0xff]
    %v6776 = vld [vmem:[%s6763 + $0x60] sm:$0xff]
    %v6777 = vld [vmem:[%s6763 + $0x68] sm:$0xff]
    %v6778 = vld [vmem:[%s6763 + $0x70] sm:$0xff]
    %v6779 = vld [vmem:[%s6763 + $0x78] sm:$0xff]
    %6780 = vmatpush.msra.mxu0 %v6779
    %6781 = vmatpush.msra.mxu0 %v6778
    %6782 = vmatpush.msra.mxu0 %v6777
    %6783 = vmatpush.msra.mxu0 %v6776
    %6784 = vmatpush.msra.mxu0 %v6775
    %6785 = vmatpush.msra.mxu0 %v6774
    %6786 = vmatpush.msra.mxu0 %v6773
    %6787 = vmatpush.msra.mxu0 %v6772
    %6788 = vmatpush.msra.mxu0 %v6771
    %6789 = vmatpush.msra.mxu0 %v6770
    %6790 = vmatpush.msra.mxu0 %v6769
    %6791 = vmatpush.msra.mxu0 %v6768
    %6792 = vmatpush.msra.mxu0 %v6767
    %6793 = vmatpush.msra.mxu0 %v6766
    %6794 = vmatpush.msra.mxu0 %v6765
    %6795 = vmatpush.msra.mxu0 %v6764
    %6796 = vmatmul.f32.gmra.mxu0 %v6747
    %v6797 = vpop.f32.mrf.mxu0
    %v6798 = vadd.f32 0.0, %v6797
    %6799 = vmatmul.f32.gmra.mxu0 %v6748
    %v6800 = vpop.f32.mrf.mxu0
    %v6801 = vadd.f32 0.0, %v6800
    %6802 = vmatmul.f32.gmra.mxu0 %v6749
    %v6803 = vpop.f32.mrf.mxu0
    %v6804 = vadd.f32 0.0, %v6803
    %6805 = vmatmul.f32.gmra.mxu0 %v6750
    %v6806 = vpop.f32.mrf.mxu0
    %v6807 = vadd.f32 0.0, %v6806
    %6808 = vmatmul.f32.gmra.mxu0 %v6751
    %v6809 = vpop.f32.mrf.mxu0
    %v6810 = vadd.f32 0.0, %v6809
    %6811 = vmatmul.f32.gmra.mxu0 %v6752
    %v6812 = vpop.f32.mrf.mxu0
    %v6813 = vadd.f32 0.0, %v6812
    %6814 = vmatmul.f32.gmra.mxu0 %v6753
    %v6815 = vpop.f32.mrf.mxu0
    %v6816 = vadd.f32 0.0, %v6815
    %6817 = vmatmul.f32.gmra.mxu0 %v6754
    %v6818 = vpop.f32.mrf.mxu0
    %v6819 = vadd.f32 0.0, %v6818
    %6820 = vmatmul.f32.gmra.mxu0 %v6755
    %v6821 = vpop.f32.mrf.mxu0
    %v6822 = vadd.f32 0.0, %v6821
    %6823 = vmatmul.f32.gmra.mxu0 %v6756
    %v6824 = vpop.f32.mrf.mxu0
    %v6825 = vadd.f32 0.0, %v6824
    %6826 = vmatmul.f32.gmra.mxu0 %v6757
    %v6827 = vpop.f32.mrf.mxu0
    %v6828 = vadd.f32 0.0, %v6827
    %6829 = vmatmul.f32.gmra.mxu0 %v6758
    %v6830 = vpop.f32.mrf.mxu0
    %v6831 = vadd.f32 0.0, %v6830
    %6832 = vmatmul.f32.gmra.mxu0 %v6759
    %v6833 = vpop.f32.mrf.mxu0
    %v6834 = vadd.f32 0.0, %v6833
    %6835 = vmatmul.f32.gmra.mxu0 %v6760
    %v6836 = vpop.f32.mrf.mxu0
    %v6837 = vadd.f32 0.0, %v6836
    %6838 = vmatmul.f32.gmra.mxu0 %v6761
    %v6839 = vpop.f32.mrf.mxu0
    %v6840 = vadd.f32 0.0, %v6839
    %6841 = vmatmul.f32.gmra.mxu0 %v6762
    %v6842 = vpop.f32.mrf.mxu0
    %v6843 = vadd.f32 0.0, %v6842
    %6844 = vdwg.mxu0
    %v6845 = vadd.f32 %v6731, %v6798
    %v6846 = vadd.f32 %v6732, %v6801
    %v6847 = vadd.f32 %v6733, %v6804
    %v6848 = vadd.f32 %v6734, %v6807
    %v6849 = vadd.f32 %v6735, %v6810
    %v6850 = vadd.f32 %v6736, %v6813
    %v6851 = vadd.f32 %v6737, %v6816
    %v6852 = vadd.f32 %v6738, %v6819
    %v6853 = vadd.f32 %v6739, %v6822
    %v6854 = vadd.f32 %v6740, %v6825
    %v6855 = vadd.f32 %v6741, %v6828
    %v6856 = vadd.f32 %v6742, %v6831
    %v6857 = vadd.f32 %v6743, %v6834
    %v6858 = vadd.f32 %v6744, %v6837
    %v6859 = vadd.f32 %v6745, %v6840
    %v6860 = vadd.f32 %v6746, %v6843
    %v6861 = vld [vmem:[%s793] sm:$0xff]
    %v6862 = vld [vmem:[%s793 + $0x10] sm:$0xff]
    %v6863 = vld [vmem:[%s793 + $0x20] sm:$0xff]
    %v6864 = vld [vmem:[%s793 + $0x30] sm:$0xff]
    %v6865 = vld [vmem:[%s793 + $0x40] sm:$0xff]
    %v6866 = vld [vmem:[%s793 + $0x50] sm:$0xff]
    %v6867 = vld [vmem:[%s793 + $0x60] sm:$0xff]
    %v6868 = vld [vmem:[%s793 + $0x70] sm:$0xff]
    %v6869 = vld [vmem:[%s793 + $0xa0] sm:$0xff]
    %v6870 = vld [vmem:[%s793 + $0xb0] sm:$0xff]
    %v6871 = vld [vmem:[%s793 + $0xc0] sm:$0xff]
    %v6872 = vld [vmem:[%s793 + $0xd0] sm:$0xff]
    %v6873 = vld [vmem:[%s793 + $0xe0] sm:$0xff]
    %v6874 = vld [vmem:[%s793 + $0xf0] sm:$0xff]
    %v6875 = vld [vmem:[%s793 + $0x100] sm:$0xff]
    %v6876 = vld [vmem:[%s793 + $0x110] sm:$0xff]
    %s6877 = scalar_lea.vmem [#allocation3], 6528
    %v6878 = vld [vmem:[%s6877] sm:$0xff]
    %v6879 = vld [vmem:[%s6877 + $0x8] sm:$0xff]
    %v6880 = vld [vmem:[%s6877 + $0x10] sm:$0xff]
    %v6881 = vld [vmem:[%s6877 + $0x18] sm:$0xff]
    %v6882 = vld [vmem:[%s6877 + $0x20] sm:$0xff]
    %v6883 = vld [vmem:[%s6877 + $0x28] sm:$0xff]
    %v6884 = vld [vmem:[%s6877 + $0x30] sm:$0xff]
    %v6885 = vld [vmem:[%s6877 + $0x38] sm:$0xff]
    %v6886 = vld [vmem:[%s6877 + $0x40] sm:$0xff]
    %v6887 = vld [vmem:[%s6877 + $0x48] sm:$0xff]
    %v6888 = vld [vmem:[%s6877 + $0x50] sm:$0xff]
    %v6889 = vld [vmem:[%s6877 + $0x58] sm:$0xff]
    %v6890 = vld [vmem:[%s6877 + $0x60] sm:$0xff]
    %v6891 = vld [vmem:[%s6877 + $0x68] sm:$0xff]
    %v6892 = vld [vmem:[%s6877 + $0x70] sm:$0xff]
    %v6893 = vld [vmem:[%s6877 + $0x78] sm:$0xff]
    %6894 = vmatpush.msra.mxu0 %v6893
    %6895 = vmatpush.msra.mxu0 %v6892
    %6896 = vmatpush.msra.mxu0 %v6891
    %6897 = vmatpush.msra.mxu0 %v6890
    %6898 = vmatpush.msra.mxu0 %v6889
    %6899 = vmatpush.msra.mxu0 %v6888
    %6900 = vmatpush.msra.mxu0 %v6887
    %6901 = vmatpush.msra.mxu0 %v6886
    %6902 = vmatpush.msra.mxu0 %v6885
    %6903 = vmatpush.msra.mxu0 %v6884
    %6904 = vmatpush.msra.mxu0 %v6883
    %6905 = vmatpush.msra.mxu0 %v6882
    %6906 = vmatpush.msra.mxu0 %v6881
    %6907 = vmatpush.msra.mxu0 %v6880
    %6908 = vmatpush.msra.mxu0 %v6879
    %6909 = vmatpush.msra.mxu0 %v6878
    %6910 = vmatmul.f32.gmra.mxu0 %v6861
    %v6911 = vpop.f32.mrf.mxu0
    %v6912 = vadd.f32 0.0, %v6911
    %6913 = vmatmul.f32.gmra.mxu0 %v6862
    %v6914 = vpop.f32.mrf.mxu0
    %v6915 = vadd.f32 0.0, %v6914
    %6916 = vmatmul.f32.gmra.mxu0 %v6863
    %v6917 = vpop.f32.mrf.mxu0
    %v6918 = vadd.f32 0.0, %v6917
    %6919 = vmatmul.f32.gmra.mxu0 %v6864
    %v6920 = vpop.f32.mrf.mxu0
    %v6921 = vadd.f32 0.0, %v6920
    %6922 = vmatmul.f32.gmra.mxu0 %v6865
    %v6923 = vpop.f32.mrf.mxu0
    %v6924 = vadd.f32 0.0, %v6923
    %6925 = vmatmul.f32.gmra.mxu0 %v6866
    %v6926 = vpop.f32.mrf.mxu0
    %v6927 = vadd.f32 0.0, %v6926
    %6928 = vmatmul.f32.gmra.mxu0 %v6867
    %v6929 = vpop.f32.mrf.mxu0
    %v6930 = vadd.f32 0.0, %v6929
    %6931 = vmatmul.f32.gmra.mxu0 %v6868
    %v6932 = vpop.f32.mrf.mxu0
    %v6933 = vadd.f32 0.0, %v6932
    %6934 = vmatmul.f32.gmra.mxu0 %v6869
    %v6935 = vpop.f32.mrf.mxu0
    %v6936 = vadd.f32 0.0, %v6935
    %6937 = vmatmul.f32.gmra.mxu0 %v6870
    %v6938 = vpop.f32.mrf.mxu0
    %v6939 = vadd.f32 0.0, %v6938
    %6940 = vmatmul.f32.gmra.mxu0 %v6871
    %v6941 = vpop.f32.mrf.mxu0
    %v6942 = vadd.f32 0.0, %v6941
    %6943 = vmatmul.f32.gmra.mxu0 %v6872
    %v6944 = vpop.f32.mrf.mxu0
    %v6945 = vadd.f32 0.0, %v6944
    %6946 = vmatmul.f32.gmra.mxu0 %v6873
    %v6947 = vpop.f32.mrf.mxu0
    %v6948 = vadd.f32 0.0, %v6947
    %6949 = vmatmul.f32.gmra.mxu0 %v6874
    %v6950 = vpop.f32.mrf.mxu0
    %v6951 = vadd.f32 0.0, %v6950
    %6952 = vmatmul.f32.gmra.mxu0 %v6875
    %v6953 = vpop.f32.mrf.mxu0
    %v6954 = vadd.f32 0.0, %v6953
    %6955 = vmatmul.f32.gmra.mxu0 %v6876
    %v6956 = vpop.f32.mrf.mxu0
    %v6957 = vadd.f32 0.0, %v6956
    %6958 = vdwg.mxu0
    %v6959 = vadd.f32 %v6845, %v6912
    %v6960 = vadd.f32 %v6846, %v6915
    %v6961 = vadd.f32 %v6847, %v6918
    %v6962 = vadd.f32 %v6848, %v6921
    %v6963 = vadd.f32 %v6849, %v6924
    %v6964 = vadd.f32 %v6850, %v6927
    %v6965 = vadd.f32 %v6851, %v6930
    %v6966 = vadd.f32 %v6852, %v6933
    %v6967 = vadd.f32 %v6853, %v6936
    %v6968 = vadd.f32 %v6854, %v6939
    %v6969 = vadd.f32 %v6855, %v6942
    %v6970 = vadd.f32 %v6856, %v6945
    %v6971 = vadd.f32 %v6857, %v6948
    %v6972 = vadd.f32 %v6858, %v6951
    %v6973 = vadd.f32 %v6859, %v6954
    %v6974 = vadd.f32 %v6860, %v6957
    %v6975 = vld [vmem:[%s793 + $0x1] sm:$0xff]
    %v6976 = vld [vmem:[%s793 + $0x11] sm:$0xff]
    %v6977 = vld [vmem:[%s793 + $0x21] sm:$0xff]
    %v6978 = vld [vmem:[%s793 + $0x31] sm:$0xff]
    %v6979 = vld [vmem:[%s793 + $0x41] sm:$0xff]
    %v6980 = vld [vmem:[%s793 + $0x51] sm:$0xff]
    %v6981 = vld [vmem:[%s793 + $0x61] sm:$0xff]
    %v6982 = vld [vmem:[%s793 + $0x71] sm:$0xff]
    %v6983 = vld [vmem:[%s793 + $0xa1] sm:$0xff]
    %v6984 = vld [vmem:[%s793 + $0xb1] sm:$0xff]
    %v6985 = vld [vmem:[%s793 + $0xc1] sm:$0xff]
    %v6986 = vld [vmem:[%s793 + $0xd1] sm:$0xff]
    %v6987 = vld [vmem:[%s793 + $0xe1] sm:$0xff]
    %v6988 = vld [vmem:[%s793 + $0xf1] sm:$0xff]
    %v6989 = vld [vmem:[%s793 + $0x101] sm:$0xff]
    %v6990 = vld [vmem:[%s793 + $0x111] sm:$0xff]
    %s6991 = scalar_lea.vmem [#allocation3], 6656
    %v6992 = vld [vmem:[%s6991] sm:$0xff]
    %v6993 = vld [vmem:[%s6991 + $0x8] sm:$0xff]
    %v6994 = vld [vmem:[%s6991 + $0x10] sm:$0xff]
    %v6995 = vld [vmem:[%s6991 + $0x18] sm:$0xff]
    %v6996 = vld [vmem:[%s6991 + $0x20] sm:$0xff]
    %v6997 = vld [vmem:[%s6991 + $0x28] sm:$0xff]
    %v6998 = vld [vmem:[%s6991 + $0x30] sm:$0xff]
    %v6999 = vld [vmem:[%s6991 + $0x38] sm:$0xff]
    %v7000 = vld [vmem:[%s6991 + $0x40] sm:$0xff]
    %v7001 = vld [vmem:[%s6991 + $0x48] sm:$0xff]
    %v7002 = vld [vmem:[%s6991 + $0x50] sm:$0xff]
    %v7003 = vld [vmem:[%s6991 + $0x58] sm:$0xff]
    %v7004 = vld [vmem:[%s6991 + $0x60] sm:$0xff]
    %v7005 = vld [vmem:[%s6991 + $0x68] sm:$0xff]
    %v7006 = vld [vmem:[%s6991 + $0x70] sm:$0xff]
    %v7007 = vld [vmem:[%s6991 + $0x78] sm:$0xff]
    %7008 = vmatpush.msra.mxu0 %v7007
    %7009 = vmatpush.msra.mxu0 %v7006
    %7010 = vmatpush.msra.mxu0 %v7005
    %7011 = vmatpush.msra.mxu0 %v7004
    %7012 = vmatpush.msra.mxu0 %v7003
    %7013 = vmatpush.msra.mxu0 %v7002
    %7014 = vmatpush.msra.mxu0 %v7001
    %7015 = vmatpush.msra.mxu0 %v7000
    %7016 = vmatpush.msra.mxu0 %v6999
    %7017 = vmatpush.msra.mxu0 %v6998
    %7018 = vmatpush.msra.mxu0 %v6997
    %7019 = vmatpush.msra.mxu0 %v6996
    %7020 = vmatpush.msra.mxu0 %v6995
    %7021 = vmatpush.msra.mxu0 %v6994
    %7022 = vmatpush.msra.mxu0 %v6993
    %7023 = vmatpush.msra.mxu0 %v6992
    %7024 = vmatmul.f32.gmra.mxu0 %v6975
    %v7025 = vpop.f32.mrf.mxu0
    %v7026 = vadd.f32 0.0, %v7025
    %7027 = vmatmul.f32.gmra.mxu0 %v6976
    %v7028 = vpop.f32.mrf.mxu0
    %v7029 = vadd.f32 0.0, %v7028
    %7030 = vmatmul.f32.gmra.mxu0 %v6977
    %v7031 = vpop.f32.mrf.mxu0
    %v7032 = vadd.f32 0.0, %v7031
    %7033 = vmatmul.f32.gmra.mxu0 %v6978
    %v7034 = vpop.f32.mrf.mxu0
    %v7035 = vadd.f32 0.0, %v7034
    %7036 = vmatmul.f32.gmra.mxu0 %v6979
    %v7037 = vpop.f32.mrf.mxu0
    %v7038 = vadd.f32 0.0, %v7037
    %7039 = vmatmul.f32.gmra.mxu0 %v6980
    %v7040 = vpop.f32.mrf.mxu0
    %v7041 = vadd.f32 0.0, %v7040
    %7042 = vmatmul.f32.gmra.mxu0 %v6981
    %v7043 = vpop.f32.mrf.mxu0
    %v7044 = vadd.f32 0.0, %v7043
    %7045 = vmatmul.f32.gmra.mxu0 %v6982
    %v7046 = vpop.f32.mrf.mxu0
    %v7047 = vadd.f32 0.0, %v7046
    %7048 = vmatmul.f32.gmra.mxu0 %v6983
    %v7049 = vpop.f32.mrf.mxu0
    %v7050 = vadd.f32 0.0, %v7049
    %7051 = vmatmul.f32.gmra.mxu0 %v6984
    %v7052 = vpop.f32.mrf.mxu0
    %v7053 = vadd.f32 0.0, %v7052
    %7054 = vmatmul.f32.gmra.mxu0 %v6985
    %v7055 = vpop.f32.mrf.mxu0
    %v7056 = vadd.f32 0.0, %v7055
    %7057 = vmatmul.f32.gmra.mxu0 %v6986
    %v7058 = vpop.f32.mrf.mxu0
    %v7059 = vadd.f32 0.0, %v7058
    %7060 = vmatmul.f32.gmra.mxu0 %v6987
    %v7061 = vpop.f32.mrf.mxu0
    %v7062 = vadd.f32 0.0, %v7061
    %7063 = vmatmul.f32.gmra.mxu0 %v6988
    %v7064 = vpop.f32.mrf.mxu0
    %v7065 = vadd.f32 0.0, %v7064
    %7066 = vmatmul.f32.gmra.mxu0 %v6989
    %v7067 = vpop.f32.mrf.mxu0
    %v7068 = vadd.f32 0.0, %v7067
    %7069 = vmatmul.f32.gmra.mxu0 %v6990
    %v7070 = vpop.f32.mrf.mxu0
    %v7071 = vadd.f32 0.0, %v7070
    %7072 = vdwg.mxu0
    %v7073 = vadd.f32 %v6959, %v7026
    %v7074 = vadd.f32 %v6960, %v7029
    %v7075 = vadd.f32 %v6961, %v7032
    %v7076 = vadd.f32 %v6962, %v7035
    %v7077 = vadd.f32 %v6963, %v7038
    %v7078 = vadd.f32 %v6964, %v7041
    %v7079 = vadd.f32 %v6965, %v7044
    %v7080 = vadd.f32 %v6966, %v7047
    %v7081 = vadd.f32 %v6967, %v7050
    %v7082 = vadd.f32 %v6968, %v7053
    %v7083 = vadd.f32 %v6969, %v7056
    %v7084 = vadd.f32 %v6970, %v7059
    %v7085 = vadd.f32 %v6971, %v7062
    %v7086 = vadd.f32 %v6972, %v7065
    %v7087 = vadd.f32 %v6973, %v7068
    %v7088 = vadd.f32 %v6974, %v7071
    %v7089 = vld [vmem:[%s793 + $0x2] sm:$0xff]
    %v7090 = vld [vmem:[%s793 + $0x12] sm:$0xff]
    %v7091 = vld [vmem:[%s793 + $0x22] sm:$0xff]
    %v7092 = vld [vmem:[%s793 + $0x32] sm:$0xff]
    %v7093 = vld [vmem:[%s793 + $0x42] sm:$0xff]
    %v7094 = vld [vmem:[%s793 + $0x52] sm:$0xff]
    %v7095 = vld [vmem:[%s793 + $0x62] sm:$0xff]
    %v7096 = vld [vmem:[%s793 + $0x72] sm:$0xff]
    %v7097 = vld [vmem:[%s793 + $0xa2] sm:$0xff]
    %v7098 = vld [vmem:[%s793 + $0xb2] sm:$0xff]
    %v7099 = vld [vmem:[%s793 + $0xc2] sm:$0xff]
    %v7100 = vld [vmem:[%s793 + $0xd2] sm:$0xff]
    %v7101 = vld [vmem:[%s793 + $0xe2] sm:$0xff]
    %v7102 = vld [vmem:[%s793 + $0xf2] sm:$0xff]
    %v7103 = vld [vmem:[%s793 + $0x102] sm:$0xff]
    %v7104 = vld [vmem:[%s793 + $0x112] sm:$0xff]
    %s7105 = scalar_lea.vmem [#allocation3], 6784
    %v7106 = vld [vmem:[%s7105] sm:$0xff]
    %v7107 = vld [vmem:[%s7105 + $0x8] sm:$0xff]
    %v7108 = vld [vmem:[%s7105 + $0x10] sm:$0xff]
    %v7109 = vld [vmem:[%s7105 + $0x18] sm:$0xff]
    %v7110 = vld [vmem:[%s7105 + $0x20] sm:$0xff]
    %v7111 = vld [vmem:[%s7105 + $0x28] sm:$0xff]
    %v7112 = vld [vmem:[%s7105 + $0x30] sm:$0xff]
    %v7113 = vld [vmem:[%s7105 + $0x38] sm:$0xff]
    %v7114 = vld [vmem:[%s7105 + $0x40] sm:$0xff]
    %v7115 = vld [vmem:[%s7105 + $0x48] sm:$0xff]
    %v7116 = vld [vmem:[%s7105 + $0x50] sm:$0xff]
    %v7117 = vld [vmem:[%s7105 + $0x58] sm:$0xff]
    %v7118 = vld [vmem:[%s7105 + $0x60] sm:$0xff]
    %v7119 = vld [vmem:[%s7105 + $0x68] sm:$0xff]
    %v7120 = vld [vmem:[%s7105 + $0x70] sm:$0xff]
    %v7121 = vld [vmem:[%s7105 + $0x78] sm:$0xff]
    %7122 = vmatpush.msra.mxu0 %v7121
    %7123 = vmatpush.msra.mxu0 %v7120
    %7124 = vmatpush.msra.mxu0 %v7119
    %7125 = vmatpush.msra.mxu0 %v7118
    %7126 = vmatpush.msra.mxu0 %v7117
    %7127 = vmatpush.msra.mxu0 %v7116
    %7128 = vmatpush.msra.mxu0 %v7115
    %7129 = vmatpush.msra.mxu0 %v7114
    %7130 = vmatpush.msra.mxu0 %v7113
    %7131 = vmatpush.msra.mxu0 %v7112
    %7132 = vmatpush.msra.mxu0 %v7111
    %7133 = vmatpush.msra.mxu0 %v7110
    %7134 = vmatpush.msra.mxu0 %v7109
    %7135 = vmatpush.msra.mxu0 %v7108
    %7136 = vmatpush.msra.mxu0 %v7107
    %7137 = vmatpush.msra.mxu0 %v7106
    %7138 = vmatmul.f32.gmra.mxu0 %v7089
    %v7139 = vpop.f32.mrf.mxu0
    %v7140 = vadd.f32 0.0, %v7139
    %7141 = vmatmul.f32.gmra.mxu0 %v7090
    %v7142 = vpop.f32.mrf.mxu0
    %v7143 = vadd.f32 0.0, %v7142
    %7144 = vmatmul.f32.gmra.mxu0 %v7091
    %v7145 = vpop.f32.mrf.mxu0
    %v7146 = vadd.f32 0.0, %v7145
    %7147 = vmatmul.f32.gmra.mxu0 %v7092
    %v7148 = vpop.f32.mrf.mxu0
    %v7149 = vadd.f32 0.0, %v7148
    %7150 = vmatmul.f32.gmra.mxu0 %v7093
    %v7151 = vpop.f32.mrf.mxu0
    %v7152 = vadd.f32 0.0, %v7151
    %7153 = vmatmul.f32.gmra.mxu0 %v7094
    %v7154 = vpop.f32.mrf.mxu0
    %v7155 = vadd.f32 0.0, %v7154
    %7156 = vmatmul.f32.gmra.mxu0 %v7095
    %v7157 = vpop.f32.mrf.mxu0
    %v7158 = vadd.f32 0.0, %v7157
    %7159 = vmatmul.f32.gmra.mxu0 %v7096
    %v7160 = vpop.f32.mrf.mxu0
    %v7161 = vadd.f32 0.0, %v7160
    %7162 = vmatmul.f32.gmra.mxu0 %v7097
    %v7163 = vpop.f32.mrf.mxu0
    %v7164 = vadd.f32 0.0, %v7163
    %7165 = vmatmul.f32.gmra.mxu0 %v7098
    %v7166 = vpop.f32.mrf.mxu0
    %v7167 = vadd.f32 0.0, %v7166
    %7168 = vmatmul.f32.gmra.mxu0 %v7099
    %v7169 = vpop.f32.mrf.mxu0
    %v7170 = vadd.f32 0.0, %v7169
    %7171 = vmatmul.f32.gmra.mxu0 %v7100
    %v7172 = vpop.f32.mrf.mxu0
    %v7173 = vadd.f32 0.0, %v7172
    %7174 = vmatmul.f32.gmra.mxu0 %v7101
    %v7175 = vpop.f32.mrf.mxu0
    %v7176 = vadd.f32 0.0, %v7175
    %7177 = vmatmul.f32.gmra.mxu0 %v7102
    %v7178 = vpop.f32.mrf.mxu0
    %v7179 = vadd.f32 0.0, %v7178
    %7180 = vmatmul.f32.gmra.mxu0 %v7103
    %v7181 = vpop.f32.mrf.mxu0
    %v7182 = vadd.f32 0.0, %v7181
    %7183 = vmatmul.f32.gmra.mxu0 %v7104
    %v7184 = vpop.f32.mrf.mxu0
    %v7185 = vadd.f32 0.0, %v7184
    %7186 = vdwg.mxu0
    %v7187 = vadd.f32 %v7073, %v7140
    %v7188 = vadd.f32 %v7074, %v7143
    %v7189 = vadd.f32 %v7075, %v7146
    %v7190 = vadd.f32 %v7076, %v7149
    %v7191 = vadd.f32 %v7077, %v7152
    %v7192 = vadd.f32 %v7078, %v7155
    %v7193 = vadd.f32 %v7079, %v7158
    %v7194 = vadd.f32 %v7080, %v7161
    %v7195 = vadd.f32 %v7081, %v7164
    %v7196 = vadd.f32 %v7082, %v7167
    %v7197 = vadd.f32 %v7083, %v7170
    %v7198 = vadd.f32 %v7084, %v7173
    %v7199 = vadd.f32 %v7085, %v7176
    %v7200 = vadd.f32 %v7086, %v7179
    %v7201 = vadd.f32 %v7087, %v7182
    %v7202 = vadd.f32 %v7088, %v7185
    %v7203 = vadd.f32 %v7187, %v7188
    %v7204 = vadd.f32 %v7203, %v7189
    %v7205 = vadd.f32 %v7204, %v7190
    %v7206 = vadd.f32 %v7205, %v7191
    %v7207 = vadd.f32 %v7206, %v7192
    %v7208 = vadd.f32 %v7207, %v7193
    %v7209 = vadd.f32 %v7208, %v7194
    %v7210 = vadd.f32 %v7209, %v7195
    %v7211 = vadd.f32 %v7210, %v7196
    %v7212 = vadd.f32 %v7211, %v7197
    %v7213 = vadd.f32 %v7212, %v7198
    %v7214 = vadd.f32 %v7213, %v7199
    %v7215 = vadd.f32 %v7214, %v7200
    %v7216 = vadd.f32 %v7215, %v7201
    %v7217 = vadd.f32 %v7216, %v7202
    %v7218 = vrot.slane %v7217, 4
    %v7219 = vadd.f32 %v7217, %v7218
    %v7220 = vrot.slane %v7219, 2
    %v7221 = vadd.f32 %v7219, %v7220
    %v7222 = vrot.slane %v7221, 1
    %v7223 = vadd.f32 %v7221, %v7222
    %v7224 = vmul.f32 %v7223, %v1163
    %v7225 = vsub.f32 %v7187, %v7224
    %v7226 = vsub.f32 %v7188, %v7224
    %v7227 = vsub.f32 %v7189, %v7224
    %v7228 = vsub.f32 %v7190, %v7224
    %v7229 = vsub.f32 %v7191, %v7224
    %v7230 = vsub.f32 %v7192, %v7224
    %v7231 = vsub.f32 %v7193, %v7224
    %v7232 = vsub.f32 %v7194, %v7224
    %v7233 = vsub.f32 %v7195, %v7224
    %v7234 = vsub.f32 %v7196, %v7224
    %v7235 = vsub.f32 %v7197, %v7224
    %v7236 = vsub.f32 %v7198, %v7224
    %v7237 = vsub.f32 %v7199, %v7224
    %v7238 = vsub.f32 %v7200, %v7224
    %v7239 = vsub.f32 %v7201, %v7224
    %v7240 = vsub.f32 %v7202, %v7224
    %v7241 = vmul.f32 %v7225, %v7225
    %v7242 = vmul.f32 %v7226, %v7226
    %v7243 = vmul.f32 %v7227, %v7227
    %v7244 = vmul.f32 %v7228, %v7228
    %v7245 = vmul.f32 %v7229, %v7229
    %v7246 = vmul.f32 %v7230, %v7230
    %v7247 = vmul.f32 %v7231, %v7231
    %v7248 = vmul.f32 %v7232, %v7232
    %v7249 = vmul.f32 %v7233, %v7233
    %v7250 = vmul.f32 %v7234, %v7234
    %v7251 = vmul.f32 %v7235, %v7235
    %v7252 = vmul.f32 %v7236, %v7236
    %v7253 = vmul.f32 %v7237, %v7237
    %v7254 = vmul.f32 %v7238, %v7238
    %v7255 = vmul.f32 %v7239, %v7239
    %v7256 = vmul.f32 %v7240, %v7240
    %v7257 = vadd.f32 %v7241, %v7242
    %v7258 = vadd.f32 %v7257, %v7243
    %v7259 = vadd.f32 %v7258, %v7244
    %v7260 = vadd.f32 %v7259, %v7245
    %v7261 = vadd.f32 %v7260, %v7246
    %v7262 = vadd.f32 %v7261, %v7247
    %v7263 = vadd.f32 %v7262, %v7248
    %v7264 = vadd.f32 %v7263, %v7249
    %v7265 = vadd.f32 %v7264, %v7250
    %v7266 = vadd.f32 %v7265, %v7251
    %v7267 = vadd.f32 %v7266, %v7252
    %v7268 = vadd.f32 %v7267, %v7253
    %v7269 = vadd.f32 %v7268, %v7254
    %v7270 = vadd.f32 %v7269, %v7255
    %v7271 = vadd.f32 %v7270, %v7256
    %v7272 = vrot.slane %v7271, 4
    %v7273 = vadd.f32 %v7271, %v7272
    %v7274 = vrot.slane %v7273, 2
    %v7275 = vadd.f32 %v7273, %v7274
    %v7276 = vrot.slane %v7275, 1
    %v7277 = vadd.f32 %v7275, %v7276
    %v7278 = vmul.f32 %v7277, %v1163
    %v7279 = vld [vmem:[#allocation6 + $0x5] sm:$0x1]
    %v7280 = vld [vmem:[#allocation6 + $0xb] sm:$0x1]
    %v7281 = vadd.f32 %v7278, 1e-05
    %v7282 = vrsqrt.pop %v7281
    %v7283 = vmul.f32 %v7282, %v7281
    %v7284 = vmul.f32 %v7283, %v7282
    %v7285 = vmul.f32 0.5, %v7284
    %v7286 = vsub.f32 1.5, %v7285
    %v7287 = vmul.f32 %v7282, %v7286
    %vm7288 = vweird.f32 %v7281
    %vm7289 = vweird.f32 %v7282
    %vm7290 = vmor %vm7288, %vm7289
    %v7291 = vsel %vm7290, %v7282, %v7287
    %v7292 = vmul.f32 %v7225, %v7291
    %v7293 = vmul.f32 %v7226, %v7291
    %v7294 = vmul.f32 %v7227, %v7291
    %v7295 = vmul.f32 %v7228, %v7291
    %v7296 = vmul.f32 %v7229, %v7291
    %v7297 = vmul.f32 %v7230, %v7291
    %v7298 = vmul.f32 %v7231, %v7291
    %v7299 = vmul.f32 %v7232, %v7291
    %v7300 = vmul.f32 %v7233, %v7291
    %v7301 = vmul.f32 %v7234, %v7291
    %v7302 = vmul.f32 %v7235, %v7291
    %v7303 = vmul.f32 %v7236, %v7291
    %v7304 = vmul.f32 %v7237, %v7291
    %v7305 = vmul.f32 %v7238, %v7291
    %v7306 = vmul.f32 %v7239, %v7291
    %v7307 = vmul.f32 %v7240, %v7291
    %v7308 = vperm.slane %v7279, 0
    %v7309 = vmul.f32 %v7292, %v7308
    %v7310 = vmul.f32 %v7293, %v7308
    %v7311 = vmul.f32 %v7294, %v7308
    %v7312 = vmul.f32 %v7295, %v7308
    %v7313 = vmul.f32 %v7296, %v7308
    %v7314 = vmul.f32 %v7297, %v7308
    %v7315 = vmul.f32 %v7298, %v7308
    %v7316 = vmul.f32 %v7299, %v7308
    %v7317 = vmul.f32 %v7300, %v7308
    %v7318 = vmul.f32 %v7301, %v7308
    %v7319 = vmul.f32 %v7302, %v7308
    %v7320 = vmul.f32 %v7303, %v7308
    %v7321 = vmul.f32 %v7304, %v7308
    %v7322 = vmul.f32 %v7305, %v7308
    %v7323 = vmul.f32 %v7306, %v7308
    %v7324 = vmul.f32 %v7307, %v7308
    %v7325 = vperm.slane %v7280, 0
    %v7326 = vadd.f32 %v7309, %v7325
    %v7327 = vadd.f32 %v7310, %v7325
    %v7328 = vadd.f32 %v7311, %v7325
    %v7329 = vadd.f32 %v7312, %v7325
    %v7330 = vadd.f32 %v7313, %v7325
    %v7331 = vadd.f32 %v7314, %v7325
    %v7332 = vadd.f32 %v7315, %v7325
    %v7333 = vadd.f32 %v7316, %v7325
    %v7334 = vadd.f32 %v7317, %v7325
    %v7335 = vadd.f32 %v7318, %v7325
    %v7336 = vadd.f32 %v7319, %v7325
    %v7337 = vadd.f32 %v7320, %v7325
    %v7338 = vadd.f32 %v7321, %v7325
    %v7339 = vadd.f32 %v7322, %v7325
    %v7340 = vadd.f32 %v7323, %v7325
    %v7341 = vadd.f32 %v7324, %v7325
    %v7342 = vmax.f32 %v7326, 0.0
    %v7343 = vmax.f32 %v7327, 0.0
    %v7344 = vmax.f32 %v7328, 0.0
    %v7345 = vmax.f32 %v7329, 0.0
    %v7346 = vmax.f32 %v7330, 0.0
    %v7347 = vmax.f32 %v7331, 0.0
    %v7348 = vmax.f32 %v7332, 0.0
    %v7349 = vmax.f32 %v7333, 0.0
    %v7350 = vmax.f32 %v7334, 0.0
    %v7351 = vmax.f32 %v7335, 0.0
    %v7352 = vmax.f32 %v7336, 0.0
    %v7353 = vmax.f32 %v7337, 0.0
    %v7354 = vmax.f32 %v7338, 0.0
    %v7355 = vmax.f32 %v7339, 0.0
    %v7356 = vmax.f32 %v7340, 0.0
    %v7357 = vmax.f32 %v7341, 0.0
    %v7358 = vadd.f32 %v7342, %v7343
    %v7359 = vadd.f32 %v7358, %v7344
    %v7360 = vadd.f32 %v7359, %v7345
    %v7361 = vadd.f32 %v7360, %v7346
    %v7362 = vadd.f32 %v7361, %v7347
    %v7363 = vadd.f32 %v7362, %v7348
    %v7364 = vadd.f32 %v7363, %v7349
    %v7365 = vrot.slane %v7364, 4
    %v7366 = vadd.f32 %v7364, %v7365
    %v7367 = vrot.slane %v7366, 2
    %v7368 = vadd.f32 %v7366, %v7367
    %v7369 = vrot.slane %v7368, 1
    %v7370 = vadd.f32 %v7368, %v7369
    %v7371 = vadd.f32 %v7350, %v7351
    %v7372 = vadd.f32 %v7371, %v7352
    %v7373 = vadd.f32 %v7372, %v7353
    %v7374 = vadd.f32 %v7373, %v7354
    %v7375 = vadd.f32 %v7374, %v7355
    %v7376 = vadd.f32 %v7375, %v7356
    %v7377 = vadd.f32 %v7376, %v7357
    %v7378 = vrot.slane %v7377, 4
    %v7379 = vadd.f32 %v7377, %v7378
    %v7380 = vrot.slane %v7379, 2
    %v7381 = vadd.f32 %v7379, %v7380
    %v7382 = vrot.slane %v7381, 1
    %v7383 = vadd.f32 %v7381, %v7382
    %v7384 = vrcp.pop 64.0
    %v7385 = vmul.f32 64.0, %v7384
    %v7386 = vsub.f32 1.0, %v7385
    %v7387 = vmul.f32 %v7384, %v7386
    %v7388 = vadd.f32 %v7384, %v7387
    %vm7389 = vweird.f32 %v7384
    %v7390 = vsel %vm7389, %v7384, %v7388
    %v7391 = vmul.f32 %v7370, %v7390
    %v7392 = vmul.f32 %v7383, %v7390
    %v7393 = vld [vmem:[#allocation6 + $0xc] sm:$0x1]
    %v7394 = vld [vmem:[#allocation6 + $0xd] sm:$0x1]
    %v7395 = vperm.slane %v7393, 0
    %v7396 = vmul.f32 %v7391, %v7395
    %v7397 = vmul.f32 %v7392, %v7395
    %v7400 = vrot.slane %v7397, 7
    %vm7401 = vcmask 1041409
    %v7402 = vsel %vm7401, %v7400, %v7396
    %vm7404 = vcmask 1041408
    %v7405 = vsel %vm7404, %v7402, 0.0
    %7406 = vadd.xlane.f32.xlu0 %v7405
    %v7407 = vpop.xlane.xlu0 %7406
    %v7408 = vperm.slane %v7394, 0
    %v7409 = vadd.f32 %v7407, %v7408
    %v7410 = vsub.f32 0.0, %v7409
    %v7411 = vmul.f32 %v7410, 1.442695
    %v7412 = vpow.pop %v7411
    %v7413 = vadd.f32 %v7412, 1.0
    %v7414 = vrcp.pop %v7413
    %v7415 = vmul.f32 %v7413, %v7414
    %v7416 = vsub.f32 1.0, %v7415
    %v7417 = vmul.f32 %v7414, %v7416
    %v7418 = vadd.f32 %v7414, %v7417
    %vm7419 = vweird.f32 %v7413
    %vm7420 = vweird.f32 %v7414
    %vm7421 = vmor %vm7419, %vm7420
    %v7422 = vsel %vm7421, %v7414, %v7418
    %v7423 = vand.u32 2147483647, %v7413
    %vm7424 = vcmp.eq.f32.partialorder %v7423, 8.507059e+37
    %v7425 = vand.u32 %v7413, 2147483648
    %v7426 = vor.u32 1.1754944e-38, %v7425
    %v7427 = vsel %vm7424, %v7426, %v7422
    %v7428 = vmul.f32 1.0, %v7427
    %vm7429 = vcmask 1024
    %7430 = vst.msk [vmem:[%s4] sm:$0x3] %vm7429, %v7428
    // Predicated region
    $region30: #{net_forward.1} parent=1 // pred_check
      _
    $region31: #{net_forward.1} parent=1 // pred_check_branch
      %7432 = sbr.rel (0) target = $region33
    $region32: #{net_forward.1} parent=1 // pred_region
      _
    $region33: #{net_forward.1} parent=1 // pred_fallthru
      _
    // Predicated region
    $region34: #{net_forward.1} parent=1 // pred_check
      _
    $region35: #{net_forward.1} parent=1 // pred_check_branch
      %7434 = sbr.rel (0) target = $region37
    $region36: #{net_forward.1} parent=1 // pred_region
      %7436 = vsyncadd [#allocation5], 0
      %s7437 = sshll.u32 [#allocation9], 4
      %s7438 = int_to_ptr.vmem [resolvable:$true] %s7437
      %s7439 = sshll.u32 %s5, 4
      %s7440 = int_to_ptr.hbm [resolvable:$true] %s7439
      %7445 = dma.vmem_to_hbm [thread:$0]  %s7438, 2048, %s7440, [#allocation5], 128, 128, 8
    $region37: #{net_forward.1} parent=1 // pred_fallthru
      _
    // Predicated region
    $region38: #{net_forward.1} parent=1 // pred_check
      _
    $region39: #{net_forward.1} parent=1 // pred_check_branch
      %7447 = sbr.rel (0) target = $region41
    $region40: #{net_forward.1} parent=1 // pred_region
      %7449 = vsyncadd [#allocation11], 0
      %s7450 = sshll.u32 [#allocation10], 4
      %s7451 = int_to_ptr.vmem [resolvable:$true] %s7450
      %s7452 = sshll.u32 %s6, 4
      %s7453 = int_to_ptr.hbm [resolvable:$true] %s7452
      %7458 = dma.vmem_to_hbm [thread:$0]  %s7451, 2048, %s7453, [#allocation11], 128, 128, 8
    $region41: #{net_forward.1} parent=1 // pred_fallthru
      _
    // Predicated region
    $region42: #{net_forward.1} parent=1 // pred_check
      _
    $region43: #{net_forward.1} parent=1 // pred_check_branch
      %7460 = sbr.rel (0) target = $region45
    $region44: #{net_forward.1} parent=1 // pred_region
      _
    $region45: #{net_forward.1} parent=1 // pred_fallthru
      _
    // Predicated region
    $region46: #{net_forward.1} parent=1 // pred_check
      _
    $region47: #{net_forward.1} parent=1 // pred_check_branch
      %7462 = sbr.rel (0) target = $region49
    $region48: #{net_forward.1} parent=1 // pred_region
      %7464 = dma.done [#allocation5], 2048
    $region49: #{net_forward.1} parent=1 // pred_fallthru
      _
    // Predicated region
    $region50: #{net_forward.1} parent=1 // pred_check
      _
    $region51: #{net_forward.1} parent=1 // pred_check_branch
      %7466 = sbr.rel (0) target = $region53
    $region52: #{net_forward.1} parent=1 // pred_region
      %7468 = dma.done [#allocation11], 2048
    $region53: #{net_forward.1} parent=1 // pred_fallthru
      _
    %7469 = vsyncpa [#allocation4], 1
    %7470 = vsyncpa [#allocation7], 1
    %7471 = vsyncpa [#allocation5], 1
    %7472 = vsyncpa [#allocation11], 1

</llo_original>
